<compile_context>
chip_gen: v7x
topology: tpu7x:2x2x1
jax: 0.10.0
libtpu: 0.0.40
codegen_flags: <defaults>
</compile_context>

<pallas_src>
import functools

import jax
import jax.numpy as jnp
from jax.experimental import pallas as pl
from jax.experimental.pallas import tpu as pltpu

_VMEM_LIMIT_BYTES = 48 * 1024 * 1024  # explicit budget; safe on v5e/v6e/v7x
_BN_EPS = 1e-5
_LRELU_SLOPE = 0.005


def _cparams(sem):
    return pltpu.CompilerParams(dimension_semantics=sem,
                                vmem_limit_bytes=_VMEM_LIMIT_BYTES)


def _sigmoid(z):
    return 1.0 / (1.0 + jnp.exp(-z))


# ----------------------------------------------------------------------------
# Pallas kernels
# ----------------------------------------------------------------------------
def _conv_stats_kernel(x_ref, w_ref, b_ref, y_ref, s_ref, ss_ref,
                       *, negative_slope):
    """Pass 1 of conv+act+BN: bf16 MXU matmul (f32 accum) + bias (+ LeakyReLU)
    and per-tile partial BN statistics (sum, sum of squares)."""
    y = jnp.dot(x_ref[...], w_ref[...], preferred_element_type=jnp.float32)
    y = y + b_ref[...]                                   # (TM, Cout) f32
    if negative_slope is not None:
        y = jnp.where(y >= 0.0, y, negative_slope * y)   # LeakyReLU
    y_ref[...] = y
    s_ref[...] = jnp.sum(y, axis=0, keepdims=True).reshape(s_ref.shape)
    ss_ref[...] = jnp.sum(y * y, axis=0, keepdims=True).reshape(ss_ref.shape)


def _bn_apply_kernel(y_ref, aff_ref, o_ref):
    """Pass 2: y * scale + shift (scale/shift packed in one (2, Cout) array)."""
    o_ref[...] = y_ref[...] * aff_ref[0:1, :] + aff_ref[1:2, :]


def _bn_apply_res_kernel(y_ref, aff_ref, r_ref, o_ref):
    """Pass 2 with fused residual add (ResBlock tail)."""
    o_ref[...] = y_ref[...] * aff_ref[0:1, :] + aff_ref[1:2, :] + r_ref[...]


def _channel_attn_kernel(x_ref, w1_ref, b1_ref, w2_ref, b2_ref, o_ref):
    """ChannelAttention: global max/avg pool over HW + shared MLP + sigmoid
    gate + multiply, for one batch element per grid step."""
    x = x_ref[0]                                          # (HW, C)
    mx = jnp.max(x, axis=0, keepdims=True)                # (1, C)
    av = jnp.sum(x, axis=0, keepdims=True) * (1.0 / x.shape[0])
    w1 = w1_ref[...]
    b1 = b1_ref[...]
    w2 = w2_ref[...]
    b2 = b2_ref[...]

    def mlp(v):
        h1 = jnp.dot(v, w1, preferred_element_type=jnp.float32) + b1
        h1 = jnp.maximum(h1, 0.0)
        return jnp.dot(h1, w2, preferred_element_type=jnp.float32) + b2

    s = _sigmoid(mlp(mx) + mlp(av))                       # (1, C)
    o_ref[...] = (x * s).reshape(o_ref.shape)


def _channel_pool_kernel(x_ref, mx_ref, mn_ref):
    """ChannelPool: max and mean over channels (lane reduce)."""
    x = x_ref[0]                                          # (HW, C)
    mx_ref[...] = jnp.max(x, axis=1, keepdims=True).reshape(mx_ref.shape)
    mn_ref[...] = (jnp.sum(x, axis=1, keepdims=True)
                   * (1.0 / x.shape[1])).reshape(mn_ref.shape)


def _spatial_conv_stats_kernel(x_ref, w_ref, y_ref, s_ref, ss_ref):
    """7x7 (2 -> 1) conv as broadcast-multiply + lane reduce (VPU/XLU; an MXU
    matmul with a 1-wide output would waste the array), plus partial BN stats."""
    y = jnp.sum(x_ref[...] * w_ref[...], axis=1, keepdims=True)   # (TM, 1)
    y_ref[...] = y
    s_ref[...] = jnp.sum(y, axis=0, keepdims=True).reshape(s_ref.shape)
    ss_ref[...] = jnp.sum(y * y, axis=0, keepdims=True).reshape(ss_ref.shape)


def _spatial_gate_kernel(y_ref, aff_ref, cnn_ref, tf_ref, cnn_o_ref, prod_o_ref):
    """BN(1ch) + sigmoid spatial gate, fused with cnn*gate and tf*(cnn*gate)."""
    gate = _sigmoid(y_ref[...] * aff_ref[:, 0:1] + aff_ref[:, 1:2])  # (TM, 1)
    cnn_att = cnn_ref[...] * gate                                    # (TM, C)
    cnn_o_ref[...] = cnn_att
    prod_o_ref[...] = cnn_att * tf_ref[...]


# ----------------------------------------------------------------------------
# Helpers / wrappers
# ----------------------------------------------------------------------------
def _choose_tm(m):
    for t in (256, 128, 64, 32, 16, 8):
        if m % t == 0:
            return t
    return m


def _im2col(x_nhwc, ksize):
    """(N,H,W,Cin) -> (N*H*W, k*k*Cin); tap order (dy, dx) outer, cin inner."""
    n, h, w, cin = x_nhwc.shape
    p = ksize // 2
    xp = jnp.pad(x_nhwc, ((0, 0), (p, p), (p, p), (0, 0)))
    cols = []
    for dy in range(ksize):
        for dx in range(ksize):
            cols.append(xp[:, dy:dy + h, dx:dx + w, :])
    xcol = jnp.concatenate(cols, axis=-1)
    return xcol.reshape(n * h * w, ksize * ksize * cin)


def _bn_affine(s_part, ss_part, m, gamma, beta, eps=_BN_EPS):
    """Reduce per-tile partial sums -> packed BN scale/shift (training stats)."""
    s = jnp.sum(s_part[:, 0, :], axis=0)
    ss = jnp.sum(ss_part[:, 0, :], axis=0)
    mean = s / m
    var = jnp.maximum(ss / m - mean * mean, 0.0)       # biased variance
    scale = gamma * jax.lax.rsqrt(var + eps)
    shift = beta - mean * scale
    return scale, shift


def _bn_apply(y, scale, shift, residual=None):
    m, cout = y.shape
    tm = _choose_tm(m)
    n_m = m // tm
    aff = jnp.stack([scale, shift], axis=0).astype(jnp.float32)   # (2, Cout)
    if residual is None:
        return pl.pallas_call(
            _bn_apply_kernel,
            out_shape=jax.ShapeDtypeStruct((m, cout), jnp.float32),
            grid=(n_m,),
            in_specs=[pl.BlockSpec((tm, cout), lambda i: (i, 0)),
                      pl.BlockSpec((2, cout), lambda i: (0, 0))],
            out_specs=pl.BlockSpec((tm, cout), lambda i: (i, 0)),
            compiler_params=_cparams(("parallel",)),
        )(y, aff)
    return pl.pallas_call(
        _bn_apply_res_kernel,
        out_shape=jax.ShapeDtypeStruct((m, cout), jnp.float32),
        grid=(n_m,),
        in_specs=[pl.BlockSpec((tm, cout), lambda i: (i, 0)),
                  pl.BlockSpec((2, cout), lambda i: (0, 0)),
                  pl.BlockSpec((tm, cout), lambda i: (i, 0))],
        out_specs=pl.BlockSpec((tm, cout), lambda i: (i, 0)),
        compiler_params=_cparams(("parallel",)),
    )(y, aff, residual.astype(jnp.float32))


def conv3x3_lrelu_bn(x_nhwc, w, b, gamma, beta, residual=None):
    """Conv2d(3x3, pad=1) + LeakyReLU(0.005) + BatchNorm2d (training stats)."""
    n, h, wd, cin = x_nhwc.shape
    cout = w.shape[-1]
    m = n * h * wd
    k = 9 * cin

    xcol = _im2col(x_nhwc, 3).astype(jnp.bfloat16)       # bf16 MXU operand
    wmat = w.reshape(k, cout).astype(jnp.bfloat16)

    tm = _choose_tm(m)
    n_m = m // tm
    kern = functools.partial(_conv_stats_kernel, negative_slope=_LRELU_SLOPE)
    y, s_p, ss_p = pl.pallas_call(
        kern,
        out_shape=(jax.ShapeDtypeStruct((m, cout), jnp.float32),
                   jax.ShapeDtypeStruct((n_m, 1, cout), jnp.float32),
                   jax.ShapeDtypeStruct((n_m, 1, cout), jnp.float32)),
        grid=(n_m,),
        in_specs=[pl.BlockSpec((tm, k), lambda i: (i, 0)),
                  pl.BlockSpec((k, cout), lambda i: (0, 0)),
                  pl.BlockSpec((1, cout), lambda i: (0, 0))],
        out_specs=(pl.BlockSpec((tm, cout), lambda i: (i, 0)),
                   pl.BlockSpec((1, 1, cout), lambda i: (i, 0, 0)),
                   pl.BlockSpec((1, 1, cout), lambda i: (i, 0, 0))),
        compiler_params=_cparams(("parallel",)),
    )(xcol, wmat, b.reshape(1, cout).astype(jnp.float32))

    scale, shift = _bn_affine(s_p, ss_p, m, gamma, beta)
    res2d = None if residual is None else residual.reshape(m, cout)
    out = _bn_apply(y, scale, shift, res2d)
    return out.reshape(n, h, wd, cout)


def channel_attention(x_flat, ca):
    """x_flat: (N, HW, C) -> (N, HW, C) channel-gated."""
    n, hw, c = x_flat.shape
    ch = ca["w1"].shape[1]
    return pl.pallas_call(
        _channel_attn_kernel,
        out_shape=jax.ShapeDtypeStruct((n, hw, c), jnp.float32),
        grid=(n,),
        in_specs=[pl.BlockSpec((1, hw, c), lambda i: (i, 0, 0)),
                  pl.BlockSpec((c, ch), lambda i: (0, 0)),
                  pl.BlockSpec((1, ch), lambda i: (0, 0)),
                  pl.BlockSpec((ch, c), lambda i: (0, 0)),
                  pl.BlockSpec((1, c), lambda i: (0, 0))],
        out_specs=pl.BlockSpec((1, hw, c), lambda i: (i, 0, 0)),
        compiler_params=_cparams(("parallel",)),
    )(x_flat, ca["w1"], ca["b1"].reshape(1, ch), ca["w2"], ca["b2"].reshape(1, c))


def spatial_attention_and_mul(cnn_flat, tf_att_flat, sa, h, w):
    """SpatialAttention on cnn, fused with the tf*cnn product.

    cnn_flat, tf_att_flat: (N, HW, C). Returns (cnn_att, tf*cnn_att) as (M, C).
    """
    n, hw, c = cnn_flat.shape
    m = n * hw
    kk = 49 * 2

    # ChannelPool (max & mean over channels).
    mx, mn = pl.pallas_call(
        _channel_pool_kernel,
        out_shape=(jax.ShapeDtypeStruct((n, hw, 1), jnp.float32),
                   jax.ShapeDtypeStruct((n, hw, 1), jnp.float32)),
        grid=(n,),
        in_specs=[pl.BlockSpec((1, hw, c), lambda i: (i, 0, 0))],
        out_specs=(pl.BlockSpec((1, hw, 1), lambda i: (i, 0, 0)),
                   pl.BlockSpec((1, hw, 1), lambda i: (i, 0, 0))),
        compiler_params=_cparams(("parallel",)),
    )(cnn_flat)
    pooled = jnp.concatenate([mx, mn], axis=-1).reshape(n, h, w, 2)   # glue

    # 7x7 conv (2 -> 1, no bias) + partial BN stats.
    xcol7 = _im2col(pooled, 7)                           # (M, 98) f32
    w7 = sa["w7"].reshape(1, kk).astype(jnp.float32)
    tm = _choose_tm(m)
    n_m = m // tm
    y7, s_p, ss_p = pl.pallas_call(
        _spatial_conv_stats_kernel,
        out_shape=(jax.ShapeDtypeStruct((m, 1), jnp.float32),
                   jax.ShapeDtypeStruct((n_m, 1, 1), jnp.float32),
                   jax.ShapeDtypeStruct((n_m, 1, 1), jnp.float32)),
        grid=(n_m,),
        in_specs=[pl.BlockSpec((tm, kk), lambda i: (i, 0)),
                  pl.BlockSpec((1, kk), lambda i: (0, 0))],
        out_specs=(pl.BlockSpec((tm, 1), lambda i: (i, 0)),
                   pl.BlockSpec((1, 1, 1), lambda i: (i, 0, 0)),
                   pl.BlockSpec((1, 1, 1), lambda i: (i, 0, 0))),
        compiler_params=_cparams(("parallel",)),
    )(xcol7, w7)

    scale, shift = _bn_affine(s_p, ss_p, m, sa["gamma"], sa["beta"])
    aff = jnp.stack([scale, shift], axis=0).reshape(1, 2).astype(jnp.float32)

    # Sigmoid spatial gate + cnn*gate + tf*(cnn*gate), one fused pass.
    cnn2d = cnn_flat.reshape(m, c)
    tf2d = tf_att_flat.reshape(m, c)
    cnn_att, prod = pl.pallas_call(
        _spatial_gate_kernel,
        out_shape=(jax.ShapeDtypeStruct((m, c), jnp.float32),
                   jax.ShapeDtypeStruct((m, c), jnp.float32)),
        grid=(n_m,),
        in_specs=[pl.BlockSpec((tm, 1), lambda i: (i, 0)),
                  pl.BlockSpec((1, 2), lambda i: (0, 0)),
                  pl.BlockSpec((tm, c), lambda i: (i, 0)),
                  pl.BlockSpec((tm, c), lambda i: (i, 0))],
        out_specs=(pl.BlockSpec((tm, c), lambda i: (i, 0)),
                   pl.BlockSpec((tm, c), lambda i: (i, 0))),
        compiler_params=_cparams(("parallel",)),
    )(y7, aff, cnn2d, tf2d)
    return cnn_att, prod


# ----------------------------------------------------------------------------
# Parameter construction (deterministic, synthetic)
# ----------------------------------------------------------------------------
def _init_conv3x3(key, cin, cout):
    kw, kb = jax.random.split(key)
    w = jax.random.normal(kw, (3, 3, cin, cout), jnp.float32) * (2.0 / (9 * cin)) ** 0.5
    b = jax.random.normal(kb, (cout,), jnp.float32) * 0.01
    gamma = jnp.ones((cout,), jnp.float32)    # BatchNorm2d default weight
    beta = jnp.zeros((cout,), jnp.float32)    # BatchNorm2d default bias
    return (w, b, gamma, beta)


def init_bifusion_params(key, c):
    ks = jax.random.split(key, 6)
    ch = c // 16
    ca = dict(
        w1=jax.random.normal(ks[0], (c, ch), jnp.float32) * (1.0 / c) ** 0.5,
        b1=jnp.zeros((ch,), jnp.float32),
        w2=jax.random.normal(ks[1], (ch, c), jnp.float32) * (1.0 / ch) ** 0.5,
        b2=jnp.zeros((c,), jnp.float32))
    sa = dict(
        w7=jax.random.normal(ks[2], (7, 7, 2, 1), jnp.float32) * (1.0 / 98.0) ** 0.5,
        gamma=jnp.ones((1,), jnp.float32),
        beta=jnp.zeros((1,), jnp.float32))
    cc = int(2.5 * c)
    return dict(ca=ca, sa=sa,
                conv=_init_conv3x3(ks[3], c, c // 2),
                rb1=_init_conv3x3(ks[4], cc, cc),
                rb2=_init_conv3x3(ks[5], cc, cc))


# ----------------------------------------------------------------------------
# BiFusion forward (matches BiFusion.forward)
# ----------------------------------------------------------------------------
@jax.jit
def bifusion_forward(tf_nchw, cnn_nchw, params):
    n, c, h, w = tf_nchw.shape
    hw = h * w
    m = n * hw

    tf = jnp.transpose(tf_nchw, (0, 2, 3, 1)).astype(jnp.float32)    # NHWC
    cnn = jnp.transpose(cnn_nchw, (0, 2, 3, 1)).astype(jnp.float32)

    # 1) tf = channel_attn(tf)
    tf_att = channel_attention(tf.reshape(n, hw, c), params["ca"])   # (N,HW,C)

    # 2) cnn = spatial_attn(cnn); 3) tf_prod_cnn = tf * cnn (fused)
    cnn_att, prod = spatial_attention_and_mul(
        cnn.reshape(n, hw, c), tf_att, params["sa"], h, w)           # (M,C) each

    # 4) tf_prod_cnn_conv = conv(tf * cnn)
    conv_out = conv3x3_lrelu_bn(prod.reshape(n, h, w, c), *params["conv"])

    # 5) concat([tf, tf_prod_cnn_conv, cnn], channel dim)
    concat = jnp.concatenate(
        [tf_att.reshape(m, c), conv_out.reshape(m, c // 2), cnn_att], axis=1)
    cc = concat.shape[1]
    concat_nhwc = concat.reshape(n, h, w, cc)

    # 6) res_block: double_conv + residual
    y1 = conv3x3_lrelu_bn(concat_nhwc, *params["rb1"])
    out = conv3x3_lrelu_bn(y1, *params["rb2"], residual=concat_nhwc)

    return jnp.transpose(out, (0, 3, 1, 2))                          # NCHW


# ----------------------------------------------------------------------------
if __name__ == "__main__":
    key = jax.random.PRNGKey(0)
    kp, kt, kc = jax.random.split(key, 3)

    N, C, H, W = 2, 64, 16, 16            # tf_channel == cnn_channel == 64
    params = init_bifusion_params(kp, C)
    tf_in = jax.random.normal(kt, (N, C, H, W), jnp.float32)
    cnn_in = jax.random.normal(kc, (N, C, H, W), jnp.float32)

    out = bifusion_forward(tf_in, cnn_in, params)
    out = jax.block_until_ready(out)

    cc = C + C // 2 + C                   # == int(2.5 * C)
    assert out.shape == (N, cc, H, W), f"shape mismatch: {out.shape}"
    assert bool(jnp.all(jnp.isfinite(out)))

    print("KERNEL_OK")
</pallas_src>

<mosaic_0001>
module attributes {stable_mosaic.version = 11 : i64} {
  func.func @_channel_pool_kernel(%arg0: i32, %arg1: memref<1x256x64xf32, #tpu.memory_space<vmem>>, %arg2: memref<1x256x1xf32, #tpu.memory_space<vmem>>, %arg3: memref<1x256x1xf32, #tpu.memory_space<vmem>>) attributes {dimension_semantics = [#tpu.dimension_semantics<parallel>], iteration_bounds = array<i64: 2>, scalar_prefetch = 0 : i64, scratch_operands = 0 : i64, tpu.core_type = #tpu.core_type<tc>, window_params = [{transform_indices = @transform_0, window_bounds = array<i64: 1, 256, 64>}, {transform_indices = @transform_1, window_bounds = array<i64: 1, 256, 1>}, {transform_indices = @transform_2, window_bounds = array<i64: 1, 256, 1>}]} {
    %c0 = arith.constant 0 : index
    %c0_0 = arith.constant 0 : index
    %c0_1 = arith.constant 0 : index
    %0 = vector.load %arg1[%c0, %c0_0, %c0_1] : memref<1x256x64xf32, #tpu.memory_space<vmem>>, vector<1x256x64xf32>
    %1 = vector.shape_cast %0 : vector<1x256x64xf32> to vector<256x64xf32>
    %cst = arith.constant dense<0xFF800000> : vector<256xf32>
    %2 = vector.multi_reduction <maximumf>, %1, %cst [1] : vector<256x64xf32> to vector<256xf32>
    %3 = vector.shape_cast %2 : vector<256xf32> to vector<256x1xf32>
    %4 = vector.shape_cast %3 : vector<256x1xf32> to vector<1x256x1xf32>
    %c0_2 = arith.constant 0 : index
    %c0_3 = arith.constant 0 : index
    %c0_4 = arith.constant 0 : index
    %5 = vector.load %arg2[%c0_2, %c0_3, %c0_4] : memref<1x256x1xf32, #tpu.memory_space<vmem>>, vector<1x256x1xf32>
    tpu.vector_store %arg2[%c0_2, %c0_3, %c0_4], %4 {strides = array<i32>} : memref<1x256x1xf32, #tpu.memory_space<vmem>>, vector<1x256x1xf32>,
    %cst_5 = arith.constant dense<0.000000e+00> : vector<256xf32>
    %6 = vector.multi_reduction <add>, %1, %cst_5 [1] : vector<256x64xf32> to vector<256xf32>
    %7 = vector.shape_cast %6 : vector<256xf32> to vector<256x1xf32>
    %cst_6 = arith.constant 1.562500e-02 : f32
    %8 = vector.broadcast %cst_6 : f32 to vector<256x1xf32>
    %9 = arith.mulf %7, %8 : vector<256x1xf32>
    %10 = vector.shape_cast %9 : vector<256x1xf32> to vector<1x256x1xf32>
    %c0_7 = arith.constant 0 : index
    %c0_8 = arith.constant 0 : index
    %c0_9 = arith.constant 0 : index
    %11 = vector.load %arg3[%c0_7, %c0_8, %c0_9] : memref<1x256x1xf32, #tpu.memory_space<vmem>>, vector<1x256x1xf32>
    tpu.vector_store %arg3[%c0_7, %c0_8, %c0_9], %10 {strides = array<i32>} : memref<1x256x1xf32, #tpu.memory_space<vmem>>, vector<1x256x1xf32>,
    return
  }
  func.func @transform_0(%arg0: i32) -> (i32, i32, i32) {
    %c0_i32 = arith.constant 0 : i32
    %c0_i32_0 = arith.constant 0 : i32
    %c0_i32_1 = arith.constant 0 : i32
    return %arg0, %c0_i32, %c0_i32_0 : i32, i32, i32
  }
  func.func @transform_1(%arg0: i32) -> (i32, i32, i32) {
    %c0_i32 = arith.constant 0 : i32
    %c0_i32_0 = arith.constant 0 : i32
    %c0_i32_1 = arith.constant 0 : i32
    return %arg0, %c0_i32, %c0_i32_0 : i32, i32, i32
  }
  func.func @transform_2(%arg0: i32) -> (i32, i32, i32) {
    %c0_i32 = arith.constant 0 : i32
    %c0_i32_0 = arith.constant 0 : i32
    %c0_i32_1 = arith.constant 0 : i32
    return %arg0, %c0_i32, %c0_i32_0 : i32, i32, i32
  }
}

module attributes {stable_mosaic.version = 11 : i64} {
  func.func @_spatial_conv_stats_kernel(%arg0: i32, %arg1: memref<256x98xf32, #tpu.memory_space<vmem>>, %arg2: memref<1x98xf32, #tpu.memory_space<vmem>>, %arg3: memref<256x1xf32, #tpu.memory_space<vmem>>, %arg4: memref<1x1x1xf32, #tpu.memory_space<vmem>>, %arg5: memref<1x1x1xf32, #tpu.memory_space<vmem>>) attributes {dimension_semantics = [#tpu.dimension_semantics<parallel>], iteration_bounds = array<i64: 2>, scalar_prefetch = 0 : i64, scratch_operands = 0 : i64, tpu.core_type = #tpu.core_type<tc>, window_params = [{transform_indices = @transform_0, window_bounds = array<i64: 256, 98>}, {pipeline_mode = #tpu.pipeline_mode<synchronous>, transform_indices = @transform_1, window_bounds = array<i64: 1, 98>}, {transform_indices = @transform_2, window_bounds = array<i64: 256, 1>}, {transform_indices = @transform_3, window_bounds = array<i64: 1, 1, 1>}, {transform_indices = @transform_4, window_bounds = array<i64: 1, 1, 1>}]} {
    %c0 = arith.constant 0 : index
    %c0_0 = arith.constant 0 : index
    %0 = vector.load %arg1[%c0, %c0_0] : memref<256x98xf32, #tpu.memory_space<vmem>>, vector<256x98xf32>
    %c0_1 = arith.constant 0 : index
    %c0_2 = arith.constant 0 : index
    %1 = vector.load %arg2[%c0_1, %c0_2] : memref<1x98xf32, #tpu.memory_space<vmem>>, vector<1x98xf32>
    %2 = vector.broadcast %1 : vector<1x98xf32> to vector<256x98xf32>
    %3 = arith.mulf %0, %2 : vector<256x98xf32>
    %cst = arith.constant dense<0.000000e+00> : vector<256xf32>
    %4 = vector.multi_reduction <add>, %3, %cst [1] : vector<256x98xf32> to vector<256xf32>
    %5 = vector.shape_cast %4 : vector<256xf32> to vector<256x1xf32>
    %c0_3 = arith.constant 0 : index
    %c0_4 = arith.constant 0 : index
    %6 = vector.load %arg3[%c0_3, %c0_4] : memref<256x1xf32, #tpu.memory_space<vmem>>, vector<256x1xf32>
    tpu.vector_store %arg3[%c0_3, %c0_4], %5 {strides = array<i32>} : memref<256x1xf32, #tpu.memory_space<vmem>>, vector<256x1xf32>,
    %cst_5 = arith.constant dense<0.000000e+00> : vector<1xf32>
    %7 = vector.multi_reduction <add>, %5, %cst_5 [0] : vector<256x1xf32> to vector<1xf32>
    %8 = vector.shape_cast %7 : vector<1xf32> to vector<1x1xf32>
    %9 = vector.shape_cast %8 : vector<1x1xf32> to vector<1x1x1xf32>
    %c0_6 = arith.constant 0 : index
    %c0_7 = arith.constant 0 : index
    %c0_8 = arith.constant 0 : index
    %10 = vector.load %arg4[%c0_6, %c0_7, %c0_8] : memref<1x1x1xf32, #tpu.memory_space<vmem>>, vector<1x1x1xf32>
    tpu.vector_store %arg4[%c0_6, %c0_7, %c0_8], %9 {strides = array<i32>} : memref<1x1x1xf32, #tpu.memory_space<vmem>>, vector<1x1x1xf32>,
    %11 = arith.mulf %5, %5 : vector<256x1xf32>
    %cst_9 = arith.constant dense<0.000000e+00> : vector<1xf32>
    %12 = vector.multi_reduction <add>, %11, %cst_9 [0] : vector<256x1xf32> to vector<1xf32>
    %13 = vector.shape_cast %12 : vector<1xf32> to vector<1x1xf32>
    %14 = vector.shape_cast %13 : vector<1x1xf32> to vector<1x1x1xf32>
    %c0_10 = arith.constant 0 : index
    %c0_11 = arith.constant 0 : index
    %c0_12 = arith.constant 0 : index
    %15 = vector.load %arg5[%c0_10, %c0_11, %c0_12] : memref<1x1x1xf32, #tpu.memory_space<vmem>>, vector<1x1x1xf32>
    tpu.vector_store %arg5[%c0_10, %c0_11, %c0_12], %14 {strides = array<i32>} : memref<1x1x1xf32, #tpu.memory_space<vmem>>, vector<1x1x1xf32>,
    return
  }
  func.func @transform_0(%arg0: i32) -> (i32, i32) {
    %c0_i32 = arith.constant 0 : i32
    %c0_i32_0 = arith.constant 0 : i32
    return %arg0, %c0_i32 : i32, i32
  }
  func.func @transform_1(%arg0: i32) -> (i32, i32) {
    %c0_i32 = arith.constant 0 : i32
    %c0_i32_0 = arith.constant 0 : i32
    %c0_i32_1 = arith.constant 0 : i32
    return %c0_i32, %c0_i32_0 : i32, i32
  }
  func.func @transform_2(%arg0: i32) -> (i32, i32) {
    %c0_i32 = arith.constant 0 : i32
    %c0_i32_0 = arith.constant 0 : i32
    return %arg0, %c0_i32 : i32, i32
  }
  func.func @transform_3(%arg0: i32) -> (i32, i32, i32) {
    %c0_i32 = arith.constant 0 : i32
    %c0_i32_0 = arith.constant 0 : i32
    %c0_i32_1 = arith.constant 0 : i32
    return %arg0, %c0_i32, %c0_i32_0 : i32, i32, i32
  }
  func.func @transform_4(%arg0: i32) -> (i32, i32, i32) {
    %c0_i32 = arith.constant 0 : i32
    %c0_i32_0 = arith.constant 0 : i32
    %c0_i32_1 = arith.constant 0 : i32
    return %arg0, %c0_i32, %c0_i32_0 : i32, i32, i32
  }
}

module attributes {stable_mosaic.version = 11 : i64} {
  func.func @_channel_attn_kernel(%arg0: i32, %arg1: memref<1x256x64xf32, #tpu.memory_space<vmem>>, %arg2: memref<64x4xf32, #tpu.memory_space<vmem>>, %arg3: memref<1x4xf32, #tpu.memory_space<vmem>>, %arg4: memref<4x64xf32, #tpu.memory_space<vmem>>, %arg5: memref<1x64xf32, #tpu.memory_space<vmem>>, %arg6: memref<1x256x64xf32, #tpu.memory_space<vmem>>) attributes {dimension_semantics = [#tpu.dimension_semantics<parallel>], iteration_bounds = array<i64: 2>, scalar_prefetch = 0 : i64, scratch_operands = 0 : i64, tpu.core_type = #tpu.core_type<tc>, window_params = [{transform_indices = @transform_0, window_bounds = array<i64: 1, 256, 64>}, {pipeline_mode = #tpu.pipeline_mode<synchronous>, transform_indices = @transform_1, window_bounds = array<i64: 64, 4>}, {pipeline_mode = #tpu.pipeline_mode<synchronous>, transform_indices = @transform_2, window_bounds = array<i64: 1, 4>}, {pipeline_mode = #tpu.pipeline_mode<synchronous>, transform_indices = @transform_3, window_bounds = array<i64: 4, 64>}, {pipeline_mode = #tpu.pipeline_mode<synchronous>, transform_indices = @transform_4, window_bounds = array<i64: 1, 64>}, {transform_indices = @transform_5, window_bounds = array<i64: 1, 256, 64>}]} {
    %c0 = arith.constant 0 : index
    %c0_0 = arith.constant 0 : index
    %c0_1 = arith.constant 0 : index
    %0 = vector.load %arg1[%c0, %c0_0, %c0_1] : memref<1x256x64xf32, #tpu.memory_space<vmem>>, vector<1x256x64xf32>
    %1 = vector.shape_cast %0 : vector<1x256x64xf32> to vector<256x64xf32>
    %cst = arith.constant dense<0xFF800000> : vector<64xf32>
    %2 = vector.multi_reduction <maximumf>, %1, %cst [0] : vector<256x64xf32> to vector<64xf32>
    %3 = vector.shape_cast %2 : vector<64xf32> to vector<1x64xf32>
    %cst_2 = arith.constant dense<0.000000e+00> : vector<64xf32>
    %4 = vector.multi_reduction <add>, %1, %cst_2 [0] : vector<256x64xf32> to vector<64xf32>
    %5 = vector.shape_cast %4 : vector<64xf32> to vector<1x64xf32>
    %cst_3 = arith.constant 3.906250e-03 : f32
    %6 = vector.broadcast %cst_3 : f32 to vector<1x64xf32>
    %7 = arith.mulf %5, %6 : vector<1x64xf32>
    %c0_4 = arith.constant 0 : index
    %c0_5 = arith.constant 0 : index
    %8 = vector.load %arg2[%c0_4, %c0_5] : memref<64x4xf32, #tpu.memory_space<vmem>>, vector<64x4xf32>
    %c0_6 = arith.constant 0 : index
    %c0_7 = arith.constant 0 : index
    %9 = vector.load %arg3[%c0_6, %c0_7] : memref<1x4xf32, #tpu.memory_space<vmem>>, vector<1x4xf32>
    %c0_8 = arith.constant 0 : index
    %c0_9 = arith.constant 0 : index
    %10 = vector.load %arg4[%c0_8, %c0_9] : memref<4x64xf32, #tpu.memory_space<vmem>>, vector<4x64xf32>
    %c0_10 = arith.constant 0 : index
    %c0_11 = arith.constant 0 : index
    %11 = vector.load %arg5[%c0_10, %c0_11] : memref<1x64xf32, #tpu.memory_space<vmem>>, vector<1x64xf32>
    %cst_12 = arith.constant dense<0.000000e+00> : vector<1x4xf32>
    %12 = tpu.matmul %3, %8, %cst_12 {dimension_numbers = #tpu.dot_dimension_numbers<[1], [0], [0], [1], [0, 0, 1, 1], [], []>} : vector<1x64xf32>, vector<64x4xf32>, vector<1x4xf32> -> vector<1x4xf32>
    %13 = arith.addf %12, %9 : vector<1x4xf32>
    %cst_13 = arith.constant 0.000000e+00 : f32
    %14 = vector.broadcast %cst_13 : f32 to vector<1x4xf32>
    %15 = arith.maximumf %13, %14 : vector<1x4xf32>
    %cst_14 = arith.constant dense<0.000000e+00> : vector<1x64xf32>
    %16 = tpu.matmul %15, %10, %cst_14 {dimension_numbers = #tpu.dot_dimension_numbers<[1], [0], [0], [1], [0, 0, 1, 1], [], []>} : vector<1x4xf32>, vector<4x64xf32>, vector<1x64xf32> -> vector<1x64xf32>
    %17 = arith.addf %16, %11 : vector<1x64xf32>
    %cst_15 = arith.constant dense<0.000000e+00> : vector<1x4xf32>
    %18 = tpu.matmul %7, %8, %cst_15 {dimension_numbers = #tpu.dot_dimension_numbers<[1], [0], [0], [1], [0, 0, 1, 1], [], []>} : vector<1x64xf32>, vector<64x4xf32>, vector<1x4xf32> -> vector<1x4xf32>
    %19 = arith.addf %18, %9 : vector<1x4xf32>
    %cst_16 = arith.constant 0.000000e+00 : f32
    %20 = vector.broadcast %cst_16 : f32 to vector<1x4xf32>
    %21 = arith.maximumf %19, %20 : vector<1x4xf32>
    %cst_17 = arith.constant dense<0.000000e+00> : vector<1x64xf32>
    %22 = tpu.matmul %21, %10, %cst_17 {dimension_numbers = #tpu.dot_dimension_numbers<[1], [0], [0], [1], [0, 0, 1, 1], [], []>} : vector<1x4xf32>, vector<4x64xf32>, vector<1x64xf32> -> vector<1x64xf32>
    %23 = arith.addf %22, %11 : vector<1x64xf32>
    %24 = arith.addf %17, %23 : vector<1x64xf32>
    %cst_18 = arith.constant 0.000000e+00 : f32
    %25 = vector.broadcast %cst_18 : f32 to vector<1x64xf32>
    %26 = arith.subf %25, %24 : vector<1x64xf32>
    %27 = math.exp %26 : vector<1x64xf32>
    %cst_19 = arith.constant 1.000000e+00 : f32
    %28 = vector.broadcast %cst_19 : f32 to vector<1x64xf32>
    %29 = arith.addf %28, %27 : vector<1x64xf32>
    %cst_20 = arith.constant 1.000000e+00 : f32
    %30 = vector.broadcast %cst_20 : f32 to vector<1x64xf32>
    %31 = arith.divf %30, %29 : vector<1x64xf32>
    %32 = vector.broadcast %31 : vector<1x64xf32> to vector<256x64xf32>
    %33 = arith.mulf %1, %32 : vector<256x64xf32>
    %34 = vector.shape_cast %33 : vector<256x64xf32> to vector<1x256x64xf32>
    %c0_21 = arith.constant 0 : index
    %c0_22 = arith.constant 0 : index
    %c0_23 = arith.constant 0 : index
    %35 = vector.load %arg6[%c0_21, %c0_22, %c0_23] : memref<1x256x64xf32, #tpu.memory_space<vmem>>, vector<1x256x64xf32>
    tpu.vector_store %arg6[%c0_21, %c0_22, %c0_23], %34 {strides = array<i32>} : memref<1x256x64xf32, #tpu.memory_space<vmem>>, vector<1x256x64xf32>,
    return
  }
  func.func @transform_0(%arg0: i32) -> (i32, i32, i32) {
    %c0_i32 = arith.constant 0 : i32
    %c0_i32_0 = arith.constant 0 : i32
    %c0_i32_1 = arith.constant 0 : i32
    return %arg0, %c0_i32, %c0_i32_0 : i32, i32, i32
  }
  func.func @transform_1(%arg0: i32) -> (i32, i32) {
    %c0_i32 = arith.constant 0 : i32
    %c0_i32_0 = arith.constant 0 : i32
    %c0_i32_1 = arith.constant 0 : i32
    return %c0_i32, %c0_i32_0 : i32, i32
  }
  func.func @transform_2(%arg0: i32) -> (i32, i32) {
    %c0_i32 = arith.constant 0 : i32
    %c0_i32_0 = arith.constant 0 : i32
    %c0_i32_1 = arith.constant 0 : i32
    return %c0_i32, %c0_i32_0 : i32, i32
  }
  func.func @transform_3(%arg0: i32) -> (i32, i32) {
    %c0_i32 = arith.constant 0 : i32
    %c0_i32_0 = arith.constant 0 : i32
    %c0_i32_1 = arith.constant 0 : i32
    return %c0_i32, %c0_i32_0 : i32, i32
  }
  func.func @transform_4(%arg0: i32) -> (i32, i32) {
    %c0_i32 = arith.constant 0 : i32
    %c0_i32_0 = arith.constant 0 : i32
    %c0_i32_1 = arith.constant 0 : i32
    return %c0_i32, %c0_i32_0 : i32, i32
  }
  func.func @transform_5(%arg0: i32) -> (i32, i32, i32) {
    %c0_i32 = arith.constant 0 : i32
    %c0_i32_0 = arith.constant 0 : i32
    %c0_i32_1 = arith.constant 0 : i32
    return %arg0, %c0_i32, %c0_i32_0 : i32, i32, i32
  }
}

module attributes {stable_mosaic.version = 11 : i64} {
  func.func @_spatial_gate_kernel(%arg0: i32, %arg1: memref<256x1xf32, #tpu.memory_space<vmem>>, %arg2: memref<1x2xf32, #tpu.memory_space<vmem>>, %arg3: memref<256x64xf32, #tpu.memory_space<vmem>>, %arg4: memref<256x64xf32, #tpu.memory_space<vmem>>, %arg5: memref<256x64xf32, #tpu.memory_space<vmem>>, %arg6: memref<256x64xf32, #tpu.memory_space<vmem>>) attributes {dimension_semantics = [#tpu.dimension_semantics<parallel>], iteration_bounds = array<i64: 2>, scalar_prefetch = 0 : i64, scratch_operands = 0 : i64, tpu.core_type = #tpu.core_type<tc>, window_params = [{transform_indices = @transform_0, window_bounds = array<i64: 256, 1>}, {pipeline_mode = #tpu.pipeline_mode<synchronous>, transform_indices = @transform_1, window_bounds = array<i64: 1, 2>}, {transform_indices = @transform_2, window_bounds = array<i64: 256, 64>}, {transform_indices = @transform_3, window_bounds = array<i64: 256, 64>}, {transform_indices = @transform_4, window_bounds = array<i64: 256, 64>}, {transform_indices = @transform_5, window_bounds = array<i64: 256, 64>}]} {
    %c0 = arith.constant 0 : index
    %c0_0 = arith.constant 0 : index
    %0 = vector.load %arg1[%c0, %c0_0] : memref<256x1xf32, #tpu.memory_space<vmem>>, vector<256x1xf32>
    %c0_1 = arith.constant 0 : index
    %c0_2 = arith.constant 0 : index
    %1 = vector.load %arg2[%c0_1, %c0_2] : memref<1x2xf32, #tpu.memory_space<vmem>>, vector<1x1xf32>
    %2 = vector.broadcast %1 : vector<1x1xf32> to vector<256x1xf32>
    %3 = arith.mulf %0, %2 : vector<256x1xf32>
    %c0_3 = arith.constant 0 : index
    %c1 = arith.constant 1 : index
    %4 = vector.load %arg2[%c0_3, %c1] : memref<1x2xf32, #tpu.memory_space<vmem>>, vector<1x1xf32>
    %5 = vector.broadcast %4 : vector<1x1xf32> to vector<256x1xf32>
    %6 = arith.addf %3, %5 : vector<256x1xf32>
    %cst = arith.constant 0.000000e+00 : f32
    %7 = vector.broadcast %cst : f32 to vector<256x1xf32>
    %8 = arith.subf %7, %6 : vector<256x1xf32>
    %9 = math.exp %8 : vector<256x1xf32>
    %cst_4 = arith.constant 1.000000e+00 : f32
    %10 = vector.broadcast %cst_4 : f32 to vector<256x1xf32>
    %11 = arith.addf %10, %9 : vector<256x1xf32>
    %cst_5 = arith.constant 1.000000e+00 : f32
    %12 = vector.broadcast %cst_5 : f32 to vector<256x1xf32>
    %13 = arith.divf %12, %11 : vector<256x1xf32>
    %c0_6 = arith.constant 0 : index
    %c0_7 = arith.constant 0 : index
    %14 = vector.load %arg3[%c0_6, %c0_7] : memref<256x64xf32, #tpu.memory_space<vmem>>, vector<256x64xf32>
    %15 = vector.broadcast %13 : vector<256x1xf32> to vector<256x64xf32>
    %16 = arith.mulf %14, %15 : vector<256x64xf32>
    %c0_8 = arith.constant 0 : index
    %c0_9 = arith.constant 0 : index
    %17 = vector.load %arg5[%c0_8, %c0_9] : memref<256x64xf32, #tpu.memory_space<vmem>>, vector<256x64xf32>
    tpu.vector_store %arg5[%c0_8, %c0_9], %16 {strides = array<i32>} : memref<256x64xf32, #tpu.memory_space<vmem>>, vector<256x64xf32>,
    %c0_10 = arith.constant 0 : index
    %c0_11 = arith.constant 0 : index
    %18 = vector.load %arg4[%c0_10, %c0_11] : memref<256x64xf32, #tpu.memory_space<vmem>>, vector<256x64xf32>
    %19 = arith.mulf %16, %18 : vector<256x64xf32>
    %c0_12 = arith.constant 0 : index
    %c0_13 = arith.constant 0 : index
    %20 = vector.load %arg6[%c0_12, %c0_13] : memref<256x64xf32, #tpu.memory_space<vmem>>, vector<256x64xf32>
    tpu.vector_store %arg6[%c0_12, %c0_13], %19 {strides = array<i32>} : memref<256x64xf32, #tpu.memory_space<vmem>>, vector<256x64xf32>,
    return
  }
  func.func @transform_0(%arg0: i32) -> (i32, i32) {
    %c0_i32 = arith.constant 0 : i32
    %c0_i32_0 = arith.constant 0 : i32
    return %arg0, %c0_i32 : i32, i32
  }
  func.func @transform_1(%arg0: i32) -> (i32, i32) {
    %c0_i32 = arith.constant 0 : i32
    %c0_i32_0 = arith.constant 0 : i32
    %c0_i32_1 = arith.constant 0 : i32
    return %c0_i32, %c0_i32_0 : i32, i32
  }
  func.func @transform_2(%arg0: i32) -> (i32, i32) {
    %c0_i32 = arith.constant 0 : i32
    %c0_i32_0 = arith.constant 0 : i32
    return %arg0, %c0_i32 : i32, i32
  }
  func.func @transform_3(%arg0: i32) -> (i32, i32) {
    %c0_i32 = arith.constant 0 : i32
    %c0_i32_0 = arith.constant 0 : i32
    return %arg0, %c0_i32 : i32, i32
  }
  func.func @transform_4(%arg0: i32) -> (i32, i32) {
    %c0_i32 = arith.constant 0 : i32
    %c0_i32_0 = arith.constant 0 : i32
    return %arg0, %c0_i32 : i32, i32
  }
  func.func @transform_5(%arg0: i32) -> (i32, i32) {
    %c0_i32 = arith.constant 0 : i32
    %c0_i32_0 = arith.constant 0 : i32
    return %arg0, %c0_i32 : i32, i32
  }
}

module attributes {stable_mosaic.version = 11 : i64} {
  func.func @_conv_stats_kernel(%arg0: i32, %arg1: memref<256x576xbf16, #tpu.memory_space<vmem>>, %arg2: memref<576x32xbf16, #tpu.memory_space<vmem>>, %arg3: memref<1x32xf32, #tpu.memory_space<vmem>>, %arg4: memref<256x32xf32, #tpu.memory_space<vmem>>, %arg5: memref<1x1x32xf32, #tpu.memory_space<vmem>>, %arg6: memref<1x1x32xf32, #tpu.memory_space<vmem>>) attributes {dimension_semantics = [#tpu.dimension_semantics<parallel>], iteration_bounds = array<i64: 2>, scalar_prefetch = 0 : i64, scratch_operands = 0 : i64, tpu.core_type = #tpu.core_type<tc>, window_params = [{transform_indices = @transform_0, window_bounds = array<i64: 256, 576>}, {pipeline_mode = #tpu.pipeline_mode<synchronous>, transform_indices = @transform_1, window_bounds = array<i64: 576, 32>}, {pipeline_mode = #tpu.pipeline_mode<synchronous>, transform_indices = @transform_2, window_bounds = array<i64: 1, 32>}, {transform_indices = @transform_3, window_bounds = array<i64: 256, 32>}, {transform_indices = @transform_4, window_bounds = array<i64: 1, 1, 32>}, {transform_indices = @transform_5, window_bounds = array<i64: 1, 1, 32>}]} {
    %c0 = arith.constant 0 : index
    %c0_0 = arith.constant 0 : index
    %0 = vector.load %arg1[%c0, %c0_0] : memref<256x576xbf16, #tpu.memory_space<vmem>>, vector<256x576xbf16>
    %c0_1 = arith.constant 0 : index
    %c0_2 = arith.constant 0 : index
    %1 = vector.load %arg2[%c0_1, %c0_2] : memref<576x32xbf16, #tpu.memory_space<vmem>>, vector<576x32xbf16>
    %cst = arith.constant dense<0.000000e+00> : vector<256x32xf32>
    %2 = tpu.matmul %0, %1, %cst {dimension_numbers = #tpu.dot_dimension_numbers<[1], [0], [0], [1], [0, 0, 1, 1], [], []>} : vector<256x576xbf16>, vector<576x32xbf16>, vector<256x32xf32> -> vector<256x32xf32>
    %c0_3 = arith.constant 0 : index
    %c0_4 = arith.constant 0 : index
    %3 = vector.load %arg3[%c0_3, %c0_4] : memref<1x32xf32, #tpu.memory_space<vmem>>, vector<1x32xf32>
    %4 = vector.broadcast %3 : vector<1x32xf32> to vector<256x32xf32>
    %5 = arith.addf %2, %4 : vector<256x32xf32>
    %cst_5 = arith.constant 0.000000e+00 : f32
    %6 = vector.broadcast %cst_5 : f32 to vector<256x32xf32>
    %7 = arith.cmpf oge, %5, %6 : vector<256x32xf32>
    %cst_6 = arith.constant 5.000000e-03 : f32
    %8 = vector.broadcast %cst_6 : f32 to vector<256x32xf32>
    %9 = arith.mulf %8, %5 : vector<256x32xf32>
    %10 = arith.select %7, %5, %9 : vector<256x32xi1>, vector<256x32xf32>
    %c0_7 = arith.constant 0 : index
    %c0_8 = arith.constant 0 : index
    %11 = vector.load %arg4[%c0_7, %c0_8] : memref<256x32xf32, #tpu.memory_space<vmem>>, vector<256x32xf32>
    tpu.vector_store %arg4[%c0_7, %c0_8], %10 {strides = array<i32>} : memref<256x32xf32, #tpu.memory_space<vmem>>, vector<256x32xf32>,
    %cst_9 = arith.constant dense<0.000000e+00> : vector<32xf32>
    %12 = vector.multi_reduction <add>, %10, %cst_9 [0] : vector<256x32xf32> to vector<32xf32>
    %13 = vector.shape_cast %12 : vector<32xf32> to vector<1x32xf32>
    %14 = vector.shape_cast %13 : vector<1x32xf32> to vector<1x1x32xf32>
    %c0_10 = arith.constant 0 : index
    %c0_11 = arith.constant 0 : index
    %c0_12 = arith.constant 0 : index
    %15 = vector.load %arg5[%c0_10, %c0_11, %c0_12] : memref<1x1x32xf32, #tpu.memory_space<vmem>>, vector<1x1x32xf32>
    tpu.vector_store %arg5[%c0_10, %c0_11, %c0_12], %14 {strides = array<i32>} : memref<1x1x32xf32, #tpu.memory_space<vmem>>, vector<1x1x32xf32>,
    %16 = arith.mulf %10, %10 : vector<256x32xf32>
    %cst_13 = arith.constant dense<0.000000e+00> : vector<32xf32>
    %17 = vector.multi_reduction <add>, %16, %cst_13 [0] : vector<256x32xf32> to vector<32xf32>
    %18 = vector.shape_cast %17 : vector<32xf32> to vector<1x32xf32>
    %19 = vector.shape_cast %18 : vector<1x32xf32> to vector<1x1x32xf32>
    %c0_14 = arith.constant 0 : index
    %c0_15 = arith.constant 0 : index
    %c0_16 = arith.constant 0 : index
    %20 = vector.load %arg6[%c0_14, %c0_15, %c0_16] : memref<1x1x32xf32, #tpu.memory_space<vmem>>, vector<1x1x32xf32>
    tpu.vector_store %arg6[%c0_14, %c0_15, %c0_16], %19 {strides = array<i32>} : memref<1x1x32xf32, #tpu.memory_space<vmem>>, vector<1x1x32xf32>,
    return
  }
  func.func @transform_0(%arg0: i32) -> (i32, i32) {
    %c0_i32 = arith.constant 0 : i32
    %c0_i32_0 = arith.constant 0 : i32
    return %arg0, %c0_i32 : i32, i32
  }
  func.func @transform_1(%arg0: i32) -> (i32, i32) {
    %c0_i32 = arith.constant 0 : i32
    %c0_i32_0 = arith.constant 0 : i32
    %c0_i32_1 = arith.constant 0 : i32
    return %c0_i32, %c0_i32_0 : i32, i32
  }
  func.func @transform_2(%arg0: i32) -> (i32, i32) {
    %c0_i32 = arith.constant 0 : i32
    %c0_i32_0 = arith.constant 0 : i32
    %c0_i32_1 = arith.constant 0 : i32
    return %c0_i32, %c0_i32_0 : i32, i32
  }
  func.func @transform_3(%arg0: i32) -> (i32, i32) {
    %c0_i32 = arith.constant 0 : i32
    %c0_i32_0 = arith.constant 0 : i32
    return %arg0, %c0_i32 : i32, i32
  }
  func.func @transform_4(%arg0: i32) -> (i32, i32, i32) {
    %c0_i32 = arith.constant 0 : i32
    %c0_i32_0 = arith.constant 0 : i32
    %c0_i32_1 = arith.constant 0 : i32
    return %arg0, %c0_i32, %c0_i32_0 : i32, i32, i32
  }
  func.func @transform_5(%arg0: i32) -> (i32, i32, i32) {
    %c0_i32 = arith.constant 0 : i32
    %c0_i32_0 = arith.constant 0 : i32
    %c0_i32_1 = arith.constant 0 : i32
    return %arg0, %c0_i32, %c0_i32_0 : i32, i32, i32
  }
}

module attributes {stable_mosaic.version = 11 : i64} {
  func.func @_bn_apply_kernel(%arg0: i32, %arg1: memref<256x32xf32, #tpu.memory_space<vmem>>, %arg2: memref<2x32xf32, #tpu.memory_space<vmem>>, %arg3: memref<256x32xf32, #tpu.memory_space<vmem>>) attributes {dimension_semantics = [#tpu.dimension_semantics<parallel>], iteration_bounds = array<i64: 2>, scalar_prefetch = 0 : i64, scratch_operands = 0 : i64, tpu.core_type = #tpu.core_type<tc>, window_params = [{transform_indices = @transform_0, window_bounds = array<i64: 256, 32>}, {pipeline_mode = #tpu.pipeline_mode<synchronous>, transform_indices = @transform_1, window_bounds = array<i64: 2, 32>}, {transform_indices = @transform_2, window_bounds = array<i64: 256, 32>}]} {
    %c0 = arith.constant 0 : index
    %c0_0 = arith.constant 0 : index
    %0 = vector.load %arg1[%c0, %c0_0] : memref<256x32xf32, #tpu.memory_space<vmem>>, vector<256x32xf32>
    %c0_1 = arith.constant 0 : index
    %c0_2 = arith.constant 0 : index
    %1 = vector.load %arg2[%c0_1, %c0_2] : memref<2x32xf32, #tpu.memory_space<vmem>>, vector<1x32xf32>
    %2 = vector.broadcast %1 : vector<1x32xf32> to vector<256x32xf32>
    %3 = arith.mulf %0, %2 : vector<256x32xf32>
    %c1 = arith.constant 1 : index
    %c0_3 = arith.constant 0 : index
    %4 = vector.load %arg2[%c1, %c0_3] : memref<2x32xf32, #tpu.memory_space<vmem>>, vector<1x32xf32>
    %5 = vector.broadcast %4 : vector<1x32xf32> to vector<256x32xf32>
    %6 = arith.addf %3, %5 : vector<256x32xf32>
    %c0_4 = arith.constant 0 : index
    %c0_5 = arith.constant 0 : index
    %7 = vector.load %arg3[%c0_4, %c0_5] : memref<256x32xf32, #tpu.memory_space<vmem>>, vector<256x32xf32>
    tpu.vector_store %arg3[%c0_4, %c0_5], %6 {strides = array<i32>} : memref<256x32xf32, #tpu.memory_space<vmem>>, vector<256x32xf32>,
    return
  }
  func.func @transform_0(%arg0: i32) -> (i32, i32) {
    %c0_i32 = arith.constant 0 : i32
    %c0_i32_0 = arith.constant 0 : i32
    return %arg0, %c0_i32 : i32, i32
  }
  func.func @transform_1(%arg0: i32) -> (i32, i32) {
    %c0_i32 = arith.constant 0 : i32
    %c0_i32_0 = arith.constant 0 : i32
    %c0_i32_1 = arith.constant 0 : i32
    return %c0_i32, %c0_i32_0 : i32, i32
  }
  func.func @transform_2(%arg0: i32) -> (i32, i32) {
    %c0_i32 = arith.constant 0 : i32
    %c0_i32_0 = arith.constant 0 : i32
    return %arg0, %c0_i32 : i32, i32
  }
}

module attributes {stable_mosaic.version = 11 : i64} {
  func.func @_conv_stats_kernel(%arg0: i32, %arg1: memref<256x1440xbf16, #tpu.memory_space<vmem>>, %arg2: memref<1440x160xbf16, #tpu.memory_space<vmem>>, %arg3: memref<1x160xf32, #tpu.memory_space<vmem>>, %arg4: memref<256x160xf32, #tpu.memory_space<vmem>>, %arg5: memref<1x1x160xf32, #tpu.memory_space<vmem>>, %arg6: memref<1x1x160xf32, #tpu.memory_space<vmem>>) attributes {dimension_semantics = [#tpu.dimension_semantics<parallel>], iteration_bounds = array<i64: 2>, scalar_prefetch = 0 : i64, scratch_operands = 0 : i64, tpu.core_type = #tpu.core_type<tc>, window_params = [{transform_indices = @transform_0, window_bounds = array<i64: 256, 1440>}, {pipeline_mode = #tpu.pipeline_mode<synchronous>, transform_indices = @transform_1, window_bounds = array<i64: 1440, 160>}, {pipeline_mode = #tpu.pipeline_mode<synchronous>, transform_indices = @transform_2, window_bounds = array<i64: 1, 160>}, {transform_indices = @transform_3, window_bounds = array<i64: 256, 160>}, {transform_indices = @transform_4, window_bounds = array<i64: 1, 1, 160>}, {transform_indices = @transform_5, window_bounds = array<i64: 1, 1, 160>}]} {
    %c0 = arith.constant 0 : index
    %c0_0 = arith.constant 0 : index
    %0 = vector.load %arg1[%c0, %c0_0] : memref<256x1440xbf16, #tpu.memory_space<vmem>>, vector<256x1440xbf16>
    %c0_1 = arith.constant 0 : index
    %c0_2 = arith.constant 0 : index
    %1 = vector.load %arg2[%c0_1, %c0_2] : memref<1440x160xbf16, #tpu.memory_space<vmem>>, vector<1440x160xbf16>
    %cst = arith.constant dense<0.000000e+00> : vector<256x160xf32>
    %2 = tpu.matmul %0, %1, %cst {dimension_numbers = #tpu.dot_dimension_numbers<[1], [0], [0], [1], [0, 0, 1, 1], [], []>} : vector<256x1440xbf16>, vector<1440x160xbf16>, vector<256x160xf32> -> vector<256x160xf32>
    %c0_3 = arith.constant 0 : index
    %c0_4 = arith.constant 0 : index
    %3 = vector.load %arg3[%c0_3, %c0_4] : memref<1x160xf32, #tpu.memory_space<vmem>>, vector<1x160xf32>
    %4 = vector.broadcast %3 : vector<1x160xf32> to vector<256x160xf32>
    %5 = arith.addf %2, %4 : vector<256x160xf32>
    %cst_5 = arith.constant 0.000000e+00 : f32
    %6 = vector.broadcast %cst_5 : f32 to vector<256x160xf32>
    %7 = arith.cmpf oge, %5, %6 : vector<256x160xf32>
    %cst_6 = arith.constant 5.000000e-03 : f32
    %8 = vector.broadcast %cst_6 : f32 to vector<256x160xf32>
    %9 = arith.mulf %8, %5 : vector<256x160xf32>
    %10 = arith.select %7, %5, %9 : vector<256x160xi1>, vector<256x160xf32>
    %c0_7 = arith.constant 0 : index
    %c0_8 = arith.constant 0 : index
    %11 = vector.load %arg4[%c0_7, %c0_8] : memref<256x160xf32, #tpu.memory_space<vmem>>, vector<256x160xf32>
    tpu.vector_store %arg4[%c0_7, %c0_8], %10 {strides = array<i32>} : memref<256x160xf32, #tpu.memory_space<vmem>>, vector<256x160xf32>,
    %cst_9 = arith.constant dense<0.000000e+00> : vector<160xf32>
    %12 = vector.multi_reduction <add>, %10, %cst_9 [0] : vector<256x160xf32> to vector<160xf32>
    %13 = vector.shape_cast %12 : vector<160xf32> to vector<1x160xf32>
    %14 = vector.shape_cast %13 : vector<1x160xf32> to vector<1x1x160xf32>
    %c0_10 = arith.constant 0 : index
    %c0_11 = arith.constant 0 : index
    %c0_12 = arith.constant 0 : index
    %15 = vector.load %arg5[%c0_10, %c0_11, %c0_12] : memref<1x1x160xf32, #tpu.memory_space<vmem>>, vector<1x1x160xf32>
    tpu.vector_store %arg5[%c0_10, %c0_11, %c0_12], %14 {strides = array<i32>} : memref<1x1x160xf32, #tpu.memory_space<vmem>>, vector<1x1x160xf32>,
    %16 = arith.mulf %10, %10 : vector<256x160xf32>
    %cst_13 = arith.constant dense<0.000000e+00> : vector<160xf32>
    %17 = vector.multi_reduction <add>, %16, %cst_13 [0] : vector<256x160xf32> to vector<160xf32>
    %18 = vector.shape_cast %17 : vector<160xf32> to vector<1x160xf32>
    %19 = vector.shape_cast %18 : vector<1x160xf32> to vector<1x1x160xf32>
    %c0_14 = arith.constant 0 : index
    %c0_15 = arith.constant 0 : index
    %c0_16 = arith.constant 0 : index
    %20 = vector.load %arg6[%c0_14, %c0_15, %c0_16] : memref<1x1x160xf32, #tpu.memory_space<vmem>>, vector<1x1x160xf32>
    tpu.vector_store %arg6[%c0_14, %c0_15, %c0_16], %19 {strides = array<i32>} : memref<1x1x160xf32, #tpu.memory_space<vmem>>, vector<1x1x160xf32>,
    return
  }
  func.func @transform_0(%arg0: i32) -> (i32, i32) {
    %c0_i32 = arith.constant 0 : i32
    %c0_i32_0 = arith.constant 0 : i32
    return %arg0, %c0_i32 : i32, i32
  }
  func.func @transform_1(%arg0: i32) -> (i32, i32) {
    %c0_i32 = arith.constant 0 : i32
    %c0_i32_0 = arith.constant 0 : i32
    %c0_i32_1 = arith.constant 0 : i32
    return %c0_i32, %c0_i32_0 : i32, i32
  }
  func.func @transform_2(%arg0: i32) -> (i32, i32) {
    %c0_i32 = arith.constant 0 : i32
    %c0_i32_0 = arith.constant 0 : i32
    %c0_i32_1 = arith.constant 0 : i32
    return %c0_i32, %c0_i32_0 : i32, i32
  }
  func.func @transform_3(%arg0: i32) -> (i32, i32) {
    %c0_i32 = arith.constant 0 : i32
    %c0_i32_0 = arith.constant 0 : i32
    return %arg0, %c0_i32 : i32, i32
  }
  func.func @transform_4(%arg0: i32) -> (i32, i32, i32) {
    %c0_i32 = arith.constant 0 : i32
    %c0_i32_0 = arith.constant 0 : i32
    %c0_i32_1 = arith.constant 0 : i32
    return %arg0, %c0_i32, %c0_i32_0 : i32, i32, i32
  }
  func.func @transform_5(%arg0: i32) -> (i32, i32, i32) {
    %c0_i32 = arith.constant 0 : i32
    %c0_i32_0 = arith.constant 0 : i32
    %c0_i32_1 = arith.constant 0 : i32
    return %arg0, %c0_i32, %c0_i32_0 : i32, i32, i32
  }
}

module attributes {stable_mosaic.version = 11 : i64} {
  func.func @_bn_apply_kernel(%arg0: i32, %arg1: memref<256x160xf32, #tpu.memory_space<vmem>>, %arg2: memref<2x160xf32, #tpu.memory_space<vmem>>, %arg3: memref<256x160xf32, #tpu.memory_space<vmem>>) attributes {dimension_semantics = [#tpu.dimension_semantics<parallel>], iteration_bounds = array<i64: 2>, scalar_prefetch = 0 : i64, scratch_operands = 0 : i64, tpu.core_type = #tpu.core_type<tc>, window_params = [{transform_indices = @transform_0, window_bounds = array<i64: 256, 160>}, {pipeline_mode = #tpu.pipeline_mode<synchronous>, transform_indices = @transform_1, window_bounds = array<i64: 2, 160>}, {transform_indices = @transform_2, window_bounds = array<i64: 256, 160>}]} {
    %c0 = arith.constant 0 : index
    %c0_0 = arith.constant 0 : index
    %0 = vector.load %arg1[%c0, %c0_0] : memref<256x160xf32, #tpu.memory_space<vmem>>, vector<256x160xf32>
    %c0_1 = arith.constant 0 : index
    %c0_2 = arith.constant 0 : index
    %1 = vector.load %arg2[%c0_1, %c0_2] : memref<2x160xf32, #tpu.memory_space<vmem>>, vector<1x160xf32>
    %2 = vector.broadcast %1 : vector<1x160xf32> to vector<256x160xf32>
    %3 = arith.mulf %0, %2 : vector<256x160xf32>
    %c1 = arith.constant 1 : index
    %c0_3 = arith.constant 0 : index
    %4 = vector.load %arg2[%c1, %c0_3] : memref<2x160xf32, #tpu.memory_space<vmem>>, vector<1x160xf32>
    %5 = vector.broadcast %4 : vector<1x160xf32> to vector<256x160xf32>
    %6 = arith.addf %3, %5 : vector<256x160xf32>
    %c0_4 = arith.constant 0 : index
    %c0_5 = arith.constant 0 : index
    %7 = vector.load %arg3[%c0_4, %c0_5] : memref<256x160xf32, #tpu.memory_space<vmem>>, vector<256x160xf32>
    tpu.vector_store %arg3[%c0_4, %c0_5], %6 {strides = array<i32>} : memref<256x160xf32, #tpu.memory_space<vmem>>, vector<256x160xf32>,
    return
  }
  func.func @transform_0(%arg0: i32) -> (i32, i32) {
    %c0_i32 = arith.constant 0 : i32
    %c0_i32_0 = arith.constant 0 : i32
    return %arg0, %c0_i32 : i32, i32
  }
  func.func @transform_1(%arg0: i32) -> (i32, i32) {
    %c0_i32 = arith.constant 0 : i32
    %c0_i32_0 = arith.constant 0 : i32
    %c0_i32_1 = arith.constant 0 : i32
    return %c0_i32, %c0_i32_0 : i32, i32
  }
  func.func @transform_2(%arg0: i32) -> (i32, i32) {
    %c0_i32 = arith.constant 0 : i32
    %c0_i32_0 = arith.constant 0 : i32
    return %arg0, %c0_i32 : i32, i32
  }
}

module attributes {stable_mosaic.version = 11 : i64} {
  func.func @_bn_apply_res_kernel(%arg0: i32, %arg1: memref<256x160xf32, #tpu.memory_space<vmem>>, %arg2: memref<2x160xf32, #tpu.memory_space<vmem>>, %arg3: memref<256x160xf32, #tpu.memory_space<vmem>>, %arg4: memref<256x160xf32, #tpu.memory_space<vmem>>) attributes {dimension_semantics = [#tpu.dimension_semantics<parallel>], iteration_bounds = array<i64: 2>, scalar_prefetch = 0 : i64, scratch_operands = 0 : i64, tpu.core_type = #tpu.core_type<tc>, window_params = [{transform_indices = @transform_0, window_bounds = array<i64: 256, 160>}, {pipeline_mode = #tpu.pipeline_mode<synchronous>, transform_indices = @transform_1, window_bounds = array<i64: 2, 160>}, {transform_indices = @transform_2, window_bounds = array<i64: 256, 160>}, {transform_indices = @transform_3, window_bounds = array<i64: 256, 160>}]} {
    %c0 = arith.constant 0 : index
    %c0_0 = arith.constant 0 : index
    %0 = vector.load %arg1[%c0, %c0_0] : memref<256x160xf32, #tpu.memory_space<vmem>>, vector<256x160xf32>
    %c0_1 = arith.constant 0 : index
    %c0_2 = arith.constant 0 : index
    %1 = vector.load %arg2[%c0_1, %c0_2] : memref<2x160xf32, #tpu.memory_space<vmem>>, vector<1x160xf32>
    %2 = vector.broadcast %1 : vector<1x160xf32> to vector<256x160xf32>
    %3 = arith.mulf %0, %2 : vector<256x160xf32>
    %c1 = arith.constant 1 : index
    %c0_3 = arith.constant 0 : index
    %4 = vector.load %arg2[%c1, %c0_3] : memref<2x160xf32, #tpu.memory_space<vmem>>, vector<1x160xf32>
    %5 = vector.broadcast %4 : vector<1x160xf32> to vector<256x160xf32>
    %6 = arith.addf %3, %5 : vector<256x160xf32>
    %c0_4 = arith.constant 0 : index
    %c0_5 = arith.constant 0 : index
    %7 = vector.load %arg3[%c0_4, %c0_5] : memref<256x160xf32, #tpu.memory_space<vmem>>, vector<256x160xf32>
    %8 = arith.addf %6, %7 : vector<256x160xf32>
    %c0_6 = arith.constant 0 : index
    %c0_7 = arith.constant 0 : index
    %9 = vector.load %arg4[%c0_6, %c0_7] : memref<256x160xf32, #tpu.memory_space<vmem>>, vector<256x160xf32>
    tpu.vector_store %arg4[%c0_6, %c0_7], %8 {strides = array<i32>} : memref<256x160xf32, #tpu.memory_space<vmem>>, vector<256x160xf32>,
    return
  }
  func.func @transform_0(%arg0: i32) -> (i32, i32) {
    %c0_i32 = arith.constant 0 : i32
    %c0_i32_0 = arith.constant 0 : i32
    return %arg0, %c0_i32 : i32, i32
  }
  func.func @transform_1(%arg0: i32) -> (i32, i32) {
    %c0_i32 = arith.constant 0 : i32
    %c0_i32_0 = arith.constant 0 : i32
    %c0_i32_1 = arith.constant 0 : i32
    return %c0_i32, %c0_i32_0 : i32, i32
  }
  func.func @transform_2(%arg0: i32) -> (i32, i32) {
    %c0_i32 = arith.constant 0 : i32
    %c0_i32_0 = arith.constant 0 : i32
    return %arg0, %c0_i32 : i32, i32
  }
  func.func @transform_3(%arg0: i32) -> (i32, i32) {
    %c0_i32 = arith.constant 0 : i32
    %c0_i32_0 = arith.constant 0 : i32
    return %arg0, %c0_i32 : i32, i32
  }
}

</mosaic_0001>

<llo_original>
// kernel: bifusion_forward.11
$region0: #{bifusion_forward.11}
  #allocation0 [shape = 'u32[]', space=smem, size = 0x4, offset = 0x4, fixed_abs, tag = 'smem constant byte address 0x4 - core index']
  #allocation1 [shape = 'u32[144,128]{1,0:T(1,128)}', space=vmem, size = 0x12000, scoped, tag = 'internal scratch']
  %s0 = inlined_call_operand.hbm [shape: f32[2,256,64], index: 0, kind: input, shape index: {}]
  %s1 = inlined_call_operand.vmem [shape: f32[2,256,1], index: 1, kind: output, shape index: {0}]
  %s2 = inlined_call_operand.vmem [shape: f32[2,256,1], index: 2, kind: output, shape index: {1}]
  %3 = xla_tuple %s1, %s2
  %s4 = sld [smem:[#allocation0]]
  $region49: #{bifusion_forward.11} parent=0
    _
  %s6 = ssub.s32 1, %s4
  %s7 = scalar_select 0, %s6, %s4
  $region1: #{bifusion_forward.11} parent=0
    #allocation2 [shape = 'u8[262144]{0}', space=vmem, size = 0x40000, scoped, tag = 'input window, operand 0']
    #allocation3 [shape = 's32[2]{0}', space=sflag, size = 0x8, scoped, tag = 'scoped memory for bifusion_forward.11']
    %8 = vsyncpa [#allocation3], 0
    %s9 = scalar_lea.sflag [#allocation3], 1
    %10 = vsyncpa %s9, 0
    loop: start=0, step=1, limit=4
    $region2: #{bifusion_forward.11} parent=1 // loop_pre_header
      _
    $region3: #{bifusion_forward.11} parent=1 // loop_header
      %s12 = sphi 0, %s16
      %p13 = scmp.ge.s32.totalorder %s12, 4
      %s22 = sphi 0, %s24
      %s25 = sphi 0, %s22
      %s26 = sphi 0, %s25
      %s42 = sphi 0, %s26
      %s48 = sphi 0, %s50
      %s51 = sphi 0, %s48
      %s52 = sphi 0, %s51
      %s68 = sphi 0, %s52
      %s74 = sphi 0, %s76
      %s77 = sphi 0, %s74
      %s78 = sphi 0, %s77
      %s94 = sphi 0, %s78
    $region4: #{bifusion_forward.11} parent=1 // loop_header_branch
      %15 = sbr.rel (%p13) target = $region8
    $region5: #{bifusion_forward.11} parent=1 // loop_body
      %s17 = ssub.s32 %s12, 1
      %s18 = ssub.s32 %s12, 2
      %s19 = sadd.s32 %s12, 1
      %s20 = ssub.s32 %s12, %s19
      %p21 = scmp.eq.s32.totalorder %s20, 0
      %s23 = sadd.s32 %s22, 1
      %s24 = scalar_select %p21, %s22, %s23
      %p27 = pneg %p21
      %p28 = scmp.eq.s32.totalorder %s12, 1
      %p29 = por %p27, %p28
      %p30 = scmp.ne.s32.totalorder %s22, %s25
      %p31 = scmp.eq.s32.totalorder %s12, 0
      %p32 = por %p30, %p31
      %p33 = scmp.ne.s32.totalorder %s22, %s25
      %p34 = scmp.eq.s32.totalorder %s17, 1
      %p35 = por %p33, %p34
      %p36 = scmp.ne.s32.totalorder %s25, %s26
      %p37 = scmp.eq.s32.totalorder %s17, 0
      %p38 = por %p36, %p37
      %p39 = scmp.ne.s32.totalorder %s25, %s26
      %p40 = scmp.eq.s32.totalorder %s18, 1
      %p41 = por %p39, %p40
      %p43 = scmp.ne.s32.totalorder %s26, %s42
      %p44 = scmp.eq.s32.totalorder %s18, 0
      %p45 = por %p43, %p44
      %s46 = ssub.s32 %s12, %s19
      %p47 = scmp.eq.s32.totalorder %s46, 0
      %s49 = sadd.s32 %s48, 1
      %s50 = scalar_select %p47, %s48, %s49
      %p53 = pneg %p47
      %p54 = scmp.eq.s32.totalorder %s12, 1
      %p55 = por %p53, %p54
      %p56 = scmp.ne.s32.totalorder %s48, %s51
      %p57 = scmp.eq.s32.totalorder %s12, 0
      %p58 = por %p56, %p57
      %p59 = scmp.ne.s32.totalorder %s48, %s51
      %p60 = scmp.eq.s32.totalorder %s17, 1
      %p61 = por %p59, %p60
      %p62 = scmp.ne.s32.totalorder %s51, %s52
      %p63 = scmp.eq.s32.totalorder %s17, 0
      %p64 = por %p62, %p63
      %p65 = scmp.ne.s32.totalorder %s51, %s52
      %p66 = scmp.eq.s32.totalorder %s18, 1
      %p67 = por %p65, %p66
      %p69 = scmp.ne.s32.totalorder %s52, %s68
      %p70 = scmp.eq.s32.totalorder %s18, 0
      %p71 = por %p69, %p70
      %s72 = ssub.s32 %s12, %s19
      %p73 = scmp.eq.s32.totalorder %s72, 0
      %s75 = sadd.s32 %s74, 1
      %s76 = scalar_select %p73, %s74, %s75
      %p79 = pneg %p73
      %p80 = scmp.eq.s32.totalorder %s12, 1
      %p81 = por %p79, %p80
      %p82 = scmp.ne.s32.totalorder %s74, %s77
      %p83 = scmp.eq.s32.totalorder %s12, 0
      %p84 = por %p82, %p83
      %p85 = scmp.ne.s32.totalorder %s74, %s77
      %p86 = scmp.eq.s32.totalorder %s17, 1
      %p87 = por %p85, %p86
      %p88 = scmp.ne.s32.totalorder %s77, %s78
      %p89 = scmp.eq.s32.totalorder %s17, 0
      %p90 = por %p88, %p89
      %p91 = scmp.ne.s32.totalorder %s77, %s78
      %p92 = scmp.eq.s32.totalorder %s18, 1
      %p93 = por %p91, %p92
      %p95 = scmp.ne.s32.totalorder %s78, %s94
      %p96 = scmp.eq.s32.totalorder %s18, 0
      %p97 = por %p95, %p96
      %p98 = scmp.le.s32.totalorder 1, %s12
      %p99 = scmp.lt.s32.totalorder %s12, 3
      %p100 = pnand %p98, %p99
      %p101 = pneg %p100
      // Predicated region
      $region9: #{bifusion_forward.11} parent=5 // pred_check
        _
      $region10: #{bifusion_forward.11} parent=5 // pred_check_branch
        %103 = sbr.rel (%p100) target = $region12
      $region11: #{bifusion_forward.11} parent=5 // pred_region
        %s104 = ssub.s32 %s12, 1
      $region12: #{bifusion_forward.11} parent=5 // pred_fallthru
        _
      %p105 = scmp.lt.s32.totalorder %s12, 2
      // Predicated region
      $region13: #{bifusion_forward.11} parent=5 // pred_check
        %p106 = pneg %p105
      $region14: #{bifusion_forward.11} parent=5 // pred_check_branch
        %108 = sbr.rel (%p106) target = $region16
      $region15: #{bifusion_forward.11} parent=5 // pred_region
        // Predicated region
        $region17: #{bifusion_forward.11} parent=15 // pred_check
          %p109 = pneg %p32
        $region18: #{bifusion_forward.11} parent=15 // pred_check_branch
          %111 = sbr.rel (%p109) target = $region20
        $region19: #{bifusion_forward.11} parent=15 // pred_region
          %s112 = sand.u32 %s22, 1
          %s113 = scalar_lea.sflag [#allocation3], %s112
          %s114 = sand.u32 %s22, 1
          %s115 = smul.addr %s114, 256
          %s116 = scalar_lea.vmem [#allocation2], %s115
          %s118 = ssub.s32 4096, 4096
          %119 = vsyncadd %s113, %s118
          %s120 = smul.addr %s12, 32
          %s121 = smul.addr %s120, 128
          %s122 = scalar_lea.hbm %s0, %s121
          %s123 = sshll.u32 %s116, 4
          %s124 = int_to_ptr.vmem [resolvable:$true] %s123
          %129 = dma.hbm_to_vmem [thread:$0]  %s122, 4096, %s124, %s113, 128, 128, 8
        $region20: #{bifusion_forward.11} parent=15 // pred_fallthru
          _
      $region16: #{bifusion_forward.11} parent=5 // pred_fallthru
        _
      %p130 = scmp.le.s32.totalorder 1, %s12
      %p131 = scmp.lt.s32.totalorder %s12, 3
      %p132 = pnand %p130, %p131
      %p133 = pneg %p132
      // Predicated region
      $region21: #{bifusion_forward.11} parent=5 // pred_check
        _
      $region22: #{bifusion_forward.11} parent=5 // pred_check_branch
        %135 = sbr.rel (%p132) target = $region24
      $region23: #{bifusion_forward.11} parent=5 // pred_region
        %s136 = ssub.s32 %s12, 1
        %s137 = sand.u32 %s25, 1
        %s138 = scalar_lea.sflag [#allocation3], %s137
        %s139 = sand.u32 %s25, 1
        %s140 = smul.addr %s139, 256
        %s141 = scalar_lea.vmem [#allocation2], %s140
        // Predicated region
        $region25: #{bifusion_forward.11} parent=23 // pred_check
          %p142 = pneg %p38
        $region26: #{bifusion_forward.11} parent=23 // pred_check_branch
          %144 = sbr.rel (%p142) target = $region28
        $region27: #{bifusion_forward.11} parent=23 // pred_region
          %145 = dma.done %s138, 4096
        $region28: #{bifusion_forward.11} parent=23 // pred_fallthru
          _
        %s146 = sand.u32 %s25, 1
        %s147 = scalar_lea.sflag [#allocation3], %s146
        %s148 = sand.u32 %s25, 1
        %s149 = smul.addr %s148, 256
        %s150 = scalar_lea.vmem [#allocation2], %s149
        %p151 = pneg %p38
        %p152 = pneg %p35
        %p153 = pneg %p64
        %p154 = pneg %p61
        %p155 = scmp.lt.s32.totalorder %s17, 1
        %s156 = scalar_select %p155, %s17, 1
        %s157 = smul.addr %s156, 32
        %s158 = smul.addr %s157, 8
        %s159 = scalar_lea.vmem %s1, %s158
        %p160 = pneg %p90
        %p161 = pneg %p87
        %p162 = scmp.lt.s32.totalorder %s17, 1
        %s163 = scalar_select %p162, %s17, 1
        %s164 = smul.addr %s163, 32
        %s165 = smul.addr %s164, 8
        %s166 = scalar_lea.vmem %s2, %s165
        %p167 = scmp.lt.s32.totalorder %s17, 1
        %s168 = scalar_select %p167, %s17, 1
        %s169 = smul.addr %s168, 32
        %s170 = smul.addr %s169, 8
        %s171 = scalar_lea.vmem %s1, %s170
        %p172 = scmp.lt.s32.totalorder %s17, 1
        %s173 = scalar_select %p172, %s17, 1
        %s174 = smul.addr %s173, 32
        %s175 = smul.addr %s174, 8
        %s176 = scalar_lea.vmem %s2, %s175
        %v177 = vld [vmem:[%s141] sm:$0xff]
        %v178 = vld [vmem:[%s141 + $0x8] sm:$0xff]
        %v179 = vld [vmem:[%s141 + $0x10] sm:$0xff]
        %v180 = vld [vmem:[%s141 + $0x18] sm:$0xff]
        %v181 = vld [vmem:[%s141 + $0x20] sm:$0xff]
        %v182 = vld [vmem:[%s141 + $0x28] sm:$0xff]
        %v183 = vld [vmem:[%s141 + $0x30] sm:$0xff]
        %v184 = vld [vmem:[%s141 + $0x38] sm:$0xff]
        %v185 = vld [vmem:[%s141 + $0x40] sm:$0xff]
        %v186 = vld [vmem:[%s141 + $0x48] sm:$0xff]
        %v187 = vld [vmem:[%s141 + $0x50] sm:$0xff]
        %v188 = vld [vmem:[%s141 + $0x58] sm:$0xff]
        %v189 = vld [vmem:[%s141 + $0x60] sm:$0xff]
        %v190 = vld [vmem:[%s141 + $0x68] sm:$0xff]
        %v191 = vld [vmem:[%s141 + $0x70] sm:$0xff]
        %v192 = vld [vmem:[%s141 + $0x78] sm:$0xff]
        %v193 = vld [vmem:[%s141 + $0x80] sm:$0xff]
        %v194 = vld [vmem:[%s141 + $0x88] sm:$0xff]
        %v195 = vld [vmem:[%s141 + $0x90] sm:$0xff]
        %v196 = vld [vmem:[%s141 + $0x98] sm:$0xff]
        %v197 = vld [vmem:[%s141 + $0xa0] sm:$0xff]
        %v198 = vld [vmem:[%s141 + $0xa8] sm:$0xff]
        %v199 = vld [vmem:[%s141 + $0xb0] sm:$0xff]
        %v200 = vld [vmem:[%s141 + $0xb8] sm:$0xff]
        %v201 = vld [vmem:[%s141 + $0xc0] sm:$0xff]
        %v202 = vld [vmem:[%s141 + $0xc8] sm:$0xff]
        %v203 = vld [vmem:[%s141 + $0xd0] sm:$0xff]
        %v204 = vld [vmem:[%s141 + $0xd8] sm:$0xff]
        %v205 = vld [vmem:[%s141 + $0xe0] sm:$0xff]
        %v206 = vld [vmem:[%s141 + $0xe8] sm:$0xff]
        %v207 = vld [vmem:[%s141 + $0xf0] sm:$0xff]
        %v208 = vld [vmem:[%s141 + $0xf8] sm:$0xff]
        %vm209 = vcmask 523264
        %v210 = vsel %vm209, %v177, -inf
        %211 = vmax.xlane.f32.xlu0 %v210
        %v212 = vpop.xlane.xlu0 %211
        %v213 = vsel %vm209, %v178, -inf
        %214 = vmax.xlane.f32.xlu0 %v213
        %v215 = vpop.xlane.xlu0 %214
        %v216 = vsel %vm209, %v179, -inf
        %217 = vmax.xlane.f32.xlu0 %v216
        %v218 = vpop.xlane.xlu0 %217
        %v219 = vsel %vm209, %v180, -inf
        %220 = vmax.xlane.f32.xlu0 %v219
        %v221 = vpop.xlane.xlu0 %220
        %v222 = vsel %vm209, %v181, -inf
        %223 = vmax.xlane.f32.xlu0 %v222
        %v224 = vpop.xlane.xlu0 %223
        %v225 = vsel %vm209, %v182, -inf
        %226 = vmax.xlane.f32.xlu0 %v225
        %v227 = vpop.xlane.xlu0 %226
        %v228 = vsel %vm209, %v183, -inf
        %229 = vmax.xlane.f32.xlu0 %v228
        %v230 = vpop.xlane.xlu0 %229
        %v231 = vsel %vm209, %v184, -inf
        %232 = vmax.xlane.f32.xlu0 %v231
        %v233 = vpop.xlane.xlu0 %232
        %v234 = vsel %vm209, %v185, -inf
        %235 = vmax.xlane.f32.xlu0 %v234
        %v236 = vpop.xlane.xlu0 %235
        %v237 = vsel %vm209, %v186, -inf
        %238 = vmax.xlane.f32.xlu0 %v237
        %v239 = vpop.xlane.xlu0 %238
        %v240 = vsel %vm209, %v187, -inf
        %241 = vmax.xlane.f32.xlu0 %v240
        %v242 = vpop.xlane.xlu0 %241
        %v243 = vsel %vm209, %v188, -inf
        %244 = vmax.xlane.f32.xlu0 %v243
        %v245 = vpop.xlane.xlu0 %244
        %v246 = vsel %vm209, %v189, -inf
        %247 = vmax.xlane.f32.xlu0 %v246
        %v248 = vpop.xlane.xlu0 %247
        %v249 = vsel %vm209, %v190, -inf
        %250 = vmax.xlane.f32.xlu0 %v249
        %v251 = vpop.xlane.xlu0 %250
        %v252 = vsel %vm209, %v191, -inf
        %253 = vmax.xlane.f32.xlu0 %v252
        %v254 = vpop.xlane.xlu0 %253
        %v255 = vsel %vm209, %v192, -inf
        %256 = vmax.xlane.f32.xlu0 %v255
        %v257 = vpop.xlane.xlu0 %256
        %v258 = vsel %vm209, %v193, -inf
        %259 = vmax.xlane.f32.xlu0 %v258
        %v260 = vpop.xlane.xlu0 %259
        %v261 = vsel %vm209, %v194, -inf
        %262 = vmax.xlane.f32.xlu0 %v261
        %v263 = vpop.xlane.xlu0 %262
        %v264 = vsel %vm209, %v195, -inf
        %265 = vmax.xlane.f32.xlu0 %v264
        %v266 = vpop.xlane.xlu0 %265
        %v267 = vsel %vm209, %v196, -inf
        %268 = vmax.xlane.f32.xlu0 %v267
        %v269 = vpop.xlane.xlu0 %268
        %v270 = vsel %vm209, %v197, -inf
        %271 = vmax.xlane.f32.xlu0 %v270
        %v272 = vpop.xlane.xlu0 %271
        %v273 = vsel %vm209, %v198, -inf
        %274 = vmax.xlane.f32.xlu0 %v273
        %v275 = vpop.xlane.xlu0 %274
        %v276 = vsel %vm209, %v199, -inf
        %277 = vmax.xlane.f32.xlu0 %v276
        %v278 = vpop.xlane.xlu0 %277
        %v279 = vsel %vm209, %v200, -inf
        %280 = vmax.xlane.f32.xlu0 %v279
        %v281 = vpop.xlane.xlu0 %280
        %v282 = vsel %vm209, %v201, -inf
        %283 = vmax.xlane.f32.xlu0 %v282
        %v284 = vpop.xlane.xlu0 %283
        %v285 = vsel %vm209, %v202, -inf
        %286 = vmax.xlane.f32.xlu0 %v285
        %v287 = vpop.xlane.xlu0 %286
        %v288 = vsel %vm209, %v203, -inf
        %289 = vmax.xlane.f32.xlu0 %v288
        %v290 = vpop.xlane.xlu0 %289
        %v291 = vsel %vm209, %v204, -inf
        %292 = vmax.xlane.f32.xlu0 %v291
        %v293 = vpop.xlane.xlu0 %292
        %v294 = vsel %vm209, %v205, -inf
        %295 = vmax.xlane.f32.xlu0 %v294
        %v296 = vpop.xlane.xlu0 %295
        %v297 = vsel %vm209, %v206, -inf
        %298 = vmax.xlane.f32.xlu0 %v297
        %v299 = vpop.xlane.xlu0 %298
        %v300 = vsel %vm209, %v207, -inf
        %301 = vmax.xlane.f32.xlu0 %v300
        %v302 = vpop.xlane.xlu0 %301
        %v303 = vsel %vm209, %v208, -inf
        %304 = vmax.xlane.f32.xlu0 %v303
        %v305 = vpop.xlane.xlu0 %304
        %vm306 = vcmask 7168
        %307 = vst.msk [vmem:[%s171] sm:$0xff] %vm306, %v212
        %308 = vst.msk [vmem:[%s171 + $0x8] sm:$0xff] %vm306, %v215
        %309 = vst.msk [vmem:[%s171 + $0x10] sm:$0xff] %vm306, %v218
        %310 = vst.msk [vmem:[%s171 + $0x18] sm:$0xff] %vm306, %v221
        %311 = vst.msk [vmem:[%s171 + $0x20] sm:$0xff] %vm306, %v224
        %312 = vst.msk [vmem:[%s171 + $0x28] sm:$0xff] %vm306, %v227
        %313 = vst.msk [vmem:[%s171 + $0x30] sm:$0xff] %vm306, %v230
        %314 = vst.msk [vmem:[%s171 + $0x38] sm:$0xff] %vm306, %v233
        %315 = vst.msk [vmem:[%s171 + $0x40] sm:$0xff] %vm306, %v236
        %316 = vst.msk [vmem:[%s171 + $0x48] sm:$0xff] %vm306, %v239
        %317 = vst.msk [vmem:[%s171 + $0x50] sm:$0xff] %vm306, %v242
        %318 = vst.msk [vmem:[%s171 + $0x58] sm:$0xff] %vm306, %v245
        %319 = vst.msk [vmem:[%s171 + $0x60] sm:$0xff] %vm306, %v248
        %320 = vst.msk [vmem:[%s171 + $0x68] sm:$0xff] %vm306, %v251
        %321 = vst.msk [vmem:[%s171 + $0x70] sm:$0xff] %vm306, %v254
        %322 = vst.msk [vmem:[%s171 + $0x78] sm:$0xff] %vm306, %v257
        %323 = vst.msk [vmem:[%s171 + $0x80] sm:$0xff] %vm306, %v260
        %324 = vst.msk [vmem:[%s171 + $0x88] sm:$0xff] %vm306, %v263
        %325 = vst.msk [vmem:[%s171 + $0x90] sm:$0xff] %vm306, %v266
        %326 = vst.msk [vmem:[%s171 + $0x98] sm:$0xff] %vm306, %v269
        %327 = vst.msk [vmem:[%s171 + $0xa0] sm:$0xff] %vm306, %v272
        %328 = vst.msk [vmem:[%s171 + $0xa8] sm:$0xff] %vm306, %v275
        %329 = vst.msk [vmem:[%s171 + $0xb0] sm:$0xff] %vm306, %v278
        %330 = vst.msk [vmem:[%s171 + $0xb8] sm:$0xff] %vm306, %v281
        %331 = vst.msk [vmem:[%s171 + $0xc0] sm:$0xff] %vm306, %v284
        %332 = vst.msk [vmem:[%s171 + $0xc8] sm:$0xff] %vm306, %v287
        %333 = vst.msk [vmem:[%s171 + $0xd0] sm:$0xff] %vm306, %v290
        %334 = vst.msk [vmem:[%s171 + $0xd8] sm:$0xff] %vm306, %v293
        %335 = vst.msk [vmem:[%s171 + $0xe0] sm:$0xff] %vm306, %v296
        %336 = vst.msk [vmem:[%s171 + $0xe8] sm:$0xff] %vm306, %v299
        %337 = vst.msk [vmem:[%s171 + $0xf0] sm:$0xff] %vm306, %v302
        %338 = vst.msk [vmem:[%s171 + $0xf8] sm:$0xff] %vm306, %v305
        %v339 = vsel %vm209, %v177, 0.0
        %340 = vadd.xlane.f32.xlu0 %v339
        %v341 = vpop.xlane.xlu0 %340
        %v342 = vsel %vm209, %v178, 0.0
        %343 = vadd.xlane.f32.xlu0 %v342
        %v344 = vpop.xlane.xlu0 %343
        %v345 = vsel %vm209, %v179, 0.0
        %346 = vadd.xlane.f32.xlu0 %v345
        %v347 = vpop.xlane.xlu0 %346
        %v348 = vsel %vm209, %v180, 0.0
        %349 = vadd.xlane.f32.xlu0 %v348
        %v350 = vpop.xlane.xlu0 %349
        %v351 = vsel %vm209, %v181, 0.0
        %352 = vadd.xlane.f32.xlu0 %v351
        %v353 = vpop.xlane.xlu0 %352
        %v354 = vsel %vm209, %v182, 0.0
        %355 = vadd.xlane.f32.xlu0 %v354
        %v356 = vpop.xlane.xlu0 %355
        %v357 = vsel %vm209, %v183, 0.0
        %358 = vadd.xlane.f32.xlu0 %v357
        %v359 = vpop.xlane.xlu0 %358
        %v360 = vsel %vm209, %v184, 0.0
        %361 = vadd.xlane.f32.xlu0 %v360
        %v362 = vpop.xlane.xlu0 %361
        %v363 = vsel %vm209, %v185, 0.0
        %364 = vadd.xlane.f32.xlu0 %v363
        %v365 = vpop.xlane.xlu0 %364
        %v366 = vsel %vm209, %v186, 0.0
        %367 = vadd.xlane.f32.xlu0 %v366
        %v368 = vpop.xlane.xlu0 %367
        %v369 = vsel %vm209, %v187, 0.0
        %370 = vadd.xlane.f32.xlu0 %v369
        %v371 = vpop.xlane.xlu0 %370
        %v372 = vsel %vm209, %v188, 0.0
        %373 = vadd.xlane.f32.xlu0 %v372
        %v374 = vpop.xlane.xlu0 %373
        %v375 = vsel %vm209, %v189, 0.0
        %376 = vadd.xlane.f32.xlu0 %v375
        %v377 = vpop.xlane.xlu0 %376
        %v378 = vsel %vm209, %v190, 0.0
        %379 = vadd.xlane.f32.xlu0 %v378
        %v380 = vpop.xlane.xlu0 %379
        %v381 = vsel %vm209, %v191, 0.0
        %382 = vadd.xlane.f32.xlu0 %v381
        %v383 = vpop.xlane.xlu0 %382
        %v384 = vsel %vm209, %v192, 0.0
        %385 = vadd.xlane.f32.xlu0 %v384
        %v386 = vpop.xlane.xlu0 %385
        %v387 = vsel %vm209, %v193, 0.0
        %388 = vadd.xlane.f32.xlu0 %v387
        %v389 = vpop.xlane.xlu0 %388
        %v390 = vsel %vm209, %v194, 0.0
        %391 = vadd.xlane.f32.xlu0 %v390
        %v392 = vpop.xlane.xlu0 %391
        %v393 = vsel %vm209, %v195, 0.0
        %394 = vadd.xlane.f32.xlu0 %v393
        %v395 = vpop.xlane.xlu0 %394
        %v396 = vsel %vm209, %v196, 0.0
        %397 = vadd.xlane.f32.xlu0 %v396
        %v398 = vpop.xlane.xlu0 %397
        %v399 = vsel %vm209, %v197, 0.0
        %400 = vadd.xlane.f32.xlu0 %v399
        %v401 = vpop.xlane.xlu0 %400
        %v402 = vsel %vm209, %v198, 0.0
        %403 = vadd.xlane.f32.xlu0 %v402
        %v404 = vpop.xlane.xlu0 %403
        %v405 = vsel %vm209, %v199, 0.0
        %406 = vadd.xlane.f32.xlu0 %v405
        %v407 = vpop.xlane.xlu0 %406
        %v408 = vsel %vm209, %v200, 0.0
        %409 = vadd.xlane.f32.xlu0 %v408
        %v410 = vpop.xlane.xlu0 %409
        %v411 = vsel %vm209, %v201, 0.0
        %412 = vadd.xlane.f32.xlu0 %v411
        %v413 = vpop.xlane.xlu0 %412
        %v414 = vsel %vm209, %v202, 0.0
        %415 = vadd.xlane.f32.xlu0 %v414
        %v416 = vpop.xlane.xlu0 %415
        %v417 = vsel %vm209, %v203, 0.0
        %418 = vadd.xlane.f32.xlu0 %v417
        %v419 = vpop.xlane.xlu0 %418
        %v420 = vsel %vm209, %v204, 0.0
        %421 = vadd.xlane.f32.xlu0 %v420
        %v422 = vpop.xlane.xlu0 %421
        %v423 = vsel %vm209, %v205, 0.0
        %424 = vadd.xlane.f32.xlu0 %v423
        %v425 = vpop.xlane.xlu0 %424
        %v426 = vsel %vm209, %v206, 0.0
        %427 = vadd.xlane.f32.xlu0 %v426
        %v428 = vpop.xlane.xlu0 %427
        %v429 = vsel %vm209, %v207, 0.0
        %430 = vadd.xlane.f32.xlu0 %v429
        %v431 = vpop.xlane.xlu0 %430
        %v432 = vsel %vm209, %v208, 0.0
        %433 = vadd.xlane.f32.xlu0 %v432
        %v434 = vpop.xlane.xlu0 %433
        %v435 = vmul.f32 %v341, 0.015625
        %v436 = vmul.f32 %v344, 0.015625
        %v437 = vmul.f32 %v347, 0.015625
        %v438 = vmul.f32 %v350, 0.015625
        %v439 = vmul.f32 %v353, 0.015625
        %v440 = vmul.f32 %v356, 0.015625
        %v441 = vmul.f32 %v359, 0.015625
        %v442 = vmul.f32 %v362, 0.015625
        %v443 = vmul.f32 %v365, 0.015625
        %v444 = vmul.f32 %v368, 0.015625
        %v445 = vmul.f32 %v371, 0.015625
        %v446 = vmul.f32 %v374, 0.015625
        %v447 = vmul.f32 %v377, 0.015625
        %v448 = vmul.f32 %v380, 0.015625
        %v449 = vmul.f32 %v383, 0.015625
        %v450 = vmul.f32 %v386, 0.015625
        %v451 = vmul.f32 %v389, 0.015625
        %v452 = vmul.f32 %v392, 0.015625
        %v453 = vmul.f32 %v395, 0.015625
        %v454 = vmul.f32 %v398, 0.015625
        %v455 = vmul.f32 %v401, 0.015625
        %v456 = vmul.f32 %v404, 0.015625
        %v457 = vmul.f32 %v407, 0.015625
        %v458 = vmul.f32 %v410, 0.015625
        %v459 = vmul.f32 %v413, 0.015625
        %v460 = vmul.f32 %v416, 0.015625
        %v461 = vmul.f32 %v419, 0.015625
        %v462 = vmul.f32 %v422, 0.015625
        %v463 = vmul.f32 %v425, 0.015625
        %v464 = vmul.f32 %v428, 0.015625
        %v465 = vmul.f32 %v431, 0.015625
        %v466 = vmul.f32 %v434, 0.015625
        %467 = vst.msk [vmem:[%s176] sm:$0xff] %vm306, %v435
        %468 = vst.msk [vmem:[%s176 + $0x8] sm:$0xff] %vm306, %v436
        %469 = vst.msk [vmem:[%s176 + $0x10] sm:$0xff] %vm306, %v437
        %470 = vst.msk [vmem:[%s176 + $0x18] sm:$0xff] %vm306, %v438
        %471 = vst.msk [vmem:[%s176 + $0x20] sm:$0xff] %vm306, %v439
        %472 = vst.msk [vmem:[%s176 + $0x28] sm:$0xff] %vm306, %v440
        %473 = vst.msk [vmem:[%s176 + $0x30] sm:$0xff] %vm306, %v441
        %474 = vst.msk [vmem:[%s176 + $0x38] sm:$0xff] %vm306, %v442
        %475 = vst.msk [vmem:[%s176 + $0x40] sm:$0xff] %vm306, %v443
        %476 = vst.msk [vmem:[%s176 + $0x48] sm:$0xff] %vm306, %v444
        %477 = vst.msk [vmem:[%s176 + $0x50] sm:$0xff] %vm306, %v445
        %478 = vst.msk [vmem:[%s176 + $0x58] sm:$0xff] %vm306, %v446
        %479 = vst.msk [vmem:[%s176 + $0x60] sm:$0xff] %vm306, %v447
        %480 = vst.msk [vmem:[%s176 + $0x68] sm:$0xff] %vm306, %v448
        %481 = vst.msk [vmem:[%s176 + $0x70] sm:$0xff] %vm306, %v449
        %482 = vst.msk [vmem:[%s176 + $0x78] sm:$0xff] %vm306, %v450
        %483 = vst.msk [vmem:[%s176 + $0x80] sm:$0xff] %vm306, %v451
        %484 = vst.msk [vmem:[%s176 + $0x88] sm:$0xff] %vm306, %v452
        %485 = vst.msk [vmem:[%s176 + $0x90] sm:$0xff] %vm306, %v453
        %486 = vst.msk [vmem:[%s176 + $0x98] sm:$0xff] %vm306, %v454
        %487 = vst.msk [vmem:[%s176 + $0xa0] sm:$0xff] %vm306, %v455
        %488 = vst.msk [vmem:[%s176 + $0xa8] sm:$0xff] %vm306, %v456
        %489 = vst.msk [vmem:[%s176 + $0xb0] sm:$0xff] %vm306, %v457
        %490 = vst.msk [vmem:[%s176 + $0xb8] sm:$0xff] %vm306, %v458
        %491 = vst.msk [vmem:[%s176 + $0xc0] sm:$0xff] %vm306, %v459
        %492 = vst.msk [vmem:[%s176 + $0xc8] sm:$0xff] %vm306, %v460
        %493 = vst.msk [vmem:[%s176 + $0xd0] sm:$0xff] %vm306, %v461
        %494 = vst.msk [vmem:[%s176 + $0xd8] sm:$0xff] %vm306, %v462
        %495 = vst.msk [vmem:[%s176 + $0xe0] sm:$0xff] %vm306, %v463
        %496 = vst.msk [vmem:[%s176 + $0xe8] sm:$0xff] %vm306, %v464
        %497 = vst.msk [vmem:[%s176 + $0xf0] sm:$0xff] %vm306, %v465
        %498 = vst.msk [vmem:[%s176 + $0xf8] sm:$0xff] %vm306, %v466
        %p499 = scmp.lt.s32.totalorder %s17, 1
        %s500 = scalar_select %p499, %s17, 1
        %s501 = smul.addr %s500, 32
        %s502 = smul.addr %s501, 8
        %s503 = scalar_lea.vmem %s1, %s502
        %p504 = scmp.lt.s32.totalorder %s17, 1
        %s505 = scalar_select %p504, %s17, 1
        %s506 = smul.addr %s505, 32
        %s507 = smul.addr %s506, 8
        %s508 = scalar_lea.vmem %s2, %s507
        // Predicated region
        $region29: #{bifusion_forward.11} parent=23 // pred_check
          %p509 = pneg %p61
        $region30: #{bifusion_forward.11} parent=23 // pred_check_branch
          %511 = sbr.rel (%p509) target = $region32
        $region31: #{bifusion_forward.11} parent=23 // pred_region
          _
        $region32: #{bifusion_forward.11} parent=23 // pred_fallthru
          _
        // Predicated region
        $region33: #{bifusion_forward.11} parent=23 // pred_check
          %p512 = pneg %p87
        $region34: #{bifusion_forward.11} parent=23 // pred_check_branch
          %514 = sbr.rel (%p512) target = $region36
        $region35: #{bifusion_forward.11} parent=23 // pred_region
          _
        $region36: #{bifusion_forward.11} parent=23 // pred_fallthru
          _
      $region24: #{bifusion_forward.11} parent=5 // pred_fallthru
        _
      %p515 = scmp.le.s32.totalorder 2, %s12
      // Predicated region
      $region37: #{bifusion_forward.11} parent=5 // pred_check
        %p516 = pneg %p515
      $region38: #{bifusion_forward.11} parent=5 // pred_check_branch
        %518 = sbr.rel (%p516) target = $region40
      $region39: #{bifusion_forward.11} parent=5 // pred_region
        %s519 = ssub.s32 %s12, 2
        // Predicated region
        $region41: #{bifusion_forward.11} parent=39 // pred_check
          %p520 = pneg %p67
        $region42: #{bifusion_forward.11} parent=39 // pred_check_branch
          %522 = sbr.rel (%p520) target = $region44
        $region43: #{bifusion_forward.11} parent=39 // pred_region
          %p523 = scmp.lt.s32.totalorder %s18, 1
          %s524 = scalar_select %p523, %s18, 1
          %s525 = smul.addr %s524, 32
          %s526 = smul.addr %s525, 8
          %s527 = scalar_lea.vmem %s1, %s526
        $region44: #{bifusion_forward.11} parent=39 // pred_fallthru
          _
        // Predicated region
        $region45: #{bifusion_forward.11} parent=39 // pred_check
          %p528 = pneg %p93
        $region46: #{bifusion_forward.11} parent=39 // pred_check_branch
          %530 = sbr.rel (%p528) target = $region48
        $region47: #{bifusion_forward.11} parent=39 // pred_region
          %p531 = scmp.lt.s32.totalorder %s18, 1
          %s532 = scalar_select %p531, %s18, 1
          %s533 = smul.addr %s532, 32
          %s534 = smul.addr %s533, 8
          %s535 = scalar_lea.vmem %s2, %s534
        $region48: #{bifusion_forward.11} parent=39 // pred_fallthru
          _
      $region40: #{bifusion_forward.11} parent=5 // pred_fallthru
        _
    $region6: #{bifusion_forward.11} parent=1 // loop_footer
      %s16 = sadd.s32 1, %s12
    $region7: #{bifusion_forward.11} parent=1 // loop_footer_branch
      %11 = sbr.rel target = $region3
    $region8: #{bifusion_forward.11} parent=1 // loop_exit
      _
    %536 = vsyncpa [#allocation3], 1
    %s537 = scalar_lea.sflag [#allocation3], 1
    %538 = vsyncpa %s537, 1

// kernel: bifusion_forward.12
$region0: #{bifusion_forward.12}
  #allocation0 [shape = 'u32[]', space=smem, size = 0x4, offset = 0x4, fixed_abs, tag = 'smem constant byte address 0x4 - core index']
  #allocation1 [shape = 'u32[144,128]{1,0:T(1,128)}', space=vmem, size = 0x12000, scoped, tag = 'internal scratch']
  %s0 = inlined_call_operand.vmem [shape: f32[512,98], index: 0, kind: input, shape index: {}]
  %s1 = inlined_call_operand.vmem [shape: f32[1,98], index: 1, kind: input, shape index: {}]
  %s2 = inlined_call_operand.vmem [shape: f32[512,1], index: 2, kind: output, shape index: {0}]
  %s3 = inlined_call_operand.vmem [shape: f32[2,1,1], index: 3, kind: output, shape index: {1}]
  %s4 = inlined_call_operand.vmem [shape: f32[2,1,1], index: 4, kind: output, shape index: {2}]
  %5 = xla_tuple %s2, %s3, %s4
  %s6 = sld [smem:[#allocation0]]
  $region57: #{bifusion_forward.12} parent=0
    _
  %s8 = ssub.s32 1, %s6
  %s9 = scalar_select 0, %s8, %s6
  loop: start=0, step=1, limit=4
  $region2: #{bifusion_forward.12} parent=0 // loop_pre_header
    _
  $region3: #{bifusion_forward.12} parent=0 // loop_header
    %s11 = sphi 0, %s15
    %p12 = scmp.ge.s32.totalorder %s11, 4
    %s21 = sphi 0, %s23
    %s24 = sphi 0, %s21
    %s25 = sphi 0, %s24
    %s41 = sphi 0, %s25
    %s45 = sphi 0, %s45
    %s47 = sphi 0, %s45
    %s48 = sphi 0, %s47
    %s62 = sphi 0, %s48
    %s68 = sphi 0, %s70
    %s71 = sphi 0, %s68
    %s72 = sphi 0, %s71
    %s88 = sphi 0, %s72
    %s94 = sphi 0, %s96
    %s97 = sphi 0, %s94
    %s98 = sphi 0, %s97
    %s114 = sphi 0, %s98
    %s120 = sphi 0, %s122
    %s123 = sphi 0, %s120
    %s124 = sphi 0, %s123
    %s140 = sphi 0, %s124
  $region4: #{bifusion_forward.12} parent=0 // loop_header_branch
    %14 = sbr.rel (%p12) target = $region8
  $region5: #{bifusion_forward.12} parent=0 // loop_body
    %s16 = ssub.s32 %s11, 1
    %s17 = ssub.s32 %s11, 2
    %s18 = sadd.s32 %s11, 1
    %s19 = ssub.s32 %s11, %s18
    %p20 = scmp.eq.s32.totalorder %s19, 0
    %s22 = sadd.s32 %s21, 1
    %s23 = scalar_select %p20, %s21, %s22
    %p26 = pneg %p20
    %p27 = scmp.eq.s32.totalorder %s11, 1
    %p28 = por %p26, %p27
    %p29 = scmp.ne.s32.totalorder %s21, %s24
    %p30 = scmp.eq.s32.totalorder %s11, 0
    %p31 = por %p29, %p30
    %p32 = scmp.ne.s32.totalorder %s21, %s24
    %p33 = scmp.eq.s32.totalorder %s16, 1
    %p34 = por %p32, %p33
    %p35 = scmp.ne.s32.totalorder %s24, %s25
    %p36 = scmp.eq.s32.totalorder %s16, 0
    %p37 = por %p35, %p36
    %p38 = scmp.ne.s32.totalorder %s24, %s25
    %p39 = scmp.eq.s32.totalorder %s17, 1
    %p40 = por %p38, %p39
    %p42 = scmp.ne.s32.totalorder %s25, %s41
    %p43 = scmp.eq.s32.totalorder %s17, 0
    %p44 = por %p42, %p43
    %s46 = sadd.s32 %s45, 1
    %p49 = scmp.eq.s32.totalorder %s11, 1
    %p50 = scmp.ne.s32.totalorder %s45, %s47
    %p51 = scmp.eq.s32.totalorder %s11, 0
    %p52 = por %p50, %p51
    %p53 = scmp.ne.s32.totalorder %s45, %s47
    %p54 = scmp.eq.s32.totalorder %s16, 1
    %p55 = por %p53, %p54
    %p56 = scmp.ne.s32.totalorder %s47, %s48
    %p57 = scmp.eq.s32.totalorder %s16, 0
    %p58 = por %p56, %p57
    %p59 = scmp.ne.s32.totalorder %s47, %s48
    %p60 = scmp.eq.s32.totalorder %s17, 1
    %p61 = por %p59, %p60
    %p63 = scmp.ne.s32.totalorder %s48, %s62
    %p64 = scmp.eq.s32.totalorder %s17, 0
    %p65 = por %p63, %p64
    %s66 = ssub.s32 %s11, %s18
    %p67 = scmp.eq.s32.totalorder %s66, 0
    %s69 = sadd.s32 %s68, 1
    %s70 = scalar_select %p67, %s68, %s69
    %p73 = pneg %p67
    %p74 = scmp.eq.s32.totalorder %s11, 1
    %p75 = por %p73, %p74
    %p76 = scmp.ne.s32.totalorder %s68, %s71
    %p77 = scmp.eq.s32.totalorder %s11, 0
    %p78 = por %p76, %p77
    %p79 = scmp.ne.s32.totalorder %s68, %s71
    %p80 = scmp.eq.s32.totalorder %s16, 1
    %p81 = por %p79, %p80
    %p82 = scmp.ne.s32.totalorder %s71, %s72
    %p83 = scmp.eq.s32.totalorder %s16, 0
    %p84 = por %p82, %p83
    %p85 = scmp.ne.s32.totalorder %s71, %s72
    %p86 = scmp.eq.s32.totalorder %s17, 1
    %p87 = por %p85, %p86
    %p89 = scmp.ne.s32.totalorder %s72, %s88
    %p90 = scmp.eq.s32.totalorder %s17, 0
    %p91 = por %p89, %p90
    %s92 = ssub.s32 %s11, %s18
    %p93 = scmp.eq.s32.totalorder %s92, 0
    %s95 = sadd.s32 %s94, 1
    %s96 = scalar_select %p93, %s94, %s95
    %p99 = pneg %p93
    %p100 = scmp.eq.s32.totalorder %s11, 1
    %p101 = por %p99, %p100
    %p102 = scmp.ne.s32.totalorder %s94, %s97
    %p103 = scmp.eq.s32.totalorder %s11, 0
    %p104 = por %p102, %p103
    %p105 = scmp.ne.s32.totalorder %s94, %s97
    %p106 = scmp.eq.s32.totalorder %s16, 1
    %p107 = por %p105, %p106
    %p108 = scmp.ne.s32.totalorder %s97, %s98
    %p109 = scmp.eq.s32.totalorder %s16, 0
    %p110 = por %p108, %p109
    %p111 = scmp.ne.s32.totalorder %s97, %s98
    %p112 = scmp.eq.s32.totalorder %s17, 1
    %p113 = por %p111, %p112
    %p115 = scmp.ne.s32.totalorder %s98, %s114
    %p116 = scmp.eq.s32.totalorder %s17, 0
    %p117 = por %p115, %p116
    %s118 = ssub.s32 %s11, %s18
    %p119 = scmp.eq.s32.totalorder %s118, 0
    %s121 = sadd.s32 %s120, 1
    %s122 = scalar_select %p119, %s120, %s121
    %p125 = pneg %p119
    %p126 = scmp.eq.s32.totalorder %s11, 1
    %p127 = por %p125, %p126
    %p128 = scmp.ne.s32.totalorder %s120, %s123
    %p129 = scmp.eq.s32.totalorder %s11, 0
    %p130 = por %p128, %p129
    %p131 = scmp.ne.s32.totalorder %s120, %s123
    %p132 = scmp.eq.s32.totalorder %s16, 1
    %p133 = por %p131, %p132
    %p134 = scmp.ne.s32.totalorder %s123, %s124
    %p135 = scmp.eq.s32.totalorder %s16, 0
    %p136 = por %p134, %p135
    %p137 = scmp.ne.s32.totalorder %s123, %s124
    %p138 = scmp.eq.s32.totalorder %s17, 1
    %p139 = por %p137, %p138
    %p141 = scmp.ne.s32.totalorder %s124, %s140
    %p142 = scmp.eq.s32.totalorder %s17, 0
    %p143 = por %p141, %p142
    %p144 = scmp.le.s32.totalorder 1, %s11
    %p145 = scmp.lt.s32.totalorder %s11, 3
    %p146 = pnand %p144, %p145
    %p147 = pneg %p146
    // Predicated region
    $region9: #{bifusion_forward.12} parent=5 // pred_check
      _
    $region10: #{bifusion_forward.12} parent=5 // pred_check_branch
      %149 = sbr.rel (%p146) target = $region12
    $region11: #{bifusion_forward.12} parent=5 // pred_region
      %s150 = ssub.s32 %s11, 1
      // Predicated region
      $region13: #{bifusion_forward.12} parent=11 // pred_check
        %p151 = pneg %p58
      $region14: #{bifusion_forward.12} parent=11 // pred_check_branch
        %153 = sbr.rel (%p151) target = $region16
      $region15: #{bifusion_forward.12} parent=11 // pred_region
        _
      $region16: #{bifusion_forward.12} parent=11 // pred_fallthru
        _
    $region12: #{bifusion_forward.12} parent=5 // pred_fallthru
      _
    %p154 = scmp.lt.s32.totalorder %s11, 2
    // Predicated region
    $region17: #{bifusion_forward.12} parent=5 // pred_check
      %p155 = pneg %p154
    $region18: #{bifusion_forward.12} parent=5 // pred_check_branch
      %157 = sbr.rel (%p155) target = $region20
    $region19: #{bifusion_forward.12} parent=5 // pred_region
      // Predicated region
      $region21: #{bifusion_forward.12} parent=19 // pred_check
        %p158 = pneg %p31
      $region22: #{bifusion_forward.12} parent=19 // pred_check_branch
        %160 = sbr.rel (%p158) target = $region24
      $region23: #{bifusion_forward.12} parent=19 // pred_region
        %s161 = smul.u32 32, %s11
        %p162 = scmp.lt.s32.totalorder %s161, 63
        %s163 = scalar_select %p162, %s161, 63
        %s164 = smul.addr %s163, 8
        %s165 = scalar_lea.vmem %s0, %s164
        %s166 = smul.u32 32, %s11
      $region24: #{bifusion_forward.12} parent=19 // pred_fallthru
        _
    $region20: #{bifusion_forward.12} parent=5 // pred_fallthru
      _
    %p167 = scmp.le.s32.totalorder 1, %s11
    %p168 = scmp.lt.s32.totalorder %s11, 3
    %p169 = pnand %p167, %p168
    %p170 = pneg %p169
    // Predicated region
    $region25: #{bifusion_forward.12} parent=5 // pred_check
      _
    $region26: #{bifusion_forward.12} parent=5 // pred_check_branch
      %172 = sbr.rel (%p169) target = $region28
    $region27: #{bifusion_forward.12} parent=5 // pred_region
      %s173 = ssub.s32 %s11, 1
      %s174 = smul.u32 32, %s16
      %p175 = scmp.lt.s32.totalorder %s174, 63
      %s176 = scalar_select %p175, %s174, 63
      %s177 = smul.addr %s176, 8
      %s178 = scalar_lea.vmem %s0, %s177
      %p179 = pneg %p37
      %p180 = pneg %p34
      %p181 = pneg %p58
      %p182 = pneg %p55
      %p183 = pneg %p84
      %p184 = pneg %p81
      %s185 = smul.u32 32, %s16
      %p186 = scmp.lt.s32.totalorder %s185, 63
      %s187 = scalar_select %p186, %s185, 63
      %s188 = smul.addr %s187, 8
      %s189 = scalar_lea.vmem %s2, %s188
      %p190 = pneg %p110
      %p191 = pneg %p107
      %p192 = scmp.lt.s32.totalorder %s16, 1
      %s193 = scalar_select %p192, %s16, 1
      %s194 = scalar_lea.vmem %s3, %s193
      %p195 = pneg %p136
      %p196 = pneg %p133
      %p197 = scmp.lt.s32.totalorder %s16, 1
      %s198 = scalar_select %p197, %s16, 1
      %s199 = scalar_lea.vmem %s4, %s198
      %s200 = smul.u32 32, %s16
      %p201 = scmp.lt.s32.totalorder %s200, 63
      %s202 = scalar_select %p201, %s200, 63
      %s203 = smul.addr %s202, 8
      %s204 = scalar_lea.vmem %s0, %s203
      %s205 = smul.u32 32, %s16
      %s206 = smul.u32 32, %s16
      %p207 = scmp.lt.s32.totalorder %s206, 63
      %s208 = scalar_select %p207, %s206, 63
      %s209 = smul.addr %s208, 8
      %s210 = scalar_lea.vmem %s2, %s209
      %s211 = smul.u32 32, %s16
      %p212 = scmp.lt.s32.totalorder %s16, 1
      %s213 = scalar_select %p212, %s16, 1
      %s214 = scalar_lea.vmem %s3, %s213
      %p215 = scmp.lt.s32.totalorder %s16, 1
      %s216 = scalar_select %p215, %s16, 1
      %s217 = scalar_lea.vmem %s4, %s216
      %v218 = vld [vmem:[%s204] sm:$0xff]
      %v219 = vld [vmem:[%s204 + $0x8] sm:$0xff]
      %v220 = vld [vmem:[%s204 + $0x10] sm:$0xff]
      %v221 = vld [vmem:[%s204 + $0x18] sm:$0xff]
      %v222 = vld [vmem:[%s204 + $0x20] sm:$0xff]
      %v223 = vld [vmem:[%s204 + $0x28] sm:$0xff]
      %v224 = vld [vmem:[%s204 + $0x30] sm:$0xff]
      %v225 = vld [vmem:[%s204 + $0x38] sm:$0xff]
      %v226 = vld [vmem:[%s204 + $0x40] sm:$0xff]
      %v227 = vld [vmem:[%s204 + $0x48] sm:$0xff]
      %v228 = vld [vmem:[%s204 + $0x50] sm:$0xff]
      %v229 = vld [vmem:[%s204 + $0x58] sm:$0xff]
      %v230 = vld [vmem:[%s204 + $0x60] sm:$0xff]
      %v231 = vld [vmem:[%s204 + $0x68] sm:$0xff]
      %v232 = vld [vmem:[%s204 + $0x70] sm:$0xff]
      %v233 = vld [vmem:[%s204 + $0x78] sm:$0xff]
      %v234 = vld [vmem:[%s204 + $0x80] sm:$0xff]
      %v235 = vld [vmem:[%s204 + $0x88] sm:$0xff]
      %v236 = vld [vmem:[%s204 + $0x90] sm:$0xff]
      %v237 = vld [vmem:[%s204 + $0x98] sm:$0xff]
      %v238 = vld [vmem:[%s204 + $0xa0] sm:$0xff]
      %v239 = vld [vmem:[%s204 + $0xa8] sm:$0xff]
      %v240 = vld [vmem:[%s204 + $0xb0] sm:$0xff]
      %v241 = vld [vmem:[%s204 + $0xb8] sm:$0xff]
      %v242 = vld [vmem:[%s204 + $0xc0] sm:$0xff]
      %v243 = vld [vmem:[%s204 + $0xc8] sm:$0xff]
      %v244 = vld [vmem:[%s204 + $0xd0] sm:$0xff]
      %v245 = vld [vmem:[%s204 + $0xd8] sm:$0xff]
      %v246 = vld [vmem:[%s204 + $0xe0] sm:$0xff]
      %v247 = vld [vmem:[%s204 + $0xe8] sm:$0xff]
      %v248 = vld [vmem:[%s204 + $0xf0] sm:$0xff]
      %v249 = vld [vmem:[%s204 + $0xf8] sm:$0xff]
      %v250 = vld [vmem:[%s1] sm:$0x1]
      %v252 = vlaneseq
      %v253 = vshrl.u32 %v252, 7
      %v254 = vsub.s32 0, %v253
      %v255 = vrot.slane %v250, %v254
      %v257 = vmul.f32 %v218, %v255
      %v258 = vmul.f32 %v219, %v255
      %v259 = vmul.f32 %v220, %v255
      %v260 = vmul.f32 %v221, %v255
      %v261 = vmul.f32 %v222, %v255
      %v262 = vmul.f32 %v223, %v255
      %v263 = vmul.f32 %v224, %v255
      %v264 = vmul.f32 %v225, %v255
      %v265 = vmul.f32 %v226, %v255
      %v266 = vmul.f32 %v227, %v255
      %v267 = vmul.f32 %v228, %v255
      %v268 = vmul.f32 %v229, %v255
      %v269 = vmul.f32 %v230, %v255
      %v270 = vmul.f32 %v231, %v255
      %v271 = vmul.f32 %v232, %v255
      %v272 = vmul.f32 %v233, %v255
      %v273 = vmul.f32 %v234, %v255
      %v274 = vmul.f32 %v235, %v255
      %v275 = vmul.f32 %v236, %v255
      %v276 = vmul.f32 %v237, %v255
      %v277 = vmul.f32 %v238, %v255
      %v278 = vmul.f32 %v239, %v255
      %v279 = vmul.f32 %v240, %v255
      %v280 = vmul.f32 %v241, %v255
      %v281 = vmul.f32 %v242, %v255
      %v282 = vmul.f32 %v243, %v255
      %v283 = vmul.f32 %v244, %v255
      %v284 = vmul.f32 %v245, %v255
      %v285 = vmul.f32 %v246, %v255
      %v286 = vmul.f32 %v247, %v255
      %v287 = vmul.f32 %v248, %v255
      %v288 = vmul.f32 %v249, %v255
      %vm289 = vcmask 801792
      %v290 = vsel %vm289, %v257, 0.0
      %291 = vadd.xlane.f32.xlu0 %v290
      %v292 = vpop.xlane.xlu0 %291
      %v293 = vsel %vm289, %v258, 0.0
      %294 = vadd.xlane.f32.xlu0 %v293
      %v295 = vpop.xlane.xlu0 %294
      %v296 = vsel %vm289, %v259, 0.0
      %297 = vadd.xlane.f32.xlu0 %v296
      %v298 = vpop.xlane.xlu0 %297
      %v299 = vsel %vm289, %v260, 0.0
      %300 = vadd.xlane.f32.xlu0 %v299
      %v301 = vpop.xlane.xlu0 %300
      %v302 = vsel %vm289, %v261, 0.0
      %303 = vadd.xlane.f32.xlu0 %v302
      %v304 = vpop.xlane.xlu0 %303
      %v305 = vsel %vm289, %v262, 0.0
      %306 = vadd.xlane.f32.xlu0 %v305
      %v307 = vpop.xlane.xlu0 %306
      %v308 = vsel %vm289, %v263, 0.0
      %309 = vadd.xlane.f32.xlu0 %v308
      %v310 = vpop.xlane.xlu0 %309
      %v311 = vsel %vm289, %v264, 0.0
      %312 = vadd.xlane.f32.xlu0 %v311
      %v313 = vpop.xlane.xlu0 %312
      %v314 = vsel %vm289, %v265, 0.0
      %315 = vadd.xlane.f32.xlu0 %v314
      %v316 = vpop.xlane.xlu0 %315
      %v317 = vsel %vm289, %v266, 0.0
      %318 = vadd.xlane.f32.xlu0 %v317
      %v319 = vpop.xlane.xlu0 %318
      %v320 = vsel %vm289, %v267, 0.0
      %321 = vadd.xlane.f32.xlu0 %v320
      %v322 = vpop.xlane.xlu0 %321
      %v323 = vsel %vm289, %v268, 0.0
      %324 = vadd.xlane.f32.xlu0 %v323
      %v325 = vpop.xlane.xlu0 %324
      %v326 = vsel %vm289, %v269, 0.0
      %327 = vadd.xlane.f32.xlu0 %v326
      %v328 = vpop.xlane.xlu0 %327
      %v329 = vsel %vm289, %v270, 0.0
      %330 = vadd.xlane.f32.xlu0 %v329
      %v331 = vpop.xlane.xlu0 %330
      %v332 = vsel %vm289, %v271, 0.0
      %333 = vadd.xlane.f32.xlu0 %v332
      %v334 = vpop.xlane.xlu0 %333
      %v335 = vsel %vm289, %v272, 0.0
      %336 = vadd.xlane.f32.xlu0 %v335
      %v337 = vpop.xlane.xlu0 %336
      %v338 = vsel %vm289, %v273, 0.0
      %339 = vadd.xlane.f32.xlu0 %v338
      %v340 = vpop.xlane.xlu0 %339
      %v341 = vsel %vm289, %v274, 0.0
      %342 = vadd.xlane.f32.xlu0 %v341
      %v343 = vpop.xlane.xlu0 %342
      %v344 = vsel %vm289, %v275, 0.0
      %345 = vadd.xlane.f32.xlu0 %v344
      %v346 = vpop.xlane.xlu0 %345
      %v347 = vsel %vm289, %v276, 0.0
      %348 = vadd.xlane.f32.xlu0 %v347
      %v349 = vpop.xlane.xlu0 %348
      %v350 = vsel %vm289, %v277, 0.0
      %351 = vadd.xlane.f32.xlu0 %v350
      %v352 = vpop.xlane.xlu0 %351
      %v353 = vsel %vm289, %v278, 0.0
      %354 = vadd.xlane.f32.xlu0 %v353
      %v355 = vpop.xlane.xlu0 %354
      %v356 = vsel %vm289, %v279, 0.0
      %357 = vadd.xlane.f32.xlu0 %v356
      %v358 = vpop.xlane.xlu0 %357
      %v359 = vsel %vm289, %v280, 0.0
      %360 = vadd.xlane.f32.xlu0 %v359
      %v361 = vpop.xlane.xlu0 %360
      %v362 = vsel %vm289, %v281, 0.0
      %363 = vadd.xlane.f32.xlu0 %v362
      %v364 = vpop.xlane.xlu0 %363
      %v365 = vsel %vm289, %v282, 0.0
      %366 = vadd.xlane.f32.xlu0 %v365
      %v367 = vpop.xlane.xlu0 %366
      %v368 = vsel %vm289, %v283, 0.0
      %369 = vadd.xlane.f32.xlu0 %v368
      %v370 = vpop.xlane.xlu0 %369
      %v371 = vsel %vm289, %v284, 0.0
      %372 = vadd.xlane.f32.xlu0 %v371
      %v373 = vpop.xlane.xlu0 %372
      %v374 = vsel %vm289, %v285, 0.0
      %375 = vadd.xlane.f32.xlu0 %v374
      %v376 = vpop.xlane.xlu0 %375
      %v377 = vsel %vm289, %v286, 0.0
      %378 = vadd.xlane.f32.xlu0 %v377
      %v379 = vpop.xlane.xlu0 %378
      %v380 = vsel %vm289, %v287, 0.0
      %381 = vadd.xlane.f32.xlu0 %v380
      %v382 = vpop.xlane.xlu0 %381
      %v383 = vsel %vm289, %v288, 0.0
      %384 = vadd.xlane.f32.xlu0 %v383
      %v385 = vpop.xlane.xlu0 %384
      %vm386 = vcmask 7168
      %387 = vst.msk [vmem:[%s210] sm:$0xff] %vm386, %v292
      %388 = vst.msk [vmem:[%s210 + $0x8] sm:$0xff] %vm386, %v295
      %389 = vst.msk [vmem:[%s210 + $0x10] sm:$0xff] %vm386, %v298
      %390 = vst.msk [vmem:[%s210 + $0x18] sm:$0xff] %vm386, %v301
      %391 = vst.msk [vmem:[%s210 + $0x20] sm:$0xff] %vm386, %v304
      %392 = vst.msk [vmem:[%s210 + $0x28] sm:$0xff] %vm386, %v307
      %393 = vst.msk [vmem:[%s210 + $0x30] sm:$0xff] %vm386, %v310
      %394 = vst.msk [vmem:[%s210 + $0x38] sm:$0xff] %vm386, %v313
      %395 = vst.msk [vmem:[%s210 + $0x40] sm:$0xff] %vm386, %v316
      %396 = vst.msk [vmem:[%s210 + $0x48] sm:$0xff] %vm386, %v319
      %397 = vst.msk [vmem:[%s210 + $0x50] sm:$0xff] %vm386, %v322
      %398 = vst.msk [vmem:[%s210 + $0x58] sm:$0xff] %vm386, %v325
      %399 = vst.msk [vmem:[%s210 + $0x60] sm:$0xff] %vm386, %v328
      %400 = vst.msk [vmem:[%s210 + $0x68] sm:$0xff] %vm386, %v331
      %401 = vst.msk [vmem:[%s210 + $0x70] sm:$0xff] %vm386, %v334
      %402 = vst.msk [vmem:[%s210 + $0x78] sm:$0xff] %vm386, %v337
      %403 = vst.msk [vmem:[%s210 + $0x80] sm:$0xff] %vm386, %v340
      %404 = vst.msk [vmem:[%s210 + $0x88] sm:$0xff] %vm386, %v343
      %405 = vst.msk [vmem:[%s210 + $0x90] sm:$0xff] %vm386, %v346
      %406 = vst.msk [vmem:[%s210 + $0x98] sm:$0xff] %vm386, %v349
      %407 = vst.msk [vmem:[%s210 + $0xa0] sm:$0xff] %vm386, %v352
      %408 = vst.msk [vmem:[%s210 + $0xa8] sm:$0xff] %vm386, %v355
      %409 = vst.msk [vmem:[%s210 + $0xb0] sm:$0xff] %vm386, %v358
      %410 = vst.msk [vmem:[%s210 + $0xb8] sm:$0xff] %vm386, %v361
      %411 = vst.msk [vmem:[%s210 + $0xc0] sm:$0xff] %vm386, %v364
      %412 = vst.msk [vmem:[%s210 + $0xc8] sm:$0xff] %vm386, %v367
      %413 = vst.msk [vmem:[%s210 + $0xd0] sm:$0xff] %vm386, %v370
      %414 = vst.msk [vmem:[%s210 + $0xd8] sm:$0xff] %vm386, %v373
      %415 = vst.msk [vmem:[%s210 + $0xe0] sm:$0xff] %vm386, %v376
      %416 = vst.msk [vmem:[%s210 + $0xe8] sm:$0xff] %vm386, %v379
      %417 = vst.msk [vmem:[%s210 + $0xf0] sm:$0xff] %vm386, %v382
      %418 = vst.msk [vmem:[%s210 + $0xf8] sm:$0xff] %vm386, %v385
      %v419 = vadd.f32 %v292, %v295
      %v420 = vadd.f32 %v419, %v298
      %v421 = vadd.f32 %v420, %v301
      %v422 = vadd.f32 %v421, %v304
      %v423 = vadd.f32 %v422, %v307
      %v424 = vadd.f32 %v423, %v310
      %v425 = vadd.f32 %v424, %v313
      %v426 = vadd.f32 %v425, %v316
      %v427 = vadd.f32 %v426, %v319
      %v428 = vadd.f32 %v427, %v322
      %v429 = vadd.f32 %v428, %v325
      %v430 = vadd.f32 %v429, %v328
      %v431 = vadd.f32 %v430, %v331
      %v432 = vadd.f32 %v431, %v334
      %v433 = vadd.f32 %v432, %v337
      %v434 = vadd.f32 %v433, %v340
      %v435 = vadd.f32 %v434, %v343
      %v436 = vadd.f32 %v435, %v346
      %v437 = vadd.f32 %v436, %v349
      %v438 = vadd.f32 %v437, %v352
      %v439 = vadd.f32 %v438, %v355
      %v440 = vadd.f32 %v439, %v358
      %v441 = vadd.f32 %v440, %v361
      %v442 = vadd.f32 %v441, %v364
      %v443 = vadd.f32 %v442, %v367
      %v444 = vadd.f32 %v443, %v370
      %v445 = vadd.f32 %v444, %v373
      %v446 = vadd.f32 %v445, %v376
      %v447 = vadd.f32 %v446, %v379
      %v448 = vadd.f32 %v447, %v382
      %v449 = vadd.f32 %v448, %v385
      %v450 = vrot.slane %v449, 4
      %v451 = vadd.f32 %v449, %v450
      %v452 = vrot.slane %v451, 2
      %v453 = vadd.f32 %v451, %v452
      %v454 = vrot.slane %v453, 1
      %v455 = vadd.f32 %v453, %v454
      %vm456 = vcmask 0
      %457 = vst.msk [vmem:[%s214] sm:$0x1] %vm456, %v455
      %v458 = vmul.f32 %v292, %v292
      %v459 = vmul.f32 %v295, %v295
      %v460 = vmul.f32 %v298, %v298
      %v461 = vmul.f32 %v301, %v301
      %v462 = vmul.f32 %v304, %v304
      %v463 = vmul.f32 %v307, %v307
      %v464 = vmul.f32 %v310, %v310
      %v465 = vmul.f32 %v313, %v313
      %v466 = vmul.f32 %v316, %v316
      %v467 = vmul.f32 %v319, %v319
      %v468 = vmul.f32 %v322, %v322
      %v469 = vmul.f32 %v325, %v325
      %v470 = vmul.f32 %v328, %v328
      %v471 = vmul.f32 %v331, %v331
      %v472 = vmul.f32 %v334, %v334
      %v473 = vmul.f32 %v337, %v337
      %v474 = vmul.f32 %v340, %v340
      %v475 = vmul.f32 %v343, %v343
      %v476 = vmul.f32 %v346, %v346
      %v477 = vmul.f32 %v349, %v349
      %v478 = vmul.f32 %v352, %v352
      %v479 = vmul.f32 %v355, %v355
      %v480 = vmul.f32 %v358, %v358
      %v481 = vmul.f32 %v361, %v361
      %v482 = vmul.f32 %v364, %v364
      %v483 = vmul.f32 %v367, %v367
      %v484 = vmul.f32 %v370, %v370
      %v485 = vmul.f32 %v373, %v373
      %v486 = vmul.f32 %v376, %v376
      %v487 = vmul.f32 %v379, %v379
      %v488 = vmul.f32 %v382, %v382
      %v489 = vmul.f32 %v385, %v385
      %v490 = vadd.f32 %v458, %v459
      %v491 = vadd.f32 %v490, %v460
      %v492 = vadd.f32 %v491, %v461
      %v493 = vadd.f32 %v492, %v462
      %v494 = vadd.f32 %v493, %v463
      %v495 = vadd.f32 %v494, %v464
      %v496 = vadd.f32 %v495, %v465
      %v497 = vadd.f32 %v496, %v466
      %v498 = vadd.f32 %v497, %v467
      %v499 = vadd.f32 %v498, %v468
      %v500 = vadd.f32 %v499, %v469
      %v501 = vadd.f32 %v500, %v470
      %v502 = vadd.f32 %v501, %v471
      %v503 = vadd.f32 %v502, %v472
      %v504 = vadd.f32 %v503, %v473
      %v505 = vadd.f32 %v504, %v474
      %v506 = vadd.f32 %v505, %v475
      %v507 = vadd.f32 %v506, %v476
      %v508 = vadd.f32 %v507, %v477
      %v509 = vadd.f32 %v508, %v478
      %v510 = vadd.f32 %v509, %v479
      %v511 = vadd.f32 %v510, %v480
      %v512 = vadd.f32 %v511, %v481
      %v513 = vadd.f32 %v512, %v482
      %v514 = vadd.f32 %v513, %v483
      %v515 = vadd.f32 %v514, %v484
      %v516 = vadd.f32 %v515, %v485
      %v517 = vadd.f32 %v516, %v486
      %v518 = vadd.f32 %v517, %v487
      %v519 = vadd.f32 %v518, %v488
      %v520 = vadd.f32 %v519, %v489
      %v521 = vrot.slane %v520, 4
      %v522 = vadd.f32 %v520, %v521
      %v523 = vrot.slane %v522, 2
      %v524 = vadd.f32 %v522, %v523
      %v525 = vrot.slane %v524, 1
      %v526 = vadd.f32 %v524, %v525
      %527 = vst.msk [vmem:[%s217] sm:$0x1] %vm456, %v526
      %s528 = smul.u32 32, %s16
      %p529 = scmp.lt.s32.totalorder %s528, 63
      %s530 = scalar_select %p529, %s528, 63
      %s531 = smul.addr %s530, 8
      %s532 = scalar_lea.vmem %s2, %s531
      %p533 = scmp.lt.s32.totalorder %s16, 1
      %s534 = scalar_select %p533, %s16, 1
      %s535 = scalar_lea.vmem %s3, %s534
      %p536 = scmp.lt.s32.totalorder %s16, 1
      %s537 = scalar_select %p536, %s16, 1
      %s538 = scalar_lea.vmem %s4, %s537
      // Predicated region
      $region29: #{bifusion_forward.12} parent=27 // pred_check
        %p539 = pneg %p81
      $region30: #{bifusion_forward.12} parent=27 // pred_check_branch
        %541 = sbr.rel (%p539) target = $region32
      $region31: #{bifusion_forward.12} parent=27 // pred_region
        %s542 = smul.u32 32, %s16
      $region32: #{bifusion_forward.12} parent=27 // pred_fallthru
        _
      // Predicated region
      $region33: #{bifusion_forward.12} parent=27 // pred_check
        %p543 = pneg %p107
      $region34: #{bifusion_forward.12} parent=27 // pred_check_branch
        %545 = sbr.rel (%p543) target = $region36
      $region35: #{bifusion_forward.12} parent=27 // pred_region
        _
      $region36: #{bifusion_forward.12} parent=27 // pred_fallthru
        _
      // Predicated region
      $region37: #{bifusion_forward.12} parent=27 // pred_check
        %p546 = pneg %p133
      $region38: #{bifusion_forward.12} parent=27 // pred_check_branch
        %548 = sbr.rel (%p546) target = $region40
      $region39: #{bifusion_forward.12} parent=27 // pred_region
        _
      $region40: #{bifusion_forward.12} parent=27 // pred_fallthru
        _
    $region28: #{bifusion_forward.12} parent=5 // pred_fallthru
      _
    %p549 = scmp.le.s32.totalorder 2, %s11
    // Predicated region
    $region41: #{bifusion_forward.12} parent=5 // pred_check
      %p550 = pneg %p549
    $region42: #{bifusion_forward.12} parent=5 // pred_check_branch
      %552 = sbr.rel (%p550) target = $region44
    $region43: #{bifusion_forward.12} parent=5 // pred_region
      %s553 = ssub.s32 %s11, 2
      // Predicated region
      $region45: #{bifusion_forward.12} parent=43 // pred_check
        %p554 = pneg %p87
      $region46: #{bifusion_forward.12} parent=43 // pred_check_branch
        %556 = sbr.rel (%p554) target = $region48
      $region47: #{bifusion_forward.12} parent=43 // pred_region
        %s557 = smul.u32 32, %s17
        %p558 = scmp.lt.s32.totalorder %s557, 63
        %s559 = scalar_select %p558, %s557, 63
        %s560 = smul.addr %s559, 8
        %s561 = scalar_lea.vmem %s2, %s560
      $region48: #{bifusion_forward.12} parent=43 // pred_fallthru
        _
      // Predicated region
      $region49: #{bifusion_forward.12} parent=43 // pred_check
        %p562 = pneg %p113
      $region50: #{bifusion_forward.12} parent=43 // pred_check_branch
        %564 = sbr.rel (%p562) target = $region52
      $region51: #{bifusion_forward.12} parent=43 // pred_region
        %p565 = scmp.lt.s32.totalorder %s17, 1
        %s566 = scalar_select %p565, %s17, 1
        %s567 = scalar_lea.vmem %s3, %s566
      $region52: #{bifusion_forward.12} parent=43 // pred_fallthru
        _
      // Predicated region
      $region53: #{bifusion_forward.12} parent=43 // pred_check
        %p568 = pneg %p139
      $region54: #{bifusion_forward.12} parent=43 // pred_check_branch
        %570 = sbr.rel (%p568) target = $region56
      $region55: #{bifusion_forward.12} parent=43 // pred_region
        %p571 = scmp.lt.s32.totalorder %s17, 1
        %s572 = scalar_select %p571, %s17, 1
        %s573 = scalar_lea.vmem %s4, %s572
      $region56: #{bifusion_forward.12} parent=43 // pred_fallthru
        _
    $region44: #{bifusion_forward.12} parent=5 // pred_fallthru
      _
  $region6: #{bifusion_forward.12} parent=0 // loop_footer
    %s15 = sadd.s32 1, %s11
  $region7: #{bifusion_forward.12} parent=0 // loop_footer_branch
    %10 = sbr.rel target = $region3
  $region8: #{bifusion_forward.12} parent=0 // loop_exit
    _

// kernel: bifusion_forward.10
$region0: #{bifusion_forward.10}
  #allocation0 [shape = 'u32[]', space=smem, size = 0x4, offset = 0x4, fixed_abs, tag = 'smem constant byte address 0x4 - core index']
  #allocation1 [shape = 'u32[144,128]{1,0:T(1,128)}', space=vmem, size = 0x12000, scoped, tag = 'internal scratch']
  %s0 = inlined_call_operand.vmem [shape: f32[2,256,64], index: 0, kind: input, shape index: {}]
  %s1 = inlined_call_operand.vmem [shape: f32[64,4], index: 1, kind: input, shape index: {}]
  %s2 = inlined_call_operand.vmem [shape: f32[1,4], index: 2, kind: input, shape index: {}]
  %s3 = inlined_call_operand.vmem [shape: f32[4,64], index: 3, kind: input, shape index: {}]
  %s4 = inlined_call_operand.vmem [shape: f32[1,64], index: 4, kind: input, shape index: {}]
  %s5 = inlined_call_operand.vmem [shape: f32[2,256,64], index: 5, kind: output, shape index: {}]
  %s6 = sld [smem:[#allocation0]]
  $region53: #{bifusion_forward.10} parent=0
    _
  %s8 = ssub.s32 1, %s6
  %s9 = scalar_select 0, %s8, %s6
  loop: start=0, step=1, limit=4
  $region2: #{bifusion_forward.10} parent=0 // loop_pre_header
    _
  $region3: #{bifusion_forward.10} parent=0 // loop_header
    %s11 = sphi 0, %s15
    %p12 = scmp.ge.s32.totalorder %s11, 4
    %s21 = sphi 0, %s23
    %s24 = sphi 0, %s21
    %s25 = sphi 0, %s24
    %s41 = sphi 0, %s25
    %s45 = sphi 0, %s45
    %s47 = sphi 0, %s45
    %s48 = sphi 0, %s47
    %s62 = sphi 0, %s48
    %s66 = sphi 0, %s66
    %s68 = sphi 0, %s66
    %s69 = sphi 0, %s68
    %s83 = sphi 0, %s69
    %s87 = sphi 0, %s87
    %s89 = sphi 0, %s87
    %s90 = sphi 0, %s89
    %s104 = sphi 0, %s90
    %s108 = sphi 0, %s108
    %s110 = sphi 0, %s108
    %s111 = sphi 0, %s110
    %s125 = sphi 0, %s111
    %s131 = sphi 0, %s133
    %s134 = sphi 0, %s131
    %s135 = sphi 0, %s134
    %s151 = sphi 0, %s135
  $region4: #{bifusion_forward.10} parent=0 // loop_header_branch
    %14 = sbr.rel (%p12) target = $region8
  $region5: #{bifusion_forward.10} parent=0 // loop_body
    %s16 = ssub.s32 %s11, 1
    %s17 = ssub.s32 %s11, 2
    %s18 = sadd.s32 %s11, 1
    %s19 = ssub.s32 %s11, %s18
    %p20 = scmp.eq.s32.totalorder %s19, 0
    %s22 = sadd.s32 %s21, 1
    %s23 = scalar_select %p20, %s21, %s22
    %p26 = pneg %p20
    %p27 = scmp.eq.s32.totalorder %s11, 1
    %p28 = por %p26, %p27
    %p29 = scmp.ne.s32.totalorder %s21, %s24
    %p30 = scmp.eq.s32.totalorder %s11, 0
    %p31 = por %p29, %p30
    %p32 = scmp.ne.s32.totalorder %s21, %s24
    %p33 = scmp.eq.s32.totalorder %s16, 1
    %p34 = por %p32, %p33
    %p35 = scmp.ne.s32.totalorder %s24, %s25
    %p36 = scmp.eq.s32.totalorder %s16, 0
    %p37 = por %p35, %p36
    %p38 = scmp.ne.s32.totalorder %s24, %s25
    %p39 = scmp.eq.s32.totalorder %s17, 1
    %p40 = por %p38, %p39
    %p42 = scmp.ne.s32.totalorder %s25, %s41
    %p43 = scmp.eq.s32.totalorder %s17, 0
    %p44 = por %p42, %p43
    %s46 = sadd.s32 %s45, 1
    %p49 = scmp.eq.s32.totalorder %s11, 1
    %p50 = scmp.ne.s32.totalorder %s45, %s47
    %p51 = scmp.eq.s32.totalorder %s11, 0
    %p52 = por %p50, %p51
    %p53 = scmp.ne.s32.totalorder %s45, %s47
    %p54 = scmp.eq.s32.totalorder %s16, 1
    %p55 = por %p53, %p54
    %p56 = scmp.ne.s32.totalorder %s47, %s48
    %p57 = scmp.eq.s32.totalorder %s16, 0
    %p58 = por %p56, %p57
    %p59 = scmp.ne.s32.totalorder %s47, %s48
    %p60 = scmp.eq.s32.totalorder %s17, 1
    %p61 = por %p59, %p60
    %p63 = scmp.ne.s32.totalorder %s48, %s62
    %p64 = scmp.eq.s32.totalorder %s17, 0
    %p65 = por %p63, %p64
    %s67 = sadd.s32 %s66, 1
    %p70 = scmp.eq.s32.totalorder %s11, 1
    %p71 = scmp.ne.s32.totalorder %s66, %s68
    %p72 = scmp.eq.s32.totalorder %s11, 0
    %p73 = por %p71, %p72
    %p74 = scmp.ne.s32.totalorder %s66, %s68
    %p75 = scmp.eq.s32.totalorder %s16, 1
    %p76 = por %p74, %p75
    %p77 = scmp.ne.s32.totalorder %s68, %s69
    %p78 = scmp.eq.s32.totalorder %s16, 0
    %p79 = por %p77, %p78
    %p80 = scmp.ne.s32.totalorder %s68, %s69
    %p81 = scmp.eq.s32.totalorder %s17, 1
    %p82 = por %p80, %p81
    %p84 = scmp.ne.s32.totalorder %s69, %s83
    %p85 = scmp.eq.s32.totalorder %s17, 0
    %p86 = por %p84, %p85
    %s88 = sadd.s32 %s87, 1
    %p91 = scmp.eq.s32.totalorder %s11, 1
    %p92 = scmp.ne.s32.totalorder %s87, %s89
    %p93 = scmp.eq.s32.totalorder %s11, 0
    %p94 = por %p92, %p93
    %p95 = scmp.ne.s32.totalorder %s87, %s89
    %p96 = scmp.eq.s32.totalorder %s16, 1
    %p97 = por %p95, %p96
    %p98 = scmp.ne.s32.totalorder %s89, %s90
    %p99 = scmp.eq.s32.totalorder %s16, 0
    %p100 = por %p98, %p99
    %p101 = scmp.ne.s32.totalorder %s89, %s90
    %p102 = scmp.eq.s32.totalorder %s17, 1
    %p103 = por %p101, %p102
    %p105 = scmp.ne.s32.totalorder %s90, %s104
    %p106 = scmp.eq.s32.totalorder %s17, 0
    %p107 = por %p105, %p106
    %s109 = sadd.s32 %s108, 1
    %p112 = scmp.eq.s32.totalorder %s11, 1
    %p113 = scmp.ne.s32.totalorder %s108, %s110
    %p114 = scmp.eq.s32.totalorder %s11, 0
    %p115 = por %p113, %p114
    %p116 = scmp.ne.s32.totalorder %s108, %s110
    %p117 = scmp.eq.s32.totalorder %s16, 1
    %p118 = por %p116, %p117
    %p119 = scmp.ne.s32.totalorder %s110, %s111
    %p120 = scmp.eq.s32.totalorder %s16, 0
    %p121 = por %p119, %p120
    %p122 = scmp.ne.s32.totalorder %s110, %s111
    %p123 = scmp.eq.s32.totalorder %s17, 1
    %p124 = por %p122, %p123
    %p126 = scmp.ne.s32.totalorder %s111, %s125
    %p127 = scmp.eq.s32.totalorder %s17, 0
    %p128 = por %p126, %p127
    %s129 = ssub.s32 %s11, %s18
    %p130 = scmp.eq.s32.totalorder %s129, 0
    %s132 = sadd.s32 %s131, 1
    %s133 = scalar_select %p130, %s131, %s132
    %p136 = pneg %p130
    %p137 = scmp.eq.s32.totalorder %s11, 1
    %p138 = por %p136, %p137
    %p139 = scmp.ne.s32.totalorder %s131, %s134
    %p140 = scmp.eq.s32.totalorder %s11, 0
    %p141 = por %p139, %p140
    %p142 = scmp.ne.s32.totalorder %s131, %s134
    %p143 = scmp.eq.s32.totalorder %s16, 1
    %p144 = por %p142, %p143
    %p145 = scmp.ne.s32.totalorder %s134, %s135
    %p146 = scmp.eq.s32.totalorder %s16, 0
    %p147 = por %p145, %p146
    %p148 = scmp.ne.s32.totalorder %s134, %s135
    %p149 = scmp.eq.s32.totalorder %s17, 1
    %p150 = por %p148, %p149
    %p152 = scmp.ne.s32.totalorder %s135, %s151
    %p153 = scmp.eq.s32.totalorder %s17, 0
    %p154 = por %p152, %p153
    %p155 = scmp.le.s32.totalorder 1, %s11
    %p156 = scmp.lt.s32.totalorder %s11, 3
    %p157 = pnand %p155, %p156
    %p158 = pneg %p157
    // Predicated region
    $region9: #{bifusion_forward.10} parent=5 // pred_check
      _
    $region10: #{bifusion_forward.10} parent=5 // pred_check_branch
      %160 = sbr.rel (%p157) target = $region12
    $region11: #{bifusion_forward.10} parent=5 // pred_region
      %s161 = ssub.s32 %s11, 1
      // Predicated region
      $region13: #{bifusion_forward.10} parent=11 // pred_check
        %p162 = pneg %p58
      $region14: #{bifusion_forward.10} parent=11 // pred_check_branch
        %164 = sbr.rel (%p162) target = $region16
      $region15: #{bifusion_forward.10} parent=11 // pred_region
        _
      $region16: #{bifusion_forward.10} parent=11 // pred_fallthru
        _
      // Predicated region
      $region17: #{bifusion_forward.10} parent=11 // pred_check
        %p165 = pneg %p79
      $region18: #{bifusion_forward.10} parent=11 // pred_check_branch
        %167 = sbr.rel (%p165) target = $region20
      $region19: #{bifusion_forward.10} parent=11 // pred_region
        _
      $region20: #{bifusion_forward.10} parent=11 // pred_fallthru
        _
      // Predicated region
      $region21: #{bifusion_forward.10} parent=11 // pred_check
        %p168 = pneg %p100
      $region22: #{bifusion_forward.10} parent=11 // pred_check_branch
        %170 = sbr.rel (%p168) target = $region24
      $region23: #{bifusion_forward.10} parent=11 // pred_region
        _
      $region24: #{bifusion_forward.10} parent=11 // pred_fallthru
        _
      // Predicated region
      $region25: #{bifusion_forward.10} parent=11 // pred_check
        %p171 = pneg %p121
      $region26: #{bifusion_forward.10} parent=11 // pred_check_branch
        %173 = sbr.rel (%p171) target = $region28
      $region27: #{bifusion_forward.10} parent=11 // pred_region
        _
      $region28: #{bifusion_forward.10} parent=11 // pred_fallthru
        _
    $region12: #{bifusion_forward.10} parent=5 // pred_fallthru
      _
    %p174 = scmp.lt.s32.totalorder %s11, 2
    // Predicated region
    $region29: #{bifusion_forward.10} parent=5 // pred_check
      %p175 = pneg %p174
    $region30: #{bifusion_forward.10} parent=5 // pred_check_branch
      %177 = sbr.rel (%p175) target = $region32
    $region31: #{bifusion_forward.10} parent=5 // pred_region
      // Predicated region
      $region33: #{bifusion_forward.10} parent=31 // pred_check
        %p178 = pneg %p31
      $region34: #{bifusion_forward.10} parent=31 // pred_check_branch
        %180 = sbr.rel (%p178) target = $region36
      $region35: #{bifusion_forward.10} parent=31 // pred_region
        %p181 = scmp.lt.s32.totalorder %s11, 1
        %s182 = scalar_select %p181, %s11, 1
        %s183 = smul.addr %s182, 32
        %s184 = smul.addr %s183, 8
        %s185 = scalar_lea.vmem %s0, %s184
      $region36: #{bifusion_forward.10} parent=31 // pred_fallthru
        _
    $region32: #{bifusion_forward.10} parent=5 // pred_fallthru
      _
    %p186 = scmp.le.s32.totalorder 1, %s11
    %p187 = scmp.lt.s32.totalorder %s11, 3
    %p188 = pnand %p186, %p187
    %p189 = pneg %p188
    // Predicated region
    $region37: #{bifusion_forward.10} parent=5 // pred_check
      _
    $region38: #{bifusion_forward.10} parent=5 // pred_check_branch
      %191 = sbr.rel (%p188) target = $region40
    $region39: #{bifusion_forward.10} parent=5 // pred_region
      %s192 = ssub.s32 %s11, 1
      %p193 = scmp.lt.s32.totalorder %s16, 1
      %s194 = scalar_select %p193, %s16, 1
      %s195 = smul.addr %s194, 32
      %s196 = smul.addr %s195, 8
      %s197 = scalar_lea.vmem %s0, %s196
      %p198 = pneg %p37
      %p199 = pneg %p34
      %p200 = pneg %p58
      %p201 = pneg %p55
      %p202 = pneg %p79
      %p203 = pneg %p76
      %p204 = pneg %p100
      %p205 = pneg %p97
      %p206 = pneg %p121
      %p207 = pneg %p118
      %p208 = pneg %p147
      %p209 = pneg %p144
      %p210 = scmp.lt.s32.totalorder %s16, 1
      %s211 = scalar_select %p210, %s16, 1
      %s212 = smul.addr %s211, 32
      %s213 = smul.addr %s212, 8
      %s214 = scalar_lea.vmem %s5, %s213
      %p215 = scmp.lt.s32.totalorder %s16, 1
      %s216 = scalar_select %p215, %s16, 1
      %s217 = smul.addr %s216, 32
      %s218 = smul.addr %s217, 8
      %s219 = scalar_lea.vmem %s0, %s218
      %p220 = scmp.lt.s32.totalorder %s16, 1
      %s221 = scalar_select %p220, %s16, 1
      %s222 = smul.addr %s221, 32
      %s223 = smul.addr %s222, 8
      %s224 = scalar_lea.vmem %s5, %s223
      %v225 = vld [vmem:[%s219] sm:$0xff]
      %v226 = vld [vmem:[%s219 + $0x8] sm:$0xff]
      %v227 = vld [vmem:[%s219 + $0x10] sm:$0xff]
      %v228 = vld [vmem:[%s219 + $0x18] sm:$0xff]
      %v229 = vld [vmem:[%s219 + $0x20] sm:$0xff]
      %v230 = vld [vmem:[%s219 + $0x28] sm:$0xff]
      %v231 = vld [vmem:[%s219 + $0x30] sm:$0xff]
      %v232 = vld [vmem:[%s219 + $0x38] sm:$0xff]
      %v233 = vld [vmem:[%s219 + $0x40] sm:$0xff]
      %v234 = vld [vmem:[%s219 + $0x48] sm:$0xff]
      %v235 = vld [vmem:[%s219 + $0x50] sm:$0xff]
      %v236 = vld [vmem:[%s219 + $0x58] sm:$0xff]
      %v237 = vld [vmem:[%s219 + $0x60] sm:$0xff]
      %v238 = vld [vmem:[%s219 + $0x68] sm:$0xff]
      %v239 = vld [vmem:[%s219 + $0x70] sm:$0xff]
      %v240 = vld [vmem:[%s219 + $0x78] sm:$0xff]
      %v241 = vld [vmem:[%s219 + $0x80] sm:$0xff]
      %v242 = vld [vmem:[%s219 + $0x88] sm:$0xff]
      %v243 = vld [vmem:[%s219 + $0x90] sm:$0xff]
      %v244 = vld [vmem:[%s219 + $0x98] sm:$0xff]
      %v245 = vld [vmem:[%s219 + $0xa0] sm:$0xff]
      %v246 = vld [vmem:[%s219 + $0xa8] sm:$0xff]
      %v247 = vld [vmem:[%s219 + $0xb0] sm:$0xff]
      %v248 = vld [vmem:[%s219 + $0xb8] sm:$0xff]
      %v249 = vld [vmem:[%s219 + $0xc0] sm:$0xff]
      %v250 = vld [vmem:[%s219 + $0xc8] sm:$0xff]
      %v251 = vld [vmem:[%s219 + $0xd0] sm:$0xff]
      %v252 = vld [vmem:[%s219 + $0xd8] sm:$0xff]
      %v253 = vld [vmem:[%s219 + $0xe0] sm:$0xff]
      %v254 = vld [vmem:[%s219 + $0xe8] sm:$0xff]
      %v255 = vld [vmem:[%s219 + $0xf0] sm:$0xff]
      %v256 = vld [vmem:[%s219 + $0xf8] sm:$0xff]
      %vm257 = vcmask 523264
      %v258 = vsel %vm257, %v225, -inf
      %v259 = vsel %vm257, %v226, -inf
      %v260 = vsel %vm257, %v227, -inf
      %v261 = vsel %vm257, %v228, -inf
      %v262 = vsel %vm257, %v229, -inf
      %v263 = vmax.f32 %v258, %v262
      %v264 = vsel %vm257, %v230, -inf
      %v265 = vmax.f32 %v259, %v264
      %v266 = vsel %vm257, %v231, -inf
      %v267 = vmax.f32 %v260, %v266
      %v268 = vsel %vm257, %v232, -inf
      %v269 = vmax.f32 %v261, %v268
      %v270 = vsel %vm257, %v233, -inf
      %v271 = vmax.f32 %v263, %v270
      %v272 = vsel %vm257, %v234, -inf
      %v273 = vmax.f32 %v265, %v272
      %v274 = vsel %vm257, %v235, -inf
      %v275 = vmax.f32 %v267, %v274
      %v276 = vsel %vm257, %v236, -inf
      %v277 = vmax.f32 %v269, %v276
      %v278 = vsel %vm257, %v237, -inf
      %v279 = vmax.f32 %v271, %v278
      %v280 = vsel %vm257, %v238, -inf
      %v281 = vmax.f32 %v273, %v280
      %v282 = vsel %vm257, %v239, -inf
      %v283 = vmax.f32 %v275, %v282
      %v284 = vsel %vm257, %v240, -inf
      %v285 = vmax.f32 %v277, %v284
      %v286 = vsel %vm257, %v241, -inf
      %v287 = vmax.f32 %v279, %v286
      %v288 = vsel %vm257, %v242, -inf
      %v289 = vmax.f32 %v281, %v288
      %v290 = vsel %vm257, %v243, -inf
      %v291 = vmax.f32 %v283, %v290
      %v292 = vsel %vm257, %v244, -inf
      %v293 = vmax.f32 %v285, %v292
      %v294 = vsel %vm257, %v245, -inf
      %v295 = vmax.f32 %v287, %v294
      %v296 = vsel %vm257, %v246, -inf
      %v297 = vmax.f32 %v289, %v296
      %v298 = vsel %vm257, %v247, -inf
      %v299 = vmax.f32 %v291, %v298
      %v300 = vsel %vm257, %v248, -inf
      %v301 = vmax.f32 %v293, %v300
      %v302 = vsel %vm257, %v249, -inf
      %v303 = vmax.f32 %v295, %v302
      %v304 = vsel %vm257, %v250, -inf
      %v305 = vmax.f32 %v297, %v304
      %v306 = vsel %vm257, %v251, -inf
      %v307 = vmax.f32 %v299, %v306
      %v308 = vsel %vm257, %v252, -inf
      %v309 = vmax.f32 %v301, %v308
      %v310 = vsel %vm257, %v253, -inf
      %v311 = vmax.f32 %v303, %v310
      %v312 = vsel %vm257, %v254, -inf
      %v313 = vmax.f32 %v305, %v312
      %v314 = vsel %vm257, %v255, -inf
      %v315 = vmax.f32 %v307, %v314
      %v316 = vsel %vm257, %v256, -inf
      %v317 = vmax.f32 %v309, %v316
      %v318 = vmax.f32 %v311, %v313
      %v319 = vmax.f32 %v315, %v317
      %v320 = vmax.f32 %v318, %v319
      %v321 = vrot.slane %v320, 4
      %v322 = vmax.f32 %v320, %v321
      %v323 = vrot.slane %v322, 2
      %v324 = vmax.f32 %v322, %v323
      %v325 = vrot.slane %v324, 1
      %v326 = vmax.f32 %v324, %v325
      %v327 = vsel %vm257, %v225, 0.0
      %v328 = vsel %vm257, %v226, 0.0
      %v329 = vadd.f32 %v327, %v328
      %v330 = vsel %vm257, %v227, 0.0
      %v331 = vadd.f32 %v329, %v330
      %v332 = vsel %vm257, %v228, 0.0
      %v333 = vadd.f32 %v331, %v332
      %v334 = vsel %vm257, %v229, 0.0
      %v335 = vadd.f32 %v333, %v334
      %v336 = vsel %vm257, %v230, 0.0
      %v337 = vadd.f32 %v335, %v336
      %v338 = vsel %vm257, %v231, 0.0
      %v339 = vadd.f32 %v337, %v338
      %v340 = vsel %vm257, %v232, 0.0
      %v341 = vadd.f32 %v339, %v340
      %v342 = vsel %vm257, %v233, 0.0
      %v343 = vadd.f32 %v341, %v342
      %v344 = vsel %vm257, %v234, 0.0
      %v345 = vadd.f32 %v343, %v344
      %v346 = vsel %vm257, %v235, 0.0
      %v347 = vadd.f32 %v345, %v346
      %v348 = vsel %vm257, %v236, 0.0
      %v349 = vadd.f32 %v347, %v348
      %v350 = vsel %vm257, %v237, 0.0
      %v351 = vadd.f32 %v349, %v350
      %v352 = vsel %vm257, %v238, 0.0
      %v353 = vadd.f32 %v351, %v352
      %v354 = vsel %vm257, %v239, 0.0
      %v355 = vadd.f32 %v353, %v354
      %v356 = vsel %vm257, %v240, 0.0
      %v357 = vadd.f32 %v355, %v356
      %v358 = vsel %vm257, %v241, 0.0
      %v359 = vadd.f32 %v357, %v358
      %v360 = vsel %vm257, %v242, 0.0
      %v361 = vadd.f32 %v359, %v360
      %v362 = vsel %vm257, %v243, 0.0
      %v363 = vadd.f32 %v361, %v362
      %v364 = vsel %vm257, %v244, 0.0
      %v365 = vadd.f32 %v363, %v364
      %v366 = vsel %vm257, %v245, 0.0
      %v367 = vadd.f32 %v365, %v366
      %v368 = vsel %vm257, %v246, 0.0
      %v369 = vadd.f32 %v367, %v368
      %v370 = vsel %vm257, %v247, 0.0
      %v371 = vadd.f32 %v369, %v370
      %v372 = vsel %vm257, %v248, 0.0
      %v373 = vadd.f32 %v371, %v372
      %v374 = vsel %vm257, %v249, 0.0
      %v375 = vadd.f32 %v373, %v374
      %v376 = vsel %vm257, %v250, 0.0
      %v377 = vadd.f32 %v375, %v376
      %v378 = vsel %vm257, %v251, 0.0
      %v379 = vadd.f32 %v377, %v378
      %v380 = vsel %vm257, %v252, 0.0
      %v381 = vadd.f32 %v379, %v380
      %v382 = vsel %vm257, %v253, 0.0
      %v383 = vadd.f32 %v381, %v382
      %v384 = vsel %vm257, %v254, 0.0
      %v385 = vadd.f32 %v383, %v384
      %v386 = vsel %vm257, %v255, 0.0
      %v387 = vadd.f32 %v385, %v386
      %v388 = vsel %vm257, %v256, 0.0
      %v389 = vadd.f32 %v387, %v388
      %v390 = vrot.slane %v389, 4
      %v391 = vadd.f32 %v389, %v390
      %v392 = vrot.slane %v391, 2
      %v393 = vadd.f32 %v391, %v392
      %v394 = vrot.slane %v393, 1
      %v395 = vadd.f32 %v393, %v394
      %v396 = vmul.f32 %v395, 0.00390625
      %v397 = vld [vmem:[%s1] sm:$0xff]
      %v398 = vld [vmem:[%s1 + $0x8] sm:$0xff]
      %v399 = vld [vmem:[%s1 + $0x10] sm:$0xff]
      %v400 = vld [vmem:[%s1 + $0x18] sm:$0xff]
      %v401 = vld [vmem:[%s1 + $0x20] sm:$0xff]
      %v402 = vld [vmem:[%s1 + $0x28] sm:$0xff]
      %v403 = vld [vmem:[%s1 + $0x30] sm:$0xff]
      %v404 = vld [vmem:[%s1 + $0x38] sm:$0xff]
      %v405 = vld [vmem:[%s2] sm:$0x1]
      %v406 = vld [vmem:[%s3] sm:$0xf]
      %v407 = vld [vmem:[%s4] sm:$0x1]
      %v409 = vsel %vm257, %v326, 0
      %411 = vmatprep.subr.mxu0 0.0
      %412 = vmatpush1.msra.mxu0 %v397
      %413 = vmatprep.subr.mxu0 0.0
      %414 = vmatpush1.msra.mxu0 %v398
      %415 = vmatprep.subr.mxu0 0.0
      %416 = vmatpush1.msra.mxu0 %v399
      %417 = vmatprep.subr.mxu0 0.0
      %418 = vmatpush1.msra.mxu0 %v400
      %419 = vmatprep.subr.mxu0 0.0
      %420 = vmatpush1.msra.mxu0 %v401
      %421 = vmatprep.subr.mxu0 0.0
      %422 = vmatpush1.msra.mxu0 %v402
      %423 = vmatprep.subr.mxu0 0.0
      %424 = vmatpush1.msra.mxu0 %v403
      %425 = vmatprep.subr.mxu0 0.0
      %426 = vmatpush1.msra.mxu0 %v404
      %427 = vmatprep.subr.mxu0 0.0
      %428 = vmatpush1.msra.mxu0 0.0
      %429 = vmatprep.subr.mxu0 0.0
      %430 = vmatpush1.msra.mxu0 0.0
      %431 = vmatprep.subr.mxu0 0.0
      %432 = vmatpush1.msra.mxu0 0.0
      %433 = vmatprep.subr.mxu0 0.0
      %434 = vmatpush1.msra.mxu0 0.0
      %435 = vmatprep.subr.mxu0 0.0
      %436 = vmatpush1.msra.mxu0 0.0
      %437 = vmatprep.subr.mxu0 0.0
      %438 = vmatpush1.msra.mxu0 0.0
      %439 = vmatprep.subr.mxu0 0.0
      %440 = vmatpush1.msra.mxu0 0.0
      %441 = vmatprep.subr.mxu0 0.0
      %442 = vmatpush1.msra.mxu0 0.0
      %443 = vmatprep.subr.mxu0 0.0
      %444 = vmatpush1.msra.mxu0 0.0
      %445 = vmatprep.subr.mxu0 0.0
      %446 = vmatpush1.msra.mxu0 0.0
      %447 = vmatprep.subr.mxu0 0.0
      %448 = vmatpush1.msra.mxu0 0.0
      %449 = vmatprep.subr.mxu0 0.0
      %450 = vmatpush1.msra.mxu0 0.0
      %451 = vmatprep.subr.mxu0 0.0
      %452 = vmatpush1.msra.mxu0 0.0
      %453 = vmatprep.subr.mxu0 0.0
      %454 = vmatpush1.msra.mxu0 0.0
      %455 = vmatprep.subr.mxu0 0.0
      %456 = vmatpush1.msra.mxu0 0.0
      %457 = vmatprep.subr.mxu0 0.0
      %458 = vmatpush1.msra.mxu0 0.0
      %459 = vmatprep.subr.mxu0 0.0
      %460 = vmatpush1.msra.mxu0 0.0
      %461 = vmatprep.subr.mxu0 0.0
      %462 = vmatpush1.msra.mxu0 0.0
      %463 = vmatprep.subr.mxu0 0.0
      %464 = vmatpush1.msra.mxu0 0.0
      %465 = vmatprep.subr.mxu0 0.0
      %466 = vmatpush1.msra.mxu0 0.0
      %467 = vmatprep.subr.mxu0 0.0
      %468 = vmatpush1.msra.mxu0 0.0
      %469 = vmatprep.subr.mxu0 0.0
      %470 = vmatpush1.msra.mxu0 0.0
      %471 = vmatprep.subr.mxu0 0.0
      %472 = vmatpush1.msra.mxu0 0.0
      %473 = vmatprep.subr.mxu0 0.0
      %474 = vmatpush1.msra.mxu0 0.0
      %475 = vmatprep.mubr.f32.mxu0 0.0
      %476 = vmatmul.mubr.f32.gmra.mrb[0].mxu0 %v409
      %v477 = vpop.f32.mrb[0].mxu0
      %v478 = vadd.f32 %v405, %v477
      %v479 = vpop.f32.mrb[0].mxu0
      %480 = vdwg.mxu0
      %v481 = vmax.f32 %v478, 0.0
      %vm482 = vcmask 31744
      %v484 = vsel %vm482, %v481, 0
      %vm486 = vcmask 1043456
      %v488 = vsel %vm486, %v406, 0
      %490 = vmatprep.subr.mxu0 0.0
      %491 = vmatpush1.msra.mxu0 %v488
      %492 = vmatprep.subr.mxu0 0.0
      %493 = vmatpush1.msra.mxu0 0.0
      %494 = vmatprep.subr.mxu0 0.0
      %495 = vmatpush1.msra.mxu0 0.0
      %496 = vmatprep.subr.mxu0 0.0
      %497 = vmatpush1.msra.mxu0 0.0
      %498 = vmatprep.subr.mxu0 0.0
      %499 = vmatpush1.msra.mxu0 0.0
      %500 = vmatprep.subr.mxu0 0.0
      %501 = vmatpush1.msra.mxu0 0.0
      %502 = vmatprep.subr.mxu0 0.0
      %503 = vmatpush1.msra.mxu0 0.0
      %504 = vmatprep.subr.mxu0 0.0
      %505 = vmatpush1.msra.mxu0 0.0
      %506 = vmatprep.subr.mxu0 0.0
      %507 = vmatpush1.msra.mxu0 0.0
      %508 = vmatprep.subr.mxu0 0.0
      %509 = vmatpush1.msra.mxu0 0.0
      %510 = vmatprep.subr.mxu0 0.0
      %511 = vmatpush1.msra.mxu0 0.0
      %512 = vmatprep.subr.mxu0 0.0
      %513 = vmatpush1.msra.mxu0 0.0
      %514 = vmatprep.subr.mxu0 0.0
      %515 = vmatpush1.msra.mxu0 0.0
      %516 = vmatprep.subr.mxu0 0.0
      %517 = vmatpush1.msra.mxu0 0.0
      %518 = vmatprep.subr.mxu0 0.0
      %519 = vmatpush1.msra.mxu0 0.0
      %520 = vmatprep.subr.mxu0 0.0
      %521 = vmatpush1.msra.mxu0 0.0
      %522 = vmatprep.subr.mxu0 0.0
      %523 = vmatpush1.msra.mxu0 0.0
      %524 = vmatprep.subr.mxu0 0.0
      %525 = vmatpush1.msra.mxu0 0.0
      %526 = vmatprep.subr.mxu0 0.0
      %527 = vmatpush1.msra.mxu0 0.0
      %528 = vmatprep.subr.mxu0 0.0
      %529 = vmatpush1.msra.mxu0 0.0
      %530 = vmatprep.subr.mxu0 0.0
      %531 = vmatpush1.msra.mxu0 0.0
      %532 = vmatprep.subr.mxu0 0.0
      %533 = vmatpush1.msra.mxu0 0.0
      %534 = vmatprep.subr.mxu0 0.0
      %535 = vmatpush1.msra.mxu0 0.0
      %536 = vmatprep.subr.mxu0 0.0
      %537 = vmatpush1.msra.mxu0 0.0
      %538 = vmatprep.subr.mxu0 0.0
      %539 = vmatpush1.msra.mxu0 0.0
      %540 = vmatprep.subr.mxu0 0.0
      %541 = vmatpush1.msra.mxu0 0.0
      %542 = vmatprep.subr.mxu0 0.0
      %543 = vmatpush1.msra.mxu0 0.0
      %544 = vmatprep.subr.mxu0 0.0
      %545 = vmatpush1.msra.mxu0 0.0
      %546 = vmatprep.subr.mxu0 0.0
      %547 = vmatpush1.msra.mxu0 0.0
      %548 = vmatprep.subr.mxu0 0.0
      %549 = vmatpush1.msra.mxu0 0.0
      %550 = vmatprep.subr.mxu0 0.0
      %551 = vmatpush1.msra.mxu0 0.0
      %552 = vmatprep.subr.mxu0 0.0
      %553 = vmatpush1.msra.mxu0 0.0
      %554 = vmatprep.mubr.f32.mxu0 0.0
      %555 = vmatmul.mubr.f32.gmra.mrb[0].mxu0 %v484
      %v556 = vpop.f32.mrb[0].mxu0
      %v557 = vadd.f32 %v407, %v556
      %v558 = vpop.f32.mrb[0].mxu0
      %559 = vdwg.mxu0
      %v561 = vsel %vm257, %v396, 0
      %563 = vmatprep.subr.mxu0 0.0
      %564 = vmatpush1.msra.mxu0 %v397
      %565 = vmatprep.subr.mxu0 0.0
      %566 = vmatpush1.msra.mxu0 %v398
      %567 = vmatprep.subr.mxu0 0.0
      %568 = vmatpush1.msra.mxu0 %v399
      %569 = vmatprep.subr.mxu0 0.0
      %570 = vmatpush1.msra.mxu0 %v400
      %571 = vmatprep.subr.mxu0 0.0
      %572 = vmatpush1.msra.mxu0 %v401
      %573 = vmatprep.subr.mxu0 0.0
      %574 = vmatpush1.msra.mxu0 %v402
      %575 = vmatprep.subr.mxu0 0.0
      %576 = vmatpush1.msra.mxu0 %v403
      %577 = vmatprep.subr.mxu0 0.0
      %578 = vmatpush1.msra.mxu0 %v404
      %579 = vmatprep.subr.mxu0 0.0
      %580 = vmatpush1.msra.mxu0 0.0
      %581 = vmatprep.subr.mxu0 0.0
      %582 = vmatpush1.msra.mxu0 0.0
      %583 = vmatprep.subr.mxu0 0.0
      %584 = vmatpush1.msra.mxu0 0.0
      %585 = vmatprep.subr.mxu0 0.0
      %586 = vmatpush1.msra.mxu0 0.0
      %587 = vmatprep.subr.mxu0 0.0
      %588 = vmatpush1.msra.mxu0 0.0
      %589 = vmatprep.subr.mxu0 0.0
      %590 = vmatpush1.msra.mxu0 0.0
      %591 = vmatprep.subr.mxu0 0.0
      %592 = vmatpush1.msra.mxu0 0.0
      %593 = vmatprep.subr.mxu0 0.0
      %594 = vmatpush1.msra.mxu0 0.0
      %595 = vmatprep.subr.mxu0 0.0
      %596 = vmatpush1.msra.mxu0 0.0
      %597 = vmatprep.subr.mxu0 0.0
      %598 = vmatpush1.msra.mxu0 0.0
      %599 = vmatprep.subr.mxu0 0.0
      %600 = vmatpush1.msra.mxu0 0.0
      %601 = vmatprep.subr.mxu0 0.0
      %602 = vmatpush1.msra.mxu0 0.0
      %603 = vmatprep.subr.mxu0 0.0
      %604 = vmatpush1.msra.mxu0 0.0
      %605 = vmatprep.subr.mxu0 0.0
      %606 = vmatpush1.msra.mxu0 0.0
      %607 = vmatprep.subr.mxu0 0.0
      %608 = vmatpush1.msra.mxu0 0.0
      %609 = vmatprep.subr.mxu0 0.0
      %610 = vmatpush1.msra.mxu0 0.0
      %611 = vmatprep.subr.mxu0 0.0
      %612 = vmatpush1.msra.mxu0 0.0
      %613 = vmatprep.subr.mxu0 0.0
      %614 = vmatpush1.msra.mxu0 0.0
      %615 = vmatprep.subr.mxu0 0.0
      %616 = vmatpush1.msra.mxu0 0.0
      %617 = vmatprep.subr.mxu0 0.0
      %618 = vmatpush1.msra.mxu0 0.0
      %619 = vmatprep.subr.mxu0 0.0
      %620 = vmatpush1.msra.mxu0 0.0
      %621 = vmatprep.subr.mxu0 0.0
      %622 = vmatpush1.msra.mxu0 0.0
      %623 = vmatprep.subr.mxu0 0.0
      %624 = vmatpush1.msra.mxu0 0.0
      %625 = vmatprep.subr.mxu0 0.0
      %626 = vmatpush1.msra.mxu0 0.0
      %627 = vmatprep.mubr.f32.mxu0 0.0
      %628 = vmatmul.mubr.f32.gmra.mrb[0].mxu0 %v561
      %v629 = vpop.f32.mrb[0].mxu0
      %v630 = vadd.f32 %v405, %v629
      %v631 = vpop.f32.mrb[0].mxu0
      %632 = vdwg.mxu0
      %v633 = vmax.f32 %v630, 0.0
      %v635 = vsel %vm482, %v633, 0
      %637 = vmatprep.subr.mxu0 0.0
      %638 = vmatpush1.msra.mxu0 %v488
      %639 = vmatprep.subr.mxu0 0.0
      %640 = vmatpush1.msra.mxu0 0.0
      %641 = vmatprep.subr.mxu0 0.0
      %642 = vmatpush1.msra.mxu0 0.0
      %643 = vmatprep.subr.mxu0 0.0
      %644 = vmatpush1.msra.mxu0 0.0
      %645 = vmatprep.subr.mxu0 0.0
      %646 = vmatpush1.msra.mxu0 0.0
      %647 = vmatprep.subr.mxu0 0.0
      %648 = vmatpush1.msra.mxu0 0.0
      %649 = vmatprep.subr.mxu0 0.0
      %650 = vmatpush1.msra.mxu0 0.0
      %651 = vmatprep.subr.mxu0 0.0
      %652 = vmatpush1.msra.mxu0 0.0
      %653 = vmatprep.subr.mxu0 0.0
      %654 = vmatpush1.msra.mxu0 0.0
      %655 = vmatprep.subr.mxu0 0.0
      %656 = vmatpush1.msra.mxu0 0.0
      %657 = vmatprep.subr.mxu0 0.0
      %658 = vmatpush1.msra.mxu0 0.0
      %659 = vmatprep.subr.mxu0 0.0
      %660 = vmatpush1.msra.mxu0 0.0
      %661 = vmatprep.subr.mxu0 0.0
      %662 = vmatpush1.msra.mxu0 0.0
      %663 = vmatprep.subr.mxu0 0.0
      %664 = vmatpush1.msra.mxu0 0.0
      %665 = vmatprep.subr.mxu0 0.0
      %666 = vmatpush1.msra.mxu0 0.0
      %667 = vmatprep.subr.mxu0 0.0
      %668 = vmatpush1.msra.mxu0 0.0
      %669 = vmatprep.subr.mxu0 0.0
      %670 = vmatpush1.msra.mxu0 0.0
      %671 = vmatprep.subr.mxu0 0.0
      %672 = vmatpush1.msra.mxu0 0.0
      %673 = vmatprep.subr.mxu0 0.0
      %674 = vmatpush1.msra.mxu0 0.0
      %675 = vmatprep.subr.mxu0 0.0
      %676 = vmatpush1.msra.mxu0 0.0
      %677 = vmatprep.subr.mxu0 0.0
      %678 = vmatpush1.msra.mxu0 0.0
      %679 = vmatprep.subr.mxu0 0.0
      %680 = vmatpush1.msra.mxu0 0.0
      %681 = vmatprep.subr.mxu0 0.0
      %682 = vmatpush1.msra.mxu0 0.0
      %683 = vmatprep.subr.mxu0 0.0
      %684 = vmatpush1.msra.mxu0 0.0
      %685 = vmatprep.subr.mxu0 0.0
      %686 = vmatpush1.msra.mxu0 0.0
      %687 = vmatprep.subr.mxu0 0.0
      %688 = vmatpush1.msra.mxu0 0.0
      %689 = vmatprep.subr.mxu0 0.0
      %690 = vmatpush1.msra.mxu0 0.0
      %691 = vmatprep.subr.mxu0 0.0
      %692 = vmatpush1.msra.mxu0 0.0
      %693 = vmatprep.subr.mxu0 0.0
      %694 = vmatpush1.msra.mxu0 0.0
      %695 = vmatprep.subr.mxu0 0.0
      %696 = vmatpush1.msra.mxu0 0.0
      %697 = vmatprep.subr.mxu0 0.0
      %698 = vmatpush1.msra.mxu0 0.0
      %699 = vmatprep.subr.mxu0 0.0
      %700 = vmatpush1.msra.mxu0 0.0
      %701 = vmatprep.mubr.f32.mxu0 0.0
      %702 = vmatmul.mubr.f32.gmra.mrb[0].mxu0 %v635
      %v703 = vpop.f32.mrb[0].mxu0
      %v704 = vadd.f32 %v407, %v703
      %v705 = vpop.f32.mrb[0].mxu0
      %706 = vdwg.mxu0
      %v707 = vadd.f32 %v557, %v704
      %v708 = vsub.f32 0.0, %v707
      %v709 = vmul.f32 %v708, 1.442695
      %v710 = vpow.pop %v709
      %v711 = vadd.f32 %v710, 1.0
      %v712 = vrcp.pop %v711
      %v713 = vmul.f32 1.0, %v712
      %v714 = vlaneseq
      %v715 = vshrl.u32 %v714, 7
      %v716 = vsub.s32 0, %v715
      %v717 = vrot.slane %v713, %v716
      %v718 = vmul.f32 %v225, %v717
      %v719 = vmul.f32 %v226, %v717
      %v720 = vmul.f32 %v227, %v717
      %v721 = vmul.f32 %v228, %v717
      %v722 = vmul.f32 %v229, %v717
      %v723 = vmul.f32 %v230, %v717
      %v724 = vmul.f32 %v231, %v717
      %v725 = vmul.f32 %v232, %v717
      %v726 = vmul.f32 %v233, %v717
      %v727 = vmul.f32 %v234, %v717
      %v728 = vmul.f32 %v235, %v717
      %v729 = vmul.f32 %v236, %v717
      %v730 = vmul.f32 %v237, %v717
      %v731 = vmul.f32 %v238, %v717
      %v732 = vmul.f32 %v239, %v717
      %v733 = vmul.f32 %v240, %v717
      %v734 = vmul.f32 %v241, %v717
      %v735 = vmul.f32 %v242, %v717
      %v736 = vmul.f32 %v243, %v717
      %v737 = vmul.f32 %v244, %v717
      %v738 = vmul.f32 %v245, %v717
      %v739 = vmul.f32 %v246, %v717
      %v740 = vmul.f32 %v247, %v717
      %v741 = vmul.f32 %v248, %v717
      %v742 = vmul.f32 %v249, %v717
      %v743 = vmul.f32 %v250, %v717
      %v744 = vmul.f32 %v251, %v717
      %v745 = vmul.f32 %v252, %v717
      %v746 = vmul.f32 %v253, %v717
      %v747 = vmul.f32 %v254, %v717
      %v748 = vmul.f32 %v255, %v717
      %v749 = vmul.f32 %v256, %v717
      %750 = vst.msk [vmem:[%s224] sm:$0xff] %vm257, %v718
      %751 = vst.msk [vmem:[%s224 + $0x8] sm:$0xff] %vm257, %v719
      %752 = vst.msk [vmem:[%s224 + $0x10] sm:$0xff] %vm257, %v720
      %753 = vst.msk [vmem:[%s224 + $0x18] sm:$0xff] %vm257, %v721
      %754 = vst.msk [vmem:[%s224 + $0x20] sm:$0xff] %vm257, %v722
      %755 = vst.msk [vmem:[%s224 + $0x28] sm:$0xff] %vm257, %v723
      %756 = vst.msk [vmem:[%s224 + $0x30] sm:$0xff] %vm257, %v724
      %757 = vst.msk [vmem:[%s224 + $0x38] sm:$0xff] %vm257, %v725
      %758 = vst.msk [vmem:[%s224 + $0x40] sm:$0xff] %vm257, %v726
      %759 = vst.msk [vmem:[%s224 + $0x48] sm:$0xff] %vm257, %v727
      %760 = vst.msk [vmem:[%s224 + $0x50] sm:$0xff] %vm257, %v728
      %761 = vst.msk [vmem:[%s224 + $0x58] sm:$0xff] %vm257, %v729
      %762 = vst.msk [vmem:[%s224 + $0x60] sm:$0xff] %vm257, %v730
      %763 = vst.msk [vmem:[%s224 + $0x68] sm:$0xff] %vm257, %v731
      %764 = vst.msk [vmem:[%s224 + $0x70] sm:$0xff] %vm257, %v732
      %765 = vst.msk [vmem:[%s224 + $0x78] sm:$0xff] %vm257, %v733
      %766 = vst.msk [vmem:[%s224 + $0x80] sm:$0xff] %vm257, %v734
      %767 = vst.msk [vmem:[%s224 + $0x88] sm:$0xff] %vm257, %v735
      %768 = vst.msk [vmem:[%s224 + $0x90] sm:$0xff] %vm257, %v736
      %769 = vst.msk [vmem:[%s224 + $0x98] sm:$0xff] %vm257, %v737
      %770 = vst.msk [vmem:[%s224 + $0xa0] sm:$0xff] %vm257, %v738
      %771 = vst.msk [vmem:[%s224 + $0xa8] sm:$0xff] %vm257, %v739
      %772 = vst.msk [vmem:[%s224 + $0xb0] sm:$0xff] %vm257, %v740
      %773 = vst.msk [vmem:[%s224 + $0xb8] sm:$0xff] %vm257, %v741
      %774 = vst.msk [vmem:[%s224 + $0xc0] sm:$0xff] %vm257, %v742
      %775 = vst.msk [vmem:[%s224 + $0xc8] sm:$0xff] %vm257, %v743
      %776 = vst.msk [vmem:[%s224 + $0xd0] sm:$0xff] %vm257, %v744
      %777 = vst.msk [vmem:[%s224 + $0xd8] sm:$0xff] %vm257, %v745
      %778 = vst.msk [vmem:[%s224 + $0xe0] sm:$0xff] %vm257, %v746
      %779 = vst.msk [vmem:[%s224 + $0xe8] sm:$0xff] %vm257, %v747
      %780 = vst.msk [vmem:[%s224 + $0xf0] sm:$0xff] %vm257, %v748
      %781 = vst.msk [vmem:[%s224 + $0xf8] sm:$0xff] %vm257, %v749
      %p782 = scmp.lt.s32.totalorder %s16, 1
      %s783 = scalar_select %p782, %s16, 1
      %s784 = smul.addr %s783, 32
      %s785 = smul.addr %s784, 8
      %s786 = scalar_lea.vmem %s5, %s785
      // Predicated region
      $region41: #{bifusion_forward.10} parent=39 // pred_check
        %p787 = pneg %p144
      $region42: #{bifusion_forward.10} parent=39 // pred_check_branch
        %789 = sbr.rel (%p787) target = $region44
      $region43: #{bifusion_forward.10} parent=39 // pred_region
        _
      $region44: #{bifusion_forward.10} parent=39 // pred_fallthru
        _
    $region40: #{bifusion_forward.10} parent=5 // pred_fallthru
      _
    %p790 = scmp.le.s32.totalorder 2, %s11
    // Predicated region
    $region45: #{bifusion_forward.10} parent=5 // pred_check
      %p791 = pneg %p790
    $region46: #{bifusion_forward.10} parent=5 // pred_check_branch
      %793 = sbr.rel (%p791) target = $region48
    $region47: #{bifusion_forward.10} parent=5 // pred_region
      %s794 = ssub.s32 %s11, 2
      // Predicated region
      $region49: #{bifusion_forward.10} parent=47 // pred_check
        %p795 = pneg %p150
      $region50: #{bifusion_forward.10} parent=47 // pred_check_branch
        %797 = sbr.rel (%p795) target = $region52
      $region51: #{bifusion_forward.10} parent=47 // pred_region
        %p798 = scmp.lt.s32.totalorder %s17, 1
        %s799 = scalar_select %p798, %s17, 1
        %s800 = smul.addr %s799, 32
        %s801 = smul.addr %s800, 8
        %s802 = scalar_lea.vmem %s5, %s801
      $region52: #{bifusion_forward.10} parent=47 // pred_fallthru
        _
    $region48: #{bifusion_forward.10} parent=5 // pred_fallthru
      _
  $region6: #{bifusion_forward.10} parent=0 // loop_footer
    %s15 = sadd.s32 1, %s11
  $region7: #{bifusion_forward.10} parent=0 // loop_footer_branch
    %10 = sbr.rel target = $region3
  $region8: #{bifusion_forward.10} parent=0 // loop_exit
    _

// kernel: bifusion_forward.13
$region0: #{bifusion_forward.13}
  #allocation0 [shape = 'u32[]', space=smem, size = 0x4, offset = 0x4, fixed_abs, tag = 'smem constant byte address 0x4 - core index']
  #allocation1 [shape = 'u32[144,128]{1,0:T(1,128)}', space=vmem, size = 0x12000, scoped, tag = 'internal scratch']
  %s0 = inlined_call_operand.vmem [shape: f32[512,1], index: 0, kind: input, shape index: {}]
  %s1 = inlined_call_operand.vmem [shape: f32[1,2], index: 1, kind: input, shape index: {}]
  %s2 = inlined_call_operand.vmem [shape: f32[512,64], index: 2, kind: input, shape index: {}]
  %s3 = inlined_call_operand.vmem [shape: f32[512,64], index: 3, kind: input, shape index: {}]
  %s4 = inlined_call_operand.vmem [shape: f32[512,64], index: 4, kind: output, shape index: {0}]
  %s5 = inlined_call_operand.vmem [shape: f32[512,64], index: 5, kind: output, shape index: {1}]
  %6 = xla_tuple %s4, %s5
  %s7 = sld [smem:[#allocation0]]
  $region57: #{bifusion_forward.13} parent=0
    _
  %s9 = ssub.s32 1, %s7
  %s10 = scalar_select 0, %s9, %s7
  loop: start=0, step=1, limit=4
  $region2: #{bifusion_forward.13} parent=0 // loop_pre_header
    _
  $region3: #{bifusion_forward.13} parent=0 // loop_header
    %s12 = sphi 0, %s16
    %p13 = scmp.ge.s32.totalorder %s12, 4
    %s22 = sphi 0, %s24
    %s25 = sphi 0, %s22
    %s26 = sphi 0, %s25
    %s42 = sphi 0, %s26
    %s46 = sphi 0, %s46
    %s48 = sphi 0, %s46
    %s49 = sphi 0, %s48
    %s63 = sphi 0, %s49
    %s69 = sphi 0, %s71
    %s72 = sphi 0, %s69
    %s73 = sphi 0, %s72
    %s89 = sphi 0, %s73
    %s95 = sphi 0, %s97
    %s98 = sphi 0, %s95
    %s99 = sphi 0, %s98
    %s115 = sphi 0, %s99
    %s121 = sphi 0, %s123
    %s124 = sphi 0, %s121
    %s125 = sphi 0, %s124
    %s141 = sphi 0, %s125
    %s147 = sphi 0, %s149
    %s150 = sphi 0, %s147
    %s151 = sphi 0, %s150
    %s167 = sphi 0, %s151
  $region4: #{bifusion_forward.13} parent=0 // loop_header_branch
    %15 = sbr.rel (%p13) target = $region8
  $region5: #{bifusion_forward.13} parent=0 // loop_body
    %s17 = ssub.s32 %s12, 1
    %s18 = ssub.s32 %s12, 2
    %s19 = sadd.s32 %s12, 1
    %s20 = ssub.s32 %s12, %s19
    %p21 = scmp.eq.s32.totalorder %s20, 0
    %s23 = sadd.s32 %s22, 1
    %s24 = scalar_select %p21, %s22, %s23
    %p27 = pneg %p21
    %p28 = scmp.eq.s32.totalorder %s12, 1
    %p29 = por %p27, %p28
    %p30 = scmp.ne.s32.totalorder %s22, %s25
    %p31 = scmp.eq.s32.totalorder %s12, 0
    %p32 = por %p30, %p31
    %p33 = scmp.ne.s32.totalorder %s22, %s25
    %p34 = scmp.eq.s32.totalorder %s17, 1
    %p35 = por %p33, %p34
    %p36 = scmp.ne.s32.totalorder %s25, %s26
    %p37 = scmp.eq.s32.totalorder %s17, 0
    %p38 = por %p36, %p37
    %p39 = scmp.ne.s32.totalorder %s25, %s26
    %p40 = scmp.eq.s32.totalorder %s18, 1
    %p41 = por %p39, %p40
    %p43 = scmp.ne.s32.totalorder %s26, %s42
    %p44 = scmp.eq.s32.totalorder %s18, 0
    %p45 = por %p43, %p44
    %s47 = sadd.s32 %s46, 1
    %p50 = scmp.eq.s32.totalorder %s12, 1
    %p51 = scmp.ne.s32.totalorder %s46, %s48
    %p52 = scmp.eq.s32.totalorder %s12, 0
    %p53 = por %p51, %p52
    %p54 = scmp.ne.s32.totalorder %s46, %s48
    %p55 = scmp.eq.s32.totalorder %s17, 1
    %p56 = por %p54, %p55
    %p57 = scmp.ne.s32.totalorder %s48, %s49
    %p58 = scmp.eq.s32.totalorder %s17, 0
    %p59 = por %p57, %p58
    %p60 = scmp.ne.s32.totalorder %s48, %s49
    %p61 = scmp.eq.s32.totalorder %s18, 1
    %p62 = por %p60, %p61
    %p64 = scmp.ne.s32.totalorder %s49, %s63
    %p65 = scmp.eq.s32.totalorder %s18, 0
    %p66 = por %p64, %p65
    %s67 = ssub.s32 %s12, %s19
    %p68 = scmp.eq.s32.totalorder %s67, 0
    %s70 = sadd.s32 %s69, 1
    %s71 = scalar_select %p68, %s69, %s70
    %p74 = pneg %p68
    %p75 = scmp.eq.s32.totalorder %s12, 1
    %p76 = por %p74, %p75
    %p77 = scmp.ne.s32.totalorder %s69, %s72
    %p78 = scmp.eq.s32.totalorder %s12, 0
    %p79 = por %p77, %p78
    %p80 = scmp.ne.s32.totalorder %s69, %s72
    %p81 = scmp.eq.s32.totalorder %s17, 1
    %p82 = por %p80, %p81
    %p83 = scmp.ne.s32.totalorder %s72, %s73
    %p84 = scmp.eq.s32.totalorder %s17, 0
    %p85 = por %p83, %p84
    %p86 = scmp.ne.s32.totalorder %s72, %s73
    %p87 = scmp.eq.s32.totalorder %s18, 1
    %p88 = por %p86, %p87
    %p90 = scmp.ne.s32.totalorder %s73, %s89
    %p91 = scmp.eq.s32.totalorder %s18, 0
    %p92 = por %p90, %p91
    %s93 = ssub.s32 %s12, %s19
    %p94 = scmp.eq.s32.totalorder %s93, 0
    %s96 = sadd.s32 %s95, 1
    %s97 = scalar_select %p94, %s95, %s96
    %p100 = pneg %p94
    %p101 = scmp.eq.s32.totalorder %s12, 1
    %p102 = por %p100, %p101
    %p103 = scmp.ne.s32.totalorder %s95, %s98
    %p104 = scmp.eq.s32.totalorder %s12, 0
    %p105 = por %p103, %p104
    %p106 = scmp.ne.s32.totalorder %s95, %s98
    %p107 = scmp.eq.s32.totalorder %s17, 1
    %p108 = por %p106, %p107
    %p109 = scmp.ne.s32.totalorder %s98, %s99
    %p110 = scmp.eq.s32.totalorder %s17, 0
    %p111 = por %p109, %p110
    %p112 = scmp.ne.s32.totalorder %s98, %s99
    %p113 = scmp.eq.s32.totalorder %s18, 1
    %p114 = por %p112, %p113
    %p116 = scmp.ne.s32.totalorder %s99, %s115
    %p117 = scmp.eq.s32.totalorder %s18, 0
    %p118 = por %p116, %p117
    %s119 = ssub.s32 %s12, %s19
    %p120 = scmp.eq.s32.totalorder %s119, 0
    %s122 = sadd.s32 %s121, 1
    %s123 = scalar_select %p120, %s121, %s122
    %p126 = pneg %p120
    %p127 = scmp.eq.s32.totalorder %s12, 1
    %p128 = por %p126, %p127
    %p129 = scmp.ne.s32.totalorder %s121, %s124
    %p130 = scmp.eq.s32.totalorder %s12, 0
    %p131 = por %p129, %p130
    %p132 = scmp.ne.s32.totalorder %s121, %s124
    %p133 = scmp.eq.s32.totalorder %s17, 1
    %p134 = por %p132, %p133
    %p135 = scmp.ne.s32.totalorder %s124, %s125
    %p136 = scmp.eq.s32.totalorder %s17, 0
    %p137 = por %p135, %p136
    %p138 = scmp.ne.s32.totalorder %s124, %s125
    %p139 = scmp.eq.s32.totalorder %s18, 1
    %p140 = por %p138, %p139
    %p142 = scmp.ne.s32.totalorder %s125, %s141
    %p143 = scmp.eq.s32.totalorder %s18, 0
    %p144 = por %p142, %p143
    %s145 = ssub.s32 %s12, %s19
    %p146 = scmp.eq.s32.totalorder %s145, 0
    %s148 = sadd.s32 %s147, 1
    %s149 = scalar_select %p146, %s147, %s148
    %p152 = pneg %p146
    %p153 = scmp.eq.s32.totalorder %s12, 1
    %p154 = por %p152, %p153
    %p155 = scmp.ne.s32.totalorder %s147, %s150
    %p156 = scmp.eq.s32.totalorder %s12, 0
    %p157 = por %p155, %p156
    %p158 = scmp.ne.s32.totalorder %s147, %s150
    %p159 = scmp.eq.s32.totalorder %s17, 1
    %p160 = por %p158, %p159
    %p161 = scmp.ne.s32.totalorder %s150, %s151
    %p162 = scmp.eq.s32.totalorder %s17, 0
    %p163 = por %p161, %p162
    %p164 = scmp.ne.s32.totalorder %s150, %s151
    %p165 = scmp.eq.s32.totalorder %s18, 1
    %p166 = por %p164, %p165
    %p168 = scmp.ne.s32.totalorder %s151, %s167
    %p169 = scmp.eq.s32.totalorder %s18, 0
    %p170 = por %p168, %p169
    %p171 = scmp.le.s32.totalorder 1, %s12
    %p172 = scmp.lt.s32.totalorder %s12, 3
    %p173 = pnand %p171, %p172
    %p174 = pneg %p173
    // Predicated region
    $region9: #{bifusion_forward.13} parent=5 // pred_check
      _
    $region10: #{bifusion_forward.13} parent=5 // pred_check_branch
      %176 = sbr.rel (%p173) target = $region12
    $region11: #{bifusion_forward.13} parent=5 // pred_region
      %s177 = ssub.s32 %s12, 1
      // Predicated region
      $region13: #{bifusion_forward.13} parent=11 // pred_check
        %p178 = pneg %p59
      $region14: #{bifusion_forward.13} parent=11 // pred_check_branch
        %180 = sbr.rel (%p178) target = $region16
      $region15: #{bifusion_forward.13} parent=11 // pred_region
        _
      $region16: #{bifusion_forward.13} parent=11 // pred_fallthru
        _
    $region12: #{bifusion_forward.13} parent=5 // pred_fallthru
      _
    %p181 = scmp.lt.s32.totalorder %s12, 2
    // Predicated region
    $region17: #{bifusion_forward.13} parent=5 // pred_check
      %p182 = pneg %p181
    $region18: #{bifusion_forward.13} parent=5 // pred_check_branch
      %184 = sbr.rel (%p182) target = $region20
    $region19: #{bifusion_forward.13} parent=5 // pred_region
      // Predicated region
      $region21: #{bifusion_forward.13} parent=19 // pred_check
        %p185 = pneg %p32
      $region22: #{bifusion_forward.13} parent=19 // pred_check_branch
        %187 = sbr.rel (%p185) target = $region24
      $region23: #{bifusion_forward.13} parent=19 // pred_region
        %s188 = smul.u32 32, %s12
        %p189 = scmp.lt.s32.totalorder %s188, 63
        %s190 = scalar_select %p189, %s188, 63
        %s191 = smul.addr %s190, 8
        %s192 = scalar_lea.vmem %s0, %s191
        %s193 = smul.u32 32, %s12
      $region24: #{bifusion_forward.13} parent=19 // pred_fallthru
        _
      // Predicated region
      $region25: #{bifusion_forward.13} parent=19 // pred_check
        %p194 = pneg %p79
      $region26: #{bifusion_forward.13} parent=19 // pred_check_branch
        %196 = sbr.rel (%p194) target = $region28
      $region27: #{bifusion_forward.13} parent=19 // pred_region
        %s197 = smul.u32 32, %s12
        %p198 = scmp.lt.s32.totalorder %s197, 63
        %s199 = scalar_select %p198, %s197, 63
        %s200 = smul.addr %s199, 8
        %s201 = scalar_lea.vmem %s2, %s200
        %s202 = smul.u32 32, %s12
      $region28: #{bifusion_forward.13} parent=19 // pred_fallthru
        _
      // Predicated region
      $region29: #{bifusion_forward.13} parent=19 // pred_check
        %p203 = pneg %p105
      $region30: #{bifusion_forward.13} parent=19 // pred_check_branch
        %205 = sbr.rel (%p203) target = $region32
      $region31: #{bifusion_forward.13} parent=19 // pred_region
        %s206 = smul.u32 32, %s12
        %p207 = scmp.lt.s32.totalorder %s206, 63
        %s208 = scalar_select %p207, %s206, 63
        %s209 = smul.addr %s208, 8
        %s210 = scalar_lea.vmem %s3, %s209
        %s211 = smul.u32 32, %s12
      $region32: #{bifusion_forward.13} parent=19 // pred_fallthru
        _
    $region20: #{bifusion_forward.13} parent=5 // pred_fallthru
      _
    %p212 = scmp.le.s32.totalorder 1, %s12
    %p213 = scmp.lt.s32.totalorder %s12, 3
    %p214 = pnand %p212, %p213
    %p215 = pneg %p214
    // Predicated region
    $region33: #{bifusion_forward.13} parent=5 // pred_check
      _
    $region34: #{bifusion_forward.13} parent=5 // pred_check_branch
      %217 = sbr.rel (%p214) target = $region36
    $region35: #{bifusion_forward.13} parent=5 // pred_region
      %s218 = ssub.s32 %s12, 1
      %s219 = smul.u32 32, %s17
      %p220 = scmp.lt.s32.totalorder %s219, 63
      %s221 = scalar_select %p220, %s219, 63
      %s222 = smul.addr %s221, 8
      %s223 = scalar_lea.vmem %s0, %s222
      %p224 = pneg %p38
      %p225 = pneg %p35
      %p226 = pneg %p59
      %p227 = pneg %p56
      %s228 = smul.u32 32, %s17
      %p229 = scmp.lt.s32.totalorder %s228, 63
      %s230 = scalar_select %p229, %s228, 63
      %s231 = smul.addr %s230, 8
      %s232 = scalar_lea.vmem %s2, %s231
      %p233 = pneg %p85
      %p234 = pneg %p82
      %s235 = smul.u32 32, %s17
      %p236 = scmp.lt.s32.totalorder %s235, 63
      %s237 = scalar_select %p236, %s235, 63
      %s238 = smul.addr %s237, 8
      %s239 = scalar_lea.vmem %s3, %s238
      %p240 = pneg %p111
      %p241 = pneg %p108
      %p242 = pneg %p137
      %p243 = pneg %p134
      %s244 = smul.u32 32, %s17
      %p245 = scmp.lt.s32.totalorder %s244, 63
      %s246 = scalar_select %p245, %s244, 63
      %s247 = smul.addr %s246, 8
      %s248 = scalar_lea.vmem %s4, %s247
      %p249 = pneg %p163
      %p250 = pneg %p160
      %s251 = smul.u32 32, %s17
      %p252 = scmp.lt.s32.totalorder %s251, 63
      %s253 = scalar_select %p252, %s251, 63
      %s254 = smul.addr %s253, 8
      %s255 = scalar_lea.vmem %s5, %s254
      %s256 = smul.u32 32, %s17
      %p257 = scmp.lt.s32.totalorder %s256, 63
      %s258 = scalar_select %p257, %s256, 63
      %s259 = smul.addr %s258, 8
      %s260 = scalar_lea.vmem %s0, %s259
      %s261 = smul.u32 32, %s17
      %s262 = smul.u32 32, %s17
      %p263 = scmp.lt.s32.totalorder %s262, 63
      %s264 = scalar_select %p263, %s262, 63
      %s265 = smul.addr %s264, 8
      %s266 = scalar_lea.vmem %s2, %s265
      %s267 = smul.u32 32, %s17
      %s268 = smul.u32 32, %s17
      %p269 = scmp.lt.s32.totalorder %s268, 63
      %s270 = scalar_select %p269, %s268, 63
      %s271 = smul.addr %s270, 8
      %s272 = scalar_lea.vmem %s3, %s271
      %s273 = smul.u32 32, %s17
      %s274 = smul.u32 32, %s17
      %p275 = scmp.lt.s32.totalorder %s274, 63
      %s276 = scalar_select %p275, %s274, 63
      %s277 = smul.addr %s276, 8
      %s278 = scalar_lea.vmem %s4, %s277
      %s279 = smul.u32 32, %s17
      %s280 = smul.u32 32, %s17
      %p281 = scmp.lt.s32.totalorder %s280, 63
      %s282 = scalar_select %p281, %s280, 63
      %s283 = smul.addr %s282, 8
      %s284 = scalar_lea.vmem %s5, %s283
      %s285 = smul.u32 32, %s17
      %v286 = vld [vmem:[%s260] sm:$0xff]
      %v287 = vld [vmem:[%s260 + $0x8] sm:$0xff]
      %v288 = vld [vmem:[%s260 + $0x10] sm:$0xff]
      %v289 = vld [vmem:[%s260 + $0x18] sm:$0xff]
      %v290 = vld [vmem:[%s260 + $0x20] sm:$0xff]
      %v291 = vld [vmem:[%s260 + $0x28] sm:$0xff]
      %v292 = vld [vmem:[%s260 + $0x30] sm:$0xff]
      %v293 = vld [vmem:[%s260 + $0x38] sm:$0xff]
      %v294 = vld [vmem:[%s260 + $0x40] sm:$0xff]
      %v295 = vld [vmem:[%s260 + $0x48] sm:$0xff]
      %v296 = vld [vmem:[%s260 + $0x50] sm:$0xff]
      %v297 = vld [vmem:[%s260 + $0x58] sm:$0xff]
      %v298 = vld [vmem:[%s260 + $0x60] sm:$0xff]
      %v299 = vld [vmem:[%s260 + $0x68] sm:$0xff]
      %v300 = vld [vmem:[%s260 + $0x70] sm:$0xff]
      %v301 = vld [vmem:[%s260 + $0x78] sm:$0xff]
      %v302 = vld [vmem:[%s260 + $0x80] sm:$0xff]
      %v303 = vld [vmem:[%s260 + $0x88] sm:$0xff]
      %v304 = vld [vmem:[%s260 + $0x90] sm:$0xff]
      %v305 = vld [vmem:[%s260 + $0x98] sm:$0xff]
      %v306 = vld [vmem:[%s260 + $0xa0] sm:$0xff]
      %v307 = vld [vmem:[%s260 + $0xa8] sm:$0xff]
      %v308 = vld [vmem:[%s260 + $0xb0] sm:$0xff]
      %v309 = vld [vmem:[%s260 + $0xb8] sm:$0xff]
      %v310 = vld [vmem:[%s260 + $0xc0] sm:$0xff]
      %v311 = vld [vmem:[%s260 + $0xc8] sm:$0xff]
      %v312 = vld [vmem:[%s260 + $0xd0] sm:$0xff]
      %v313 = vld [vmem:[%s260 + $0xd8] sm:$0xff]
      %v314 = vld [vmem:[%s260 + $0xe0] sm:$0xff]
      %v315 = vld [vmem:[%s260 + $0xe8] sm:$0xff]
      %v316 = vld [vmem:[%s260 + $0xf0] sm:$0xff]
      %v317 = vld [vmem:[%s260 + $0xf8] sm:$0xff]
      %v318 = vld [vmem:[%s1] sm:$0x1]
      %v320 = vlaneseq
      %v321 = vshrl.u32 %v320, 7
      %v322 = vsub.s32 0, %v321
      %v323 = vrot.slane %v318, %v322
      %v325 = vmul.f32 %v286, %v323
      %v326 = vmul.f32 %v287, %v323
      %v327 = vmul.f32 %v288, %v323
      %v328 = vmul.f32 %v289, %v323
      %v329 = vmul.f32 %v290, %v323
      %v330 = vmul.f32 %v291, %v323
      %v331 = vmul.f32 %v292, %v323
      %v332 = vmul.f32 %v293, %v323
      %v333 = vmul.f32 %v294, %v323
      %v334 = vmul.f32 %v295, %v323
      %v335 = vmul.f32 %v296, %v323
      %v336 = vmul.f32 %v297, %v323
      %v337 = vmul.f32 %v298, %v323
      %v338 = vmul.f32 %v299, %v323
      %v339 = vmul.f32 %v300, %v323
      %v340 = vmul.f32 %v301, %v323
      %v341 = vmul.f32 %v302, %v323
      %v342 = vmul.f32 %v303, %v323
      %v343 = vmul.f32 %v304, %v323
      %v344 = vmul.f32 %v305, %v323
      %v345 = vmul.f32 %v306, %v323
      %v346 = vmul.f32 %v307, %v323
      %v347 = vmul.f32 %v308, %v323
      %v348 = vmul.f32 %v309, %v323
      %v349 = vmul.f32 %v310, %v323
      %v350 = vmul.f32 %v311, %v323
      %v351 = vmul.f32 %v312, %v323
      %v352 = vmul.f32 %v313, %v323
      %v353 = vmul.f32 %v314, %v323
      %v354 = vmul.f32 %v315, %v323
      %v355 = vmul.f32 %v316, %v323
      %v356 = vmul.f32 %v317, %v323
      %357 = vrot.lane.b32.xlu0 %v323, 127
      %v358 = vpop.permute.xlu0 %357
      %v360 = vadd.f32 %v325, %v358
      %v361 = vadd.f32 %v326, %v358
      %v362 = vadd.f32 %v327, %v358
      %v363 = vadd.f32 %v328, %v358
      %v364 = vadd.f32 %v329, %v358
      %v365 = vadd.f32 %v330, %v358
      %v366 = vadd.f32 %v331, %v358
      %v367 = vadd.f32 %v332, %v358
      %v368 = vadd.f32 %v333, %v358
      %v369 = vadd.f32 %v334, %v358
      %v370 = vadd.f32 %v335, %v358
      %v371 = vadd.f32 %v336, %v358
      %v372 = vadd.f32 %v337, %v358
      %v373 = vadd.f32 %v338, %v358
      %v374 = vadd.f32 %v339, %v358
      %v375 = vadd.f32 %v340, %v358
      %v376 = vadd.f32 %v341, %v358
      %v377 = vadd.f32 %v342, %v358
      %v378 = vadd.f32 %v343, %v358
      %v379 = vadd.f32 %v344, %v358
      %v380 = vadd.f32 %v345, %v358
      %v381 = vadd.f32 %v346, %v358
      %v382 = vadd.f32 %v347, %v358
      %v383 = vadd.f32 %v348, %v358
      %v384 = vadd.f32 %v349, %v358
      %v385 = vadd.f32 %v350, %v358
      %v386 = vadd.f32 %v351, %v358
      %v387 = vadd.f32 %v352, %v358
      %v388 = vadd.f32 %v353, %v358
      %v389 = vadd.f32 %v354, %v358
      %v390 = vadd.f32 %v355, %v358
      %v391 = vadd.f32 %v356, %v358
      %v392 = vsub.f32 0.0, %v360
      %v393 = vsub.f32 0.0, %v361
      %v394 = vsub.f32 0.0, %v362
      %v395 = vsub.f32 0.0, %v363
      %v396 = vsub.f32 0.0, %v364
      %v397 = vsub.f32 0.0, %v365
      %v398 = vsub.f32 0.0, %v366
      %v399 = vsub.f32 0.0, %v367
      %v400 = vsub.f32 0.0, %v368
      %v401 = vsub.f32 0.0, %v369
      %v402 = vsub.f32 0.0, %v370
      %v403 = vsub.f32 0.0, %v371
      %v404 = vsub.f32 0.0, %v372
      %v405 = vsub.f32 0.0, %v373
      %v406 = vsub.f32 0.0, %v374
      %v407 = vsub.f32 0.0, %v375
      %v408 = vsub.f32 0.0, %v376
      %v409 = vsub.f32 0.0, %v377
      %v410 = vsub.f32 0.0, %v378
      %v411 = vsub.f32 0.0, %v379
      %v412 = vsub.f32 0.0, %v380
      %v413 = vsub.f32 0.0, %v381
      %v414 = vsub.f32 0.0, %v382
      %v415 = vsub.f32 0.0, %v383
      %v416 = vsub.f32 0.0, %v384
      %v417 = vsub.f32 0.0, %v385
      %v418 = vsub.f32 0.0, %v386
      %v419 = vsub.f32 0.0, %v387
      %v420 = vsub.f32 0.0, %v388
      %v421 = vsub.f32 0.0, %v389
      %v422 = vsub.f32 0.0, %v390
      %v423 = vsub.f32 0.0, %v391
      %v424 = vmul.f32 %v392, 1.442695
      %v425 = vpow.pop %v424
      %v426 = vmul.f32 %v393, 1.442695
      %v427 = vpow.pop %v426
      %v428 = vmul.f32 %v394, 1.442695
      %v429 = vpow.pop %v428
      %v430 = vmul.f32 %v395, 1.442695
      %v431 = vpow.pop %v430
      %v432 = vmul.f32 %v396, 1.442695
      %v433 = vpow.pop %v432
      %v434 = vmul.f32 %v397, 1.442695
      %v435 = vpow.pop %v434
      %v436 = vmul.f32 %v398, 1.442695
      %v437 = vpow.pop %v436
      %v438 = vmul.f32 %v399, 1.442695
      %v439 = vpow.pop %v438
      %v440 = vmul.f32 %v400, 1.442695
      %v441 = vpow.pop %v440
      %v442 = vmul.f32 %v401, 1.442695
      %v443 = vpow.pop %v442
      %v444 = vmul.f32 %v402, 1.442695
      %v445 = vpow.pop %v444
      %v446 = vmul.f32 %v403, 1.442695
      %v447 = vpow.pop %v446
      %v448 = vmul.f32 %v404, 1.442695
      %v449 = vpow.pop %v448
      %v450 = vmul.f32 %v405, 1.442695
      %v451 = vpow.pop %v450
      %v452 = vmul.f32 %v406, 1.442695
      %v453 = vpow.pop %v452
      %v454 = vmul.f32 %v407, 1.442695
      %v455 = vpow.pop %v454
      %v456 = vmul.f32 %v408, 1.442695
      %v457 = vpow.pop %v456
      %v458 = vmul.f32 %v409, 1.442695
      %v459 = vpow.pop %v458
      %v460 = vmul.f32 %v410, 1.442695
      %v461 = vpow.pop %v460
      %v462 = vmul.f32 %v411, 1.442695
      %v463 = vpow.pop %v462
      %v464 = vmul.f32 %v412, 1.442695
      %v465 = vpow.pop %v464
      %v466 = vmul.f32 %v413, 1.442695
      %v467 = vpow.pop %v466
      %v468 = vmul.f32 %v414, 1.442695
      %v469 = vpow.pop %v468
      %v470 = vmul.f32 %v415, 1.442695
      %v471 = vpow.pop %v470
      %v472 = vmul.f32 %v416, 1.442695
      %v473 = vpow.pop %v472
      %v474 = vmul.f32 %v417, 1.442695
      %v475 = vpow.pop %v474
      %v476 = vmul.f32 %v418, 1.442695
      %v477 = vpow.pop %v476
      %v478 = vmul.f32 %v419, 1.442695
      %v479 = vpow.pop %v478
      %v480 = vmul.f32 %v420, 1.442695
      %v481 = vpow.pop %v480
      %v482 = vmul.f32 %v421, 1.442695
      %v483 = vpow.pop %v482
      %v484 = vmul.f32 %v422, 1.442695
      %v485 = vpow.pop %v484
      %v486 = vmul.f32 %v423, 1.442695
      %v487 = vpow.pop %v486
      %v488 = vadd.f32 %v425, 1.0
      %v489 = vadd.f32 %v427, 1.0
      %v490 = vadd.f32 %v429, 1.0
      %v491 = vadd.f32 %v431, 1.0
      %v492 = vadd.f32 %v433, 1.0
      %v493 = vadd.f32 %v435, 1.0
      %v494 = vadd.f32 %v437, 1.0
      %v495 = vadd.f32 %v439, 1.0
      %v496 = vadd.f32 %v441, 1.0
      %v497 = vadd.f32 %v443, 1.0
      %v498 = vadd.f32 %v445, 1.0
      %v499 = vadd.f32 %v447, 1.0
      %v500 = vadd.f32 %v449, 1.0
      %v501 = vadd.f32 %v451, 1.0
      %v502 = vadd.f32 %v453, 1.0
      %v503 = vadd.f32 %v455, 1.0
      %v504 = vadd.f32 %v457, 1.0
      %v505 = vadd.f32 %v459, 1.0
      %v506 = vadd.f32 %v461, 1.0
      %v507 = vadd.f32 %v463, 1.0
      %v508 = vadd.f32 %v465, 1.0
      %v509 = vadd.f32 %v467, 1.0
      %v510 = vadd.f32 %v469, 1.0
      %v511 = vadd.f32 %v471, 1.0
      %v512 = vadd.f32 %v473, 1.0
      %v513 = vadd.f32 %v475, 1.0
      %v514 = vadd.f32 %v477, 1.0
      %v515 = vadd.f32 %v479, 1.0
      %v516 = vadd.f32 %v481, 1.0
      %v517 = vadd.f32 %v483, 1.0
      %v518 = vadd.f32 %v485, 1.0
      %v519 = vadd.f32 %v487, 1.0
      %v520 = vrcp.pop %v488
      %v521 = vmul.f32 1.0, %v520
      %v522 = vrcp.pop %v489
      %v523 = vmul.f32 1.0, %v522
      %v524 = vrcp.pop %v490
      %v525 = vmul.f32 1.0, %v524
      %v526 = vrcp.pop %v491
      %v527 = vmul.f32 1.0, %v526
      %v528 = vrcp.pop %v492
      %v529 = vmul.f32 1.0, %v528
      %v530 = vrcp.pop %v493
      %v531 = vmul.f32 1.0, %v530
      %v532 = vrcp.pop %v494
      %v533 = vmul.f32 1.0, %v532
      %v534 = vrcp.pop %v495
      %v535 = vmul.f32 1.0, %v534
      %v536 = vrcp.pop %v496
      %v537 = vmul.f32 1.0, %v536
      %v538 = vrcp.pop %v497
      %v539 = vmul.f32 1.0, %v538
      %v540 = vrcp.pop %v498
      %v541 = vmul.f32 1.0, %v540
      %v542 = vrcp.pop %v499
      %v543 = vmul.f32 1.0, %v542
      %v544 = vrcp.pop %v500
      %v545 = vmul.f32 1.0, %v544
      %v546 = vrcp.pop %v501
      %v547 = vmul.f32 1.0, %v546
      %v548 = vrcp.pop %v502
      %v549 = vmul.f32 1.0, %v548
      %v550 = vrcp.pop %v503
      %v551 = vmul.f32 1.0, %v550
      %v552 = vrcp.pop %v504
      %v553 = vmul.f32 1.0, %v552
      %v554 = vrcp.pop %v505
      %v555 = vmul.f32 1.0, %v554
      %v556 = vrcp.pop %v506
      %v557 = vmul.f32 1.0, %v556
      %v558 = vrcp.pop %v507
      %v559 = vmul.f32 1.0, %v558
      %v560 = vrcp.pop %v508
      %v561 = vmul.f32 1.0, %v560
      %v562 = vrcp.pop %v509
      %v563 = vmul.f32 1.0, %v562
      %v564 = vrcp.pop %v510
      %v565 = vmul.f32 1.0, %v564
      %v566 = vrcp.pop %v511
      %v567 = vmul.f32 1.0, %v566
      %v568 = vrcp.pop %v512
      %v569 = vmul.f32 1.0, %v568
      %v570 = vrcp.pop %v513
      %v571 = vmul.f32 1.0, %v570
      %v572 = vrcp.pop %v514
      %v573 = vmul.f32 1.0, %v572
      %v574 = vrcp.pop %v515
      %v575 = vmul.f32 1.0, %v574
      %v576 = vrcp.pop %v516
      %v577 = vmul.f32 1.0, %v576
      %v578 = vrcp.pop %v517
      %v579 = vmul.f32 1.0, %v578
      %v580 = vrcp.pop %v518
      %v581 = vmul.f32 1.0, %v580
      %v582 = vrcp.pop %v519
      %v583 = vmul.f32 1.0, %v582
      %v584 = vld [vmem:[%s266] sm:$0xff]
      %v585 = vld [vmem:[%s266 + $0x8] sm:$0xff]
      %v586 = vld [vmem:[%s266 + $0x10] sm:$0xff]
      %v587 = vld [vmem:[%s266 + $0x18] sm:$0xff]
      %v588 = vld [vmem:[%s266 + $0x20] sm:$0xff]
      %v589 = vld [vmem:[%s266 + $0x28] sm:$0xff]
      %v590 = vld [vmem:[%s266 + $0x30] sm:$0xff]
      %v591 = vld [vmem:[%s266 + $0x38] sm:$0xff]
      %v592 = vld [vmem:[%s266 + $0x40] sm:$0xff]
      %v593 = vld [vmem:[%s266 + $0x48] sm:$0xff]
      %v594 = vld [vmem:[%s266 + $0x50] sm:$0xff]
      %v595 = vld [vmem:[%s266 + $0x58] sm:$0xff]
      %v596 = vld [vmem:[%s266 + $0x60] sm:$0xff]
      %v597 = vld [vmem:[%s266 + $0x68] sm:$0xff]
      %v598 = vld [vmem:[%s266 + $0x70] sm:$0xff]
      %v599 = vld [vmem:[%s266 + $0x78] sm:$0xff]
      %v600 = vld [vmem:[%s266 + $0x80] sm:$0xff]
      %v601 = vld [vmem:[%s266 + $0x88] sm:$0xff]
      %v602 = vld [vmem:[%s266 + $0x90] sm:$0xff]
      %v603 = vld [vmem:[%s266 + $0x98] sm:$0xff]
      %v604 = vld [vmem:[%s266 + $0xa0] sm:$0xff]
      %v605 = vld [vmem:[%s266 + $0xa8] sm:$0xff]
      %v606 = vld [vmem:[%s266 + $0xb0] sm:$0xff]
      %v607 = vld [vmem:[%s266 + $0xb8] sm:$0xff]
      %v608 = vld [vmem:[%s266 + $0xc0] sm:$0xff]
      %v609 = vld [vmem:[%s266 + $0xc8] sm:$0xff]
      %v610 = vld [vmem:[%s266 + $0xd0] sm:$0xff]
      %v611 = vld [vmem:[%s266 + $0xd8] sm:$0xff]
      %v612 = vld [vmem:[%s266 + $0xe0] sm:$0xff]
      %v613 = vld [vmem:[%s266 + $0xe8] sm:$0xff]
      %v614 = vld [vmem:[%s266 + $0xf0] sm:$0xff]
      %v615 = vld [vmem:[%s266 + $0xf8] sm:$0xff]
      %617 = vset.pattern.permute.xlu0 0
      %618 = vperm.xlu0 %617, %v521
      %v619 = vpop.permute.xlu0 %618
      %622 = vset.pattern.permute.xlu0 0
      %623 = vperm.xlu0 %622, %v523
      %v624 = vpop.permute.xlu0 %623
      %627 = vset.pattern.permute.xlu0 0
      %628 = vperm.xlu0 %627, %v525
      %v629 = vpop.permute.xlu0 %628
      %632 = vset.pattern.permute.xlu0 0
      %633 = vperm.xlu0 %632, %v527
      %v634 = vpop.permute.xlu0 %633
      %637 = vset.pattern.permute.xlu0 0
      %638 = vperm.xlu0 %637, %v529
      %v639 = vpop.permute.xlu0 %638
      %642 = vset.pattern.permute.xlu0 0
      %643 = vperm.xlu0 %642, %v531
      %v644 = vpop.permute.xlu0 %643
      %647 = vset.pattern.permute.xlu0 0
      %648 = vperm.xlu0 %647, %v533
      %v649 = vpop.permute.xlu0 %648
      %652 = vset.pattern.permute.xlu0 0
      %653 = vperm.xlu0 %652, %v535
      %v654 = vpop.permute.xlu0 %653
      %657 = vset.pattern.permute.xlu0 0
      %658 = vperm.xlu0 %657, %v537
      %v659 = vpop.permute.xlu0 %658
      %662 = vset.pattern.permute.xlu0 0
      %663 = vperm.xlu0 %662, %v539
      %v664 = vpop.permute.xlu0 %663
      %667 = vset.pattern.permute.xlu0 0
      %668 = vperm.xlu0 %667, %v541
      %v669 = vpop.permute.xlu0 %668
      %672 = vset.pattern.permute.xlu0 0
      %673 = vperm.xlu0 %672, %v543
      %v674 = vpop.permute.xlu0 %673
      %677 = vset.pattern.permute.xlu0 0
      %678 = vperm.xlu0 %677, %v545
      %v679 = vpop.permute.xlu0 %678
      %682 = vset.pattern.permute.xlu0 0
      %683 = vperm.xlu0 %682, %v547
      %v684 = vpop.permute.xlu0 %683
      %687 = vset.pattern.permute.xlu0 0
      %688 = vperm.xlu0 %687, %v549
      %v689 = vpop.permute.xlu0 %688
      %692 = vset.pattern.permute.xlu0 0
      %693 = vperm.xlu0 %692, %v551
      %v694 = vpop.permute.xlu0 %693
      %697 = vset.pattern.permute.xlu0 0
      %698 = vperm.xlu0 %697, %v553
      %v699 = vpop.permute.xlu0 %698
      %702 = vset.pattern.permute.xlu0 0
      %703 = vperm.xlu0 %702, %v555
      %v704 = vpop.permute.xlu0 %703
      %707 = vset.pattern.permute.xlu0 0
      %708 = vperm.xlu0 %707, %v557
      %v709 = vpop.permute.xlu0 %708
      %712 = vset.pattern.permute.xlu0 0
      %713 = vperm.xlu0 %712, %v559
      %v714 = vpop.permute.xlu0 %713
      %717 = vset.pattern.permute.xlu0 0
      %718 = vperm.xlu0 %717, %v561
      %v719 = vpop.permute.xlu0 %718
      %722 = vset.pattern.permute.xlu0 0
      %723 = vperm.xlu0 %722, %v563
      %v724 = vpop.permute.xlu0 %723
      %727 = vset.pattern.permute.xlu0 0
      %728 = vperm.xlu0 %727, %v565
      %v729 = vpop.permute.xlu0 %728
      %732 = vset.pattern.permute.xlu0 0
      %733 = vperm.xlu0 %732, %v567
      %v734 = vpop.permute.xlu0 %733
      %737 = vset.pattern.permute.xlu0 0
      %738 = vperm.xlu0 %737, %v569
      %v739 = vpop.permute.xlu0 %738
      %742 = vset.pattern.permute.xlu0 0
      %743 = vperm.xlu0 %742, %v571
      %v744 = vpop.permute.xlu0 %743
      %747 = vset.pattern.permute.xlu0 0
      %748 = vperm.xlu0 %747, %v573
      %v749 = vpop.permute.xlu0 %748
      %752 = vset.pattern.permute.xlu0 0
      %753 = vperm.xlu0 %752, %v575
      %v754 = vpop.permute.xlu0 %753
      %757 = vset.pattern.permute.xlu0 0
      %758 = vperm.xlu0 %757, %v577
      %v759 = vpop.permute.xlu0 %758
      %762 = vset.pattern.permute.xlu0 0
      %763 = vperm.xlu0 %762, %v579
      %v764 = vpop.permute.xlu0 %763
      %767 = vset.pattern.permute.xlu0 0
      %768 = vperm.xlu0 %767, %v581
      %v769 = vpop.permute.xlu0 %768
      %772 = vset.pattern.permute.xlu0 0
      %773 = vperm.xlu0 %772, %v583
      %v774 = vpop.permute.xlu0 %773
      %v776 = vmul.f32 %v584, %v619
      %v777 = vmul.f32 %v585, %v624
      %v778 = vmul.f32 %v586, %v629
      %v779 = vmul.f32 %v587, %v634
      %v780 = vmul.f32 %v588, %v639
      %v781 = vmul.f32 %v589, %v644
      %v782 = vmul.f32 %v590, %v649
      %v783 = vmul.f32 %v591, %v654
      %v784 = vmul.f32 %v592, %v659
      %v785 = vmul.f32 %v593, %v664
      %v786 = vmul.f32 %v594, %v669
      %v787 = vmul.f32 %v595, %v674
      %v788 = vmul.f32 %v596, %v679
      %v789 = vmul.f32 %v597, %v684
      %v790 = vmul.f32 %v598, %v689
      %v791 = vmul.f32 %v599, %v694
      %v792 = vmul.f32 %v600, %v699
      %v793 = vmul.f32 %v601, %v704
      %v794 = vmul.f32 %v602, %v709
      %v795 = vmul.f32 %v603, %v714
      %v796 = vmul.f32 %v604, %v719
      %v797 = vmul.f32 %v605, %v724
      %v798 = vmul.f32 %v606, %v729
      %v799 = vmul.f32 %v607, %v734
      %v800 = vmul.f32 %v608, %v739
      %v801 = vmul.f32 %v609, %v744
      %v802 = vmul.f32 %v610, %v749
      %v803 = vmul.f32 %v611, %v754
      %v804 = vmul.f32 %v612, %v759
      %v805 = vmul.f32 %v613, %v764
      %v806 = vmul.f32 %v614, %v769
      %v807 = vmul.f32 %v615, %v774
      %vm808 = vcmask 523264
      %809 = vst.msk [vmem:[%s278] sm:$0xff] %vm808, %v776
      %810 = vst.msk [vmem:[%s278 + $0x8] sm:$0xff] %vm808, %v777
      %811 = vst.msk [vmem:[%s278 + $0x10] sm:$0xff] %vm808, %v778
      %812 = vst.msk [vmem:[%s278 + $0x18] sm:$0xff] %vm808, %v779
      %813 = vst.msk [vmem:[%s278 + $0x20] sm:$0xff] %vm808, %v780
      %814 = vst.msk [vmem:[%s278 + $0x28] sm:$0xff] %vm808, %v781
      %815 = vst.msk [vmem:[%s278 + $0x30] sm:$0xff] %vm808, %v782
      %816 = vst.msk [vmem:[%s278 + $0x38] sm:$0xff] %vm808, %v783
      %817 = vst.msk [vmem:[%s278 + $0x40] sm:$0xff] %vm808, %v784
      %818 = vst.msk [vmem:[%s278 + $0x48] sm:$0xff] %vm808, %v785
      %819 = vst.msk [vmem:[%s278 + $0x50] sm:$0xff] %vm808, %v786
      %820 = vst.msk [vmem:[%s278 + $0x58] sm:$0xff] %vm808, %v787
      %821 = vst.msk [vmem:[%s278 + $0x60] sm:$0xff] %vm808, %v788
      %822 = vst.msk [vmem:[%s278 + $0x68] sm:$0xff] %vm808, %v789
      %823 = vst.msk [vmem:[%s278 + $0x70] sm:$0xff] %vm808, %v790
      %824 = vst.msk [vmem:[%s278 + $0x78] sm:$0xff] %vm808, %v791
      %825 = vst.msk [vmem:[%s278 + $0x80] sm:$0xff] %vm808, %v792
      %826 = vst.msk [vmem:[%s278 + $0x88] sm:$0xff] %vm808, %v793
      %827 = vst.msk [vmem:[%s278 + $0x90] sm:$0xff] %vm808, %v794
      %828 = vst.msk [vmem:[%s278 + $0x98] sm:$0xff] %vm808, %v795
      %829 = vst.msk [vmem:[%s278 + $0xa0] sm:$0xff] %vm808, %v796
      %830 = vst.msk [vmem:[%s278 + $0xa8] sm:$0xff] %vm808, %v797
      %831 = vst.msk [vmem:[%s278 + $0xb0] sm:$0xff] %vm808, %v798
      %832 = vst.msk [vmem:[%s278 + $0xb8] sm:$0xff] %vm808, %v799
      %833 = vst.msk [vmem:[%s278 + $0xc0] sm:$0xff] %vm808, %v800
      %834 = vst.msk [vmem:[%s278 + $0xc8] sm:$0xff] %vm808, %v801
      %835 = vst.msk [vmem:[%s278 + $0xd0] sm:$0xff] %vm808, %v802
      %836 = vst.msk [vmem:[%s278 + $0xd8] sm:$0xff] %vm808, %v803
      %837 = vst.msk [vmem:[%s278 + $0xe0] sm:$0xff] %vm808, %v804
      %838 = vst.msk [vmem:[%s278 + $0xe8] sm:$0xff] %vm808, %v805
      %839 = vst.msk [vmem:[%s278 + $0xf0] sm:$0xff] %vm808, %v806
      %840 = vst.msk [vmem:[%s278 + $0xf8] sm:$0xff] %vm808, %v807
      %v841 = vld [vmem:[%s272] sm:$0xff]
      %v842 = vld [vmem:[%s272 + $0x8] sm:$0xff]
      %v843 = vld [vmem:[%s272 + $0x10] sm:$0xff]
      %v844 = vld [vmem:[%s272 + $0x18] sm:$0xff]
      %v845 = vld [vmem:[%s272 + $0x20] sm:$0xff]
      %v846 = vld [vmem:[%s272 + $0x28] sm:$0xff]
      %v847 = vld [vmem:[%s272 + $0x30] sm:$0xff]
      %v848 = vld [vmem:[%s272 + $0x38] sm:$0xff]
      %v849 = vld [vmem:[%s272 + $0x40] sm:$0xff]
      %v850 = vld [vmem:[%s272 + $0x48] sm:$0xff]
      %v851 = vld [vmem:[%s272 + $0x50] sm:$0xff]
      %v852 = vld [vmem:[%s272 + $0x58] sm:$0xff]
      %v853 = vld [vmem:[%s272 + $0x60] sm:$0xff]
      %v854 = vld [vmem:[%s272 + $0x68] sm:$0xff]
      %v855 = vld [vmem:[%s272 + $0x70] sm:$0xff]
      %v856 = vld [vmem:[%s272 + $0x78] sm:$0xff]
      %v857 = vld [vmem:[%s272 + $0x80] sm:$0xff]
      %v858 = vld [vmem:[%s272 + $0x88] sm:$0xff]
      %v859 = vld [vmem:[%s272 + $0x90] sm:$0xff]
      %v860 = vld [vmem:[%s272 + $0x98] sm:$0xff]
      %v861 = vld [vmem:[%s272 + $0xa0] sm:$0xff]
      %v862 = vld [vmem:[%s272 + $0xa8] sm:$0xff]
      %v863 = vld [vmem:[%s272 + $0xb0] sm:$0xff]
      %v864 = vld [vmem:[%s272 + $0xb8] sm:$0xff]
      %v865 = vld [vmem:[%s272 + $0xc0] sm:$0xff]
      %v866 = vld [vmem:[%s272 + $0xc8] sm:$0xff]
      %v867 = vld [vmem:[%s272 + $0xd0] sm:$0xff]
      %v868 = vld [vmem:[%s272 + $0xd8] sm:$0xff]
      %v869 = vld [vmem:[%s272 + $0xe0] sm:$0xff]
      %v870 = vld [vmem:[%s272 + $0xe8] sm:$0xff]
      %v871 = vld [vmem:[%s272 + $0xf0] sm:$0xff]
      %v872 = vld [vmem:[%s272 + $0xf8] sm:$0xff]
      %v873 = vmul.f32 %v776, %v841
      %v874 = vmul.f32 %v777, %v842
      %v875 = vmul.f32 %v778, %v843
      %v876 = vmul.f32 %v779, %v844
      %v877 = vmul.f32 %v780, %v845
      %v878 = vmul.f32 %v781, %v846
      %v879 = vmul.f32 %v782, %v847
      %v880 = vmul.f32 %v783, %v848
      %v881 = vmul.f32 %v784, %v849
      %v882 = vmul.f32 %v785, %v850
      %v883 = vmul.f32 %v786, %v851
      %v884 = vmul.f32 %v787, %v852
      %v885 = vmul.f32 %v788, %v853
      %v886 = vmul.f32 %v789, %v854
      %v887 = vmul.f32 %v790, %v855
      %v888 = vmul.f32 %v791, %v856
      %v889 = vmul.f32 %v792, %v857
      %v890 = vmul.f32 %v793, %v858
      %v891 = vmul.f32 %v794, %v859
      %v892 = vmul.f32 %v795, %v860
      %v893 = vmul.f32 %v796, %v861
      %v894 = vmul.f32 %v797, %v862
      %v895 = vmul.f32 %v798, %v863
      %v896 = vmul.f32 %v799, %v864
      %v897 = vmul.f32 %v800, %v865
      %v898 = vmul.f32 %v801, %v866
      %v899 = vmul.f32 %v802, %v867
      %v900 = vmul.f32 %v803, %v868
      %v901 = vmul.f32 %v804, %v869
      %v902 = vmul.f32 %v805, %v870
      %v903 = vmul.f32 %v806, %v871
      %v904 = vmul.f32 %v807, %v872
      %905 = vst.msk [vmem:[%s284] sm:$0xff] %vm808, %v873
      %906 = vst.msk [vmem:[%s284 + $0x8] sm:$0xff] %vm808, %v874
      %907 = vst.msk [vmem:[%s284 + $0x10] sm:$0xff] %vm808, %v875
      %908 = vst.msk [vmem:[%s284 + $0x18] sm:$0xff] %vm808, %v876
      %909 = vst.msk [vmem:[%s284 + $0x20] sm:$0xff] %vm808, %v877
      %910 = vst.msk [vmem:[%s284 + $0x28] sm:$0xff] %vm808, %v878
      %911 = vst.msk [vmem:[%s284 + $0x30] sm:$0xff] %vm808, %v879
      %912 = vst.msk [vmem:[%s284 + $0x38] sm:$0xff] %vm808, %v880
      %913 = vst.msk [vmem:[%s284 + $0x40] sm:$0xff] %vm808, %v881
      %914 = vst.msk [vmem:[%s284 + $0x48] sm:$0xff] %vm808, %v882
      %915 = vst.msk [vmem:[%s284 + $0x50] sm:$0xff] %vm808, %v883
      %916 = vst.msk [vmem:[%s284 + $0x58] sm:$0xff] %vm808, %v884
      %917 = vst.msk [vmem:[%s284 + $0x60] sm:$0xff] %vm808, %v885
      %918 = vst.msk [vmem:[%s284 + $0x68] sm:$0xff] %vm808, %v886
      %919 = vst.msk [vmem:[%s284 + $0x70] sm:$0xff] %vm808, %v887
      %920 = vst.msk [vmem:[%s284 + $0x78] sm:$0xff] %vm808, %v888
      %921 = vst.msk [vmem:[%s284 + $0x80] sm:$0xff] %vm808, %v889
      %922 = vst.msk [vmem:[%s284 + $0x88] sm:$0xff] %vm808, %v890
      %923 = vst.msk [vmem:[%s284 + $0x90] sm:$0xff] %vm808, %v891
      %924 = vst.msk [vmem:[%s284 + $0x98] sm:$0xff] %vm808, %v892
      %925 = vst.msk [vmem:[%s284 + $0xa0] sm:$0xff] %vm808, %v893
      %926 = vst.msk [vmem:[%s284 + $0xa8] sm:$0xff] %vm808, %v894
      %927 = vst.msk [vmem:[%s284 + $0xb0] sm:$0xff] %vm808, %v895
      %928 = vst.msk [vmem:[%s284 + $0xb8] sm:$0xff] %vm808, %v896
      %929 = vst.msk [vmem:[%s284 + $0xc0] sm:$0xff] %vm808, %v897
      %930 = vst.msk [vmem:[%s284 + $0xc8] sm:$0xff] %vm808, %v898
      %931 = vst.msk [vmem:[%s284 + $0xd0] sm:$0xff] %vm808, %v899
      %932 = vst.msk [vmem:[%s284 + $0xd8] sm:$0xff] %vm808, %v900
      %933 = vst.msk [vmem:[%s284 + $0xe0] sm:$0xff] %vm808, %v901
      %934 = vst.msk [vmem:[%s284 + $0xe8] sm:$0xff] %vm808, %v902
      %935 = vst.msk [vmem:[%s284 + $0xf0] sm:$0xff] %vm808, %v903
      %936 = vst.msk [vmem:[%s284 + $0xf8] sm:$0xff] %vm808, %v904
      %s937 = smul.u32 32, %s17
      %p938 = scmp.lt.s32.totalorder %s937, 63
      %s939 = scalar_select %p938, %s937, 63
      %s940 = smul.addr %s939, 8
      %s941 = scalar_lea.vmem %s4, %s940
      %s942 = smul.u32 32, %s17
      %p943 = scmp.lt.s32.totalorder %s942, 63
      %s944 = scalar_select %p943, %s942, 63
      %s945 = smul.addr %s944, 8
      %s946 = scalar_lea.vmem %s5, %s945
      // Predicated region
      $region37: #{bifusion_forward.13} parent=35 // pred_check
        %p947 = pneg %p134
      $region38: #{bifusion_forward.13} parent=35 // pred_check_branch
        %949 = sbr.rel (%p947) target = $region40
      $region39: #{bifusion_forward.13} parent=35 // pred_region
        %s950 = smul.u32 32, %s17
      $region40: #{bifusion_forward.13} parent=35 // pred_fallthru
        _
      // Predicated region
      $region41: #{bifusion_forward.13} parent=35 // pred_check
        %p951 = pneg %p160
      $region42: #{bifusion_forward.13} parent=35 // pred_check_branch
        %953 = sbr.rel (%p951) target = $region44
      $region43: #{bifusion_forward.13} parent=35 // pred_region
        %s954 = smul.u32 32, %s17
      $region44: #{bifusion_forward.13} parent=35 // pred_fallthru
        _
    $region36: #{bifusion_forward.13} parent=5 // pred_fallthru
      _
    %p955 = scmp.le.s32.totalorder 2, %s12
    // Predicated region
    $region45: #{bifusion_forward.13} parent=5 // pred_check
      %p956 = pneg %p955
    $region46: #{bifusion_forward.13} parent=5 // pred_check_branch
      %958 = sbr.rel (%p956) target = $region48
    $region47: #{bifusion_forward.13} parent=5 // pred_region
      %s959 = ssub.s32 %s12, 2
      // Predicated region
      $region49: #{bifusion_forward.13} parent=47 // pred_check
        %p960 = pneg %p140
      $region50: #{bifusion_forward.13} parent=47 // pred_check_branch
        %962 = sbr.rel (%p960) target = $region52
      $region51: #{bifusion_forward.13} parent=47 // pred_region
        %s963 = smul.u32 32, %s18
        %p964 = scmp.lt.s32.totalorder %s963, 63
        %s965 = scalar_select %p964, %s963, 63
        %s966 = smul.addr %s965, 8
        %s967 = scalar_lea.vmem %s4, %s966
      $region52: #{bifusion_forward.13} parent=47 // pred_fallthru
        _
      // Predicated region
      $region53: #{bifusion_forward.13} parent=47 // pred_check
        %p968 = pneg %p166
      $region54: #{bifusion_forward.13} parent=47 // pred_check_branch
        %970 = sbr.rel (%p968) target = $region56
      $region55: #{bifusion_forward.13} parent=47 // pred_region
        %s971 = smul.u32 32, %s18
        %p972 = scmp.lt.s32.totalorder %s971, 63
        %s973 = scalar_select %p972, %s971, 63
        %s974 = smul.addr %s973, 8
        %s975 = scalar_lea.vmem %s5, %s974
      $region56: #{bifusion_forward.13} parent=47 // pred_fallthru
        _
    $region48: #{bifusion_forward.13} parent=5 // pred_fallthru
      _
  $region6: #{bifusion_forward.13} parent=0 // loop_footer
    %s16 = sadd.s32 1, %s12
  $region7: #{bifusion_forward.13} parent=0 // loop_footer_branch
    %11 = sbr.rel target = $region3
  $region8: #{bifusion_forward.13} parent=0 // loop_exit
    _

// kernel: bifusion_forward.15
$region0: #{bifusion_forward.15}
  #allocation0 [shape = 'u32[]', space=smem, size = 0x4, offset = 0x4, fixed_abs, tag = 'smem constant byte address 0x4 - core index']
  #allocation1 [shape = 'u32[144,128]{1,0:T(1,128)}', space=vmem, size = 0x12000, scoped, tag = 'internal scratch']
  %s0 = inlined_call_operand.vmem [shape: f32[512,32], index: 0, kind: input, shape index: {}]
  %s1 = inlined_call_operand.vmem [shape: f32[2,32], index: 1, kind: input, shape index: {}]
  %s2 = inlined_call_operand.vmem [shape: f32[512,32], index: 2, kind: output, shape index: {}]
  %s3 = sld [smem:[#allocation0]]
  $region41: #{bifusion_forward.15} parent=0
    _
  %s5 = ssub.s32 1, %s3
  %s6 = scalar_select 0, %s5, %s3
  loop: start=0, step=1, limit=4
  $region2: #{bifusion_forward.15} parent=0 // loop_pre_header
    _
  $region3: #{bifusion_forward.15} parent=0 // loop_header
    %s8 = sphi 0, %s12
    %p9 = scmp.ge.s32.totalorder %s8, 4
    %s18 = sphi 0, %s20
    %s21 = sphi 0, %s18
    %s22 = sphi 0, %s21
    %s38 = sphi 0, %s22
    %s42 = sphi 0, %s42
    %s44 = sphi 0, %s42
    %s45 = sphi 0, %s44
    %s59 = sphi 0, %s45
    %s65 = sphi 0, %s67
    %s68 = sphi 0, %s65
    %s69 = sphi 0, %s68
    %s85 = sphi 0, %s69
  $region4: #{bifusion_forward.15} parent=0 // loop_header_branch
    %11 = sbr.rel (%p9) target = $region8
  $region5: #{bifusion_forward.15} parent=0 // loop_body
    %s13 = ssub.s32 %s8, 1
    %s14 = ssub.s32 %s8, 2
    %s15 = sadd.s32 %s8, 1
    %s16 = ssub.s32 %s8, %s15
    %p17 = scmp.eq.s32.totalorder %s16, 0
    %s19 = sadd.s32 %s18, 1
    %s20 = scalar_select %p17, %s18, %s19
    %p23 = pneg %p17
    %p24 = scmp.eq.s32.totalorder %s8, 1
    %p25 = por %p23, %p24
    %p26 = scmp.ne.s32.totalorder %s18, %s21
    %p27 = scmp.eq.s32.totalorder %s8, 0
    %p28 = por %p26, %p27
    %p29 = scmp.ne.s32.totalorder %s18, %s21
    %p30 = scmp.eq.s32.totalorder %s13, 1
    %p31 = por %p29, %p30
    %p32 = scmp.ne.s32.totalorder %s21, %s22
    %p33 = scmp.eq.s32.totalorder %s13, 0
    %p34 = por %p32, %p33
    %p35 = scmp.ne.s32.totalorder %s21, %s22
    %p36 = scmp.eq.s32.totalorder %s14, 1
    %p37 = por %p35, %p36
    %p39 = scmp.ne.s32.totalorder %s22, %s38
    %p40 = scmp.eq.s32.totalorder %s14, 0
    %p41 = por %p39, %p40
    %s43 = sadd.s32 %s42, 1
    %p46 = scmp.eq.s32.totalorder %s8, 1
    %p47 = scmp.ne.s32.totalorder %s42, %s44
    %p48 = scmp.eq.s32.totalorder %s8, 0
    %p49 = por %p47, %p48
    %p50 = scmp.ne.s32.totalorder %s42, %s44
    %p51 = scmp.eq.s32.totalorder %s13, 1
    %p52 = por %p50, %p51
    %p53 = scmp.ne.s32.totalorder %s44, %s45
    %p54 = scmp.eq.s32.totalorder %s13, 0
    %p55 = por %p53, %p54
    %p56 = scmp.ne.s32.totalorder %s44, %s45
    %p57 = scmp.eq.s32.totalorder %s14, 1
    %p58 = por %p56, %p57
    %p60 = scmp.ne.s32.totalorder %s45, %s59
    %p61 = scmp.eq.s32.totalorder %s14, 0
    %p62 = por %p60, %p61
    %s63 = ssub.s32 %s8, %s15
    %p64 = scmp.eq.s32.totalorder %s63, 0
    %s66 = sadd.s32 %s65, 1
    %s67 = scalar_select %p64, %s65, %s66
    %p70 = pneg %p64
    %p71 = scmp.eq.s32.totalorder %s8, 1
    %p72 = por %p70, %p71
    %p73 = scmp.ne.s32.totalorder %s65, %s68
    %p74 = scmp.eq.s32.totalorder %s8, 0
    %p75 = por %p73, %p74
    %p76 = scmp.ne.s32.totalorder %s65, %s68
    %p77 = scmp.eq.s32.totalorder %s13, 1
    %p78 = por %p76, %p77
    %p79 = scmp.ne.s32.totalorder %s68, %s69
    %p80 = scmp.eq.s32.totalorder %s13, 0
    %p81 = por %p79, %p80
    %p82 = scmp.ne.s32.totalorder %s68, %s69
    %p83 = scmp.eq.s32.totalorder %s14, 1
    %p84 = por %p82, %p83
    %p86 = scmp.ne.s32.totalorder %s69, %s85
    %p87 = scmp.eq.s32.totalorder %s14, 0
    %p88 = por %p86, %p87
    %p89 = scmp.le.s32.totalorder 1, %s8
    %p90 = scmp.lt.s32.totalorder %s8, 3
    %p91 = pnand %p89, %p90
    %p92 = pneg %p91
    // Predicated region
    $region9: #{bifusion_forward.15} parent=5 // pred_check
      _
    $region10: #{bifusion_forward.15} parent=5 // pred_check_branch
      %94 = sbr.rel (%p91) target = $region12
    $region11: #{bifusion_forward.15} parent=5 // pred_region
      %s95 = ssub.s32 %s8, 1
      // Predicated region
      $region13: #{bifusion_forward.15} parent=11 // pred_check
        %p96 = pneg %p55
      $region14: #{bifusion_forward.15} parent=11 // pred_check_branch
        %98 = sbr.rel (%p96) target = $region16
      $region15: #{bifusion_forward.15} parent=11 // pred_region
        _
      $region16: #{bifusion_forward.15} parent=11 // pred_fallthru
        _
    $region12: #{bifusion_forward.15} parent=5 // pred_fallthru
      _
    %p99 = scmp.lt.s32.totalorder %s8, 2
    // Predicated region
    $region17: #{bifusion_forward.15} parent=5 // pred_check
      %p100 = pneg %p99
    $region18: #{bifusion_forward.15} parent=5 // pred_check_branch
      %102 = sbr.rel (%p100) target = $region20
    $region19: #{bifusion_forward.15} parent=5 // pred_region
      // Predicated region
      $region21: #{bifusion_forward.15} parent=19 // pred_check
        %p103 = pneg %p28
      $region22: #{bifusion_forward.15} parent=19 // pred_check_branch
        %105 = sbr.rel (%p103) target = $region24
      $region23: #{bifusion_forward.15} parent=19 // pred_region
        %s106 = smul.u32 32, %s8
        %p107 = scmp.lt.s32.totalorder %s106, 63
        %s108 = scalar_select %p107, %s106, 63
        %s109 = smul.addr %s108, 8
        %s110 = scalar_lea.vmem %s0, %s109
        %s111 = smul.u32 32, %s8
      $region24: #{bifusion_forward.15} parent=19 // pred_fallthru
        _
    $region20: #{bifusion_forward.15} parent=5 // pred_fallthru
      _
    %p112 = scmp.le.s32.totalorder 1, %s8
    %p113 = scmp.lt.s32.totalorder %s8, 3
    %p114 = pnand %p112, %p113
    %p115 = pneg %p114
    // Predicated region
    $region25: #{bifusion_forward.15} parent=5 // pred_check
      _
    $region26: #{bifusion_forward.15} parent=5 // pred_check_branch
      %117 = sbr.rel (%p114) target = $region28
    $region27: #{bifusion_forward.15} parent=5 // pred_region
      %s118 = ssub.s32 %s8, 1
      %s119 = smul.u32 32, %s13
      %p120 = scmp.lt.s32.totalorder %s119, 63
      %s121 = scalar_select %p120, %s119, 63
      %s122 = smul.addr %s121, 8
      %s123 = scalar_lea.vmem %s0, %s122
      %p124 = pneg %p34
      %p125 = pneg %p31
      %p126 = pneg %p55
      %p127 = pneg %p52
      %p128 = pneg %p81
      %p129 = pneg %p78
      %s130 = smul.u32 32, %s13
      %p131 = scmp.lt.s32.totalorder %s130, 63
      %s132 = scalar_select %p131, %s130, 63
      %s133 = smul.addr %s132, 8
      %s134 = scalar_lea.vmem %s2, %s133
      %s135 = smul.u32 32, %s13
      %p136 = scmp.lt.s32.totalorder %s135, 63
      %s137 = scalar_select %p136, %s135, 63
      %s138 = smul.addr %s137, 8
      %s139 = scalar_lea.vmem %s0, %s138
      %s140 = smul.u32 32, %s13
      %s141 = smul.u32 32, %s13
      %p142 = scmp.lt.s32.totalorder %s141, 63
      %s143 = scalar_select %p142, %s141, 63
      %s144 = smul.addr %s143, 8
      %s145 = scalar_lea.vmem %s2, %s144
      %s146 = smul.u32 32, %s13
      %v147 = vld [vmem:[%s139] sm:$0xff]
      %v148 = vld [vmem:[%s139 + $0x8] sm:$0xff]
      %v149 = vld [vmem:[%s139 + $0x10] sm:$0xff]
      %v150 = vld [vmem:[%s139 + $0x18] sm:$0xff]
      %v151 = vld [vmem:[%s139 + $0x20] sm:$0xff]
      %v152 = vld [vmem:[%s139 + $0x28] sm:$0xff]
      %v153 = vld [vmem:[%s139 + $0x30] sm:$0xff]
      %v154 = vld [vmem:[%s139 + $0x38] sm:$0xff]
      %v155 = vld [vmem:[%s139 + $0x40] sm:$0xff]
      %v156 = vld [vmem:[%s139 + $0x48] sm:$0xff]
      %v157 = vld [vmem:[%s139 + $0x50] sm:$0xff]
      %v158 = vld [vmem:[%s139 + $0x58] sm:$0xff]
      %v159 = vld [vmem:[%s139 + $0x60] sm:$0xff]
      %v160 = vld [vmem:[%s139 + $0x68] sm:$0xff]
      %v161 = vld [vmem:[%s139 + $0x70] sm:$0xff]
      %v162 = vld [vmem:[%s139 + $0x78] sm:$0xff]
      %v163 = vld [vmem:[%s139 + $0x80] sm:$0xff]
      %v164 = vld [vmem:[%s139 + $0x88] sm:$0xff]
      %v165 = vld [vmem:[%s139 + $0x90] sm:$0xff]
      %v166 = vld [vmem:[%s139 + $0x98] sm:$0xff]
      %v167 = vld [vmem:[%s139 + $0xa0] sm:$0xff]
      %v168 = vld [vmem:[%s139 + $0xa8] sm:$0xff]
      %v169 = vld [vmem:[%s139 + $0xb0] sm:$0xff]
      %v170 = vld [vmem:[%s139 + $0xb8] sm:$0xff]
      %v171 = vld [vmem:[%s139 + $0xc0] sm:$0xff]
      %v172 = vld [vmem:[%s139 + $0xc8] sm:$0xff]
      %v173 = vld [vmem:[%s139 + $0xd0] sm:$0xff]
      %v174 = vld [vmem:[%s139 + $0xd8] sm:$0xff]
      %v175 = vld [vmem:[%s139 + $0xe0] sm:$0xff]
      %v176 = vld [vmem:[%s139 + $0xe8] sm:$0xff]
      %v177 = vld [vmem:[%s139 + $0xf0] sm:$0xff]
      %v178 = vld [vmem:[%s139 + $0xf8] sm:$0xff]
      %v179 = vld [vmem:[%s1] sm:$0x1]
      %v180 = vlaneseq
      %v181 = vshrl.u32 %v180, 7
      %v182 = vsub.s32 0, %v181
      %v183 = vrot.slane %v179, %v182
      %v184 = vmul.f32 %v147, %v183
      %v185 = vmul.f32 %v148, %v183
      %v186 = vmul.f32 %v149, %v183
      %v187 = vmul.f32 %v150, %v183
      %v188 = vmul.f32 %v151, %v183
      %v189 = vmul.f32 %v152, %v183
      %v190 = vmul.f32 %v153, %v183
      %v191 = vmul.f32 %v154, %v183
      %v192 = vmul.f32 %v155, %v183
      %v193 = vmul.f32 %v156, %v183
      %v194 = vmul.f32 %v157, %v183
      %v195 = vmul.f32 %v158, %v183
      %v196 = vmul.f32 %v159, %v183
      %v197 = vmul.f32 %v160, %v183
      %v198 = vmul.f32 %v161, %v183
      %v199 = vmul.f32 %v162, %v183
      %v200 = vmul.f32 %v163, %v183
      %v201 = vmul.f32 %v164, %v183
      %v202 = vmul.f32 %v165, %v183
      %v203 = vmul.f32 %v166, %v183
      %v204 = vmul.f32 %v167, %v183
      %v205 = vmul.f32 %v168, %v183
      %v206 = vmul.f32 %v169, %v183
      %v207 = vmul.f32 %v170, %v183
      %v208 = vmul.f32 %v171, %v183
      %v209 = vmul.f32 %v172, %v183
      %v210 = vmul.f32 %v173, %v183
      %v211 = vmul.f32 %v174, %v183
      %v212 = vmul.f32 %v175, %v183
      %v213 = vmul.f32 %v176, %v183
      %v214 = vmul.f32 %v177, %v183
      %v215 = vmul.f32 %v178, %v183
      %v216 = vld [vmem:[%s1 + $0x1] sm:$0x1]
      %v217 = vlaneseq
      %v218 = vshrl.u32 %v217, 7
      %v219 = vsub.s32 0, %v218
      %v220 = vrot.slane %v216, %v219
      %v221 = vadd.f32 %v184, %v220
      %v222 = vadd.f32 %v185, %v220
      %v223 = vadd.f32 %v186, %v220
      %v224 = vadd.f32 %v187, %v220
      %v225 = vadd.f32 %v188, %v220
      %v226 = vadd.f32 %v189, %v220
      %v227 = vadd.f32 %v190, %v220
      %v228 = vadd.f32 %v191, %v220
      %v229 = vadd.f32 %v192, %v220
      %v230 = vadd.f32 %v193, %v220
      %v231 = vadd.f32 %v194, %v220
      %v232 = vadd.f32 %v195, %v220
      %v233 = vadd.f32 %v196, %v220
      %v234 = vadd.f32 %v197, %v220
      %v235 = vadd.f32 %v198, %v220
      %v236 = vadd.f32 %v199, %v220
      %v237 = vadd.f32 %v200, %v220
      %v238 = vadd.f32 %v201, %v220
      %v239 = vadd.f32 %v202, %v220
      %v240 = vadd.f32 %v203, %v220
      %v241 = vadd.f32 %v204, %v220
      %v242 = vadd.f32 %v205, %v220
      %v243 = vadd.f32 %v206, %v220
      %v244 = vadd.f32 %v207, %v220
      %v245 = vadd.f32 %v208, %v220
      %v246 = vadd.f32 %v209, %v220
      %v247 = vadd.f32 %v210, %v220
      %v248 = vadd.f32 %v211, %v220
      %v249 = vadd.f32 %v212, %v220
      %v250 = vadd.f32 %v213, %v220
      %v251 = vadd.f32 %v214, %v220
      %v252 = vadd.f32 %v215, %v220
      %vm253 = vcmask 261120
      %254 = vst.msk [vmem:[%s145] sm:$0xff] %vm253, %v221
      %255 = vst.msk [vmem:[%s145 + $0x8] sm:$0xff] %vm253, %v222
      %256 = vst.msk [vmem:[%s145 + $0x10] sm:$0xff] %vm253, %v223
      %257 = vst.msk [vmem:[%s145 + $0x18] sm:$0xff] %vm253, %v224
      %258 = vst.msk [vmem:[%s145 + $0x20] sm:$0xff] %vm253, %v225
      %259 = vst.msk [vmem:[%s145 + $0x28] sm:$0xff] %vm253, %v226
      %260 = vst.msk [vmem:[%s145 + $0x30] sm:$0xff] %vm253, %v227
      %261 = vst.msk [vmem:[%s145 + $0x38] sm:$0xff] %vm253, %v228
      %262 = vst.msk [vmem:[%s145 + $0x40] sm:$0xff] %vm253, %v229
      %263 = vst.msk [vmem:[%s145 + $0x48] sm:$0xff] %vm253, %v230
      %264 = vst.msk [vmem:[%s145 + $0x50] sm:$0xff] %vm253, %v231
      %265 = vst.msk [vmem:[%s145 + $0x58] sm:$0xff] %vm253, %v232
      %266 = vst.msk [vmem:[%s145 + $0x60] sm:$0xff] %vm253, %v233
      %267 = vst.msk [vmem:[%s145 + $0x68] sm:$0xff] %vm253, %v234
      %268 = vst.msk [vmem:[%s145 + $0x70] sm:$0xff] %vm253, %v235
      %269 = vst.msk [vmem:[%s145 + $0x78] sm:$0xff] %vm253, %v236
      %270 = vst.msk [vmem:[%s145 + $0x80] sm:$0xff] %vm253, %v237
      %271 = vst.msk [vmem:[%s145 + $0x88] sm:$0xff] %vm253, %v238
      %272 = vst.msk [vmem:[%s145 + $0x90] sm:$0xff] %vm253, %v239
      %273 = vst.msk [vmem:[%s145 + $0x98] sm:$0xff] %vm253, %v240
      %274 = vst.msk [vmem:[%s145 + $0xa0] sm:$0xff] %vm253, %v241
      %275 = vst.msk [vmem:[%s145 + $0xa8] sm:$0xff] %vm253, %v242
      %276 = vst.msk [vmem:[%s145 + $0xb0] sm:$0xff] %vm253, %v243
      %277 = vst.msk [vmem:[%s145 + $0xb8] sm:$0xff] %vm253, %v244
      %278 = vst.msk [vmem:[%s145 + $0xc0] sm:$0xff] %vm253, %v245
      %279 = vst.msk [vmem:[%s145 + $0xc8] sm:$0xff] %vm253, %v246
      %280 = vst.msk [vmem:[%s145 + $0xd0] sm:$0xff] %vm253, %v247
      %281 = vst.msk [vmem:[%s145 + $0xd8] sm:$0xff] %vm253, %v248
      %282 = vst.msk [vmem:[%s145 + $0xe0] sm:$0xff] %vm253, %v249
      %283 = vst.msk [vmem:[%s145 + $0xe8] sm:$0xff] %vm253, %v250
      %284 = vst.msk [vmem:[%s145 + $0xf0] sm:$0xff] %vm253, %v251
      %285 = vst.msk [vmem:[%s145 + $0xf8] sm:$0xff] %vm253, %v252
      %s286 = smul.u32 32, %s13
      %p287 = scmp.lt.s32.totalorder %s286, 63
      %s288 = scalar_select %p287, %s286, 63
      %s289 = smul.addr %s288, 8
      %s290 = scalar_lea.vmem %s2, %s289
      // Predicated region
      $region29: #{bifusion_forward.15} parent=27 // pred_check
        %p291 = pneg %p78
      $region30: #{bifusion_forward.15} parent=27 // pred_check_branch
        %293 = sbr.rel (%p291) target = $region32
      $region31: #{bifusion_forward.15} parent=27 // pred_region
        %s294 = smul.u32 32, %s13
      $region32: #{bifusion_forward.15} parent=27 // pred_fallthru
        _
    $region28: #{bifusion_forward.15} parent=5 // pred_fallthru
      _
    %p295 = scmp.le.s32.totalorder 2, %s8
    // Predicated region
    $region33: #{bifusion_forward.15} parent=5 // pred_check
      %p296 = pneg %p295
    $region34: #{bifusion_forward.15} parent=5 // pred_check_branch
      %298 = sbr.rel (%p296) target = $region36
    $region35: #{bifusion_forward.15} parent=5 // pred_region
      %s299 = ssub.s32 %s8, 2
      // Predicated region
      $region37: #{bifusion_forward.15} parent=35 // pred_check
        %p300 = pneg %p84
      $region38: #{bifusion_forward.15} parent=35 // pred_check_branch
        %302 = sbr.rel (%p300) target = $region40
      $region39: #{bifusion_forward.15} parent=35 // pred_region
        %s303 = smul.u32 32, %s14
        %p304 = scmp.lt.s32.totalorder %s303, 63
        %s305 = scalar_select %p304, %s303, 63
        %s306 = smul.addr %s305, 8
        %s307 = scalar_lea.vmem %s2, %s306
      $region40: #{bifusion_forward.15} parent=35 // pred_fallthru
        _
    $region36: #{bifusion_forward.15} parent=5 // pred_fallthru
      _
  $region6: #{bifusion_forward.15} parent=0 // loop_footer
    %s12 = sadd.s32 1, %s8
  $region7: #{bifusion_forward.15} parent=0 // loop_footer_branch
    %7 = sbr.rel target = $region3
  $region8: #{bifusion_forward.15} parent=0 // loop_exit
    _

// kernel: bifusion_forward.14
$region0: #{bifusion_forward.14}
  #allocation0 [shape = 'u32[]', space=smem, size = 0x4, offset = 0x4, fixed_abs, tag = 'smem constant byte address 0x4 - core index']
  #allocation1 [shape = 'u32[144,128]{1,0:T(1,128)}', space=vmem, size = 0x12000, scoped, tag = 'internal scratch']
  %s0 = inlined_call_operand.vmem [shape: bf16[512,576], index: 0, kind: input, shape index: {}]
  %s1 = inlined_call_operand.vmem [shape: bf16[576,32], index: 1, kind: input, shape index: {}]
  %s2 = inlined_call_operand.vmem [shape: f32[1,32], index: 2, kind: input, shape index: {}]
  %s3 = inlined_call_operand.vmem [shape: f32[512,32], index: 3, kind: output, shape index: {0}]
  %s4 = inlined_call_operand.vmem [shape: f32[2,1,32], index: 4, kind: output, shape index: {1}]
  %s5 = inlined_call_operand.vmem [shape: f32[2,1,32], index: 5, kind: output, shape index: {2}]
  %6 = xla_tuple %s3, %s4, %s5
  %s7 = sld [smem:[#allocation0]]
  $region61: #{bifusion_forward.14} parent=0
    _
  %s9 = ssub.s32 1, %s7
  %s10 = scalar_select 0, %s9, %s7
  loop: start=0, step=1, limit=4
  $region2: #{bifusion_forward.14} parent=0 // loop_pre_header
    _
  $region3: #{bifusion_forward.14} parent=0 // loop_header
    %s12 = sphi 0, %s16
    %p13 = scmp.ge.s32.totalorder %s12, 4
    %s22 = sphi 0, %s24
    %s25 = sphi 0, %s22
    %s26 = sphi 0, %s25
    %s42 = sphi 0, %s26
    %s46 = sphi 0, %s46
    %s48 = sphi 0, %s46
    %s49 = sphi 0, %s48
    %s63 = sphi 0, %s49
    %s67 = sphi 0, %s67
    %s69 = sphi 0, %s67
    %s70 = sphi 0, %s69
    %s84 = sphi 0, %s70
    %s90 = sphi 0, %s92
    %s93 = sphi 0, %s90
    %s94 = sphi 0, %s93
    %s110 = sphi 0, %s94
    %s116 = sphi 0, %s118
    %s119 = sphi 0, %s116
    %s120 = sphi 0, %s119
    %s136 = sphi 0, %s120
    %s142 = sphi 0, %s144
    %s145 = sphi 0, %s142
    %s146 = sphi 0, %s145
    %s162 = sphi 0, %s146
  $region4: #{bifusion_forward.14} parent=0 // loop_header_branch
    %15 = sbr.rel (%p13) target = $region8
  $region5: #{bifusion_forward.14} parent=0 // loop_body
    %s17 = ssub.s32 %s12, 1
    %s18 = ssub.s32 %s12, 2
    %s19 = sadd.s32 %s12, 1
    %s20 = ssub.s32 %s12, %s19
    %p21 = scmp.eq.s32.totalorder %s20, 0
    %s23 = sadd.s32 %s22, 1
    %s24 = scalar_select %p21, %s22, %s23
    %p27 = pneg %p21
    %p28 = scmp.eq.s32.totalorder %s12, 1
    %p29 = por %p27, %p28
    %p30 = scmp.ne.s32.totalorder %s22, %s25
    %p31 = scmp.eq.s32.totalorder %s12, 0
    %p32 = por %p30, %p31
    %p33 = scmp.ne.s32.totalorder %s22, %s25
    %p34 = scmp.eq.s32.totalorder %s17, 1
    %p35 = por %p33, %p34
    %p36 = scmp.ne.s32.totalorder %s25, %s26
    %p37 = scmp.eq.s32.totalorder %s17, 0
    %p38 = por %p36, %p37
    %p39 = scmp.ne.s32.totalorder %s25, %s26
    %p40 = scmp.eq.s32.totalorder %s18, 1
    %p41 = por %p39, %p40
    %p43 = scmp.ne.s32.totalorder %s26, %s42
    %p44 = scmp.eq.s32.totalorder %s18, 0
    %p45 = por %p43, %p44
    %s47 = sadd.s32 %s46, 1
    %p50 = scmp.eq.s32.totalorder %s12, 1
    %p51 = scmp.ne.s32.totalorder %s46, %s48
    %p52 = scmp.eq.s32.totalorder %s12, 0
    %p53 = por %p51, %p52
    %p54 = scmp.ne.s32.totalorder %s46, %s48
    %p55 = scmp.eq.s32.totalorder %s17, 1
    %p56 = por %p54, %p55
    %p57 = scmp.ne.s32.totalorder %s48, %s49
    %p58 = scmp.eq.s32.totalorder %s17, 0
    %p59 = por %p57, %p58
    %p60 = scmp.ne.s32.totalorder %s48, %s49
    %p61 = scmp.eq.s32.totalorder %s18, 1
    %p62 = por %p60, %p61
    %p64 = scmp.ne.s32.totalorder %s49, %s63
    %p65 = scmp.eq.s32.totalorder %s18, 0
    %p66 = por %p64, %p65
    %s68 = sadd.s32 %s67, 1
    %p71 = scmp.eq.s32.totalorder %s12, 1
    %p72 = scmp.ne.s32.totalorder %s67, %s69
    %p73 = scmp.eq.s32.totalorder %s12, 0
    %p74 = por %p72, %p73
    %p75 = scmp.ne.s32.totalorder %s67, %s69
    %p76 = scmp.eq.s32.totalorder %s17, 1
    %p77 = por %p75, %p76
    %p78 = scmp.ne.s32.totalorder %s69, %s70
    %p79 = scmp.eq.s32.totalorder %s17, 0
    %p80 = por %p78, %p79
    %p81 = scmp.ne.s32.totalorder %s69, %s70
    %p82 = scmp.eq.s32.totalorder %s18, 1
    %p83 = por %p81, %p82
    %p85 = scmp.ne.s32.totalorder %s70, %s84
    %p86 = scmp.eq.s32.totalorder %s18, 0
    %p87 = por %p85, %p86
    %s88 = ssub.s32 %s12, %s19
    %p89 = scmp.eq.s32.totalorder %s88, 0
    %s91 = sadd.s32 %s90, 1
    %s92 = scalar_select %p89, %s90, %s91
    %p95 = pneg %p89
    %p96 = scmp.eq.s32.totalorder %s12, 1
    %p97 = por %p95, %p96
    %p98 = scmp.ne.s32.totalorder %s90, %s93
    %p99 = scmp.eq.s32.totalorder %s12, 0
    %p100 = por %p98, %p99
    %p101 = scmp.ne.s32.totalorder %s90, %s93
    %p102 = scmp.eq.s32.totalorder %s17, 1
    %p103 = por %p101, %p102
    %p104 = scmp.ne.s32.totalorder %s93, %s94
    %p105 = scmp.eq.s32.totalorder %s17, 0
    %p106 = por %p104, %p105
    %p107 = scmp.ne.s32.totalorder %s93, %s94
    %p108 = scmp.eq.s32.totalorder %s18, 1
    %p109 = por %p107, %p108
    %p111 = scmp.ne.s32.totalorder %s94, %s110
    %p112 = scmp.eq.s32.totalorder %s18, 0
    %p113 = por %p111, %p112
    %s114 = ssub.s32 %s12, %s19
    %p115 = scmp.eq.s32.totalorder %s114, 0
    %s117 = sadd.s32 %s116, 1
    %s118 = scalar_select %p115, %s116, %s117
    %p121 = pneg %p115
    %p122 = scmp.eq.s32.totalorder %s12, 1
    %p123 = por %p121, %p122
    %p124 = scmp.ne.s32.totalorder %s116, %s119
    %p125 = scmp.eq.s32.totalorder %s12, 0
    %p126 = por %p124, %p125
    %p127 = scmp.ne.s32.totalorder %s116, %s119
    %p128 = scmp.eq.s32.totalorder %s17, 1
    %p129 = por %p127, %p128
    %p130 = scmp.ne.s32.totalorder %s119, %s120
    %p131 = scmp.eq.s32.totalorder %s17, 0
    %p132 = por %p130, %p131
    %p133 = scmp.ne.s32.totalorder %s119, %s120
    %p134 = scmp.eq.s32.totalorder %s18, 1
    %p135 = por %p133, %p134
    %p137 = scmp.ne.s32.totalorder %s120, %s136
    %p138 = scmp.eq.s32.totalorder %s18, 0
    %p139 = por %p137, %p138
    %s140 = ssub.s32 %s12, %s19
    %p141 = scmp.eq.s32.totalorder %s140, 0
    %s143 = sadd.s32 %s142, 1
    %s144 = scalar_select %p141, %s142, %s143
    %p147 = pneg %p141
    %p148 = scmp.eq.s32.totalorder %s12, 1
    %p149 = por %p147, %p148
    %p150 = scmp.ne.s32.totalorder %s142, %s145
    %p151 = scmp.eq.s32.totalorder %s12, 0
    %p152 = por %p150, %p151
    %p153 = scmp.ne.s32.totalorder %s142, %s145
    %p154 = scmp.eq.s32.totalorder %s17, 1
    %p155 = por %p153, %p154
    %p156 = scmp.ne.s32.totalorder %s145, %s146
    %p157 = scmp.eq.s32.totalorder %s17, 0
    %p158 = por %p156, %p157
    %p159 = scmp.ne.s32.totalorder %s145, %s146
    %p160 = scmp.eq.s32.totalorder %s18, 1
    %p161 = por %p159, %p160
    %p163 = scmp.ne.s32.totalorder %s146, %s162
    %p164 = scmp.eq.s32.totalorder %s18, 0
    %p165 = por %p163, %p164
    %p166 = scmp.le.s32.totalorder 1, %s12
    %p167 = scmp.lt.s32.totalorder %s12, 3
    %p168 = pnand %p166, %p167
    %p169 = pneg %p168
    // Predicated region
    $region9: #{bifusion_forward.14} parent=5 // pred_check
      _
    $region10: #{bifusion_forward.14} parent=5 // pred_check_branch
      %171 = sbr.rel (%p168) target = $region12
    $region11: #{bifusion_forward.14} parent=5 // pred_region
      %s172 = ssub.s32 %s12, 1
      // Predicated region
      $region13: #{bifusion_forward.14} parent=11 // pred_check
        %p173 = pneg %p59
      $region14: #{bifusion_forward.14} parent=11 // pred_check_branch
        %175 = sbr.rel (%p173) target = $region16
      $region15: #{bifusion_forward.14} parent=11 // pred_region
        _
      $region16: #{bifusion_forward.14} parent=11 // pred_fallthru
        _
      // Predicated region
      $region17: #{bifusion_forward.14} parent=11 // pred_check
        %p176 = pneg %p80
      $region18: #{bifusion_forward.14} parent=11 // pred_check_branch
        %178 = sbr.rel (%p176) target = $region20
      $region19: #{bifusion_forward.14} parent=11 // pred_region
        _
      $region20: #{bifusion_forward.14} parent=11 // pred_fallthru
        _
    $region12: #{bifusion_forward.14} parent=5 // pred_fallthru
      _
    %p179 = scmp.lt.s32.totalorder %s12, 2
    // Predicated region
    $region21: #{bifusion_forward.14} parent=5 // pred_check
      %p180 = pneg %p179
    $region22: #{bifusion_forward.14} parent=5 // pred_check_branch
      %182 = sbr.rel (%p180) target = $region24
    $region23: #{bifusion_forward.14} parent=5 // pred_region
      // Predicated region
      $region25: #{bifusion_forward.14} parent=23 // pred_check
        %p183 = pneg %p32
      $region26: #{bifusion_forward.14} parent=23 // pred_check_branch
        %185 = sbr.rel (%p183) target = $region28
      $region27: #{bifusion_forward.14} parent=23 // pred_region
        %s186 = smul.u32 32, %s12
        %p187 = scmp.lt.s32.totalorder %s186, 63
        %s188 = scalar_select %p187, %s186, 63
        %s189 = smul.addr %s188, 5
        %s190 = smul.addr %s189, 4
        %s191 = scalar_lea.vmem %s0, %s190
        %s192 = smul.u32 32, %s12
      $region28: #{bifusion_forward.14} parent=23 // pred_fallthru
        _
    $region24: #{bifusion_forward.14} parent=5 // pred_fallthru
      _
    %p193 = scmp.le.s32.totalorder 1, %s12
    %p194 = scmp.lt.s32.totalorder %s12, 3
    %p195 = pnand %p193, %p194
    %p196 = pneg %p195
    // Predicated region
    $region29: #{bifusion_forward.14} parent=5 // pred_check
      _
    $region30: #{bifusion_forward.14} parent=5 // pred_check_branch
      %198 = sbr.rel (%p195) target = $region32
    $region31: #{bifusion_forward.14} parent=5 // pred_region
      %s199 = ssub.s32 %s12, 1
      %s200 = smul.u32 32, %s17
      %p201 = scmp.lt.s32.totalorder %s200, 63
      %s202 = scalar_select %p201, %s200, 63
      %s203 = smul.addr %s202, 5
      %s204 = smul.addr %s203, 4
      %s205 = scalar_lea.vmem %s0, %s204
      %p206 = pneg %p38
      %p207 = pneg %p35
      %p208 = pneg %p59
      %p209 = pneg %p56
      %p210 = pneg %p80
      %p211 = pneg %p77
      %p212 = pneg %p106
      %p213 = pneg %p103
      %s214 = smul.u32 32, %s17
      %p215 = scmp.lt.s32.totalorder %s214, 63
      %s216 = scalar_select %p215, %s214, 63
      %s217 = smul.addr %s216, 8
      %s218 = scalar_lea.vmem %s3, %s217
      %p219 = pneg %p132
      %p220 = pneg %p129
      %p221 = scmp.lt.s32.totalorder %s17, 1
      %s222 = scalar_select %p221, %s17, 1
      %s223 = scalar_lea.vmem %s4, %s222
      %p224 = pneg %p158
      %p225 = pneg %p155
      %p226 = scmp.lt.s32.totalorder %s17, 1
      %s227 = scalar_select %p226, %s17, 1
      %s228 = scalar_lea.vmem %s5, %s227
      %s229 = smul.u32 32, %s17
      %p230 = scmp.lt.s32.totalorder %s229, 63
      %s231 = scalar_select %p230, %s229, 63
      %s232 = smul.addr %s231, 5
      %s233 = smul.addr %s232, 4
      %s234 = scalar_lea.vmem %s0, %s233
      %s235 = smul.u32 32, %s17
      %s236 = smul.u32 32, %s17
      %p237 = scmp.lt.s32.totalorder %s236, 63
      %s238 = scalar_select %p237, %s236, 63
      %s239 = smul.addr %s238, 8
      %s240 = scalar_lea.vmem %s3, %s239
      %s241 = smul.u32 32, %s17
      %p242 = scmp.lt.s32.totalorder %s17, 1
      %s243 = scalar_select %p242, %s17, 1
      %s244 = scalar_lea.vmem %s4, %s243
      %p245 = scmp.lt.s32.totalorder %s17, 1
      %s246 = scalar_select %p245, %s17, 1
      %s247 = scalar_lea.vmem %s5, %s246
      %v249 = vld [vmem:[%s234] sm:$0xff]
      %v250 = vld [vmem:[%s234 + $0x8] sm:$0xff]
      %v251 = vld [vmem:[%s234 + $0x10] sm:$0xf]
      %v252 = vld [vmem:[%s234 + $0x14] sm:$0xff]
      %v253 = vld [vmem:[%s234 + $0x1c] sm:$0xff]
      %v254 = vld [vmem:[%s234 + $0x24] sm:$0xf]
      %v255 = vld [vmem:[%s234 + $0x28] sm:$0xff]
      %v256 = vld [vmem:[%s234 + $0x30] sm:$0xff]
      %v257 = vld [vmem:[%s234 + $0x38] sm:$0xf]
      %v258 = vld [vmem:[%s234 + $0x3c] sm:$0xff]
      %v259 = vld [vmem:[%s234 + $0x44] sm:$0xff]
      %v260 = vld [vmem:[%s234 + $0x4c] sm:$0xf]
      %v261 = vld [vmem:[%s234 + $0x50] sm:$0xff]
      %v262 = vld [vmem:[%s234 + $0x58] sm:$0xff]
      %v263 = vld [vmem:[%s234 + $0x60] sm:$0xf]
      %v264 = vld [vmem:[%s234 + $0x64] sm:$0xff]
      %v265 = vld [vmem:[%s234 + $0x6c] sm:$0xff]
      %v266 = vld [vmem:[%s234 + $0x74] sm:$0xf]
      %v267 = vld [vmem:[%s234 + $0x78] sm:$0xff]
      %v268 = vld [vmem:[%s234 + $0x80] sm:$0xff]
      %v269 = vld [vmem:[%s234 + $0x88] sm:$0xf]
      %v270 = vld [vmem:[%s234 + $0x8c] sm:$0xff]
      %v271 = vld [vmem:[%s234 + $0x94] sm:$0xff]
      %v272 = vld [vmem:[%s234 + $0x9c] sm:$0xf]
      %v273 = vld [vmem:[%s234 + $0xa0] sm:$0xff]
      %v274 = vld [vmem:[%s234 + $0xa8] sm:$0xff]
      %v275 = vld [vmem:[%s234 + $0xb0] sm:$0xf]
      %v276 = vld [vmem:[%s234 + $0xb4] sm:$0xff]
      %v277 = vld [vmem:[%s234 + $0xbc] sm:$0xff]
      %v278 = vld [vmem:[%s234 + $0xc4] sm:$0xf]
      %v279 = vld [vmem:[%s234 + $0xc8] sm:$0xff]
      %v280 = vld [vmem:[%s234 + $0xd0] sm:$0xff]
      %v281 = vld [vmem:[%s234 + $0xd8] sm:$0xf]
      %v282 = vld [vmem:[%s234 + $0xdc] sm:$0xff]
      %v283 = vld [vmem:[%s234 + $0xe4] sm:$0xff]
      %v284 = vld [vmem:[%s234 + $0xec] sm:$0xf]
      %v285 = vld [vmem:[%s234 + $0xf0] sm:$0xff]
      %v286 = vld [vmem:[%s234 + $0xf8] sm:$0xff]
      %v287 = vld [vmem:[%s234 + $0x100] sm:$0xf]
      %v288 = vld [vmem:[%s234 + $0x104] sm:$0xff]
      %v289 = vld [vmem:[%s234 + $0x10c] sm:$0xff]
      %v290 = vld [vmem:[%s234 + $0x114] sm:$0xf]
      %v291 = vld [vmem:[%s234 + $0x118] sm:$0xff]
      %v292 = vld [vmem:[%s234 + $0x120] sm:$0xff]
      %v293 = vld [vmem:[%s234 + $0x128] sm:$0xf]
      %v294 = vld [vmem:[%s234 + $0x12c] sm:$0xff]
      %v295 = vld [vmem:[%s234 + $0x134] sm:$0xff]
      %v296 = vld [vmem:[%s234 + $0x13c] sm:$0xf]
      %v297 = vld [vmem:[%s234 + $0x140] sm:$0xff]
      %v298 = vld [vmem:[%s234 + $0x148] sm:$0xff]
      %v299 = vld [vmem:[%s234 + $0x150] sm:$0xf]
      %v300 = vld [vmem:[%s234 + $0x154] sm:$0xff]
      %v301 = vld [vmem:[%s234 + $0x15c] sm:$0xff]
      %v302 = vld [vmem:[%s234 + $0x164] sm:$0xf]
      %v303 = vld [vmem:[%s234 + $0x168] sm:$0xff]
      %v304 = vld [vmem:[%s234 + $0x170] sm:$0xff]
      %v305 = vld [vmem:[%s234 + $0x178] sm:$0xf]
      %v306 = vld [vmem:[%s234 + $0x17c] sm:$0xff]
      %v307 = vld [vmem:[%s234 + $0x184] sm:$0xff]
      %v308 = vld [vmem:[%s234 + $0x18c] sm:$0xf]
      %v309 = vld [vmem:[%s234 + $0x190] sm:$0xff]
      %v310 = vld [vmem:[%s234 + $0x198] sm:$0xff]
      %v311 = vld [vmem:[%s234 + $0x1a0] sm:$0xf]
      %v312 = vld [vmem:[%s234 + $0x1a4] sm:$0xff]
      %v313 = vld [vmem:[%s234 + $0x1ac] sm:$0xff]
      %v314 = vld [vmem:[%s234 + $0x1b4] sm:$0xf]
      %v315 = vld [vmem:[%s234 + $0x1b8] sm:$0xff]
      %v316 = vld [vmem:[%s234 + $0x1c0] sm:$0xff]
      %v317 = vld [vmem:[%s234 + $0x1c8] sm:$0xf]
      %v318 = vld [vmem:[%s234 + $0x1cc] sm:$0xff]
      %v319 = vld [vmem:[%s234 + $0x1d4] sm:$0xff]
      %v320 = vld [vmem:[%s234 + $0x1dc] sm:$0xf]
      %v321 = vld [vmem:[%s234 + $0x1e0] sm:$0xff]
      %v322 = vld [vmem:[%s234 + $0x1e8] sm:$0xff]
      %v323 = vld [vmem:[%s234 + $0x1f0] sm:$0xf]
      %v324 = vld [vmem:[%s234 + $0x1f4] sm:$0xff]
      %v325 = vld [vmem:[%s234 + $0x1fc] sm:$0xff]
      %v326 = vld [vmem:[%s234 + $0x204] sm:$0xf]
      %v327 = vld [vmem:[%s234 + $0x208] sm:$0xff]
      %v328 = vld [vmem:[%s234 + $0x210] sm:$0xff]
      %v329 = vld [vmem:[%s234 + $0x218] sm:$0xf]
      %v330 = vld [vmem:[%s234 + $0x21c] sm:$0xff]
      %v331 = vld [vmem:[%s234 + $0x224] sm:$0xff]
      %v332 = vld [vmem:[%s234 + $0x22c] sm:$0xf]
      %v333 = vld [vmem:[%s234 + $0x230] sm:$0xff]
      %v334 = vld [vmem:[%s234 + $0x238] sm:$0xff]
      %v335 = vld [vmem:[%s234 + $0x240] sm:$0xf]
      %v336 = vld [vmem:[%s234 + $0x244] sm:$0xff]
      %v337 = vld [vmem:[%s234 + $0x24c] sm:$0xff]
      %v338 = vld [vmem:[%s234 + $0x254] sm:$0xf]
      %v339 = vld [vmem:[%s234 + $0x258] sm:$0xff]
      %v340 = vld [vmem:[%s234 + $0x260] sm:$0xff]
      %v341 = vld [vmem:[%s234 + $0x268] sm:$0xf]
      %v342 = vld [vmem:[%s234 + $0x26c] sm:$0xff]
      %v343 = vld [vmem:[%s234 + $0x274] sm:$0xff]
      %v344 = vld [vmem:[%s234 + $0x27c] sm:$0xf]
      %v345 = vld [vmem:[%s1] sm:$0xf]
      %v346 = vld [vmem:[%s1 + $0x4] sm:$0xf]
      %v347 = vld [vmem:[%s1 + $0x8] sm:$0xf]
      %v348 = vld [vmem:[%s1 + $0xc] sm:$0xf]
      %v349 = vld [vmem:[%s1 + $0x10] sm:$0xf]
      %v350 = vld [vmem:[%s1 + $0x14] sm:$0xf]
      %v351 = vld [vmem:[%s1 + $0x18] sm:$0xf]
      %v352 = vld [vmem:[%s1 + $0x1c] sm:$0xf]
      %v353 = vld [vmem:[%s1 + $0x20] sm:$0xf]
      %v354 = vld [vmem:[%s1 + $0x24] sm:$0xf]
      %v355 = vld [vmem:[%s1 + $0x28] sm:$0xf]
      %v356 = vld [vmem:[%s1 + $0x2c] sm:$0xf]
      %v357 = vld [vmem:[%s1 + $0x30] sm:$0xf]
      %v358 = vld [vmem:[%s1 + $0x34] sm:$0xf]
      %v359 = vld [vmem:[%s1 + $0x38] sm:$0xf]
      %v360 = vld [vmem:[%s1 + $0x3c] sm:$0xf]
      %v361 = vld [vmem:[%s1 + $0x40] sm:$0xf]
      %v362 = vld [vmem:[%s1 + $0x44] sm:$0xf]
      %v363 = vld [vmem:[%s1 + $0x48] sm:$0xf]
      %v364 = vld [vmem:[%s1 + $0x4c] sm:$0xf]
      %v365 = vld [vmem:[%s1 + $0x50] sm:$0xf]
      %v366 = vld [vmem:[%s1 + $0x54] sm:$0xf]
      %v367 = vld [vmem:[%s1 + $0x58] sm:$0xf]
      %v368 = vld [vmem:[%s1 + $0x5c] sm:$0xf]
      %v369 = vld [vmem:[%s1 + $0x60] sm:$0xf]
      %v370 = vld [vmem:[%s1 + $0x64] sm:$0xf]
      %v371 = vld [vmem:[%s1 + $0x68] sm:$0xf]
      %v372 = vld [vmem:[%s1 + $0x6c] sm:$0xf]
      %v373 = vld [vmem:[%s1 + $0x70] sm:$0xf]
      %v374 = vld [vmem:[%s1 + $0x74] sm:$0xf]
      %v375 = vld [vmem:[%s1 + $0x78] sm:$0xf]
      %v376 = vld [vmem:[%s1 + $0x7c] sm:$0xf]
      %v377 = vld [vmem:[%s1 + $0x80] sm:$0xf]
      %v378 = vld [vmem:[%s1 + $0x84] sm:$0xf]
      %v379 = vld [vmem:[%s1 + $0x88] sm:$0xf]
      %v380 = vld [vmem:[%s1 + $0x8c] sm:$0xf]
      %v381 = vld [vmem:[%s1 + $0x90] sm:$0xf]
      %v382 = vld [vmem:[%s1 + $0x94] sm:$0xf]
      %v383 = vld [vmem:[%s1 + $0x98] sm:$0xf]
      %v384 = vld [vmem:[%s1 + $0x9c] sm:$0xf]
      %v385 = vld [vmem:[%s1 + $0xa0] sm:$0xf]
      %v386 = vld [vmem:[%s1 + $0xa4] sm:$0xf]
      %v387 = vld [vmem:[%s1 + $0xa8] sm:$0xf]
      %v388 = vld [vmem:[%s1 + $0xac] sm:$0xf]
      %v389 = vld [vmem:[%s1 + $0xb0] sm:$0xf]
      %v390 = vld [vmem:[%s1 + $0xb4] sm:$0xf]
      %v391 = vld [vmem:[%s1 + $0xb8] sm:$0xf]
      %v392 = vld [vmem:[%s1 + $0xbc] sm:$0xf]
      %v393 = vld [vmem:[%s1 + $0xc0] sm:$0xf]
      %v394 = vld [vmem:[%s1 + $0xc4] sm:$0xf]
      %v395 = vld [vmem:[%s1 + $0xc8] sm:$0xf]
      %v396 = vld [vmem:[%s1 + $0xcc] sm:$0xf]
      %v397 = vld [vmem:[%s1 + $0xd0] sm:$0xf]
      %v398 = vld [vmem:[%s1 + $0xd4] sm:$0xf]
      %v399 = vld [vmem:[%s1 + $0xd8] sm:$0xf]
      %v400 = vld [vmem:[%s1 + $0xdc] sm:$0xf]
      %v401 = vld [vmem:[%s1 + $0xe0] sm:$0xf]
      %v402 = vld [vmem:[%s1 + $0xe4] sm:$0xf]
      %v403 = vld [vmem:[%s1 + $0xe8] sm:$0xf]
      %v404 = vld [vmem:[%s1 + $0xec] sm:$0xf]
      %v405 = vld [vmem:[%s1 + $0xf0] sm:$0xf]
      %v406 = vld [vmem:[%s1 + $0xf4] sm:$0xf]
      %v407 = vld [vmem:[%s1 + $0xf8] sm:$0xf]
      %v408 = vld [vmem:[%s1 + $0xfc] sm:$0xf]
      %v409 = vld [vmem:[%s1 + $0x100] sm:$0xf]
      %v410 = vld [vmem:[%s1 + $0x104] sm:$0xf]
      %v411 = vld [vmem:[%s1 + $0x108] sm:$0xf]
      %v412 = vld [vmem:[%s1 + $0x10c] sm:$0xf]
      %v413 = vld [vmem:[%s1 + $0x110] sm:$0xf]
      %v414 = vld [vmem:[%s1 + $0x114] sm:$0xf]
      %v415 = vld [vmem:[%s1 + $0x118] sm:$0xf]
      %v416 = vld [vmem:[%s1 + $0x11c] sm:$0xf]
      %v417 = vld [vmem:[%s2] sm:$0x1]
      %v419 = vlaneseq
      %v420 = vshrl.u32 %v419, 7
      %v421 = vsub.s32 0, %v420
      %v422 = vrot.slane %v417, %v421
      %v520 = vunpack.c.l.b16 %v249
      %v521 = vunpack.c.h.b16 %v249
      %v522 = vunpack.c.l.b16 %v250
      %v523 = vunpack.c.h.b16 %v250
      %v524 = vunpack.c.l.b16 %v251
      %v525 = vunpack.c.l.b16 %v252
      %v526 = vunpack.c.h.b16 %v252
      %v527 = vunpack.c.l.b16 %v253
      %v528 = vunpack.c.h.b16 %v253
      %v529 = vunpack.c.l.b16 %v254
      %v530 = vunpack.c.l.b16 %v255
      %v531 = vunpack.c.h.b16 %v255
      %v532 = vunpack.c.l.b16 %v256
      %v533 = vunpack.c.h.b16 %v256
      %v534 = vunpack.c.l.b16 %v257
      %v535 = vunpack.c.l.b16 %v258
      %v536 = vunpack.c.h.b16 %v258
      %v537 = vunpack.c.l.b16 %v259
      %v538 = vunpack.c.h.b16 %v259
      %v539 = vunpack.c.l.b16 %v260
      %v540 = vunpack.c.l.b16 %v261
      %v541 = vunpack.c.h.b16 %v261
      %v542 = vunpack.c.l.b16 %v262
      %v543 = vunpack.c.h.b16 %v262
      %v544 = vunpack.c.l.b16 %v263
      %v545 = vunpack.c.l.b16 %v264
      %v546 = vunpack.c.h.b16 %v264
      %v547 = vunpack.c.l.b16 %v265
      %v548 = vunpack.c.h.b16 %v265
      %v549 = vunpack.c.l.b16 %v266
      %v550 = vunpack.c.l.b16 %v267
      %v551 = vunpack.c.h.b16 %v267
      %v552 = vunpack.c.l.b16 %v268
      %v553 = vunpack.c.h.b16 %v268
      %v554 = vunpack.c.l.b16 %v269
      %v555 = vunpack.c.l.b16 %v270
      %v556 = vunpack.c.h.b16 %v270
      %v557 = vunpack.c.l.b16 %v271
      %v558 = vunpack.c.h.b16 %v271
      %v559 = vunpack.c.l.b16 %v272
      %v560 = vunpack.c.l.b16 %v273
      %v561 = vunpack.c.h.b16 %v273
      %v562 = vunpack.c.l.b16 %v274
      %v563 = vunpack.c.h.b16 %v274
      %v564 = vunpack.c.l.b16 %v275
      %v565 = vunpack.c.l.b16 %v276
      %v566 = vunpack.c.h.b16 %v276
      %v567 = vunpack.c.l.b16 %v277
      %v568 = vunpack.c.h.b16 %v277
      %v569 = vunpack.c.l.b16 %v278
      %v570 = vunpack.c.l.b16 %v279
      %v571 = vunpack.c.h.b16 %v279
      %v572 = vunpack.c.l.b16 %v280
      %v573 = vunpack.c.h.b16 %v280
      %v574 = vunpack.c.l.b16 %v281
      %v575 = vunpack.c.l.b16 %v282
      %v576 = vunpack.c.h.b16 %v282
      %v577 = vunpack.c.l.b16 %v283
      %v578 = vunpack.c.h.b16 %v283
      %v579 = vunpack.c.l.b16 %v284
      %v580 = vunpack.c.l.b16 %v285
      %v581 = vunpack.c.h.b16 %v285
      %v582 = vunpack.c.l.b16 %v286
      %v583 = vunpack.c.h.b16 %v286
      %v584 = vunpack.c.l.b16 %v287
      %v585 = vunpack.c.l.b16 %v288
      %v586 = vunpack.c.h.b16 %v288
      %v587 = vunpack.c.l.b16 %v289
      %v588 = vunpack.c.h.b16 %v289
      %v589 = vunpack.c.l.b16 %v290
      %v590 = vunpack.c.l.b16 %v291
      %v591 = vunpack.c.h.b16 %v291
      %v592 = vunpack.c.l.b16 %v292
      %v593 = vunpack.c.h.b16 %v292
      %v594 = vunpack.c.l.b16 %v293
      %v595 = vunpack.c.l.b16 %v294
      %v596 = vunpack.c.h.b16 %v294
      %v597 = vunpack.c.l.b16 %v295
      %v598 = vunpack.c.h.b16 %v295
      %v599 = vunpack.c.l.b16 %v296
      %v600 = vunpack.c.l.b16 %v297
      %v601 = vunpack.c.h.b16 %v297
      %v602 = vunpack.c.l.b16 %v298
      %v603 = vunpack.c.h.b16 %v298
      %v604 = vunpack.c.l.b16 %v299
      %v605 = vunpack.c.l.b16 %v300
      %v606 = vunpack.c.h.b16 %v300
      %v607 = vunpack.c.l.b16 %v301
      %v608 = vunpack.c.h.b16 %v301
      %v609 = vunpack.c.l.b16 %v302
      %v610 = vunpack.c.l.b16 %v303
      %v611 = vunpack.c.h.b16 %v303
      %v612 = vunpack.c.l.b16 %v304
      %v613 = vunpack.c.h.b16 %v304
      %v614 = vunpack.c.l.b16 %v305
      %v615 = vunpack.c.l.b16 %v306
      %v616 = vunpack.c.h.b16 %v306
      %v617 = vunpack.c.l.b16 %v307
      %v618 = vunpack.c.h.b16 %v307
      %v619 = vunpack.c.l.b16 %v308
      %v620 = vunpack.c.l.b16 %v309
      %v621 = vunpack.c.h.b16 %v309
      %v622 = vunpack.c.l.b16 %v310
      %v623 = vunpack.c.h.b16 %v310
      %v624 = vunpack.c.l.b16 %v311
      %v625 = vunpack.c.l.b16 %v312
      %v626 = vunpack.c.h.b16 %v312
      %v627 = vunpack.c.l.b16 %v313
      %v628 = vunpack.c.h.b16 %v313
      %v629 = vunpack.c.l.b16 %v314
      %v630 = vunpack.c.l.b16 %v315
      %v631 = vunpack.c.h.b16 %v315
      %v632 = vunpack.c.l.b16 %v316
      %v633 = vunpack.c.h.b16 %v316
      %v634 = vunpack.c.l.b16 %v317
      %v635 = vunpack.c.l.b16 %v318
      %v636 = vunpack.c.h.b16 %v318
      %v637 = vunpack.c.l.b16 %v319
      %v638 = vunpack.c.h.b16 %v319
      %v639 = vunpack.c.l.b16 %v320
      %v640 = vunpack.c.l.b16 %v321
      %v641 = vunpack.c.h.b16 %v321
      %v642 = vunpack.c.l.b16 %v322
      %v643 = vunpack.c.h.b16 %v322
      %v644 = vunpack.c.l.b16 %v323
      %v645 = vunpack.c.l.b16 %v324
      %v646 = vunpack.c.h.b16 %v324
      %v647 = vunpack.c.l.b16 %v325
      %v648 = vunpack.c.h.b16 %v325
      %v649 = vunpack.c.l.b16 %v326
      %v650 = vunpack.c.l.b16 %v327
      %v651 = vunpack.c.h.b16 %v327
      %v652 = vunpack.c.l.b16 %v328
      %v653 = vunpack.c.h.b16 %v328
      %v654 = vunpack.c.l.b16 %v329
      %v655 = vunpack.c.l.b16 %v330
      %v656 = vunpack.c.h.b16 %v330
      %v657 = vunpack.c.l.b16 %v331
      %v658 = vunpack.c.h.b16 %v331
      %v659 = vunpack.c.l.b16 %v332
      %v660 = vunpack.c.l.b16 %v333
      %v661 = vunpack.c.h.b16 %v333
      %v662 = vunpack.c.l.b16 %v334
      %v663 = vunpack.c.h.b16 %v334
      %v664 = vunpack.c.l.b16 %v335
      %v665 = vunpack.c.l.b16 %v336
      %v666 = vunpack.c.h.b16 %v336
      %v667 = vunpack.c.l.b16 %v337
      %v668 = vunpack.c.h.b16 %v337
      %v669 = vunpack.c.l.b16 %v338
      %v670 = vunpack.c.l.b16 %v339
      %v671 = vunpack.c.h.b16 %v339
      %v672 = vunpack.c.l.b16 %v340
      %v673 = vunpack.c.h.b16 %v340
      %v674 = vunpack.c.l.b16 %v341
      %v675 = vunpack.c.l.b16 %v342
      %v676 = vunpack.c.h.b16 %v342
      %v677 = vunpack.c.l.b16 %v343
      %v678 = vunpack.c.h.b16 %v343
      %v679 = vunpack.c.l.b16 %v344
      %v680 = vpack.c.b16 %v525, %v520
      %v681 = vpack.c.b16 %v526, %v521
      %v682 = vpack.c.b16 %v527, %v522
      %v683 = vpack.c.b16 %v528, %v523
      %v684 = vpack.c.b16 %v529, %v524
      %v685 = vpack.c.b16 %v535, %v530
      %v686 = vpack.c.b16 %v536, %v531
      %v687 = vpack.c.b16 %v537, %v532
      %v688 = vpack.c.b16 %v538, %v533
      %v689 = vpack.c.b16 %v539, %v534
      %v690 = vpack.c.b16 %v545, %v540
      %v691 = vpack.c.b16 %v546, %v541
      %v692 = vpack.c.b16 %v547, %v542
      %v693 = vpack.c.b16 %v548, %v543
      %v694 = vpack.c.b16 %v549, %v544
      %v695 = vpack.c.b16 %v555, %v550
      %v696 = vpack.c.b16 %v556, %v551
      %v697 = vpack.c.b16 %v557, %v552
      %v698 = vpack.c.b16 %v558, %v553
      %v699 = vpack.c.b16 %v559, %v554
      %v700 = vpack.c.b16 %v565, %v560
      %v701 = vpack.c.b16 %v566, %v561
      %v702 = vpack.c.b16 %v567, %v562
      %v703 = vpack.c.b16 %v568, %v563
      %v704 = vpack.c.b16 %v569, %v564
      %v705 = vpack.c.b16 %v575, %v570
      %v706 = vpack.c.b16 %v576, %v571
      %v707 = vpack.c.b16 %v577, %v572
      %v708 = vpack.c.b16 %v578, %v573
      %v709 = vpack.c.b16 %v579, %v574
      %v710 = vpack.c.b16 %v585, %v580
      %v711 = vpack.c.b16 %v586, %v581
      %v712 = vpack.c.b16 %v587, %v582
      %v713 = vpack.c.b16 %v588, %v583
      %v714 = vpack.c.b16 %v589, %v584
      %v715 = vpack.c.b16 %v595, %v590
      %v716 = vpack.c.b16 %v596, %v591
      %v717 = vpack.c.b16 %v597, %v592
      %v718 = vpack.c.b16 %v598, %v593
      %v719 = vpack.c.b16 %v599, %v594
      %v720 = vpack.c.b16 %v605, %v600
      %v721 = vpack.c.b16 %v606, %v601
      %v722 = vpack.c.b16 %v607, %v602
      %v723 = vpack.c.b16 %v608, %v603
      %v724 = vpack.c.b16 %v609, %v604
      %v725 = vpack.c.b16 %v615, %v610
      %v726 = vpack.c.b16 %v616, %v611
      %v727 = vpack.c.b16 %v617, %v612
      %v728 = vpack.c.b16 %v618, %v613
      %v729 = vpack.c.b16 %v619, %v614
      %v730 = vpack.c.b16 %v625, %v620
      %v731 = vpack.c.b16 %v626, %v621
      %v732 = vpack.c.b16 %v627, %v622
      %v733 = vpack.c.b16 %v628, %v623
      %v734 = vpack.c.b16 %v629, %v624
      %v735 = vpack.c.b16 %v635, %v630
      %v736 = vpack.c.b16 %v636, %v631
      %v737 = vpack.c.b16 %v637, %v632
      %v738 = vpack.c.b16 %v638, %v633
      %v739 = vpack.c.b16 %v639, %v634
      %v740 = vpack.c.b16 %v645, %v640
      %v741 = vpack.c.b16 %v646, %v641
      %v742 = vpack.c.b16 %v647, %v642
      %v743 = vpack.c.b16 %v648, %v643
      %v744 = vpack.c.b16 %v649, %v644
      %v745 = vpack.c.b16 %v655, %v650
      %v746 = vpack.c.b16 %v656, %v651
      %v747 = vpack.c.b16 %v657, %v652
      %v748 = vpack.c.b16 %v658, %v653
      %v749 = vpack.c.b16 %v659, %v654
      %v750 = vpack.c.b16 %v665, %v660
      %v751 = vpack.c.b16 %v666, %v661
      %v752 = vpack.c.b16 %v667, %v662
      %v753 = vpack.c.b16 %v668, %v663
      %v754 = vpack.c.b16 %v669, %v664
      %v755 = vpack.c.b16 %v675, %v670
      %v756 = vpack.c.b16 %v676, %v671
      %v757 = vpack.c.b16 %v677, %v672
      %v758 = vpack.c.b16 %v678, %v673
      %v759 = vpack.c.b16 %v679, %v674
      %v896 = vunpack.c.l.b16 %v345
      %v897 = vunpack.c.l.b16 %v346
      %v898 = vunpack.c.l.b16 %v347
      %v899 = vunpack.c.l.b16 %v348
      %v900 = vunpack.c.l.b16 %v349
      %v901 = vunpack.c.l.b16 %v350
      %v902 = vunpack.c.l.b16 %v351
      %v903 = vunpack.c.l.b16 %v352
      %v904 = vunpack.c.l.b16 %v353
      %v905 = vunpack.c.l.b16 %v354
      %v906 = vunpack.c.l.b16 %v355
      %v907 = vunpack.c.l.b16 %v356
      %v908 = vunpack.c.l.b16 %v357
      %v909 = vunpack.c.l.b16 %v358
      %v910 = vunpack.c.l.b16 %v359
      %v911 = vunpack.c.l.b16 %v360
      %v912 = vunpack.c.l.b16 %v361
      %v913 = vunpack.c.l.b16 %v362
      %v914 = vunpack.c.l.b16 %v363
      %v915 = vunpack.c.l.b16 %v364
      %v916 = vunpack.c.l.b16 %v365
      %v917 = vunpack.c.l.b16 %v366
      %v918 = vunpack.c.l.b16 %v367
      %v919 = vunpack.c.l.b16 %v368
      %v920 = vunpack.c.l.b16 %v369
      %v921 = vunpack.c.l.b16 %v370
      %v922 = vunpack.c.l.b16 %v371
      %v923 = vunpack.c.l.b16 %v372
      %v924 = vunpack.c.l.b16 %v373
      %v925 = vunpack.c.l.b16 %v374
      %v926 = vunpack.c.l.b16 %v375
      %v927 = vunpack.c.l.b16 %v376
      %v928 = vunpack.c.l.b16 %v377
      %v929 = vunpack.c.l.b16 %v378
      %v930 = vunpack.c.l.b16 %v379
      %v931 = vunpack.c.l.b16 %v380
      %v932 = vunpack.c.l.b16 %v381
      %v933 = vunpack.c.l.b16 %v382
      %v934 = vunpack.c.l.b16 %v383
      %v935 = vunpack.c.l.b16 %v384
      %v936 = vunpack.c.l.b16 %v385
      %v937 = vunpack.c.l.b16 %v386
      %v938 = vunpack.c.l.b16 %v387
      %v939 = vunpack.c.l.b16 %v388
      %v940 = vunpack.c.l.b16 %v389
      %v941 = vunpack.c.l.b16 %v390
      %v942 = vunpack.c.l.b16 %v391
      %v943 = vunpack.c.l.b16 %v392
      %v944 = vunpack.c.l.b16 %v393
      %v945 = vunpack.c.l.b16 %v394
      %v946 = vunpack.c.l.b16 %v395
      %v947 = vunpack.c.l.b16 %v396
      %v948 = vunpack.c.l.b16 %v397
      %v949 = vunpack.c.l.b16 %v398
      %v950 = vunpack.c.l.b16 %v399
      %v951 = vunpack.c.l.b16 %v400
      %v952 = vunpack.c.l.b16 %v401
      %v953 = vunpack.c.l.b16 %v402
      %v954 = vunpack.c.l.b16 %v403
      %v955 = vunpack.c.l.b16 %v404
      %v956 = vunpack.c.l.b16 %v405
      %v957 = vunpack.c.l.b16 %v406
      %v958 = vunpack.c.l.b16 %v407
      %v959 = vunpack.c.l.b16 %v408
      %v960 = vunpack.c.l.b16 %v409
      %v961 = vunpack.c.l.b16 %v410
      %v962 = vunpack.c.l.b16 %v411
      %v963 = vunpack.c.l.b16 %v412
      %v964 = vunpack.c.l.b16 %v413
      %v965 = vunpack.c.l.b16 %v414
      %v966 = vunpack.c.l.b16 %v415
      %v967 = vunpack.c.l.b16 %v416
      %v968 = vpack.c.b16 %v897, %v896
      %v969 = vpack.c.b16 %v899, %v898
      %v970 = vpack.c.b16 %v901, %v900
      %v971 = vpack.c.b16 %v903, %v902
      %v972 = vpack.c.b16 %v905, %v904
      %v973 = vpack.c.b16 %v907, %v906
      %v974 = vpack.c.b16 %v909, %v908
      %v975 = vpack.c.b16 %v911, %v910
      %v976 = vpack.c.b16 %v913, %v912
      %v977 = vpack.c.b16 %v915, %v914
      %v978 = vpack.c.b16 %v917, %v916
      %v979 = vpack.c.b16 %v919, %v918
      %v980 = vpack.c.b16 %v921, %v920
      %v981 = vpack.c.b16 %v923, %v922
      %v982 = vpack.c.b16 %v925, %v924
      %v983 = vpack.c.b16 %v927, %v926
      %v984 = vpack.c.b16 %v929, %v928
      %v985 = vpack.c.b16 %v931, %v930
      %v986 = vpack.c.b16 %v933, %v932
      %v987 = vpack.c.b16 %v935, %v934
      %v988 = vpack.c.b16 %v937, %v936
      %v989 = vpack.c.b16 %v939, %v938
      %v990 = vpack.c.b16 %v941, %v940
      %v991 = vpack.c.b16 %v943, %v942
      %v992 = vpack.c.b16 %v945, %v944
      %v993 = vpack.c.b16 %v947, %v946
      %v994 = vpack.c.b16 %v949, %v948
      %v995 = vpack.c.b16 %v951, %v950
      %v996 = vpack.c.b16 %v953, %v952
      %v997 = vpack.c.b16 %v955, %v954
      %v998 = vpack.c.b16 %v957, %v956
      %v999 = vpack.c.b16 %v959, %v958
      %v1000 = vpack.c.b16 %v961, %v960
      %v1001 = vpack.c.b16 %v963, %v962
      %v1002 = vpack.c.b16 %v965, %v964
      %v1003 = vpack.c.b16 %v967, %v966
      %vm1040 = vcmask 523264
      %v1042 = vsel %vm1040, %v684, 0
      %v1045 = vsel %vm1040, %v689, 0
      %v1048 = vsel %vm1040, %v694, 0
      %v1051 = vsel %vm1040, %v699, 0
      %v1054 = vsel %vm1040, %v704, 0
      %v1057 = vsel %vm1040, %v709, 0
      %v1060 = vsel %vm1040, %v714, 0
      %v1063 = vsel %vm1040, %v719, 0
      %v1066 = vsel %vm1040, %v724, 0
      %v1069 = vsel %vm1040, %v729, 0
      %v1072 = vsel %vm1040, %v734, 0
      %v1075 = vsel %vm1040, %v739, 0
      %v1078 = vsel %vm1040, %v744, 0
      %v1081 = vsel %vm1040, %v749, 0
      %v1084 = vsel %vm1040, %v754, 0
      %v1087 = vsel %vm1040, %v759, 0
      %1089 = vmatprep.subr.bf16.mxu0 0
      %1090 = vmatpush1.bf16.msra.mxu0 %v968
      %1091 = vmatprep.subr.bf16.mxu0 0
      %1092 = vmatpush1.bf16.msra.mxu0 %v969
      %1093 = vmatprep.subr.bf16.mxu0 0
      %1094 = vmatpush1.bf16.msra.mxu0 %v970
      %1095 = vmatprep.subr.bf16.mxu0 0
      %1096 = vmatpush1.bf16.msra.mxu0 %v971
      %1097 = vmatprep.subr.bf16.mxu0 0
      %1098 = vmatpush1.bf16.msra.mxu0 %v972
      %1099 = vmatprep.subr.bf16.mxu0 0
      %1100 = vmatpush1.bf16.msra.mxu0 %v973
      %1101 = vmatprep.subr.bf16.mxu0 0
      %1102 = vmatpush1.bf16.msra.mxu0 %v974
      %1103 = vmatprep.subr.bf16.mxu0 0
      %1104 = vmatpush1.bf16.msra.mxu0 %v975
      %1105 = vmatprep.subr.bf16.mxu0 0
      %1106 = vmatpush1.bf16.msra.mxu0 %v976
      %1107 = vmatprep.subr.bf16.mxu0 0
      %1108 = vmatpush1.bf16.msra.mxu0 %v977
      %1109 = vmatprep.subr.bf16.mxu0 0
      %1110 = vmatpush1.bf16.msra.mxu0 %v978
      %1111 = vmatprep.subr.bf16.mxu0 0
      %1112 = vmatpush1.bf16.msra.mxu0 %v979
      %1113 = vmatprep.subr.bf16.mxu0 0
      %1114 = vmatpush1.bf16.msra.mxu0 %v980
      %1115 = vmatprep.subr.bf16.mxu0 0
      %1116 = vmatpush1.bf16.msra.mxu0 %v981
      %1117 = vmatprep.subr.bf16.mxu0 0
      %1118 = vmatpush1.bf16.msra.mxu0 %v982
      %1119 = vmatprep.subr.bf16.mxu0 0
      %1120 = vmatpush1.bf16.msra.mxu0 %v983
      %1121 = vmatprep.mubr.bf16.mxu0 %v681
      %1122 = vmatmul.mubr.bf16.gmra.mrb[0].mxu0 %v680
      %v1123 = vpop.f32.mrb[0].mxu0
      %v1124 = vadd.f32 %v422, %v1123
      %v1125 = vpop.f32.mrb[0].mxu0
      %v1126 = vpop.f32.mrb[0].mxu0
      %v1127 = vadd.f32 %v422, %v1126
      %v1128 = vpop.f32.mrb[0].mxu0
      %1129 = vmatprep.mubr.bf16.mxu0 %v686
      %1130 = vmatmul.mubr.bf16.gmra.mrb[0].mxu0 %v685
      %v1131 = vpop.f32.mrb[0].mxu0
      %v1132 = vadd.f32 %v422, %v1131
      %v1133 = vpop.f32.mrb[0].mxu0
      %v1134 = vpop.f32.mrb[0].mxu0
      %v1135 = vadd.f32 %v422, %v1134
      %v1136 = vpop.f32.mrb[0].mxu0
      %1137 = vmatprep.mubr.bf16.mxu0 %v691
      %1138 = vmatmul.mubr.bf16.gmra.mrb[0].mxu0 %v690
      %v1139 = vpop.f32.mrb[0].mxu0
      %v1140 = vadd.f32 %v422, %v1139
      %v1141 = vpop.f32.mrb[0].mxu0
      %v1142 = vpop.f32.mrb[0].mxu0
      %v1143 = vadd.f32 %v422, %v1142
      %v1144 = vpop.f32.mrb[0].mxu0
      %1145 = vmatprep.mubr.bf16.mxu0 %v696
      %1146 = vmatmul.mubr.bf16.gmra.mrb[0].mxu0 %v695
      %v1147 = vpop.f32.mrb[0].mxu0
      %v1148 = vadd.f32 %v422, %v1147
      %v1149 = vpop.f32.mrb[0].mxu0
      %v1150 = vpop.f32.mrb[0].mxu0
      %v1151 = vadd.f32 %v422, %v1150
      %v1152 = vpop.f32.mrb[0].mxu0
      %1153 = vmatprep.mubr.bf16.mxu0 %v701
      %1154 = vmatmul.mubr.bf16.gmra.mrb[0].mxu0 %v700
      %v1155 = vpop.f32.mrb[0].mxu0
      %v1156 = vadd.f32 %v422, %v1155
      %v1157 = vpop.f32.mrb[0].mxu0
      %v1158 = vpop.f32.mrb[0].mxu0
      %v1159 = vadd.f32 %v422, %v1158
      %v1160 = vpop.f32.mrb[0].mxu0
      %1161 = vmatprep.mubr.bf16.mxu0 %v706
      %1162 = vmatmul.mubr.bf16.gmra.mrb[0].mxu0 %v705
      %v1163 = vpop.f32.mrb[0].mxu0
      %v1164 = vadd.f32 %v422, %v1163
      %v1165 = vpop.f32.mrb[0].mxu0
      %v1166 = vpop.f32.mrb[0].mxu0
      %v1167 = vadd.f32 %v422, %v1166
      %v1168 = vpop.f32.mrb[0].mxu0
      %1169 = vmatprep.mubr.bf16.mxu0 %v711
      %1170 = vmatmul.mubr.bf16.gmra.mrb[0].mxu0 %v710
      %v1171 = vpop.f32.mrb[0].mxu0
      %v1172 = vadd.f32 %v422, %v1171
      %v1173 = vpop.f32.mrb[0].mxu0
      %v1174 = vpop.f32.mrb[0].mxu0
      %v1175 = vadd.f32 %v422, %v1174
      %v1176 = vpop.f32.mrb[0].mxu0
      %1177 = vmatprep.mubr.bf16.mxu0 %v716
      %1178 = vmatmul.mubr.bf16.gmra.mrb[0].mxu0 %v715
      %v1179 = vpop.f32.mrb[0].mxu0
      %v1180 = vadd.f32 %v422, %v1179
      %v1181 = vpop.f32.mrb[0].mxu0
      %v1182 = vpop.f32.mrb[0].mxu0
      %v1183 = vadd.f32 %v422, %v1182
      %v1184 = vpop.f32.mrb[0].mxu0
      %1185 = vmatprep.mubr.bf16.mxu0 %v721
      %1186 = vmatmul.mubr.bf16.gmra.mrb[0].mxu0 %v720
      %v1187 = vpop.f32.mrb[0].mxu0
      %v1188 = vadd.f32 %v422, %v1187
      %v1189 = vpop.f32.mrb[0].mxu0
      %v1190 = vpop.f32.mrb[0].mxu0
      %v1191 = vadd.f32 %v422, %v1190
      %v1192 = vpop.f32.mrb[0].mxu0
      %1193 = vmatprep.mubr.bf16.mxu0 %v726
      %1194 = vmatmul.mubr.bf16.gmra.mrb[0].mxu0 %v725
      %v1195 = vpop.f32.mrb[0].mxu0
      %v1196 = vadd.f32 %v422, %v1195
      %v1197 = vpop.f32.mrb[0].mxu0
      %v1198 = vpop.f32.mrb[0].mxu0
      %v1199 = vadd.f32 %v422, %v1198
      %v1200 = vpop.f32.mrb[0].mxu0
      %1201 = vmatprep.mubr.bf16.mxu0 %v731
      %1202 = vmatmul.mubr.bf16.gmra.mrb[0].mxu0 %v730
      %v1203 = vpop.f32.mrb[0].mxu0
      %v1204 = vadd.f32 %v422, %v1203
      %v1205 = vpop.f32.mrb[0].mxu0
      %v1206 = vpop.f32.mrb[0].mxu0
      %v1207 = vadd.f32 %v422, %v1206
      %v1208 = vpop.f32.mrb[0].mxu0
      %1209 = vmatprep.mubr.bf16.mxu0 %v736
      %1210 = vmatmul.mubr.bf16.gmra.mrb[0].mxu0 %v735
      %v1211 = vpop.f32.mrb[0].mxu0
      %v1212 = vadd.f32 %v422, %v1211
      %v1213 = vpop.f32.mrb[0].mxu0
      %v1214 = vpop.f32.mrb[0].mxu0
      %v1215 = vadd.f32 %v422, %v1214
      %v1216 = vpop.f32.mrb[0].mxu0
      %1217 = vmatprep.mubr.bf16.mxu0 %v741
      %1218 = vmatmul.mubr.bf16.gmra.mrb[0].mxu0 %v740
      %v1219 = vpop.f32.mrb[0].mxu0
      %v1220 = vadd.f32 %v422, %v1219
      %v1221 = vpop.f32.mrb[0].mxu0
      %v1222 = vpop.f32.mrb[0].mxu0
      %v1223 = vadd.f32 %v422, %v1222
      %v1224 = vpop.f32.mrb[0].mxu0
      %1225 = vmatprep.mubr.bf16.mxu0 %v746
      %1226 = vmatmul.mubr.bf16.gmra.mrb[0].mxu0 %v745
      %v1227 = vpop.f32.mrb[0].mxu0
      %v1228 = vadd.f32 %v422, %v1227
      %v1229 = vpop.f32.mrb[0].mxu0
      %v1230 = vpop.f32.mrb[0].mxu0
      %v1231 = vadd.f32 %v422, %v1230
      %v1232 = vpop.f32.mrb[0].mxu0
      %1233 = vmatprep.mubr.bf16.mxu0 %v751
      %1234 = vmatmul.mubr.bf16.gmra.mrb[0].mxu0 %v750
      %v1235 = vpop.f32.mrb[0].mxu0
      %v1236 = vadd.f32 %v422, %v1235
      %v1237 = vpop.f32.mrb[0].mxu0
      %v1238 = vpop.f32.mrb[0].mxu0
      %v1239 = vadd.f32 %v422, %v1238
      %v1240 = vpop.f32.mrb[0].mxu0
      %1241 = vmatprep.mubr.bf16.mxu0 %v756
      %1242 = vmatmul.mubr.bf16.gmra.mrb[0].mxu0 %v755
      %v1243 = vpop.f32.mrb[0].mxu0
      %v1244 = vadd.f32 %v422, %v1243
      %v1245 = vpop.f32.mrb[0].mxu0
      %v1246 = vpop.f32.mrb[0].mxu0
      %v1247 = vadd.f32 %v422, %v1246
      %v1248 = vpop.f32.mrb[0].mxu0
      %1249 = vdwg.mxu0
      %1250 = vmatprep.subr.bf16.mxu0 0
      %1251 = vmatpush1.bf16.msra.mxu0 %v984
      %1252 = vmatprep.subr.bf16.mxu0 0
      %1253 = vmatpush1.bf16.msra.mxu0 %v985
      %1254 = vmatprep.subr.bf16.mxu0 0
      %1255 = vmatpush1.bf16.msra.mxu0 %v986
      %1256 = vmatprep.subr.bf16.mxu0 0
      %1257 = vmatpush1.bf16.msra.mxu0 %v987
      %1258 = vmatprep.subr.bf16.mxu0 0
      %1259 = vmatpush1.bf16.msra.mxu0 %v988
      %1260 = vmatprep.subr.bf16.mxu0 0
      %1261 = vmatpush1.bf16.msra.mxu0 %v989
      %1262 = vmatprep.subr.bf16.mxu0 0
      %1263 = vmatpush1.bf16.msra.mxu0 %v990
      %1264 = vmatprep.subr.bf16.mxu0 0
      %1265 = vmatpush1.bf16.msra.mxu0 %v991
      %1266 = vmatprep.subr.bf16.mxu0 0
      %1267 = vmatpush1.bf16.msra.mxu0 %v992
      %1268 = vmatprep.subr.bf16.mxu0 0
      %1269 = vmatpush1.bf16.msra.mxu0 %v993
      %1270 = vmatprep.subr.bf16.mxu0 0
      %1271 = vmatpush1.bf16.msra.mxu0 %v994
      %1272 = vmatprep.subr.bf16.mxu0 0
      %1273 = vmatpush1.bf16.msra.mxu0 %v995
      %1274 = vmatprep.subr.bf16.mxu0 0
      %1275 = vmatpush1.bf16.msra.mxu0 %v996
      %1276 = vmatprep.subr.bf16.mxu0 0
      %1277 = vmatpush1.bf16.msra.mxu0 %v997
      %1278 = vmatprep.subr.bf16.mxu0 0
      %1279 = vmatpush1.bf16.msra.mxu0 %v998
      %1280 = vmatprep.subr.bf16.mxu0 0
      %1281 = vmatpush1.bf16.msra.mxu0 %v999
      %1282 = vmatprep.mubr.bf16.mxu0 %v683
      %1283 = vmatmul.mubr.bf16.gmra.mrb[0].mxu0 %v682
      %v1284 = vpop.f32.mrb[0].mxu0
      %v1285 = vadd.f32 %v1124, %v1284
      %v1286 = vpop.f32.mrb[0].mxu0
      %v1287 = vpop.f32.mrb[0].mxu0
      %v1288 = vadd.f32 %v1127, %v1287
      %v1289 = vpop.f32.mrb[0].mxu0
      %1290 = vmatprep.mubr.bf16.mxu0 %v688
      %1291 = vmatmul.mubr.bf16.gmra.mrb[0].mxu0 %v687
      %v1292 = vpop.f32.mrb[0].mxu0
      %v1293 = vadd.f32 %v1132, %v1292
      %v1294 = vpop.f32.mrb[0].mxu0
      %v1295 = vpop.f32.mrb[0].mxu0
      %v1296 = vadd.f32 %v1135, %v1295
      %v1297 = vpop.f32.mrb[0].mxu0
      %1298 = vmatprep.mubr.bf16.mxu0 %v693
      %1299 = vmatmul.mubr.bf16.gmra.mrb[0].mxu0 %v692
      %v1300 = vpop.f32.mrb[0].mxu0
      %v1301 = vadd.f32 %v1140, %v1300
      %v1302 = vpop.f32.mrb[0].mxu0
      %v1303 = vpop.f32.mrb[0].mxu0
      %v1304 = vadd.f32 %v1143, %v1303
      %v1305 = vpop.f32.mrb[0].mxu0
      %1306 = vmatprep.mubr.bf16.mxu0 %v698
      %1307 = vmatmul.mubr.bf16.gmra.mrb[0].mxu0 %v697
      %v1308 = vpop.f32.mrb[0].mxu0
      %v1309 = vadd.f32 %v1148, %v1308
      %v1310 = vpop.f32.mrb[0].mxu0
      %v1311 = vpop.f32.mrb[0].mxu0
      %v1312 = vadd.f32 %v1151, %v1311
      %v1313 = vpop.f32.mrb[0].mxu0
      %1314 = vmatprep.mubr.bf16.mxu0 %v703
      %1315 = vmatmul.mubr.bf16.gmra.mrb[0].mxu0 %v702
      %v1316 = vpop.f32.mrb[0].mxu0
      %v1317 = vadd.f32 %v1156, %v1316
      %v1318 = vpop.f32.mrb[0].mxu0
      %v1319 = vpop.f32.mrb[0].mxu0
      %v1320 = vadd.f32 %v1159, %v1319
      %v1321 = vpop.f32.mrb[0].mxu0
      %1322 = vmatprep.mubr.bf16.mxu0 %v708
      %1323 = vmatmul.mubr.bf16.gmra.mrb[0].mxu0 %v707
      %v1324 = vpop.f32.mrb[0].mxu0
      %v1325 = vadd.f32 %v1164, %v1324
      %v1326 = vpop.f32.mrb[0].mxu0
      %v1327 = vpop.f32.mrb[0].mxu0
      %v1328 = vadd.f32 %v1167, %v1327
      %v1329 = vpop.f32.mrb[0].mxu0
      %1330 = vmatprep.mubr.bf16.mxu0 %v713
      %1331 = vmatmul.mubr.bf16.gmra.mrb[0].mxu0 %v712
      %v1332 = vpop.f32.mrb[0].mxu0
      %v1333 = vadd.f32 %v1172, %v1332
      %v1334 = vpop.f32.mrb[0].mxu0
      %v1335 = vpop.f32.mrb[0].mxu0
      %v1336 = vadd.f32 %v1175, %v1335
      %v1337 = vpop.f32.mrb[0].mxu0
      %1338 = vmatprep.mubr.bf16.mxu0 %v718
      %1339 = vmatmul.mubr.bf16.gmra.mrb[0].mxu0 %v717
      %v1340 = vpop.f32.mrb[0].mxu0
      %v1341 = vadd.f32 %v1180, %v1340
      %v1342 = vpop.f32.mrb[0].mxu0
      %v1343 = vpop.f32.mrb[0].mxu0
      %v1344 = vadd.f32 %v1183, %v1343
      %v1345 = vpop.f32.mrb[0].mxu0
      %1346 = vmatprep.mubr.bf16.mxu0 %v723
      %1347 = vmatmul.mubr.bf16.gmra.mrb[0].mxu0 %v722
      %v1348 = vpop.f32.mrb[0].mxu0
      %v1349 = vadd.f32 %v1188, %v1348
      %v1350 = vpop.f32.mrb[0].mxu0
      %v1351 = vpop.f32.mrb[0].mxu0
      %v1352 = vadd.f32 %v1191, %v1351
      %v1353 = vpop.f32.mrb[0].mxu0
      %1354 = vmatprep.mubr.bf16.mxu0 %v728
      %1355 = vmatmul.mubr.bf16.gmra.mrb[0].mxu0 %v727
      %v1356 = vpop.f32.mrb[0].mxu0
      %v1357 = vadd.f32 %v1196, %v1356
      %v1358 = vpop.f32.mrb[0].mxu0
      %v1359 = vpop.f32.mrb[0].mxu0
      %v1360 = vadd.f32 %v1199, %v1359
      %v1361 = vpop.f32.mrb[0].mxu0
      %1362 = vmatprep.mubr.bf16.mxu0 %v733
      %1363 = vmatmul.mubr.bf16.gmra.mrb[0].mxu0 %v732
      %v1364 = vpop.f32.mrb[0].mxu0
      %v1365 = vadd.f32 %v1204, %v1364
      %v1366 = vpop.f32.mrb[0].mxu0
      %v1367 = vpop.f32.mrb[0].mxu0
      %v1368 = vadd.f32 %v1207, %v1367
      %v1369 = vpop.f32.mrb[0].mxu0
      %1370 = vmatprep.mubr.bf16.mxu0 %v738
      %1371 = vmatmul.mubr.bf16.gmra.mrb[0].mxu0 %v737
      %v1372 = vpop.f32.mrb[0].mxu0
      %v1373 = vadd.f32 %v1212, %v1372
      %v1374 = vpop.f32.mrb[0].mxu0
      %v1375 = vpop.f32.mrb[0].mxu0
      %v1376 = vadd.f32 %v1215, %v1375
      %v1377 = vpop.f32.mrb[0].mxu0
      %1378 = vmatprep.mubr.bf16.mxu0 %v743
      %1379 = vmatmul.mubr.bf16.gmra.mrb[0].mxu0 %v742
      %v1380 = vpop.f32.mrb[0].mxu0
      %v1381 = vadd.f32 %v1220, %v1380
      %v1382 = vpop.f32.mrb[0].mxu0
      %v1383 = vpop.f32.mrb[0].mxu0
      %v1384 = vadd.f32 %v1223, %v1383
      %v1385 = vpop.f32.mrb[0].mxu0
      %1386 = vmatprep.mubr.bf16.mxu0 %v748
      %1387 = vmatmul.mubr.bf16.gmra.mrb[0].mxu0 %v747
      %v1388 = vpop.f32.mrb[0].mxu0
      %v1389 = vadd.f32 %v1228, %v1388
      %v1390 = vpop.f32.mrb[0].mxu0
      %v1391 = vpop.f32.mrb[0].mxu0
      %v1392 = vadd.f32 %v1231, %v1391
      %v1393 = vpop.f32.mrb[0].mxu0
      %1394 = vmatprep.mubr.bf16.mxu0 %v753
      %1395 = vmatmul.mubr.bf16.gmra.mrb[0].mxu0 %v752
      %v1396 = vpop.f32.mrb[0].mxu0
      %v1397 = vadd.f32 %v1236, %v1396
      %v1398 = vpop.f32.mrb[0].mxu0
      %v1399 = vpop.f32.mrb[0].mxu0
      %v1400 = vadd.f32 %v1239, %v1399
      %v1401 = vpop.f32.mrb[0].mxu0
      %1402 = vmatprep.mubr.bf16.mxu0 %v758
      %1403 = vmatmul.mubr.bf16.gmra.mrb[0].mxu0 %v757
      %v1404 = vpop.f32.mrb[0].mxu0
      %v1405 = vadd.f32 %v1244, %v1404
      %v1406 = vpop.f32.mrb[0].mxu0
      %v1407 = vpop.f32.mrb[0].mxu0
      %v1408 = vadd.f32 %v1247, %v1407
      %v1409 = vpop.f32.mrb[0].mxu0
      %1410 = vdwg.mxu0
      %1411 = vmatprep.subr.bf16.mxu0 0
      %1412 = vmatpush1.bf16.msra.mxu0 %v1000
      %1413 = vmatprep.subr.bf16.mxu0 0
      %1414 = vmatpush1.bf16.msra.mxu0 %v1001
      %1415 = vmatprep.subr.bf16.mxu0 0
      %1416 = vmatpush1.bf16.msra.mxu0 %v1002
      %1417 = vmatprep.subr.bf16.mxu0 0
      %1418 = vmatpush1.bf16.msra.mxu0 %v1003
      %1419 = vmatprep.subr.bf16.mxu0 0
      %1420 = vmatpush1.bf16.msra.mxu0 0
      %1421 = vmatprep.subr.bf16.mxu0 0
      %1422 = vmatpush1.bf16.msra.mxu0 0
      %1423 = vmatprep.subr.bf16.mxu0 0
      %1424 = vmatpush1.bf16.msra.mxu0 0
      %1425 = vmatprep.subr.bf16.mxu0 0
      %1426 = vmatpush1.bf16.msra.mxu0 0
      %1427 = vmatprep.subr.bf16.mxu0 0
      %1428 = vmatpush1.bf16.msra.mxu0 0
      %1429 = vmatprep.subr.bf16.mxu0 0
      %1430 = vmatpush1.bf16.msra.mxu0 0
      %1431 = vmatprep.subr.bf16.mxu0 0
      %1432 = vmatpush1.bf16.msra.mxu0 0
      %1433 = vmatprep.subr.bf16.mxu0 0
      %1434 = vmatpush1.bf16.msra.mxu0 0
      %1435 = vmatprep.subr.bf16.mxu0 0
      %1436 = vmatpush1.bf16.msra.mxu0 0
      %1437 = vmatprep.subr.bf16.mxu0 0
      %1438 = vmatpush1.bf16.msra.mxu0 0
      %1439 = vmatprep.subr.bf16.mxu0 0
      %1440 = vmatpush1.bf16.msra.mxu0 0
      %1441 = vmatprep.subr.bf16.mxu0 0
      %1442 = vmatpush1.bf16.msra.mxu0 0
      %1443 = vmatprep.mubr.bf16.mxu0 0
      %1444 = vmatmul.mubr.bf16.gmra.mrb[0].mxu0 %v1042
      %v1445 = vpop.f32.mrb[0].mxu0
      %v1446 = vadd.f32 %v1285, %v1445
      %v1447 = vpop.f32.mrb[0].mxu0
      %v1448 = vpop.f32.mrb[0].mxu0
      %v1449 = vadd.f32 %v1288, %v1448
      %v1450 = vpop.f32.mrb[0].mxu0
      %1451 = vmatprep.mubr.bf16.mxu0 0
      %1452 = vmatmul.mubr.bf16.gmra.mrb[0].mxu0 %v1045
      %v1453 = vpop.f32.mrb[0].mxu0
      %v1454 = vadd.f32 %v1293, %v1453
      %v1455 = vpop.f32.mrb[0].mxu0
      %v1456 = vpop.f32.mrb[0].mxu0
      %v1457 = vadd.f32 %v1296, %v1456
      %v1458 = vpop.f32.mrb[0].mxu0
      %1459 = vmatprep.mubr.bf16.mxu0 0
      %1460 = vmatmul.mubr.bf16.gmra.mrb[0].mxu0 %v1048
      %v1461 = vpop.f32.mrb[0].mxu0
      %v1462 = vadd.f32 %v1301, %v1461
      %v1463 = vpop.f32.mrb[0].mxu0
      %v1464 = vpop.f32.mrb[0].mxu0
      %v1465 = vadd.f32 %v1304, %v1464
      %v1466 = vpop.f32.mrb[0].mxu0
      %1467 = vmatprep.mubr.bf16.mxu0 0
      %1468 = vmatmul.mubr.bf16.gmra.mrb[0].mxu0 %v1051
      %v1469 = vpop.f32.mrb[0].mxu0
      %v1470 = vadd.f32 %v1309, %v1469
      %v1471 = vpop.f32.mrb[0].mxu0
      %v1472 = vpop.f32.mrb[0].mxu0
      %v1473 = vadd.f32 %v1312, %v1472
      %v1474 = vpop.f32.mrb[0].mxu0
      %1475 = vmatprep.mubr.bf16.mxu0 0
      %1476 = vmatmul.mubr.bf16.gmra.mrb[0].mxu0 %v1054
      %v1477 = vpop.f32.mrb[0].mxu0
      %v1478 = vadd.f32 %v1317, %v1477
      %v1479 = vpop.f32.mrb[0].mxu0
      %v1480 = vpop.f32.mrb[0].mxu0
      %v1481 = vadd.f32 %v1320, %v1480
      %v1482 = vpop.f32.mrb[0].mxu0
      %1483 = vmatprep.mubr.bf16.mxu0 0
      %1484 = vmatmul.mubr.bf16.gmra.mrb[0].mxu0 %v1057
      %v1485 = vpop.f32.mrb[0].mxu0
      %v1486 = vadd.f32 %v1325, %v1485
      %v1487 = vpop.f32.mrb[0].mxu0
      %v1488 = vpop.f32.mrb[0].mxu0
      %v1489 = vadd.f32 %v1328, %v1488
      %v1490 = vpop.f32.mrb[0].mxu0
      %1491 = vmatprep.mubr.bf16.mxu0 0
      %1492 = vmatmul.mubr.bf16.gmra.mrb[0].mxu0 %v1060
      %v1493 = vpop.f32.mrb[0].mxu0
      %v1494 = vadd.f32 %v1333, %v1493
      %v1495 = vpop.f32.mrb[0].mxu0
      %v1496 = vpop.f32.mrb[0].mxu0
      %v1497 = vadd.f32 %v1336, %v1496
      %v1498 = vpop.f32.mrb[0].mxu0
      %1499 = vmatprep.mubr.bf16.mxu0 0
      %1500 = vmatmul.mubr.bf16.gmra.mrb[0].mxu0 %v1063
      %v1501 = vpop.f32.mrb[0].mxu0
      %v1502 = vadd.f32 %v1341, %v1501
      %v1503 = vpop.f32.mrb[0].mxu0
      %v1504 = vpop.f32.mrb[0].mxu0
      %v1505 = vadd.f32 %v1344, %v1504
      %v1506 = vpop.f32.mrb[0].mxu0
      %1507 = vmatprep.mubr.bf16.mxu0 0
      %1508 = vmatmul.mubr.bf16.gmra.mrb[0].mxu0 %v1066
      %v1509 = vpop.f32.mrb[0].mxu0
      %v1510 = vadd.f32 %v1349, %v1509
      %v1511 = vpop.f32.mrb[0].mxu0
      %v1512 = vpop.f32.mrb[0].mxu0
      %v1513 = vadd.f32 %v1352, %v1512
      %v1514 = vpop.f32.mrb[0].mxu0
      %1515 = vmatprep.mubr.bf16.mxu0 0
      %1516 = vmatmul.mubr.bf16.gmra.mrb[0].mxu0 %v1069
      %v1517 = vpop.f32.mrb[0].mxu0
      %v1518 = vadd.f32 %v1357, %v1517
      %v1519 = vpop.f32.mrb[0].mxu0
      %v1520 = vpop.f32.mrb[0].mxu0
      %v1521 = vadd.f32 %v1360, %v1520
      %v1522 = vpop.f32.mrb[0].mxu0
      %1523 = vmatprep.mubr.bf16.mxu0 0
      %1524 = vmatmul.mubr.bf16.gmra.mrb[0].mxu0 %v1072
      %v1525 = vpop.f32.mrb[0].mxu0
      %v1526 = vadd.f32 %v1365, %v1525
      %v1527 = vpop.f32.mrb[0].mxu0
      %v1528 = vpop.f32.mrb[0].mxu0
      %v1529 = vadd.f32 %v1368, %v1528
      %v1530 = vpop.f32.mrb[0].mxu0
      %1531 = vmatprep.mubr.bf16.mxu0 0
      %1532 = vmatmul.mubr.bf16.gmra.mrb[0].mxu0 %v1075
      %v1533 = vpop.f32.mrb[0].mxu0
      %v1534 = vadd.f32 %v1373, %v1533
      %v1535 = vpop.f32.mrb[0].mxu0
      %v1536 = vpop.f32.mrb[0].mxu0
      %v1537 = vadd.f32 %v1376, %v1536
      %v1538 = vpop.f32.mrb[0].mxu0
      %1539 = vmatprep.mubr.bf16.mxu0 0
      %1540 = vmatmul.mubr.bf16.gmra.mrb[0].mxu0 %v1078
      %v1541 = vpop.f32.mrb[0].mxu0
      %v1542 = vadd.f32 %v1381, %v1541
      %v1543 = vpop.f32.mrb[0].mxu0
      %v1544 = vpop.f32.mrb[0].mxu0
      %v1545 = vadd.f32 %v1384, %v1544
      %v1546 = vpop.f32.mrb[0].mxu0
      %1547 = vmatprep.mubr.bf16.mxu0 0
      %1548 = vmatmul.mubr.bf16.gmra.mrb[0].mxu0 %v1081
      %v1549 = vpop.f32.mrb[0].mxu0
      %v1550 = vadd.f32 %v1389, %v1549
      %v1551 = vpop.f32.mrb[0].mxu0
      %v1552 = vpop.f32.mrb[0].mxu0
      %v1553 = vadd.f32 %v1392, %v1552
      %v1554 = vpop.f32.mrb[0].mxu0
      %1555 = vmatprep.mubr.bf16.mxu0 0
      %1556 = vmatmul.mubr.bf16.gmra.mrb[0].mxu0 %v1084
      %v1557 = vpop.f32.mrb[0].mxu0
      %v1558 = vadd.f32 %v1397, %v1557
      %v1559 = vpop.f32.mrb[0].mxu0
      %v1560 = vpop.f32.mrb[0].mxu0
      %v1561 = vadd.f32 %v1400, %v1560
      %v1562 = vpop.f32.mrb[0].mxu0
      %1563 = vmatprep.mubr.bf16.mxu0 0
      %1564 = vmatmul.mubr.bf16.gmra.mrb[0].mxu0 %v1087
      %v1565 = vpop.f32.mrb[0].mxu0
      %v1566 = vadd.f32 %v1405, %v1565
      %v1567 = vpop.f32.mrb[0].mxu0
      %v1568 = vpop.f32.mrb[0].mxu0
      %v1569 = vadd.f32 %v1408, %v1568
      %v1570 = vpop.f32.mrb[0].mxu0
      %1571 = vdwg.mxu0
      %vm1572 = vcmp.ge.f32.partialorder %v1446, 0.0
      %vm1573 = vcmp.ge.f32.partialorder %v1449, 0.0
      %vm1574 = vcmp.ge.f32.partialorder %v1454, 0.0
      %vm1575 = vcmp.ge.f32.partialorder %v1457, 0.0
      %vm1576 = vcmp.ge.f32.partialorder %v1462, 0.0
      %vm1577 = vcmp.ge.f32.partialorder %v1465, 0.0
      %vm1578 = vcmp.ge.f32.partialorder %v1470, 0.0
      %vm1579 = vcmp.ge.f32.partialorder %v1473, 0.0
      %vm1580 = vcmp.ge.f32.partialorder %v1478, 0.0
      %vm1581 = vcmp.ge.f32.partialorder %v1481, 0.0
      %vm1582 = vcmp.ge.f32.partialorder %v1486, 0.0
      %vm1583 = vcmp.ge.f32.partialorder %v1489, 0.0
      %vm1584 = vcmp.ge.f32.partialorder %v1494, 0.0
      %vm1585 = vcmp.ge.f32.partialorder %v1497, 0.0
      %vm1586 = vcmp.ge.f32.partialorder %v1502, 0.0
      %vm1587 = vcmp.ge.f32.partialorder %v1505, 0.0
      %vm1588 = vcmp.ge.f32.partialorder %v1510, 0.0
      %vm1589 = vcmp.ge.f32.partialorder %v1513, 0.0
      %vm1590 = vcmp.ge.f32.partialorder %v1518, 0.0
      %vm1591 = vcmp.ge.f32.partialorder %v1521, 0.0
      %vm1592 = vcmp.ge.f32.partialorder %v1526, 0.0
      %vm1593 = vcmp.ge.f32.partialorder %v1529, 0.0
      %vm1594 = vcmp.ge.f32.partialorder %v1534, 0.0
      %vm1595 = vcmp.ge.f32.partialorder %v1537, 0.0
      %vm1596 = vcmp.ge.f32.partialorder %v1542, 0.0
      %vm1597 = vcmp.ge.f32.partialorder %v1545, 0.0
      %vm1598 = vcmp.ge.f32.partialorder %v1550, 0.0
      %vm1599 = vcmp.ge.f32.partialorder %v1553, 0.0
      %vm1600 = vcmp.ge.f32.partialorder %v1558, 0.0
      %vm1601 = vcmp.ge.f32.partialorder %v1561, 0.0
      %vm1602 = vcmp.ge.f32.partialorder %v1566, 0.0
      %vm1603 = vcmp.ge.f32.partialorder %v1569, 0.0
      %v1604 = vmul.f32 %v1446, 0.005
      %v1605 = vmul.f32 %v1449, 0.005
      %v1606 = vmul.f32 %v1454, 0.005
      %v1607 = vmul.f32 %v1457, 0.005
      %v1608 = vmul.f32 %v1462, 0.005
      %v1609 = vmul.f32 %v1465, 0.005
      %v1610 = vmul.f32 %v1470, 0.005
      %v1611 = vmul.f32 %v1473, 0.005
      %v1612 = vmul.f32 %v1478, 0.005
      %v1613 = vmul.f32 %v1481, 0.005
      %v1614 = vmul.f32 %v1486, 0.005
      %v1615 = vmul.f32 %v1489, 0.005
      %v1616 = vmul.f32 %v1494, 0.005
      %v1617 = vmul.f32 %v1497, 0.005
      %v1618 = vmul.f32 %v1502, 0.005
      %v1619 = vmul.f32 %v1505, 0.005
      %v1620 = vmul.f32 %v1510, 0.005
      %v1621 = vmul.f32 %v1513, 0.005
      %v1622 = vmul.f32 %v1518, 0.005
      %v1623 = vmul.f32 %v1521, 0.005
      %v1624 = vmul.f32 %v1526, 0.005
      %v1625 = vmul.f32 %v1529, 0.005
      %v1626 = vmul.f32 %v1534, 0.005
      %v1627 = vmul.f32 %v1537, 0.005
      %v1628 = vmul.f32 %v1542, 0.005
      %v1629 = vmul.f32 %v1545, 0.005
      %v1630 = vmul.f32 %v1550, 0.005
      %v1631 = vmul.f32 %v1553, 0.005
      %v1632 = vmul.f32 %v1558, 0.005
      %v1633 = vmul.f32 %v1561, 0.005
      %v1634 = vmul.f32 %v1566, 0.005
      %v1635 = vmul.f32 %v1569, 0.005
      %v1636 = vsel %vm1572, %v1446, %v1604
      %v1637 = vsel %vm1573, %v1449, %v1605
      %v1638 = vsel %vm1574, %v1454, %v1606
      %v1639 = vsel %vm1575, %v1457, %v1607
      %v1640 = vsel %vm1576, %v1462, %v1608
      %v1641 = vsel %vm1577, %v1465, %v1609
      %v1642 = vsel %vm1578, %v1470, %v1610
      %v1643 = vsel %vm1579, %v1473, %v1611
      %v1644 = vsel %vm1580, %v1478, %v1612
      %v1645 = vsel %vm1581, %v1481, %v1613
      %v1646 = vsel %vm1582, %v1486, %v1614
      %v1647 = vsel %vm1583, %v1489, %v1615
      %v1648 = vsel %vm1584, %v1494, %v1616
      %v1649 = vsel %vm1585, %v1497, %v1617
      %v1650 = vsel %vm1586, %v1502, %v1618
      %v1651 = vsel %vm1587, %v1505, %v1619
      %v1652 = vsel %vm1588, %v1510, %v1620
      %v1653 = vsel %vm1589, %v1513, %v1621
      %v1654 = vsel %vm1590, %v1518, %v1622
      %v1655 = vsel %vm1591, %v1521, %v1623
      %v1656 = vsel %vm1592, %v1526, %v1624
      %v1657 = vsel %vm1593, %v1529, %v1625
      %v1658 = vsel %vm1594, %v1534, %v1626
      %v1659 = vsel %vm1595, %v1537, %v1627
      %v1660 = vsel %vm1596, %v1542, %v1628
      %v1661 = vsel %vm1597, %v1545, %v1629
      %v1662 = vsel %vm1598, %v1550, %v1630
      %v1663 = vsel %vm1599, %v1553, %v1631
      %v1664 = vsel %vm1600, %v1558, %v1632
      %v1665 = vsel %vm1601, %v1561, %v1633
      %v1666 = vsel %vm1602, %v1566, %v1634
      %v1667 = vsel %vm1603, %v1569, %v1635
      %vm1668 = vcmask 261120
      %1669 = vst.msk [vmem:[%s240] sm:$0xff] %vm1668, %v1636
      %1670 = vst.msk [vmem:[%s240 + $0x8] sm:$0xff] %vm1668, %v1637
      %1671 = vst.msk [vmem:[%s240 + $0x10] sm:$0xff] %vm1668, %v1638
      %1672 = vst.msk [vmem:[%s240 + $0x18] sm:$0xff] %vm1668, %v1639
      %1673 = vst.msk [vmem:[%s240 + $0x20] sm:$0xff] %vm1668, %v1640
      %1674 = vst.msk [vmem:[%s240 + $0x28] sm:$0xff] %vm1668, %v1641
      %1675 = vst.msk [vmem:[%s240 + $0x30] sm:$0xff] %vm1668, %v1642
      %1676 = vst.msk [vmem:[%s240 + $0x38] sm:$0xff] %vm1668, %v1643
      %1677 = vst.msk [vmem:[%s240 + $0x40] sm:$0xff] %vm1668, %v1644
      %1678 = vst.msk [vmem:[%s240 + $0x48] sm:$0xff] %vm1668, %v1645
      %1679 = vst.msk [vmem:[%s240 + $0x50] sm:$0xff] %vm1668, %v1646
      %1680 = vst.msk [vmem:[%s240 + $0x58] sm:$0xff] %vm1668, %v1647
      %1681 = vst.msk [vmem:[%s240 + $0x60] sm:$0xff] %vm1668, %v1648
      %1682 = vst.msk [vmem:[%s240 + $0x68] sm:$0xff] %vm1668, %v1649
      %1683 = vst.msk [vmem:[%s240 + $0x70] sm:$0xff] %vm1668, %v1650
      %1684 = vst.msk [vmem:[%s240 + $0x78] sm:$0xff] %vm1668, %v1651
      %1685 = vst.msk [vmem:[%s240 + $0x80] sm:$0xff] %vm1668, %v1652
      %1686 = vst.msk [vmem:[%s240 + $0x88] sm:$0xff] %vm1668, %v1653
      %1687 = vst.msk [vmem:[%s240 + $0x90] sm:$0xff] %vm1668, %v1654
      %1688 = vst.msk [vmem:[%s240 + $0x98] sm:$0xff] %vm1668, %v1655
      %1689 = vst.msk [vmem:[%s240 + $0xa0] sm:$0xff] %vm1668, %v1656
      %1690 = vst.msk [vmem:[%s240 + $0xa8] sm:$0xff] %vm1668, %v1657
      %1691 = vst.msk [vmem:[%s240 + $0xb0] sm:$0xff] %vm1668, %v1658
      %1692 = vst.msk [vmem:[%s240 + $0xb8] sm:$0xff] %vm1668, %v1659
      %1693 = vst.msk [vmem:[%s240 + $0xc0] sm:$0xff] %vm1668, %v1660
      %1694 = vst.msk [vmem:[%s240 + $0xc8] sm:$0xff] %vm1668, %v1661
      %1695 = vst.msk [vmem:[%s240 + $0xd0] sm:$0xff] %vm1668, %v1662
      %1696 = vst.msk [vmem:[%s240 + $0xd8] sm:$0xff] %vm1668, %v1663
      %1697 = vst.msk [vmem:[%s240 + $0xe0] sm:$0xff] %vm1668, %v1664
      %1698 = vst.msk [vmem:[%s240 + $0xe8] sm:$0xff] %vm1668, %v1665
      %1699 = vst.msk [vmem:[%s240 + $0xf0] sm:$0xff] %vm1668, %v1666
      %1700 = vst.msk [vmem:[%s240 + $0xf8] sm:$0xff] %vm1668, %v1667
      %v1701 = vsel %vm1668, %v1636, 0.0
      %v1702 = vsel %vm1668, %v1637, 0.0
      %v1703 = vadd.f32 %v1701, %v1702
      %v1704 = vsel %vm1668, %v1638, 0.0
      %v1705 = vadd.f32 %v1703, %v1704
      %v1706 = vsel %vm1668, %v1639, 0.0
      %v1707 = vadd.f32 %v1705, %v1706
      %v1708 = vsel %vm1668, %v1640, 0.0
      %v1709 = vadd.f32 %v1707, %v1708
      %v1710 = vsel %vm1668, %v1641, 0.0
      %v1711 = vadd.f32 %v1709, %v1710
      %v1712 = vsel %vm1668, %v1642, 0.0
      %v1713 = vadd.f32 %v1711, %v1712
      %v1714 = vsel %vm1668, %v1643, 0.0
      %v1715 = vadd.f32 %v1713, %v1714
      %v1716 = vsel %vm1668, %v1644, 0.0
      %v1717 = vadd.f32 %v1715, %v1716
      %v1718 = vsel %vm1668, %v1645, 0.0
      %v1719 = vadd.f32 %v1717, %v1718
      %v1720 = vsel %vm1668, %v1646, 0.0
      %v1721 = vadd.f32 %v1719, %v1720
      %v1722 = vsel %vm1668, %v1647, 0.0
      %v1723 = vadd.f32 %v1721, %v1722
      %v1724 = vsel %vm1668, %v1648, 0.0
      %v1725 = vadd.f32 %v1723, %v1724
      %v1726 = vsel %vm1668, %v1649, 0.0
      %v1727 = vadd.f32 %v1725, %v1726
      %v1728 = vsel %vm1668, %v1650, 0.0
      %v1729 = vadd.f32 %v1727, %v1728
      %v1730 = vsel %vm1668, %v1651, 0.0
      %v1731 = vadd.f32 %v1729, %v1730
      %v1732 = vsel %vm1668, %v1652, 0.0
      %v1733 = vadd.f32 %v1731, %v1732
      %v1734 = vsel %vm1668, %v1653, 0.0
      %v1735 = vadd.f32 %v1733, %v1734
      %v1736 = vsel %vm1668, %v1654, 0.0
      %v1737 = vadd.f32 %v1735, %v1736
      %v1738 = vsel %vm1668, %v1655, 0.0
      %v1739 = vadd.f32 %v1737, %v1738
      %v1740 = vsel %vm1668, %v1656, 0.0
      %v1741 = vadd.f32 %v1739, %v1740
      %v1742 = vsel %vm1668, %v1657, 0.0
      %v1743 = vadd.f32 %v1741, %v1742
      %v1744 = vsel %vm1668, %v1658, 0.0
      %v1745 = vadd.f32 %v1743, %v1744
      %v1746 = vsel %vm1668, %v1659, 0.0
      %v1747 = vadd.f32 %v1745, %v1746
      %v1748 = vsel %vm1668, %v1660, 0.0
      %v1749 = vadd.f32 %v1747, %v1748
      %v1750 = vsel %vm1668, %v1661, 0.0
      %v1751 = vadd.f32 %v1749, %v1750
      %v1752 = vsel %vm1668, %v1662, 0.0
      %v1753 = vadd.f32 %v1751, %v1752
      %v1754 = vsel %vm1668, %v1663, 0.0
      %v1755 = vadd.f32 %v1753, %v1754
      %v1756 = vsel %vm1668, %v1664, 0.0
      %v1757 = vadd.f32 %v1755, %v1756
      %v1758 = vsel %vm1668, %v1665, 0.0
      %v1759 = vadd.f32 %v1757, %v1758
      %v1760 = vsel %vm1668, %v1666, 0.0
      %v1761 = vadd.f32 %v1759, %v1760
      %v1762 = vsel %vm1668, %v1667, 0.0
      %v1763 = vadd.f32 %v1761, %v1762
      %v1764 = vrot.slane %v1763, 4
      %v1765 = vadd.f32 %v1763, %v1764
      %v1766 = vrot.slane %v1765, 2
      %v1767 = vadd.f32 %v1765, %v1766
      %v1768 = vrot.slane %v1767, 1
      %v1769 = vadd.f32 %v1767, %v1768
      %vm1770 = vcmask 253952
      %1771 = vst.msk [vmem:[%s244] sm:$0x1] %vm1770, %v1769
      %v1772 = vmul.f32 %v1636, %v1636
      %v1773 = vmul.f32 %v1637, %v1637
      %v1774 = vmul.f32 %v1638, %v1638
      %v1775 = vmul.f32 %v1639, %v1639
      %v1776 = vmul.f32 %v1640, %v1640
      %v1777 = vmul.f32 %v1641, %v1641
      %v1778 = vmul.f32 %v1642, %v1642
      %v1779 = vmul.f32 %v1643, %v1643
      %v1780 = vmul.f32 %v1644, %v1644
      %v1781 = vmul.f32 %v1645, %v1645
      %v1782 = vmul.f32 %v1646, %v1646
      %v1783 = vmul.f32 %v1647, %v1647
      %v1784 = vmul.f32 %v1648, %v1648
      %v1785 = vmul.f32 %v1649, %v1649
      %v1786 = vmul.f32 %v1650, %v1650
      %v1787 = vmul.f32 %v1651, %v1651
      %v1788 = vmul.f32 %v1652, %v1652
      %v1789 = vmul.f32 %v1653, %v1653
      %v1790 = vmul.f32 %v1654, %v1654
      %v1791 = vmul.f32 %v1655, %v1655
      %v1792 = vmul.f32 %v1656, %v1656
      %v1793 = vmul.f32 %v1657, %v1657
      %v1794 = vmul.f32 %v1658, %v1658
      %v1795 = vmul.f32 %v1659, %v1659
      %v1796 = vmul.f32 %v1660, %v1660
      %v1797 = vmul.f32 %v1661, %v1661
      %v1798 = vmul.f32 %v1662, %v1662
      %v1799 = vmul.f32 %v1663, %v1663
      %v1800 = vmul.f32 %v1664, %v1664
      %v1801 = vmul.f32 %v1665, %v1665
      %v1802 = vmul.f32 %v1666, %v1666
      %v1803 = vmul.f32 %v1667, %v1667
      %v1804 = vsel %vm1668, %v1772, 0.0
      %v1805 = vsel %vm1668, %v1773, 0.0
      %v1806 = vadd.f32 %v1804, %v1805
      %v1807 = vsel %vm1668, %v1774, 0.0
      %v1808 = vadd.f32 %v1806, %v1807
      %v1809 = vsel %vm1668, %v1775, 0.0
      %v1810 = vadd.f32 %v1808, %v1809
      %v1811 = vsel %vm1668, %v1776, 0.0
      %v1812 = vadd.f32 %v1810, %v1811
      %v1813 = vsel %vm1668, %v1777, 0.0
      %v1814 = vadd.f32 %v1812, %v1813
      %v1815 = vsel %vm1668, %v1778, 0.0
      %v1816 = vadd.f32 %v1814, %v1815
      %v1817 = vsel %vm1668, %v1779, 0.0
      %v1818 = vadd.f32 %v1816, %v1817
      %v1819 = vsel %vm1668, %v1780, 0.0
      %v1820 = vadd.f32 %v1818, %v1819
      %v1821 = vsel %vm1668, %v1781, 0.0
      %v1822 = vadd.f32 %v1820, %v1821
      %v1823 = vsel %vm1668, %v1782, 0.0
      %v1824 = vadd.f32 %v1822, %v1823
      %v1825 = vsel %vm1668, %v1783, 0.0
      %v1826 = vadd.f32 %v1824, %v1825
      %v1827 = vsel %vm1668, %v1784, 0.0
      %v1828 = vadd.f32 %v1826, %v1827
      %v1829 = vsel %vm1668, %v1785, 0.0
      %v1830 = vadd.f32 %v1828, %v1829
      %v1831 = vsel %vm1668, %v1786, 0.0
      %v1832 = vadd.f32 %v1830, %v1831
      %v1833 = vsel %vm1668, %v1787, 0.0
      %v1834 = vadd.f32 %v1832, %v1833
      %v1835 = vsel %vm1668, %v1788, 0.0
      %v1836 = vadd.f32 %v1834, %v1835
      %v1837 = vsel %vm1668, %v1789, 0.0
      %v1838 = vadd.f32 %v1836, %v1837
      %v1839 = vsel %vm1668, %v1790, 0.0
      %v1840 = vadd.f32 %v1838, %v1839
      %v1841 = vsel %vm1668, %v1791, 0.0
      %v1842 = vadd.f32 %v1840, %v1841
      %v1843 = vsel %vm1668, %v1792, 0.0
      %v1844 = vadd.f32 %v1842, %v1843
      %v1845 = vsel %vm1668, %v1793, 0.0
      %v1846 = vadd.f32 %v1844, %v1845
      %v1847 = vsel %vm1668, %v1794, 0.0
      %v1848 = vadd.f32 %v1846, %v1847
      %v1849 = vsel %vm1668, %v1795, 0.0
      %v1850 = vadd.f32 %v1848, %v1849
      %v1851 = vsel %vm1668, %v1796, 0.0
      %v1852 = vadd.f32 %v1850, %v1851
      %v1853 = vsel %vm1668, %v1797, 0.0
      %v1854 = vadd.f32 %v1852, %v1853
      %v1855 = vsel %vm1668, %v1798, 0.0
      %v1856 = vadd.f32 %v1854, %v1855
      %v1857 = vsel %vm1668, %v1799, 0.0
      %v1858 = vadd.f32 %v1856, %v1857
      %v1859 = vsel %vm1668, %v1800, 0.0
      %v1860 = vadd.f32 %v1858, %v1859
      %v1861 = vsel %vm1668, %v1801, 0.0
      %v1862 = vadd.f32 %v1860, %v1861
      %v1863 = vsel %vm1668, %v1802, 0.0
      %v1864 = vadd.f32 %v1862, %v1863
      %v1865 = vsel %vm1668, %v1803, 0.0
      %v1866 = vadd.f32 %v1864, %v1865
      %v1867 = vrot.slane %v1866, 4
      %v1868 = vadd.f32 %v1866, %v1867
      %v1869 = vrot.slane %v1868, 2
      %v1870 = vadd.f32 %v1868, %v1869
      %v1871 = vrot.slane %v1870, 1
      %v1872 = vadd.f32 %v1870, %v1871
      %1873 = vst.msk [vmem:[%s247] sm:$0x1] %vm1770, %v1872
      %s1874 = smul.u32 32, %s17
      %p1875 = scmp.lt.s32.totalorder %s1874, 63
      %s1876 = scalar_select %p1875, %s1874, 63
      %s1877 = smul.addr %s1876, 8
      %s1878 = scalar_lea.vmem %s3, %s1877
      %p1879 = scmp.lt.s32.totalorder %s17, 1
      %s1880 = scalar_select %p1879, %s17, 1
      %s1881 = scalar_lea.vmem %s4, %s1880
      %p1882 = scmp.lt.s32.totalorder %s17, 1
      %s1883 = scalar_select %p1882, %s17, 1
      %s1884 = scalar_lea.vmem %s5, %s1883
      // Predicated region
      $region33: #{bifusion_forward.14} parent=31 // pred_check
        %p1885 = pneg %p103
      $region34: #{bifusion_forward.14} parent=31 // pred_check_branch
        %1887 = sbr.rel (%p1885) target = $region36
      $region35: #{bifusion_forward.14} parent=31 // pred_region
        %s1888 = smul.u32 32, %s17
      $region36: #{bifusion_forward.14} parent=31 // pred_fallthru
        _
      // Predicated region
      $region37: #{bifusion_forward.14} parent=31 // pred_check
        %p1889 = pneg %p129
      $region38: #{bifusion_forward.14} parent=31 // pred_check_branch
        %1891 = sbr.rel (%p1889) target = $region40
      $region39: #{bifusion_forward.14} parent=31 // pred_region
        _
      $region40: #{bifusion_forward.14} parent=31 // pred_fallthru
        _
      // Predicated region
      $region41: #{bifusion_forward.14} parent=31 // pred_check
        %p1892 = pneg %p155
      $region42: #{bifusion_forward.14} parent=31 // pred_check_branch
        %1894 = sbr.rel (%p1892) target = $region44
      $region43: #{bifusion_forward.14} parent=31 // pred_region
        _
      $region44: #{bifusion_forward.14} parent=31 // pred_fallthru
        _
    $region32: #{bifusion_forward.14} parent=5 // pred_fallthru
      _
    %p1895 = scmp.le.s32.totalorder 2, %s12
    // Predicated region
    $region45: #{bifusion_forward.14} parent=5 // pred_check
      %p1896 = pneg %p1895
    $region46: #{bifusion_forward.14} parent=5 // pred_check_branch
      %1898 = sbr.rel (%p1896) target = $region48
    $region47: #{bifusion_forward.14} parent=5 // pred_region
      %s1899 = ssub.s32 %s12, 2
      // Predicated region
      $region49: #{bifusion_forward.14} parent=47 // pred_check
        %p1900 = pneg %p109
      $region50: #{bifusion_forward.14} parent=47 // pred_check_branch
        %1902 = sbr.rel (%p1900) target = $region52
      $region51: #{bifusion_forward.14} parent=47 // pred_region
        %s1903 = smul.u32 32, %s18
        %p1904 = scmp.lt.s32.totalorder %s1903, 63
        %s1905 = scalar_select %p1904, %s1903, 63
        %s1906 = smul.addr %s1905, 8
        %s1907 = scalar_lea.vmem %s3, %s1906
      $region52: #{bifusion_forward.14} parent=47 // pred_fallthru
        _
      // Predicated region
      $region53: #{bifusion_forward.14} parent=47 // pred_check
        %p1908 = pneg %p135
      $region54: #{bifusion_forward.14} parent=47 // pred_check_branch
        %1910 = sbr.rel (%p1908) target = $region56
      $region55: #{bifusion_forward.14} parent=47 // pred_region
        %p1911 = scmp.lt.s32.totalorder %s18, 1
        %s1912 = scalar_select %p1911, %s18, 1
        %s1913 = scalar_lea.vmem %s4, %s1912
      $region56: #{bifusion_forward.14} parent=47 // pred_fallthru
        _
      // Predicated region
      $region57: #{bifusion_forward.14} parent=47 // pred_check
        %p1914 = pneg %p161
      $region58: #{bifusion_forward.14} parent=47 // pred_check_branch
        %1916 = sbr.rel (%p1914) target = $region60
      $region59: #{bifusion_forward.14} parent=47 // pred_region
        %p1917 = scmp.lt.s32.totalorder %s18, 1
        %s1918 = scalar_select %p1917, %s18, 1
        %s1919 = scalar_lea.vmem %s5, %s1918
      $region60: #{bifusion_forward.14} parent=47 // pred_fallthru
        _
    $region48: #{bifusion_forward.14} parent=5 // pred_fallthru
      _
  $region6: #{bifusion_forward.14} parent=0 // loop_footer
    %s16 = sadd.s32 1, %s12
  $region7: #{bifusion_forward.14} parent=0 // loop_footer_branch
    %11 = sbr.rel target = $region3
  $region8: #{bifusion_forward.14} parent=0 // loop_exit
    _

// kernel: bifusion_forward.17
$region0: #{bifusion_forward.17}
  #allocation0 [shape = 'u32[]', space=smem, size = 0x4, offset = 0x4, fixed_abs, tag = 'smem constant byte address 0x4 - core index']
  #allocation1 [shape = 'u32[144,128]{1,0:T(1,128)}', space=vmem, size = 0x12000, scoped, tag = 'internal scratch']
  %s0 = inlined_call_operand.vmem [shape: f32[512,160], index: 0, kind: input, shape index: {}]
  %s1 = inlined_call_operand.vmem [shape: f32[2,160], index: 1, kind: input, shape index: {}]
  %s2 = inlined_call_operand.vmem [shape: f32[512,160], index: 2, kind: output, shape index: {}]
  %s3 = sld [smem:[#allocation0]]
  $region41: #{bifusion_forward.17} parent=0
    _
  %s5 = ssub.s32 1, %s3
  %s6 = scalar_select 0, %s5, %s3
  loop: start=0, step=1, limit=4
  $region2: #{bifusion_forward.17} parent=0 // loop_pre_header
    _
  $region3: #{bifusion_forward.17} parent=0 // loop_header
    %s8 = sphi 0, %s12
    %p9 = scmp.ge.s32.totalorder %s8, 4
    %s18 = sphi 0, %s20
    %s21 = sphi 0, %s18
    %s22 = sphi 0, %s21
    %s38 = sphi 0, %s22
    %s42 = sphi 0, %s42
    %s44 = sphi 0, %s42
    %s45 = sphi 0, %s44
    %s59 = sphi 0, %s45
    %s65 = sphi 0, %s67
    %s68 = sphi 0, %s65
    %s69 = sphi 0, %s68
    %s85 = sphi 0, %s69
  $region4: #{bifusion_forward.17} parent=0 // loop_header_branch
    %11 = sbr.rel (%p9) target = $region8
  $region5: #{bifusion_forward.17} parent=0 // loop_body
    %s13 = ssub.s32 %s8, 1
    %s14 = ssub.s32 %s8, 2
    %s15 = sadd.s32 %s8, 1
    %s16 = ssub.s32 %s8, %s15
    %p17 = scmp.eq.s32.totalorder %s16, 0
    %s19 = sadd.s32 %s18, 1
    %s20 = scalar_select %p17, %s18, %s19
    %p23 = pneg %p17
    %p24 = scmp.eq.s32.totalorder %s8, 1
    %p25 = por %p23, %p24
    %p26 = scmp.ne.s32.totalorder %s18, %s21
    %p27 = scmp.eq.s32.totalorder %s8, 0
    %p28 = por %p26, %p27
    %p29 = scmp.ne.s32.totalorder %s18, %s21
    %p30 = scmp.eq.s32.totalorder %s13, 1
    %p31 = por %p29, %p30
    %p32 = scmp.ne.s32.totalorder %s21, %s22
    %p33 = scmp.eq.s32.totalorder %s13, 0
    %p34 = por %p32, %p33
    %p35 = scmp.ne.s32.totalorder %s21, %s22
    %p36 = scmp.eq.s32.totalorder %s14, 1
    %p37 = por %p35, %p36
    %p39 = scmp.ne.s32.totalorder %s22, %s38
    %p40 = scmp.eq.s32.totalorder %s14, 0
    %p41 = por %p39, %p40
    %s43 = sadd.s32 %s42, 1
    %p46 = scmp.eq.s32.totalorder %s8, 1
    %p47 = scmp.ne.s32.totalorder %s42, %s44
    %p48 = scmp.eq.s32.totalorder %s8, 0
    %p49 = por %p47, %p48
    %p50 = scmp.ne.s32.totalorder %s42, %s44
    %p51 = scmp.eq.s32.totalorder %s13, 1
    %p52 = por %p50, %p51
    %p53 = scmp.ne.s32.totalorder %s44, %s45
    %p54 = scmp.eq.s32.totalorder %s13, 0
    %p55 = por %p53, %p54
    %p56 = scmp.ne.s32.totalorder %s44, %s45
    %p57 = scmp.eq.s32.totalorder %s14, 1
    %p58 = por %p56, %p57
    %p60 = scmp.ne.s32.totalorder %s45, %s59
    %p61 = scmp.eq.s32.totalorder %s14, 0
    %p62 = por %p60, %p61
    %s63 = ssub.s32 %s8, %s15
    %p64 = scmp.eq.s32.totalorder %s63, 0
    %s66 = sadd.s32 %s65, 1
    %s67 = scalar_select %p64, %s65, %s66
    %p70 = pneg %p64
    %p71 = scmp.eq.s32.totalorder %s8, 1
    %p72 = por %p70, %p71
    %p73 = scmp.ne.s32.totalorder %s65, %s68
    %p74 = scmp.eq.s32.totalorder %s8, 0
    %p75 = por %p73, %p74
    %p76 = scmp.ne.s32.totalorder %s65, %s68
    %p77 = scmp.eq.s32.totalorder %s13, 1
    %p78 = por %p76, %p77
    %p79 = scmp.ne.s32.totalorder %s68, %s69
    %p80 = scmp.eq.s32.totalorder %s13, 0
    %p81 = por %p79, %p80
    %p82 = scmp.ne.s32.totalorder %s68, %s69
    %p83 = scmp.eq.s32.totalorder %s14, 1
    %p84 = por %p82, %p83
    %p86 = scmp.ne.s32.totalorder %s69, %s85
    %p87 = scmp.eq.s32.totalorder %s14, 0
    %p88 = por %p86, %p87
    %p89 = scmp.le.s32.totalorder 1, %s8
    %p90 = scmp.lt.s32.totalorder %s8, 3
    %p91 = pnand %p89, %p90
    %p92 = pneg %p91
    // Predicated region
    $region9: #{bifusion_forward.17} parent=5 // pred_check
      _
    $region10: #{bifusion_forward.17} parent=5 // pred_check_branch
      %94 = sbr.rel (%p91) target = $region12
    $region11: #{bifusion_forward.17} parent=5 // pred_region
      %s95 = ssub.s32 %s8, 1
      // Predicated region
      $region13: #{bifusion_forward.17} parent=11 // pred_check
        %p96 = pneg %p55
      $region14: #{bifusion_forward.17} parent=11 // pred_check_branch
        %98 = sbr.rel (%p96) target = $region16
      $region15: #{bifusion_forward.17} parent=11 // pred_region
        _
      $region16: #{bifusion_forward.17} parent=11 // pred_fallthru
        _
    $region12: #{bifusion_forward.17} parent=5 // pred_fallthru
      _
    %p99 = scmp.lt.s32.totalorder %s8, 2
    // Predicated region
    $region17: #{bifusion_forward.17} parent=5 // pred_check
      %p100 = pneg %p99
    $region18: #{bifusion_forward.17} parent=5 // pred_check_branch
      %102 = sbr.rel (%p100) target = $region20
    $region19: #{bifusion_forward.17} parent=5 // pred_region
      // Predicated region
      $region21: #{bifusion_forward.17} parent=19 // pred_check
        %p103 = pneg %p28
      $region22: #{bifusion_forward.17} parent=19 // pred_check_branch
        %105 = sbr.rel (%p103) target = $region24
      $region23: #{bifusion_forward.17} parent=19 // pred_region
        %s106 = smul.u32 32, %s8
        %p107 = scmp.lt.s32.totalorder %s106, 63
        %s108 = scalar_select %p107, %s106, 63
        %s109 = smul.addr %s108, 2
        %s110 = smul.addr %s109, 8
        %s111 = scalar_lea.vmem %s0, %s110
        %s112 = smul.u32 32, %s8
      $region24: #{bifusion_forward.17} parent=19 // pred_fallthru
        _
    $region20: #{bifusion_forward.17} parent=5 // pred_fallthru
      _
    %p113 = scmp.le.s32.totalorder 1, %s8
    %p114 = scmp.lt.s32.totalorder %s8, 3
    %p115 = pnand %p113, %p114
    %p116 = pneg %p115
    // Predicated region
    $region25: #{bifusion_forward.17} parent=5 // pred_check
      _
    $region26: #{bifusion_forward.17} parent=5 // pred_check_branch
      %118 = sbr.rel (%p115) target = $region28
    $region27: #{bifusion_forward.17} parent=5 // pred_region
      %s119 = ssub.s32 %s8, 1
      %s120 = smul.u32 32, %s13
      %p121 = scmp.lt.s32.totalorder %s120, 63
      %s122 = scalar_select %p121, %s120, 63
      %s123 = smul.addr %s122, 2
      %s124 = smul.addr %s123, 8
      %s125 = scalar_lea.vmem %s0, %s124
      %p126 = pneg %p34
      %p127 = pneg %p31
      %p128 = pneg %p55
      %p129 = pneg %p52
      %p130 = pneg %p81
      %p131 = pneg %p78
      %s132 = smul.u32 32, %s13
      %p133 = scmp.lt.s32.totalorder %s132, 63
      %s134 = scalar_select %p133, %s132, 63
      %s135 = smul.addr %s134, 2
      %s136 = smul.addr %s135, 8
      %s137 = scalar_lea.vmem %s2, %s136
      %s138 = smul.u32 32, %s13
      %p139 = scmp.lt.s32.totalorder %s138, 63
      %s140 = scalar_select %p139, %s138, 63
      %s141 = smul.addr %s140, 2
      %s142 = smul.addr %s141, 8
      %s143 = scalar_lea.vmem %s0, %s142
      %s144 = smul.u32 32, %s13
      %s145 = smul.u32 32, %s13
      %p146 = scmp.lt.s32.totalorder %s145, 63
      %s147 = scalar_select %p146, %s145, 63
      %s148 = smul.addr %s147, 2
      %s149 = smul.addr %s148, 8
      %s150 = scalar_lea.vmem %s2, %s149
      %s151 = smul.u32 32, %s13
      %v152 = vld [vmem:[%s143] sm:$0xff]
      %v153 = vld [vmem:[%s143 + $0x8] sm:$0xff]
      %v154 = vld [vmem:[%s143 + $0x10] sm:$0xff]
      %v155 = vld [vmem:[%s143 + $0x18] sm:$0xff]
      %v156 = vld [vmem:[%s143 + $0x20] sm:$0xff]
      %v157 = vld [vmem:[%s143 + $0x28] sm:$0xff]
      %v158 = vld [vmem:[%s143 + $0x30] sm:$0xff]
      %v159 = vld [vmem:[%s143 + $0x38] sm:$0xff]
      %v160 = vld [vmem:[%s143 + $0x40] sm:$0xff]
      %v161 = vld [vmem:[%s143 + $0x48] sm:$0xff]
      %v162 = vld [vmem:[%s143 + $0x50] sm:$0xff]
      %v163 = vld [vmem:[%s143 + $0x58] sm:$0xff]
      %v164 = vld [vmem:[%s143 + $0x60] sm:$0xff]
      %v165 = vld [vmem:[%s143 + $0x68] sm:$0xff]
      %v166 = vld [vmem:[%s143 + $0x70] sm:$0xff]
      %v167 = vld [vmem:[%s143 + $0x78] sm:$0xff]
      %v168 = vld [vmem:[%s143 + $0x80] sm:$0xff]
      %v169 = vld [vmem:[%s143 + $0x88] sm:$0xff]
      %v170 = vld [vmem:[%s143 + $0x90] sm:$0xff]
      %v171 = vld [vmem:[%s143 + $0x98] sm:$0xff]
      %v172 = vld [vmem:[%s143 + $0xa0] sm:$0xff]
      %v173 = vld [vmem:[%s143 + $0xa8] sm:$0xff]
      %v174 = vld [vmem:[%s143 + $0xb0] sm:$0xff]
      %v175 = vld [vmem:[%s143 + $0xb8] sm:$0xff]
      %v176 = vld [vmem:[%s143 + $0xc0] sm:$0xff]
      %v177 = vld [vmem:[%s143 + $0xc8] sm:$0xff]
      %v178 = vld [vmem:[%s143 + $0xd0] sm:$0xff]
      %v179 = vld [vmem:[%s143 + $0xd8] sm:$0xff]
      %v180 = vld [vmem:[%s143 + $0xe0] sm:$0xff]
      %v181 = vld [vmem:[%s143 + $0xe8] sm:$0xff]
      %v182 = vld [vmem:[%s143 + $0xf0] sm:$0xff]
      %v183 = vld [vmem:[%s143 + $0xf8] sm:$0xff]
      %v184 = vld [vmem:[%s143 + $0x100] sm:$0xff]
      %v185 = vld [vmem:[%s143 + $0x108] sm:$0xff]
      %v186 = vld [vmem:[%s143 + $0x110] sm:$0xff]
      %v187 = vld [vmem:[%s143 + $0x118] sm:$0xff]
      %v188 = vld [vmem:[%s143 + $0x120] sm:$0xff]
      %v189 = vld [vmem:[%s143 + $0x128] sm:$0xff]
      %v190 = vld [vmem:[%s143 + $0x130] sm:$0xff]
      %v191 = vld [vmem:[%s143 + $0x138] sm:$0xff]
      %v192 = vld [vmem:[%s143 + $0x140] sm:$0xff]
      %v193 = vld [vmem:[%s143 + $0x148] sm:$0xff]
      %v194 = vld [vmem:[%s143 + $0x150] sm:$0xff]
      %v195 = vld [vmem:[%s143 + $0x158] sm:$0xff]
      %v196 = vld [vmem:[%s143 + $0x160] sm:$0xff]
      %v197 = vld [vmem:[%s143 + $0x168] sm:$0xff]
      %v198 = vld [vmem:[%s143 + $0x170] sm:$0xff]
      %v199 = vld [vmem:[%s143 + $0x178] sm:$0xff]
      %v200 = vld [vmem:[%s143 + $0x180] sm:$0xff]
      %v201 = vld [vmem:[%s143 + $0x188] sm:$0xff]
      %v202 = vld [vmem:[%s143 + $0x190] sm:$0xff]
      %v203 = vld [vmem:[%s143 + $0x198] sm:$0xff]
      %v204 = vld [vmem:[%s143 + $0x1a0] sm:$0xff]
      %v205 = vld [vmem:[%s143 + $0x1a8] sm:$0xff]
      %v206 = vld [vmem:[%s143 + $0x1b0] sm:$0xff]
      %v207 = vld [vmem:[%s143 + $0x1b8] sm:$0xff]
      %v208 = vld [vmem:[%s143 + $0x1c0] sm:$0xff]
      %v209 = vld [vmem:[%s143 + $0x1c8] sm:$0xff]
      %v210 = vld [vmem:[%s143 + $0x1d0] sm:$0xff]
      %v211 = vld [vmem:[%s143 + $0x1d8] sm:$0xff]
      %v212 = vld [vmem:[%s143 + $0x1e0] sm:$0xff]
      %v213 = vld [vmem:[%s143 + $0x1e8] sm:$0xff]
      %v214 = vld [vmem:[%s143 + $0x1f0] sm:$0xff]
      %v215 = vld [vmem:[%s143 + $0x1f8] sm:$0xff]
      %v216 = vld [vmem:[%s1] ss:$2 sm:$0x3]
      %v218 = vlaneseq
      %v219 = vshrl.u32 %v218, 7
      %v220 = vsub.s32 0, %v219
      %v221 = vrot.slane %v216, %v220
      %v222 = vlaneseq
      %v223 = vshrl.u32 %v222, 7
      %v224 = vsub.s32 1, %v223
      %v225 = vrot.slane %v216, %v224
      %v228 = vmul.f32 %v152, %v221
      %v229 = vmul.f32 %v153, %v225
      %v230 = vmul.f32 %v154, %v221
      %v231 = vmul.f32 %v155, %v225
      %v232 = vmul.f32 %v156, %v221
      %v233 = vmul.f32 %v157, %v225
      %v234 = vmul.f32 %v158, %v221
      %v235 = vmul.f32 %v159, %v225
      %v236 = vmul.f32 %v160, %v221
      %v237 = vmul.f32 %v161, %v225
      %v238 = vmul.f32 %v162, %v221
      %v239 = vmul.f32 %v163, %v225
      %v240 = vmul.f32 %v164, %v221
      %v241 = vmul.f32 %v165, %v225
      %v242 = vmul.f32 %v166, %v221
      %v243 = vmul.f32 %v167, %v225
      %v244 = vmul.f32 %v168, %v221
      %v245 = vmul.f32 %v169, %v225
      %v246 = vmul.f32 %v170, %v221
      %v247 = vmul.f32 %v171, %v225
      %v248 = vmul.f32 %v172, %v221
      %v249 = vmul.f32 %v173, %v225
      %v250 = vmul.f32 %v174, %v221
      %v251 = vmul.f32 %v175, %v225
      %v252 = vmul.f32 %v176, %v221
      %v253 = vmul.f32 %v177, %v225
      %v254 = vmul.f32 %v178, %v221
      %v255 = vmul.f32 %v179, %v225
      %v256 = vmul.f32 %v180, %v221
      %v257 = vmul.f32 %v181, %v225
      %v258 = vmul.f32 %v182, %v221
      %v259 = vmul.f32 %v183, %v225
      %v260 = vmul.f32 %v184, %v221
      %v261 = vmul.f32 %v185, %v225
      %v262 = vmul.f32 %v186, %v221
      %v263 = vmul.f32 %v187, %v225
      %v264 = vmul.f32 %v188, %v221
      %v265 = vmul.f32 %v189, %v225
      %v266 = vmul.f32 %v190, %v221
      %v267 = vmul.f32 %v191, %v225
      %v268 = vmul.f32 %v192, %v221
      %v269 = vmul.f32 %v193, %v225
      %v270 = vmul.f32 %v194, %v221
      %v271 = vmul.f32 %v195, %v225
      %v272 = vmul.f32 %v196, %v221
      %v273 = vmul.f32 %v197, %v225
      %v274 = vmul.f32 %v198, %v221
      %v275 = vmul.f32 %v199, %v225
      %v276 = vmul.f32 %v200, %v221
      %v277 = vmul.f32 %v201, %v225
      %v278 = vmul.f32 %v202, %v221
      %v279 = vmul.f32 %v203, %v225
      %v280 = vmul.f32 %v204, %v221
      %v281 = vmul.f32 %v205, %v225
      %v282 = vmul.f32 %v206, %v221
      %v283 = vmul.f32 %v207, %v225
      %v284 = vmul.f32 %v208, %v221
      %v285 = vmul.f32 %v209, %v225
      %v286 = vmul.f32 %v210, %v221
      %v287 = vmul.f32 %v211, %v225
      %v288 = vmul.f32 %v212, %v221
      %v289 = vmul.f32 %v213, %v225
      %v290 = vmul.f32 %v214, %v221
      %v291 = vmul.f32 %v215, %v225
      %s292 = scalar_lea.vmem %s1, 1
      %v293 = vld [vmem:[%s292] ss:$2 sm:$0x3]
      %v295 = vlaneseq
      %v296 = vshrl.u32 %v295, 7
      %v297 = vsub.s32 0, %v296
      %v298 = vrot.slane %v293, %v297
      %v299 = vlaneseq
      %v300 = vshrl.u32 %v299, 7
      %v301 = vsub.s32 1, %v300
      %v302 = vrot.slane %v293, %v301
      %v305 = vadd.f32 %v228, %v298
      %v306 = vadd.f32 %v229, %v302
      %v307 = vadd.f32 %v230, %v298
      %v308 = vadd.f32 %v231, %v302
      %v309 = vadd.f32 %v232, %v298
      %v310 = vadd.f32 %v233, %v302
      %v311 = vadd.f32 %v234, %v298
      %v312 = vadd.f32 %v235, %v302
      %v313 = vadd.f32 %v236, %v298
      %v314 = vadd.f32 %v237, %v302
      %v315 = vadd.f32 %v238, %v298
      %v316 = vadd.f32 %v239, %v302
      %v317 = vadd.f32 %v240, %v298
      %v318 = vadd.f32 %v241, %v302
      %v319 = vadd.f32 %v242, %v298
      %v320 = vadd.f32 %v243, %v302
      %v321 = vadd.f32 %v244, %v298
      %v322 = vadd.f32 %v245, %v302
      %v323 = vadd.f32 %v246, %v298
      %v324 = vadd.f32 %v247, %v302
      %v325 = vadd.f32 %v248, %v298
      %v326 = vadd.f32 %v249, %v302
      %v327 = vadd.f32 %v250, %v298
      %v328 = vadd.f32 %v251, %v302
      %v329 = vadd.f32 %v252, %v298
      %v330 = vadd.f32 %v253, %v302
      %v331 = vadd.f32 %v254, %v298
      %v332 = vadd.f32 %v255, %v302
      %v333 = vadd.f32 %v256, %v298
      %v334 = vadd.f32 %v257, %v302
      %v335 = vadd.f32 %v258, %v298
      %v336 = vadd.f32 %v259, %v302
      %v337 = vadd.f32 %v260, %v298
      %v338 = vadd.f32 %v261, %v302
      %v339 = vadd.f32 %v262, %v298
      %v340 = vadd.f32 %v263, %v302
      %v341 = vadd.f32 %v264, %v298
      %v342 = vadd.f32 %v265, %v302
      %v343 = vadd.f32 %v266, %v298
      %v344 = vadd.f32 %v267, %v302
      %v345 = vadd.f32 %v268, %v298
      %v346 = vadd.f32 %v269, %v302
      %v347 = vadd.f32 %v270, %v298
      %v348 = vadd.f32 %v271, %v302
      %v349 = vadd.f32 %v272, %v298
      %v350 = vadd.f32 %v273, %v302
      %v351 = vadd.f32 %v274, %v298
      %v352 = vadd.f32 %v275, %v302
      %v353 = vadd.f32 %v276, %v298
      %v354 = vadd.f32 %v277, %v302
      %v355 = vadd.f32 %v278, %v298
      %v356 = vadd.f32 %v279, %v302
      %v357 = vadd.f32 %v280, %v298
      %v358 = vadd.f32 %v281, %v302
      %v359 = vadd.f32 %v282, %v298
      %v360 = vadd.f32 %v283, %v302
      %v361 = vadd.f32 %v284, %v298
      %v362 = vadd.f32 %v285, %v302
      %v363 = vadd.f32 %v286, %v298
      %v364 = vadd.f32 %v287, %v302
      %v365 = vadd.f32 %v288, %v298
      %v366 = vadd.f32 %v289, %v302
      %v367 = vadd.f32 %v290, %v298
      %v368 = vadd.f32 %v291, %v302
      %369 = vst [vmem:[%s150] sm:$0xff] %v305
      %vm370 = vcmask 261120
      %371 = vst.msk [vmem:[%s150 + $0x8] sm:$0xff] %vm370, %v306
      %372 = vst [vmem:[%s150 + $0x10] sm:$0xff] %v307
      %373 = vst.msk [vmem:[%s150 + $0x18] sm:$0xff] %vm370, %v308
      %374 = vst [vmem:[%s150 + $0x20] sm:$0xff] %v309
      %375 = vst.msk [vmem:[%s150 + $0x28] sm:$0xff] %vm370, %v310
      %376 = vst [vmem:[%s150 + $0x30] sm:$0xff] %v311
      %377 = vst.msk [vmem:[%s150 + $0x38] sm:$0xff] %vm370, %v312
      %378 = vst [vmem:[%s150 + $0x40] sm:$0xff] %v313
      %379 = vst.msk [vmem:[%s150 + $0x48] sm:$0xff] %vm370, %v314
      %380 = vst [vmem:[%s150 + $0x50] sm:$0xff] %v315
      %381 = vst.msk [vmem:[%s150 + $0x58] sm:$0xff] %vm370, %v316
      %382 = vst [vmem:[%s150 + $0x60] sm:$0xff] %v317
      %383 = vst.msk [vmem:[%s150 + $0x68] sm:$0xff] %vm370, %v318
      %384 = vst [vmem:[%s150 + $0x70] sm:$0xff] %v319
      %385 = vst.msk [vmem:[%s150 + $0x78] sm:$0xff] %vm370, %v320
      %386 = vst [vmem:[%s150 + $0x80] sm:$0xff] %v321
      %387 = vst.msk [vmem:[%s150 + $0x88] sm:$0xff] %vm370, %v322
      %388 = vst [vmem:[%s150 + $0x90] sm:$0xff] %v323
      %389 = vst.msk [vmem:[%s150 + $0x98] sm:$0xff] %vm370, %v324
      %390 = vst [vmem:[%s150 + $0xa0] sm:$0xff] %v325
      %391 = vst.msk [vmem:[%s150 + $0xa8] sm:$0xff] %vm370, %v326
      %392 = vst [vmem:[%s150 + $0xb0] sm:$0xff] %v327
      %393 = vst.msk [vmem:[%s150 + $0xb8] sm:$0xff] %vm370, %v328
      %394 = vst [vmem:[%s150 + $0xc0] sm:$0xff] %v329
      %395 = vst.msk [vmem:[%s150 + $0xc8] sm:$0xff] %vm370, %v330
      %396 = vst [vmem:[%s150 + $0xd0] sm:$0xff] %v331
      %397 = vst.msk [vmem:[%s150 + $0xd8] sm:$0xff] %vm370, %v332
      %398 = vst [vmem:[%s150 + $0xe0] sm:$0xff] %v333
      %399 = vst.msk [vmem:[%s150 + $0xe8] sm:$0xff] %vm370, %v334
      %400 = vst [vmem:[%s150 + $0xf0] sm:$0xff] %v335
      %401 = vst.msk [vmem:[%s150 + $0xf8] sm:$0xff] %vm370, %v336
      %402 = vst [vmem:[%s150 + $0x100] sm:$0xff] %v337
      %403 = vst.msk [vmem:[%s150 + $0x108] sm:$0xff] %vm370, %v338
      %404 = vst [vmem:[%s150 + $0x110] sm:$0xff] %v339
      %405 = vst.msk [vmem:[%s150 + $0x118] sm:$0xff] %vm370, %v340
      %406 = vst [vmem:[%s150 + $0x120] sm:$0xff] %v341
      %407 = vst.msk [vmem:[%s150 + $0x128] sm:$0xff] %vm370, %v342
      %408 = vst [vmem:[%s150 + $0x130] sm:$0xff] %v343
      %409 = vst.msk [vmem:[%s150 + $0x138] sm:$0xff] %vm370, %v344
      %410 = vst [vmem:[%s150 + $0x140] sm:$0xff] %v345
      %411 = vst.msk [vmem:[%s150 + $0x148] sm:$0xff] %vm370, %v346
      %412 = vst [vmem:[%s150 + $0x150] sm:$0xff] %v347
      %413 = vst.msk [vmem:[%s150 + $0x158] sm:$0xff] %vm370, %v348
      %414 = vst [vmem:[%s150 + $0x160] sm:$0xff] %v349
      %415 = vst.msk [vmem:[%s150 + $0x168] sm:$0xff] %vm370, %v350
      %416 = vst [vmem:[%s150 + $0x170] sm:$0xff] %v351
      %417 = vst.msk [vmem:[%s150 + $0x178] sm:$0xff] %vm370, %v352
      %418 = vst [vmem:[%s150 + $0x180] sm:$0xff] %v353
      %419 = vst.msk [vmem:[%s150 + $0x188] sm:$0xff] %vm370, %v354
      %420 = vst [vmem:[%s150 + $0x190] sm:$0xff] %v355
      %421 = vst.msk [vmem:[%s150 + $0x198] sm:$0xff] %vm370, %v356
      %422 = vst [vmem:[%s150 + $0x1a0] sm:$0xff] %v357
      %423 = vst.msk [vmem:[%s150 + $0x1a8] sm:$0xff] %vm370, %v358
      %424 = vst [vmem:[%s150 + $0x1b0] sm:$0xff] %v359
      %425 = vst.msk [vmem:[%s150 + $0x1b8] sm:$0xff] %vm370, %v360
      %426 = vst [vmem:[%s150 + $0x1c0] sm:$0xff] %v361
      %427 = vst.msk [vmem:[%s150 + $0x1c8] sm:$0xff] %vm370, %v362
      %428 = vst [vmem:[%s150 + $0x1d0] sm:$0xff] %v363
      %429 = vst.msk [vmem:[%s150 + $0x1d8] sm:$0xff] %vm370, %v364
      %430 = vst [vmem:[%s150 + $0x1e0] sm:$0xff] %v365
      %431 = vst.msk [vmem:[%s150 + $0x1e8] sm:$0xff] %vm370, %v366
      %432 = vst [vmem:[%s150 + $0x1f0] sm:$0xff] %v367
      %433 = vst.msk [vmem:[%s150 + $0x1f8] sm:$0xff] %vm370, %v368
      %s434 = smul.u32 32, %s13
      %p435 = scmp.lt.s32.totalorder %s434, 63
      %s436 = scalar_select %p435, %s434, 63
      %s437 = smul.addr %s436, 2
      %s438 = smul.addr %s437, 8
      %s439 = scalar_lea.vmem %s2, %s438
      // Predicated region
      $region29: #{bifusion_forward.17} parent=27 // pred_check
        %p440 = pneg %p78
      $region30: #{bifusion_forward.17} parent=27 // pred_check_branch
        %442 = sbr.rel (%p440) target = $region32
      $region31: #{bifusion_forward.17} parent=27 // pred_region
        %s443 = smul.u32 32, %s13
      $region32: #{bifusion_forward.17} parent=27 // pred_fallthru
        _
    $region28: #{bifusion_forward.17} parent=5 // pred_fallthru
      _
    %p444 = scmp.le.s32.totalorder 2, %s8
    // Predicated region
    $region33: #{bifusion_forward.17} parent=5 // pred_check
      %p445 = pneg %p444
    $region34: #{bifusion_forward.17} parent=5 // pred_check_branch
      %447 = sbr.rel (%p445) target = $region36
    $region35: #{bifusion_forward.17} parent=5 // pred_region
      %s448 = ssub.s32 %s8, 2
      // Predicated region
      $region37: #{bifusion_forward.17} parent=35 // pred_check
        %p449 = pneg %p84
      $region38: #{bifusion_forward.17} parent=35 // pred_check_branch
        %451 = sbr.rel (%p449) target = $region40
      $region39: #{bifusion_forward.17} parent=35 // pred_region
        %s452 = smul.u32 32, %s14
        %p453 = scmp.lt.s32.totalorder %s452, 63
        %s454 = scalar_select %p453, %s452, 63
        %s455 = smul.addr %s454, 2
        %s456 = smul.addr %s455, 8
        %s457 = scalar_lea.vmem %s2, %s456
      $region40: #{bifusion_forward.17} parent=35 // pred_fallthru
        _
    $region36: #{bifusion_forward.17} parent=5 // pred_fallthru
      _
  $region6: #{bifusion_forward.17} parent=0 // loop_footer
    %s12 = sadd.s32 1, %s8
  $region7: #{bifusion_forward.17} parent=0 // loop_footer_branch
    %7 = sbr.rel target = $region3
  $region8: #{bifusion_forward.17} parent=0 // loop_exit
    _

// kernel: bifusion_forward.16
$region0: #{bifusion_forward.16}
  #allocation0 [shape = 'u32[]', space=smem, size = 0x4, offset = 0x4, fixed_abs, tag = 'smem constant byte address 0x4 - core index']
  #allocation1 [shape = 'u32[144,128]{1,0:T(1,128)}', space=vmem, size = 0x12000, scoped, tag = 'internal scratch']
  %s0 = inlined_call_operand.vmem [shape: bf16[512,1440], index: 0, kind: input, shape index: {}]
  %s1 = inlined_call_operand.vmem [shape: bf16[1440,160], index: 1, kind: input, shape index: {}]
  %s2 = inlined_call_operand.vmem [shape: f32[1,160], index: 2, kind: input, shape index: {}]
  %s3 = inlined_call_operand.vmem [shape: f32[512,160], index: 3, kind: output, shape index: {0}]
  %s4 = inlined_call_operand.vmem [shape: f32[2,1,160], index: 4, kind: output, shape index: {1}]
  %s5 = inlined_call_operand.vmem [shape: f32[2,1,160], index: 5, kind: output, shape index: {2}]
  %6 = xla_tuple %s3, %s4, %s5
  %s7 = sld [smem:[#allocation0]]
  $region61: #{bifusion_forward.16} parent=0
    _
  %s9 = ssub.s32 1, %s7
  %s10 = scalar_select 0, %s9, %s7
  loop: start=0, step=1, limit=4
  $region2: #{bifusion_forward.16} parent=0 // loop_pre_header
    _
  $region3: #{bifusion_forward.16} parent=0 // loop_header
    %s12 = sphi 0, %s16
    %p13 = scmp.ge.s32.totalorder %s12, 4
    %s22 = sphi 0, %s24
    %s25 = sphi 0, %s22
    %s26 = sphi 0, %s25
    %s42 = sphi 0, %s26
    %s46 = sphi 0, %s46
    %s48 = sphi 0, %s46
    %s49 = sphi 0, %s48
    %s63 = sphi 0, %s49
    %s67 = sphi 0, %s67
    %s69 = sphi 0, %s67
    %s70 = sphi 0, %s69
    %s84 = sphi 0, %s70
    %s90 = sphi 0, %s92
    %s93 = sphi 0, %s90
    %s94 = sphi 0, %s93
    %s110 = sphi 0, %s94
    %s116 = sphi 0, %s118
    %s119 = sphi 0, %s116
    %s120 = sphi 0, %s119
    %s136 = sphi 0, %s120
    %s142 = sphi 0, %s144
    %s145 = sphi 0, %s142
    %s146 = sphi 0, %s145
    %s162 = sphi 0, %s146
  $region4: #{bifusion_forward.16} parent=0 // loop_header_branch
    %15 = sbr.rel (%p13) target = $region8
  $region5: #{bifusion_forward.16} parent=0 // loop_body
    %s17 = ssub.s32 %s12, 1
    %s18 = ssub.s32 %s12, 2
    %s19 = sadd.s32 %s12, 1
    %s20 = ssub.s32 %s12, %s19
    %p21 = scmp.eq.s32.totalorder %s20, 0
    %s23 = sadd.s32 %s22, 1
    %s24 = scalar_select %p21, %s22, %s23
    %p27 = pneg %p21
    %p28 = scmp.eq.s32.totalorder %s12, 1
    %p29 = por %p27, %p28
    %p30 = scmp.ne.s32.totalorder %s22, %s25
    %p31 = scmp.eq.s32.totalorder %s12, 0
    %p32 = por %p30, %p31
    %p33 = scmp.ne.s32.totalorder %s22, %s25
    %p34 = scmp.eq.s32.totalorder %s17, 1
    %p35 = por %p33, %p34
    %p36 = scmp.ne.s32.totalorder %s25, %s26
    %p37 = scmp.eq.s32.totalorder %s17, 0
    %p38 = por %p36, %p37
    %p39 = scmp.ne.s32.totalorder %s25, %s26
    %p40 = scmp.eq.s32.totalorder %s18, 1
    %p41 = por %p39, %p40
    %p43 = scmp.ne.s32.totalorder %s26, %s42
    %p44 = scmp.eq.s32.totalorder %s18, 0
    %p45 = por %p43, %p44
    %s47 = sadd.s32 %s46, 1
    %p50 = scmp.eq.s32.totalorder %s12, 1
    %p51 = scmp.ne.s32.totalorder %s46, %s48
    %p52 = scmp.eq.s32.totalorder %s12, 0
    %p53 = por %p51, %p52
    %p54 = scmp.ne.s32.totalorder %s46, %s48
    %p55 = scmp.eq.s32.totalorder %s17, 1
    %p56 = por %p54, %p55
    %p57 = scmp.ne.s32.totalorder %s48, %s49
    %p58 = scmp.eq.s32.totalorder %s17, 0
    %p59 = por %p57, %p58
    %p60 = scmp.ne.s32.totalorder %s48, %s49
    %p61 = scmp.eq.s32.totalorder %s18, 1
    %p62 = por %p60, %p61
    %p64 = scmp.ne.s32.totalorder %s49, %s63
    %p65 = scmp.eq.s32.totalorder %s18, 0
    %p66 = por %p64, %p65
    %s68 = sadd.s32 %s67, 1
    %p71 = scmp.eq.s32.totalorder %s12, 1
    %p72 = scmp.ne.s32.totalorder %s67, %s69
    %p73 = scmp.eq.s32.totalorder %s12, 0
    %p74 = por %p72, %p73
    %p75 = scmp.ne.s32.totalorder %s67, %s69
    %p76 = scmp.eq.s32.totalorder %s17, 1
    %p77 = por %p75, %p76
    %p78 = scmp.ne.s32.totalorder %s69, %s70
    %p79 = scmp.eq.s32.totalorder %s17, 0
    %p80 = por %p78, %p79
    %p81 = scmp.ne.s32.totalorder %s69, %s70
    %p82 = scmp.eq.s32.totalorder %s18, 1
    %p83 = por %p81, %p82
    %p85 = scmp.ne.s32.totalorder %s70, %s84
    %p86 = scmp.eq.s32.totalorder %s18, 0
    %p87 = por %p85, %p86
    %s88 = ssub.s32 %s12, %s19
    %p89 = scmp.eq.s32.totalorder %s88, 0
    %s91 = sadd.s32 %s90, 1
    %s92 = scalar_select %p89, %s90, %s91
    %p95 = pneg %p89
    %p96 = scmp.eq.s32.totalorder %s12, 1
    %p97 = por %p95, %p96
    %p98 = scmp.ne.s32.totalorder %s90, %s93
    %p99 = scmp.eq.s32.totalorder %s12, 0
    %p100 = por %p98, %p99
    %p101 = scmp.ne.s32.totalorder %s90, %s93
    %p102 = scmp.eq.s32.totalorder %s17, 1
    %p103 = por %p101, %p102
    %p104 = scmp.ne.s32.totalorder %s93, %s94
    %p105 = scmp.eq.s32.totalorder %s17, 0
    %p106 = por %p104, %p105
    %p107 = scmp.ne.s32.totalorder %s93, %s94
    %p108 = scmp.eq.s32.totalorder %s18, 1
    %p109 = por %p107, %p108
    %p111 = scmp.ne.s32.totalorder %s94, %s110
    %p112 = scmp.eq.s32.totalorder %s18, 0
    %p113 = por %p111, %p112
    %s114 = ssub.s32 %s12, %s19
    %p115 = scmp.eq.s32.totalorder %s114, 0
    %s117 = sadd.s32 %s116, 1
    %s118 = scalar_select %p115, %s116, %s117
    %p121 = pneg %p115
    %p122 = scmp.eq.s32.totalorder %s12, 1
    %p123 = por %p121, %p122
    %p124 = scmp.ne.s32.totalorder %s116, %s119
    %p125 = scmp.eq.s32.totalorder %s12, 0
    %p126 = por %p124, %p125
    %p127 = scmp.ne.s32.totalorder %s116, %s119
    %p128 = scmp.eq.s32.totalorder %s17, 1
    %p129 = por %p127, %p128
    %p130 = scmp.ne.s32.totalorder %s119, %s120
    %p131 = scmp.eq.s32.totalorder %s17, 0
    %p132 = por %p130, %p131
    %p133 = scmp.ne.s32.totalorder %s119, %s120
    %p134 = scmp.eq.s32.totalorder %s18, 1
    %p135 = por %p133, %p134
    %p137 = scmp.ne.s32.totalorder %s120, %s136
    %p138 = scmp.eq.s32.totalorder %s18, 0
    %p139 = por %p137, %p138
    %s140 = ssub.s32 %s12, %s19
    %p141 = scmp.eq.s32.totalorder %s140, 0
    %s143 = sadd.s32 %s142, 1
    %s144 = scalar_select %p141, %s142, %s143
    %p147 = pneg %p141
    %p148 = scmp.eq.s32.totalorder %s12, 1
    %p149 = por %p147, %p148
    %p150 = scmp.ne.s32.totalorder %s142, %s145
    %p151 = scmp.eq.s32.totalorder %s12, 0
    %p152 = por %p150, %p151
    %p153 = scmp.ne.s32.totalorder %s142, %s145
    %p154 = scmp.eq.s32.totalorder %s17, 1
    %p155 = por %p153, %p154
    %p156 = scmp.ne.s32.totalorder %s145, %s146
    %p157 = scmp.eq.s32.totalorder %s17, 0
    %p158 = por %p156, %p157
    %p159 = scmp.ne.s32.totalorder %s145, %s146
    %p160 = scmp.eq.s32.totalorder %s18, 1
    %p161 = por %p159, %p160
    %p163 = scmp.ne.s32.totalorder %s146, %s162
    %p164 = scmp.eq.s32.totalorder %s18, 0
    %p165 = por %p163, %p164
    %p166 = scmp.le.s32.totalorder 1, %s12
    %p167 = scmp.lt.s32.totalorder %s12, 3
    %p168 = pnand %p166, %p167
    %p169 = pneg %p168
    // Predicated region
    $region9: #{bifusion_forward.16} parent=5 // pred_check
      _
    $region10: #{bifusion_forward.16} parent=5 // pred_check_branch
      %171 = sbr.rel (%p168) target = $region12
    $region11: #{bifusion_forward.16} parent=5 // pred_region
      %s172 = ssub.s32 %s12, 1
      // Predicated region
      $region13: #{bifusion_forward.16} parent=11 // pred_check
        %p173 = pneg %p59
      $region14: #{bifusion_forward.16} parent=11 // pred_check_branch
        %175 = sbr.rel (%p173) target = $region16
      $region15: #{bifusion_forward.16} parent=11 // pred_region
        _
      $region16: #{bifusion_forward.16} parent=11 // pred_fallthru
        _
      // Predicated region
      $region17: #{bifusion_forward.16} parent=11 // pred_check
        %p176 = pneg %p80
      $region18: #{bifusion_forward.16} parent=11 // pred_check_branch
        %178 = sbr.rel (%p176) target = $region20
      $region19: #{bifusion_forward.16} parent=11 // pred_region
        _
      $region20: #{bifusion_forward.16} parent=11 // pred_fallthru
        _
    $region12: #{bifusion_forward.16} parent=5 // pred_fallthru
      _
    %p179 = scmp.lt.s32.totalorder %s12, 2
    // Predicated region
    $region21: #{bifusion_forward.16} parent=5 // pred_check
      %p180 = pneg %p179
    $region22: #{bifusion_forward.16} parent=5 // pred_check_branch
      %182 = sbr.rel (%p180) target = $region24
    $region23: #{bifusion_forward.16} parent=5 // pred_region
      // Predicated region
      $region25: #{bifusion_forward.16} parent=23 // pred_check
        %p183 = pneg %p32
      $region26: #{bifusion_forward.16} parent=23 // pred_check_branch
        %185 = sbr.rel (%p183) target = $region28
      $region27: #{bifusion_forward.16} parent=23 // pred_region
        %s186 = smul.u32 32, %s12
        %p187 = scmp.lt.s32.totalorder %s186, 63
        %s188 = scalar_select %p187, %s186, 63
        %s189 = smul.addr %s188, 12
        %s190 = smul.addr %s189, 4
        %s191 = scalar_lea.vmem %s0, %s190
        %s192 = smul.u32 32, %s12
      $region28: #{bifusion_forward.16} parent=23 // pred_fallthru
        _
    $region24: #{bifusion_forward.16} parent=5 // pred_fallthru
      _
    %p193 = scmp.le.s32.totalorder 1, %s12
    %p194 = scmp.lt.s32.totalorder %s12, 3
    %p195 = pnand %p193, %p194
    %p196 = pneg %p195
    // Predicated region
    $region29: #{bifusion_forward.16} parent=5 // pred_check
      _
    $region30: #{bifusion_forward.16} parent=5 // pred_check_branch
      %198 = sbr.rel (%p195) target = $region32
    $region31: #{bifusion_forward.16} parent=5 // pred_region
      %s199 = ssub.s32 %s12, 1
      %s200 = smul.u32 32, %s17
      %p201 = scmp.lt.s32.totalorder %s200, 63
      %s202 = scalar_select %p201, %s200, 63
      %s203 = smul.addr %s202, 12
      %s204 = smul.addr %s203, 4
      %s205 = scalar_lea.vmem %s0, %s204
      %p206 = pneg %p38
      %p207 = pneg %p35
      %p208 = pneg %p59
      %p209 = pneg %p56
      %p210 = pneg %p80
      %p211 = pneg %p77
      %p212 = pneg %p106
      %p213 = pneg %p103
      %s214 = smul.u32 32, %s17
      %p215 = scmp.lt.s32.totalorder %s214, 63
      %s216 = scalar_select %p215, %s214, 63
      %s217 = smul.addr %s216, 2
      %s218 = smul.addr %s217, 8
      %s219 = scalar_lea.vmem %s3, %s218
      %p220 = pneg %p132
      %p221 = pneg %p129
      %p222 = scmp.lt.s32.totalorder %s17, 1
      %s223 = scalar_select %p222, %s17, 1
      %s224 = smul.addr %s223, 2
      %s225 = scalar_lea.vmem %s4, %s224
      %p226 = pneg %p158
      %p227 = pneg %p155
      %p228 = scmp.lt.s32.totalorder %s17, 1
      %s229 = scalar_select %p228, %s17, 1
      %s230 = smul.addr %s229, 2
      %s231 = scalar_lea.vmem %s5, %s230
      %s232 = smul.u32 32, %s17
      %p233 = scmp.lt.s32.totalorder %s232, 63
      %s234 = scalar_select %p233, %s232, 63
      %s235 = smul.addr %s234, 12
      %s236 = smul.addr %s235, 4
      %s237 = scalar_lea.vmem %s0, %s236
      %s238 = smul.u32 32, %s17
      %s239 = smul.u32 32, %s17
      %p240 = scmp.lt.s32.totalorder %s239, 63
      %s241 = scalar_select %p240, %s239, 63
      %s242 = smul.addr %s241, 2
      %s243 = smul.addr %s242, 8
      %s244 = scalar_lea.vmem %s3, %s243
      %s245 = smul.u32 32, %s17
      %p246 = scmp.lt.s32.totalorder %s17, 1
      %s247 = scalar_select %p246, %s17, 1
      %s248 = smul.addr %s247, 2
      %s249 = scalar_lea.vmem %s4, %s248
      %p250 = scmp.lt.s32.totalorder %s17, 1
      %s251 = scalar_select %p250, %s17, 1
      %s252 = smul.addr %s251, 2
      %s253 = scalar_lea.vmem %s5, %s252
      %v255 = vld [vmem:[%s237] sm:$0xff]
      %v256 = vld [vmem:[%s237 + $0x8] sm:$0xff]
      %v257 = vld [vmem:[%s237 + $0x10] sm:$0xff]
      %v258 = vld [vmem:[%s237 + $0x18] sm:$0xff]
      %v259 = vld [vmem:[%s237 + $0x20] sm:$0xff]
      %v260 = vld [vmem:[%s237 + $0x28] sm:$0xff]
      %v261 = vld [vmem:[%s237 + $0x30] sm:$0xff]
      %v262 = vld [vmem:[%s237 + $0x38] sm:$0xff]
      %v263 = vld [vmem:[%s237 + $0x40] sm:$0xff]
      %v264 = vld [vmem:[%s237 + $0x48] sm:$0xff]
      %v265 = vld [vmem:[%s237 + $0x50] sm:$0xff]
      %v266 = vld [vmem:[%s237 + $0x58] sm:$0xff]
      %v267 = vld [vmem:[%s237 + $0x60] sm:$0xff]
      %v268 = vld [vmem:[%s237 + $0x68] sm:$0xff]
      %v269 = vld [vmem:[%s237 + $0x70] sm:$0xff]
      %v270 = vld [vmem:[%s237 + $0x78] sm:$0xff]
      %v271 = vld [vmem:[%s237 + $0x80] sm:$0xff]
      %v272 = vld [vmem:[%s237 + $0x88] sm:$0xff]
      %v273 = vld [vmem:[%s237 + $0x90] sm:$0xff]
      %v274 = vld [vmem:[%s237 + $0x98] sm:$0xff]
      %v275 = vld [vmem:[%s237 + $0xa0] sm:$0xff]
      %v276 = vld [vmem:[%s237 + $0xa8] sm:$0xff]
      %v277 = vld [vmem:[%s237 + $0xb0] sm:$0xff]
      %v278 = vld [vmem:[%s237 + $0xb8] sm:$0xff]
      %v279 = vld [vmem:[%s237 + $0xc0] sm:$0xff]
      %v280 = vld [vmem:[%s237 + $0xc8] sm:$0xff]
      %v281 = vld [vmem:[%s237 + $0xd0] sm:$0xff]
      %v282 = vld [vmem:[%s237 + $0xd8] sm:$0xff]
      %v283 = vld [vmem:[%s237 + $0xe0] sm:$0xff]
      %v284 = vld [vmem:[%s237 + $0xe8] sm:$0xff]
      %v285 = vld [vmem:[%s237 + $0xf0] sm:$0xff]
      %v286 = vld [vmem:[%s237 + $0xf8] sm:$0xff]
      %v287 = vld [vmem:[%s237 + $0x100] sm:$0xff]
      %v288 = vld [vmem:[%s237 + $0x108] sm:$0xff]
      %v289 = vld [vmem:[%s237 + $0x110] sm:$0xff]
      %v290 = vld [vmem:[%s237 + $0x118] sm:$0xff]
      %v291 = vld [vmem:[%s237 + $0x120] sm:$0xff]
      %v292 = vld [vmem:[%s237 + $0x128] sm:$0xff]
      %v293 = vld [vmem:[%s237 + $0x130] sm:$0xff]
      %v294 = vld [vmem:[%s237 + $0x138] sm:$0xff]
      %v295 = vld [vmem:[%s237 + $0x140] sm:$0xff]
      %v296 = vld [vmem:[%s237 + $0x148] sm:$0xff]
      %v297 = vld [vmem:[%s237 + $0x150] sm:$0xff]
      %v298 = vld [vmem:[%s237 + $0x158] sm:$0xff]
      %v299 = vld [vmem:[%s237 + $0x160] sm:$0xff]
      %v300 = vld [vmem:[%s237 + $0x168] sm:$0xff]
      %v301 = vld [vmem:[%s237 + $0x170] sm:$0xff]
      %v302 = vld [vmem:[%s237 + $0x178] sm:$0xff]
      %v303 = vld [vmem:[%s237 + $0x180] sm:$0xff]
      %v304 = vld [vmem:[%s237 + $0x188] sm:$0xff]
      %v305 = vld [vmem:[%s237 + $0x190] sm:$0xff]
      %v306 = vld [vmem:[%s237 + $0x198] sm:$0xff]
      %v307 = vld [vmem:[%s237 + $0x1a0] sm:$0xff]
      %v308 = vld [vmem:[%s237 + $0x1a8] sm:$0xff]
      %v309 = vld [vmem:[%s237 + $0x1b0] sm:$0xff]
      %v310 = vld [vmem:[%s237 + $0x1b8] sm:$0xff]
      %v311 = vld [vmem:[%s237 + $0x1c0] sm:$0xff]
      %v312 = vld [vmem:[%s237 + $0x1c8] sm:$0xff]
      %v313 = vld [vmem:[%s237 + $0x1d0] sm:$0xff]
      %v314 = vld [vmem:[%s237 + $0x1d8] sm:$0xff]
      %v315 = vld [vmem:[%s237 + $0x1e0] sm:$0xff]
      %v316 = vld [vmem:[%s237 + $0x1e8] sm:$0xff]
      %v317 = vld [vmem:[%s237 + $0x1f0] sm:$0xff]
      %v318 = vld [vmem:[%s237 + $0x1f8] sm:$0xff]
      %v319 = vld [vmem:[%s237 + $0x200] sm:$0xff]
      %v320 = vld [vmem:[%s237 + $0x208] sm:$0xff]
      %v321 = vld [vmem:[%s237 + $0x210] sm:$0xff]
      %v322 = vld [vmem:[%s237 + $0x218] sm:$0xff]
      %v323 = vld [vmem:[%s237 + $0x220] sm:$0xff]
      %v324 = vld [vmem:[%s237 + $0x228] sm:$0xff]
      %v325 = vld [vmem:[%s237 + $0x230] sm:$0xff]
      %v326 = vld [vmem:[%s237 + $0x238] sm:$0xff]
      %v327 = vld [vmem:[%s237 + $0x240] sm:$0xff]
      %v328 = vld [vmem:[%s237 + $0x248] sm:$0xff]
      %v329 = vld [vmem:[%s237 + $0x250] sm:$0xff]
      %v330 = vld [vmem:[%s237 + $0x258] sm:$0xff]
      %v331 = vld [vmem:[%s237 + $0x260] sm:$0xff]
      %v332 = vld [vmem:[%s237 + $0x268] sm:$0xff]
      %v333 = vld [vmem:[%s237 + $0x270] sm:$0xff]
      %v334 = vld [vmem:[%s237 + $0x278] sm:$0xff]
      %v335 = vld [vmem:[%s237 + $0x280] sm:$0xff]
      %v336 = vld [vmem:[%s237 + $0x288] sm:$0xff]
      %v337 = vld [vmem:[%s237 + $0x290] sm:$0xff]
      %v338 = vld [vmem:[%s237 + $0x298] sm:$0xff]
      %v339 = vld [vmem:[%s237 + $0x2a0] sm:$0xff]
      %v340 = vld [vmem:[%s237 + $0x2a8] sm:$0xff]
      %v341 = vld [vmem:[%s237 + $0x2b0] sm:$0xff]
      %v342 = vld [vmem:[%s237 + $0x2b8] sm:$0xff]
      %v343 = vld [vmem:[%s237 + $0x2c0] sm:$0xff]
      %v344 = vld [vmem:[%s237 + $0x2c8] sm:$0xff]
      %v345 = vld [vmem:[%s237 + $0x2d0] sm:$0xff]
      %v346 = vld [vmem:[%s237 + $0x2d8] sm:$0xff]
      %v347 = vld [vmem:[%s237 + $0x2e0] sm:$0xff]
      %v348 = vld [vmem:[%s237 + $0x2e8] sm:$0xff]
      %v349 = vld [vmem:[%s237 + $0x2f0] sm:$0xff]
      %v350 = vld [vmem:[%s237 + $0x2f8] sm:$0xff]
      %v351 = vld [vmem:[%s237 + $0x300] sm:$0xff]
      %v352 = vld [vmem:[%s237 + $0x308] sm:$0xff]
      %v353 = vld [vmem:[%s237 + $0x310] sm:$0xff]
      %v354 = vld [vmem:[%s237 + $0x318] sm:$0xff]
      %v355 = vld [vmem:[%s237 + $0x320] sm:$0xff]
      %v356 = vld [vmem:[%s237 + $0x328] sm:$0xff]
      %v357 = vld [vmem:[%s237 + $0x330] sm:$0xff]
      %v358 = vld [vmem:[%s237 + $0x338] sm:$0xff]
      %v359 = vld [vmem:[%s237 + $0x340] sm:$0xff]
      %v360 = vld [vmem:[%s237 + $0x348] sm:$0xff]
      %v361 = vld [vmem:[%s237 + $0x350] sm:$0xff]
      %v362 = vld [vmem:[%s237 + $0x358] sm:$0xff]
      %v363 = vld [vmem:[%s237 + $0x360] sm:$0xff]
      %v364 = vld [vmem:[%s237 + $0x368] sm:$0xff]
      %v365 = vld [vmem:[%s237 + $0x370] sm:$0xff]
      %v366 = vld [vmem:[%s237 + $0x378] sm:$0xff]
      %v367 = vld [vmem:[%s237 + $0x380] sm:$0xff]
      %v368 = vld [vmem:[%s237 + $0x388] sm:$0xff]
      %v369 = vld [vmem:[%s237 + $0x390] sm:$0xff]
      %v370 = vld [vmem:[%s237 + $0x398] sm:$0xff]
      %v371 = vld [vmem:[%s237 + $0x3a0] sm:$0xff]
      %v372 = vld [vmem:[%s237 + $0x3a8] sm:$0xff]
      %v373 = vld [vmem:[%s237 + $0x3b0] sm:$0xff]
      %v374 = vld [vmem:[%s237 + $0x3b8] sm:$0xff]
      %v375 = vld [vmem:[%s237 + $0x3c0] sm:$0xff]
      %v376 = vld [vmem:[%s237 + $0x3c8] sm:$0xff]
      %v377 = vld [vmem:[%s237 + $0x3d0] sm:$0xff]
      %v378 = vld [vmem:[%s237 + $0x3d8] sm:$0xff]
      %v379 = vld [vmem:[%s237 + $0x3e0] sm:$0xff]
      %v380 = vld [vmem:[%s237 + $0x3e8] sm:$0xff]
      %v381 = vld [vmem:[%s237 + $0x3f0] sm:$0xff]
      %v382 = vld [vmem:[%s237 + $0x3f8] sm:$0xff]
      %v383 = vld [vmem:[%s237 + $0x400] sm:$0xff]
      %v384 = vld [vmem:[%s237 + $0x408] sm:$0xff]
      %v385 = vld [vmem:[%s237 + $0x410] sm:$0xff]
      %v386 = vld [vmem:[%s237 + $0x418] sm:$0xff]
      %v387 = vld [vmem:[%s237 + $0x420] sm:$0xff]
      %v388 = vld [vmem:[%s237 + $0x428] sm:$0xff]
      %v389 = vld [vmem:[%s237 + $0x430] sm:$0xff]
      %v390 = vld [vmem:[%s237 + $0x438] sm:$0xff]
      %v391 = vld [vmem:[%s237 + $0x440] sm:$0xff]
      %v392 = vld [vmem:[%s237 + $0x448] sm:$0xff]
      %v393 = vld [vmem:[%s237 + $0x450] sm:$0xff]
      %v394 = vld [vmem:[%s237 + $0x458] sm:$0xff]
      %v395 = vld [vmem:[%s237 + $0x460] sm:$0xff]
      %v396 = vld [vmem:[%s237 + $0x468] sm:$0xff]
      %v397 = vld [vmem:[%s237 + $0x470] sm:$0xff]
      %v398 = vld [vmem:[%s237 + $0x478] sm:$0xff]
      %v399 = vld [vmem:[%s237 + $0x480] sm:$0xff]
      %v400 = vld [vmem:[%s237 + $0x488] sm:$0xff]
      %v401 = vld [vmem:[%s237 + $0x490] sm:$0xff]
      %v402 = vld [vmem:[%s237 + $0x498] sm:$0xff]
      %v403 = vld [vmem:[%s237 + $0x4a0] sm:$0xff]
      %v404 = vld [vmem:[%s237 + $0x4a8] sm:$0xff]
      %v405 = vld [vmem:[%s237 + $0x4b0] sm:$0xff]
      %v406 = vld [vmem:[%s237 + $0x4b8] sm:$0xff]
      %v407 = vld [vmem:[%s237 + $0x4c0] sm:$0xff]
      %v408 = vld [vmem:[%s237 + $0x4c8] sm:$0xff]
      %v409 = vld [vmem:[%s237 + $0x4d0] sm:$0xff]
      %v410 = vld [vmem:[%s237 + $0x4d8] sm:$0xff]
      %v411 = vld [vmem:[%s237 + $0x4e0] sm:$0xff]
      %v412 = vld [vmem:[%s237 + $0x4e8] sm:$0xff]
      %v413 = vld [vmem:[%s237 + $0x4f0] sm:$0xff]
      %v414 = vld [vmem:[%s237 + $0x4f8] sm:$0xff]
      %v415 = vld [vmem:[%s237 + $0x500] sm:$0xff]
      %v416 = vld [vmem:[%s237 + $0x508] sm:$0xff]
      %v417 = vld [vmem:[%s237 + $0x510] sm:$0xff]
      %v418 = vld [vmem:[%s237 + $0x518] sm:$0xff]
      %v419 = vld [vmem:[%s237 + $0x520] sm:$0xff]
      %v420 = vld [vmem:[%s237 + $0x528] sm:$0xff]
      %v421 = vld [vmem:[%s237 + $0x530] sm:$0xff]
      %v422 = vld [vmem:[%s237 + $0x538] sm:$0xff]
      %v423 = vld [vmem:[%s237 + $0x540] sm:$0xff]
      %v424 = vld [vmem:[%s237 + $0x548] sm:$0xff]
      %v425 = vld [vmem:[%s237 + $0x550] sm:$0xff]
      %v426 = vld [vmem:[%s237 + $0x558] sm:$0xff]
      %v427 = vld [vmem:[%s237 + $0x560] sm:$0xff]
      %v428 = vld [vmem:[%s237 + $0x568] sm:$0xff]
      %v429 = vld [vmem:[%s237 + $0x570] sm:$0xff]
      %v430 = vld [vmem:[%s237 + $0x578] sm:$0xff]
      %v431 = vld [vmem:[%s237 + $0x580] sm:$0xff]
      %v432 = vld [vmem:[%s237 + $0x588] sm:$0xff]
      %v433 = vld [vmem:[%s237 + $0x590] sm:$0xff]
      %v434 = vld [vmem:[%s237 + $0x598] sm:$0xff]
      %v435 = vld [vmem:[%s237 + $0x5a0] sm:$0xff]
      %v436 = vld [vmem:[%s237 + $0x5a8] sm:$0xff]
      %v437 = vld [vmem:[%s237 + $0x5b0] sm:$0xff]
      %v438 = vld [vmem:[%s237 + $0x5b8] sm:$0xff]
      %v439 = vld [vmem:[%s237 + $0x5c0] sm:$0xff]
      %v440 = vld [vmem:[%s237 + $0x5c8] sm:$0xff]
      %v441 = vld [vmem:[%s237 + $0x5d0] sm:$0xff]
      %v442 = vld [vmem:[%s237 + $0x5d8] sm:$0xff]
      %v443 = vld [vmem:[%s237 + $0x5e0] sm:$0xff]
      %v444 = vld [vmem:[%s237 + $0x5e8] sm:$0xff]
      %v445 = vld [vmem:[%s237 + $0x5f0] sm:$0xff]
      %v446 = vld [vmem:[%s237 + $0x5f8] sm:$0xff]
      %v447 = vld [vmem:[%s1] sm:$0xff]
      %v448 = vld [vmem:[%s1 + $0x8] sm:$0xff]
      %v449 = vld [vmem:[%s1 + $0x10] sm:$0xff]
      %v450 = vld [vmem:[%s1 + $0x18] sm:$0xff]
      %v451 = vld [vmem:[%s1 + $0x20] sm:$0xff]
      %v452 = vld [vmem:[%s1 + $0x28] sm:$0xff]
      %v453 = vld [vmem:[%s1 + $0x30] sm:$0xff]
      %v454 = vld [vmem:[%s1 + $0x38] sm:$0xff]
      %v455 = vld [vmem:[%s1 + $0x40] sm:$0xff]
      %v456 = vld [vmem:[%s1 + $0x48] sm:$0xff]
      %v457 = vld [vmem:[%s1 + $0x50] sm:$0xff]
      %v458 = vld [vmem:[%s1 + $0x58] sm:$0xff]
      %v459 = vld [vmem:[%s1 + $0x60] sm:$0xff]
      %v460 = vld [vmem:[%s1 + $0x68] sm:$0xff]
      %v461 = vld [vmem:[%s1 + $0x70] sm:$0xff]
      %v462 = vld [vmem:[%s1 + $0x78] sm:$0xff]
      %v463 = vld [vmem:[%s1 + $0x80] sm:$0xff]
      %v464 = vld [vmem:[%s1 + $0x88] sm:$0xff]
      %v465 = vld [vmem:[%s1 + $0x90] sm:$0xff]
      %v466 = vld [vmem:[%s1 + $0x98] sm:$0xff]
      %v467 = vld [vmem:[%s1 + $0xa0] sm:$0xff]
      %v468 = vld [vmem:[%s1 + $0xa8] sm:$0xff]
      %v469 = vld [vmem:[%s1 + $0xb0] sm:$0xff]
      %v470 = vld [vmem:[%s1 + $0xb8] sm:$0xff]
      %v471 = vld [vmem:[%s1 + $0xc0] sm:$0xff]
      %v472 = vld [vmem:[%s1 + $0xc8] sm:$0xff]
      %v473 = vld [vmem:[%s1 + $0xd0] sm:$0xff]
      %v474 = vld [vmem:[%s1 + $0xd8] sm:$0xff]
      %v475 = vld [vmem:[%s1 + $0xe0] sm:$0xff]
      %v476 = vld [vmem:[%s1 + $0xe8] sm:$0xff]
      %v477 = vld [vmem:[%s1 + $0xf0] sm:$0xff]
      %v478 = vld [vmem:[%s1 + $0xf8] sm:$0xff]
      %v479 = vld [vmem:[%s1 + $0x100] sm:$0xff]
      %v480 = vld [vmem:[%s1 + $0x108] sm:$0xff]
      %v481 = vld [vmem:[%s1 + $0x110] sm:$0xff]
      %v482 = vld [vmem:[%s1 + $0x118] sm:$0xff]
      %v483 = vld [vmem:[%s1 + $0x120] sm:$0xff]
      %v484 = vld [vmem:[%s1 + $0x128] sm:$0xff]
      %v485 = vld [vmem:[%s1 + $0x130] sm:$0xff]
      %v486 = vld [vmem:[%s1 + $0x138] sm:$0xff]
      %v487 = vld [vmem:[%s1 + $0x140] sm:$0xff]
      %v488 = vld [vmem:[%s1 + $0x148] sm:$0xff]
      %v489 = vld [vmem:[%s1 + $0x150] sm:$0xff]
      %v490 = vld [vmem:[%s1 + $0x158] sm:$0xff]
      %v491 = vld [vmem:[%s1 + $0x160] sm:$0xff]
      %v492 = vld [vmem:[%s1 + $0x168] sm:$0xff]
      %v493 = vld [vmem:[%s1 + $0x170] sm:$0xff]
      %v494 = vld [vmem:[%s1 + $0x178] sm:$0xff]
      %v495 = vld [vmem:[%s1 + $0x180] sm:$0xff]
      %v496 = vld [vmem:[%s1 + $0x188] sm:$0xff]
      %v497 = vld [vmem:[%s1 + $0x190] sm:$0xff]
      %v498 = vld [vmem:[%s1 + $0x198] sm:$0xff]
      %v499 = vld [vmem:[%s1 + $0x1a0] sm:$0xff]
      %v500 = vld [vmem:[%s1 + $0x1a8] sm:$0xff]
      %v501 = vld [vmem:[%s1 + $0x1b0] sm:$0xff]
      %v502 = vld [vmem:[%s1 + $0x1b8] sm:$0xff]
      %v503 = vld [vmem:[%s1 + $0x1c0] sm:$0xff]
      %v504 = vld [vmem:[%s1 + $0x1c8] sm:$0xff]
      %v505 = vld [vmem:[%s1 + $0x1d0] sm:$0xff]
      %v506 = vld [vmem:[%s1 + $0x1d8] sm:$0xff]
      %v507 = vld [vmem:[%s1 + $0x1e0] sm:$0xff]
      %v508 = vld [vmem:[%s1 + $0x1e8] sm:$0xff]
      %v509 = vld [vmem:[%s1 + $0x1f0] sm:$0xff]
      %v510 = vld [vmem:[%s1 + $0x1f8] sm:$0xff]
      %v511 = vld [vmem:[%s1 + $0x200] sm:$0xff]
      %v512 = vld [vmem:[%s1 + $0x208] sm:$0xff]
      %v513 = vld [vmem:[%s1 + $0x210] sm:$0xff]
      %v514 = vld [vmem:[%s1 + $0x218] sm:$0xff]
      %v515 = vld [vmem:[%s1 + $0x220] sm:$0xff]
      %v516 = vld [vmem:[%s1 + $0x228] sm:$0xff]
      %v517 = vld [vmem:[%s1 + $0x230] sm:$0xff]
      %v518 = vld [vmem:[%s1 + $0x238] sm:$0xff]
      %v519 = vld [vmem:[%s1 + $0x240] sm:$0xff]
      %v520 = vld [vmem:[%s1 + $0x248] sm:$0xff]
      %v521 = vld [vmem:[%s1 + $0x250] sm:$0xff]
      %v522 = vld [vmem:[%s1 + $0x258] sm:$0xff]
      %v523 = vld [vmem:[%s1 + $0x260] sm:$0xff]
      %v524 = vld [vmem:[%s1 + $0x268] sm:$0xff]
      %v525 = vld [vmem:[%s1 + $0x270] sm:$0xff]
      %v526 = vld [vmem:[%s1 + $0x278] sm:$0xff]
      %v527 = vld [vmem:[%s1 + $0x280] sm:$0xff]
      %v528 = vld [vmem:[%s1 + $0x288] sm:$0xff]
      %v529 = vld [vmem:[%s1 + $0x290] sm:$0xff]
      %v530 = vld [vmem:[%s1 + $0x298] sm:$0xff]
      %v531 = vld [vmem:[%s1 + $0x2a0] sm:$0xff]
      %v532 = vld [vmem:[%s1 + $0x2a8] sm:$0xff]
      %v533 = vld [vmem:[%s1 + $0x2b0] sm:$0xff]
      %v534 = vld [vmem:[%s1 + $0x2b8] sm:$0xff]
      %v535 = vld [vmem:[%s1 + $0x2c0] sm:$0xff]
      %v536 = vld [vmem:[%s1 + $0x2c8] sm:$0xff]
      %v537 = vld [vmem:[%s1 + $0x2d0] sm:$0xff]
      %v538 = vld [vmem:[%s1 + $0x2d8] sm:$0xff]
      %v539 = vld [vmem:[%s1 + $0x2e0] sm:$0xff]
      %v540 = vld [vmem:[%s1 + $0x2e8] sm:$0xff]
      %v541 = vld [vmem:[%s1 + $0x2f0] sm:$0xff]
      %v542 = vld [vmem:[%s1 + $0x2f8] sm:$0xff]
      %v543 = vld [vmem:[%s1 + $0x300] sm:$0xff]
      %v544 = vld [vmem:[%s1 + $0x308] sm:$0xff]
      %v545 = vld [vmem:[%s1 + $0x310] sm:$0xff]
      %v546 = vld [vmem:[%s1 + $0x318] sm:$0xff]
      %v547 = vld [vmem:[%s1 + $0x320] sm:$0xff]
      %v548 = vld [vmem:[%s1 + $0x328] sm:$0xff]
      %v549 = vld [vmem:[%s1 + $0x330] sm:$0xff]
      %v550 = vld [vmem:[%s1 + $0x338] sm:$0xff]
      %v551 = vld [vmem:[%s1 + $0x340] sm:$0xff]
      %v552 = vld [vmem:[%s1 + $0x348] sm:$0xff]
      %v553 = vld [vmem:[%s1 + $0x350] sm:$0xff]
      %v554 = vld [vmem:[%s1 + $0x358] sm:$0xff]
      %v555 = vld [vmem:[%s1 + $0x360] sm:$0xff]
      %v556 = vld [vmem:[%s1 + $0x368] sm:$0xff]
      %v557 = vld [vmem:[%s1 + $0x370] sm:$0xff]
      %v558 = vld [vmem:[%s1 + $0x378] sm:$0xff]
      %v559 = vld [vmem:[%s1 + $0x380] sm:$0xff]
      %v560 = vld [vmem:[%s1 + $0x388] sm:$0xff]
      %v561 = vld [vmem:[%s1 + $0x390] sm:$0xff]
      %v562 = vld [vmem:[%s1 + $0x398] sm:$0xff]
      %v563 = vld [vmem:[%s1 + $0x3a0] sm:$0xff]
      %v564 = vld [vmem:[%s1 + $0x3a8] sm:$0xff]
      %v565 = vld [vmem:[%s1 + $0x3b0] sm:$0xff]
      %v566 = vld [vmem:[%s1 + $0x3b8] sm:$0xff]
      %v567 = vld [vmem:[%s1 + $0x3c0] sm:$0xff]
      %v568 = vld [vmem:[%s1 + $0x3c8] sm:$0xff]
      %v569 = vld [vmem:[%s1 + $0x3d0] sm:$0xff]
      %v570 = vld [vmem:[%s1 + $0x3d8] sm:$0xff]
      %v571 = vld [vmem:[%s1 + $0x3e0] sm:$0xff]
      %v572 = vld [vmem:[%s1 + $0x3e8] sm:$0xff]
      %v573 = vld [vmem:[%s1 + $0x3f0] sm:$0xff]
      %v574 = vld [vmem:[%s1 + $0x3f8] sm:$0xff]
      %v575 = vld [vmem:[%s1 + $0x400] sm:$0xff]
      %v576 = vld [vmem:[%s1 + $0x408] sm:$0xff]
      %v577 = vld [vmem:[%s1 + $0x410] sm:$0xff]
      %v578 = vld [vmem:[%s1 + $0x418] sm:$0xff]
      %v579 = vld [vmem:[%s1 + $0x420] sm:$0xff]
      %v580 = vld [vmem:[%s1 + $0x428] sm:$0xff]
      %v581 = vld [vmem:[%s1 + $0x430] sm:$0xff]
      %v582 = vld [vmem:[%s1 + $0x438] sm:$0xff]
      %v583 = vld [vmem:[%s1 + $0x440] sm:$0xff]
      %v584 = vld [vmem:[%s1 + $0x448] sm:$0xff]
      %v585 = vld [vmem:[%s1 + $0x450] sm:$0xff]
      %v586 = vld [vmem:[%s1 + $0x458] sm:$0xff]
      %v587 = vld [vmem:[%s1 + $0x460] sm:$0xff]
      %v588 = vld [vmem:[%s1 + $0x468] sm:$0xff]
      %v589 = vld [vmem:[%s1 + $0x470] sm:$0xff]
      %v590 = vld [vmem:[%s1 + $0x478] sm:$0xff]
      %v591 = vld [vmem:[%s1 + $0x480] sm:$0xff]
      %v592 = vld [vmem:[%s1 + $0x488] sm:$0xff]
      %v593 = vld [vmem:[%s1 + $0x490] sm:$0xff]
      %v594 = vld [vmem:[%s1 + $0x498] sm:$0xff]
      %v595 = vld [vmem:[%s1 + $0x4a0] sm:$0xff]
      %v596 = vld [vmem:[%s1 + $0x4a8] sm:$0xff]
      %v597 = vld [vmem:[%s1 + $0x4b0] sm:$0xff]
      %v598 = vld [vmem:[%s1 + $0x4b8] sm:$0xff]
      %v599 = vld [vmem:[%s1 + $0x4c0] sm:$0xff]
      %v600 = vld [vmem:[%s1 + $0x4c8] sm:$0xff]
      %v601 = vld [vmem:[%s1 + $0x4d0] sm:$0xff]
      %v602 = vld [vmem:[%s1 + $0x4d8] sm:$0xff]
      %v603 = vld [vmem:[%s1 + $0x4e0] sm:$0xff]
      %v604 = vld [vmem:[%s1 + $0x4e8] sm:$0xff]
      %v605 = vld [vmem:[%s1 + $0x4f0] sm:$0xff]
      %v606 = vld [vmem:[%s1 + $0x4f8] sm:$0xff]
      %v607 = vld [vmem:[%s1 + $0x500] sm:$0xff]
      %v608 = vld [vmem:[%s1 + $0x508] sm:$0xff]
      %v609 = vld [vmem:[%s1 + $0x510] sm:$0xff]
      %v610 = vld [vmem:[%s1 + $0x518] sm:$0xff]
      %v611 = vld [vmem:[%s1 + $0x520] sm:$0xff]
      %v612 = vld [vmem:[%s1 + $0x528] sm:$0xff]
      %v613 = vld [vmem:[%s1 + $0x530] sm:$0xff]
      %v614 = vld [vmem:[%s1 + $0x538] sm:$0xff]
      %v615 = vld [vmem:[%s1 + $0x540] sm:$0xff]
      %v616 = vld [vmem:[%s1 + $0x548] sm:$0xff]
      %v617 = vld [vmem:[%s1 + $0x550] sm:$0xff]
      %v618 = vld [vmem:[%s1 + $0x558] sm:$0xff]
      %v619 = vld [vmem:[%s1 + $0x560] sm:$0xff]
      %v620 = vld [vmem:[%s1 + $0x568] sm:$0xff]
      %v621 = vld [vmem:[%s1 + $0x570] sm:$0xff]
      %v622 = vld [vmem:[%s1 + $0x578] sm:$0xff]
      %v623 = vld [vmem:[%s1 + $0x580] sm:$0xff]
      %v624 = vld [vmem:[%s1 + $0x588] sm:$0xff]
      %v625 = vld [vmem:[%s1 + $0x590] sm:$0xff]
      %v626 = vld [vmem:[%s1 + $0x598] sm:$0xff]
      %v627 = vld [vmem:[%s2] sm:$0x3]
      %v629 = vlaneseq
      %v630 = vshrl.u32 %v629, 7
      %v631 = vsub.s32 0, %v630
      %v632 = vrot.slane %v627, %v631
      %v633 = vlaneseq
      %v634 = vshrl.u32 %v633, 7
      %v635 = vsub.s32 1, %v634
      %v636 = vrot.slane %v627, %v635
      %v831 = vunpack.c.l.b16 %v255
      %v832 = vunpack.c.h.b16 %v255
      %v833 = vunpack.c.l.b16 %v256
      %v834 = vunpack.c.h.b16 %v256
      %v835 = vunpack.c.l.b16 %v257
      %v836 = vunpack.c.h.b16 %v257
      %v837 = vunpack.c.l.b16 %v258
      %v838 = vunpack.c.h.b16 %v258
      %v839 = vunpack.c.l.b16 %v259
      %v840 = vunpack.c.h.b16 %v259
      %v841 = vunpack.c.l.b16 %v260
      %v842 = vunpack.c.h.b16 %v260
      %v843 = vunpack.c.l.b16 %v261
      %v844 = vunpack.c.h.b16 %v261
      %v845 = vunpack.c.l.b16 %v262
      %v846 = vunpack.c.h.b16 %v262
      %v847 = vunpack.c.l.b16 %v263
      %v848 = vunpack.c.h.b16 %v263
      %v849 = vunpack.c.l.b16 %v264
      %v850 = vunpack.c.h.b16 %v264
      %v851 = vunpack.c.l.b16 %v265
      %v852 = vunpack.c.h.b16 %v265
      %v853 = vunpack.c.l.b16 %v266
      %v854 = vunpack.c.h.b16 %v266
      %v855 = vunpack.c.l.b16 %v267
      %v856 = vunpack.c.h.b16 %v267
      %v857 = vunpack.c.l.b16 %v268
      %v858 = vunpack.c.h.b16 %v268
      %v859 = vunpack.c.l.b16 %v269
      %v860 = vunpack.c.h.b16 %v269
      %v861 = vunpack.c.l.b16 %v270
      %v862 = vunpack.c.h.b16 %v270
      %v863 = vunpack.c.l.b16 %v271
      %v864 = vunpack.c.h.b16 %v271
      %v865 = vunpack.c.l.b16 %v272
      %v866 = vunpack.c.h.b16 %v272
      %v867 = vunpack.c.l.b16 %v273
      %v868 = vunpack.c.h.b16 %v273
      %v869 = vunpack.c.l.b16 %v274
      %v870 = vunpack.c.h.b16 %v274
      %v871 = vunpack.c.l.b16 %v275
      %v872 = vunpack.c.h.b16 %v275
      %v873 = vunpack.c.l.b16 %v276
      %v874 = vunpack.c.h.b16 %v276
      %v875 = vunpack.c.l.b16 %v277
      %v876 = vunpack.c.h.b16 %v277
      %v877 = vunpack.c.l.b16 %v278
      %v878 = vunpack.c.h.b16 %v278
      %v879 = vunpack.c.l.b16 %v279
      %v880 = vunpack.c.h.b16 %v279
      %v881 = vunpack.c.l.b16 %v280
      %v882 = vunpack.c.h.b16 %v280
      %v883 = vunpack.c.l.b16 %v281
      %v884 = vunpack.c.h.b16 %v281
      %v885 = vunpack.c.l.b16 %v282
      %v886 = vunpack.c.h.b16 %v282
      %v887 = vunpack.c.l.b16 %v283
      %v888 = vunpack.c.h.b16 %v283
      %v889 = vunpack.c.l.b16 %v284
      %v890 = vunpack.c.h.b16 %v284
      %v891 = vunpack.c.l.b16 %v285
      %v892 = vunpack.c.h.b16 %v285
      %v893 = vunpack.c.l.b16 %v286
      %v894 = vunpack.c.h.b16 %v286
      %v895 = vunpack.c.l.b16 %v287
      %v896 = vunpack.c.h.b16 %v287
      %v897 = vunpack.c.l.b16 %v288
      %v898 = vunpack.c.h.b16 %v288
      %v899 = vunpack.c.l.b16 %v289
      %v900 = vunpack.c.h.b16 %v289
      %v901 = vunpack.c.l.b16 %v290
      %v902 = vunpack.c.h.b16 %v290
      %v903 = vunpack.c.l.b16 %v291
      %v904 = vunpack.c.h.b16 %v291
      %v905 = vunpack.c.l.b16 %v292
      %v906 = vunpack.c.h.b16 %v292
      %v907 = vunpack.c.l.b16 %v293
      %v908 = vunpack.c.h.b16 %v293
      %v909 = vunpack.c.l.b16 %v294
      %v910 = vunpack.c.h.b16 %v294
      %v911 = vunpack.c.l.b16 %v295
      %v912 = vunpack.c.h.b16 %v295
      %v913 = vunpack.c.l.b16 %v296
      %v914 = vunpack.c.h.b16 %v296
      %v915 = vunpack.c.l.b16 %v297
      %v916 = vunpack.c.h.b16 %v297
      %v917 = vunpack.c.l.b16 %v298
      %v918 = vunpack.c.h.b16 %v298
      %v919 = vunpack.c.l.b16 %v299
      %v920 = vunpack.c.h.b16 %v299
      %v921 = vunpack.c.l.b16 %v300
      %v922 = vunpack.c.h.b16 %v300
      %v923 = vunpack.c.l.b16 %v301
      %v924 = vunpack.c.h.b16 %v301
      %v925 = vunpack.c.l.b16 %v302
      %v926 = vunpack.c.h.b16 %v302
      %v927 = vunpack.c.l.b16 %v303
      %v928 = vunpack.c.h.b16 %v303
      %v929 = vunpack.c.l.b16 %v304
      %v930 = vunpack.c.h.b16 %v304
      %v931 = vunpack.c.l.b16 %v305
      %v932 = vunpack.c.h.b16 %v305
      %v933 = vunpack.c.l.b16 %v306
      %v934 = vunpack.c.h.b16 %v306
      %v935 = vunpack.c.l.b16 %v307
      %v936 = vunpack.c.h.b16 %v307
      %v937 = vunpack.c.l.b16 %v308
      %v938 = vunpack.c.h.b16 %v308
      %v939 = vunpack.c.l.b16 %v309
      %v940 = vunpack.c.h.b16 %v309
      %v941 = vunpack.c.l.b16 %v310
      %v942 = vunpack.c.h.b16 %v310
      %v943 = vunpack.c.l.b16 %v311
      %v944 = vunpack.c.h.b16 %v311
      %v945 = vunpack.c.l.b16 %v312
      %v946 = vunpack.c.h.b16 %v312
      %v947 = vunpack.c.l.b16 %v313
      %v948 = vunpack.c.h.b16 %v313
      %v949 = vunpack.c.l.b16 %v314
      %v950 = vunpack.c.h.b16 %v314
      %v951 = vunpack.c.l.b16 %v315
      %v952 = vunpack.c.h.b16 %v315
      %v953 = vunpack.c.l.b16 %v316
      %v954 = vunpack.c.h.b16 %v316
      %v955 = vunpack.c.l.b16 %v317
      %v956 = vunpack.c.h.b16 %v317
      %v957 = vunpack.c.l.b16 %v318
      %v958 = vunpack.c.h.b16 %v318
      %v959 = vunpack.c.l.b16 %v319
      %v960 = vunpack.c.h.b16 %v319
      %v961 = vunpack.c.l.b16 %v320
      %v962 = vunpack.c.h.b16 %v320
      %v963 = vunpack.c.l.b16 %v321
      %v964 = vunpack.c.h.b16 %v321
      %v965 = vunpack.c.l.b16 %v322
      %v966 = vunpack.c.h.b16 %v322
      %v967 = vunpack.c.l.b16 %v323
      %v968 = vunpack.c.h.b16 %v323
      %v969 = vunpack.c.l.b16 %v324
      %v970 = vunpack.c.h.b16 %v324
      %v971 = vunpack.c.l.b16 %v325
      %v972 = vunpack.c.h.b16 %v325
      %v973 = vunpack.c.l.b16 %v326
      %v974 = vunpack.c.h.b16 %v326
      %v975 = vunpack.c.l.b16 %v327
      %v976 = vunpack.c.h.b16 %v327
      %v977 = vunpack.c.l.b16 %v328
      %v978 = vunpack.c.h.b16 %v328
      %v979 = vunpack.c.l.b16 %v329
      %v980 = vunpack.c.h.b16 %v329
      %v981 = vunpack.c.l.b16 %v330
      %v982 = vunpack.c.h.b16 %v330
      %v983 = vunpack.c.l.b16 %v331
      %v984 = vunpack.c.h.b16 %v331
      %v985 = vunpack.c.l.b16 %v332
      %v986 = vunpack.c.h.b16 %v332
      %v987 = vunpack.c.l.b16 %v333
      %v988 = vunpack.c.h.b16 %v333
      %v989 = vunpack.c.l.b16 %v334
      %v990 = vunpack.c.h.b16 %v334
      %v991 = vunpack.c.l.b16 %v335
      %v992 = vunpack.c.h.b16 %v335
      %v993 = vunpack.c.l.b16 %v336
      %v994 = vunpack.c.h.b16 %v336
      %v995 = vunpack.c.l.b16 %v337
      %v996 = vunpack.c.h.b16 %v337
      %v997 = vunpack.c.l.b16 %v338
      %v998 = vunpack.c.h.b16 %v338
      %v999 = vunpack.c.l.b16 %v339
      %v1000 = vunpack.c.h.b16 %v339
      %v1001 = vunpack.c.l.b16 %v340
      %v1002 = vunpack.c.h.b16 %v340
      %v1003 = vunpack.c.l.b16 %v341
      %v1004 = vunpack.c.h.b16 %v341
      %v1005 = vunpack.c.l.b16 %v342
      %v1006 = vunpack.c.h.b16 %v342
      %v1007 = vunpack.c.l.b16 %v343
      %v1008 = vunpack.c.h.b16 %v343
      %v1009 = vunpack.c.l.b16 %v344
      %v1010 = vunpack.c.h.b16 %v344
      %v1011 = vunpack.c.l.b16 %v345
      %v1012 = vunpack.c.h.b16 %v345
      %v1013 = vunpack.c.l.b16 %v346
      %v1014 = vunpack.c.h.b16 %v346
      %v1015 = vunpack.c.l.b16 %v347
      %v1016 = vunpack.c.h.b16 %v347
      %v1017 = vunpack.c.l.b16 %v348
      %v1018 = vunpack.c.h.b16 %v348
      %v1019 = vunpack.c.l.b16 %v349
      %v1020 = vunpack.c.h.b16 %v349
      %v1021 = vunpack.c.l.b16 %v350
      %v1022 = vunpack.c.h.b16 %v350
      %v1023 = vunpack.c.l.b16 %v351
      %v1024 = vunpack.c.h.b16 %v351
      %v1025 = vunpack.c.l.b16 %v352
      %v1026 = vunpack.c.h.b16 %v352
      %v1027 = vunpack.c.l.b16 %v353
      %v1028 = vunpack.c.h.b16 %v353
      %v1029 = vunpack.c.l.b16 %v354
      %v1030 = vunpack.c.h.b16 %v354
      %v1031 = vunpack.c.l.b16 %v355
      %v1032 = vunpack.c.h.b16 %v355
      %v1033 = vunpack.c.l.b16 %v356
      %v1034 = vunpack.c.h.b16 %v356
      %v1035 = vunpack.c.l.b16 %v357
      %v1036 = vunpack.c.h.b16 %v357
      %v1037 = vunpack.c.l.b16 %v358
      %v1038 = vunpack.c.h.b16 %v358
      %v1039 = vunpack.c.l.b16 %v359
      %v1040 = vunpack.c.h.b16 %v359
      %v1041 = vunpack.c.l.b16 %v360
      %v1042 = vunpack.c.h.b16 %v360
      %v1043 = vunpack.c.l.b16 %v361
      %v1044 = vunpack.c.h.b16 %v361
      %v1045 = vunpack.c.l.b16 %v362
      %v1046 = vunpack.c.h.b16 %v362
      %v1047 = vunpack.c.l.b16 %v363
      %v1048 = vunpack.c.h.b16 %v363
      %v1049 = vunpack.c.l.b16 %v364
      %v1050 = vunpack.c.h.b16 %v364
      %v1051 = vunpack.c.l.b16 %v365
      %v1052 = vunpack.c.h.b16 %v365
      %v1053 = vunpack.c.l.b16 %v366
      %v1054 = vunpack.c.h.b16 %v366
      %v1055 = vunpack.c.l.b16 %v367
      %v1056 = vunpack.c.h.b16 %v367
      %v1057 = vunpack.c.l.b16 %v368
      %v1058 = vunpack.c.h.b16 %v368
      %v1059 = vunpack.c.l.b16 %v369
      %v1060 = vunpack.c.h.b16 %v369
      %v1061 = vunpack.c.l.b16 %v370
      %v1062 = vunpack.c.h.b16 %v370
      %v1063 = vunpack.c.l.b16 %v371
      %v1064 = vunpack.c.h.b16 %v371
      %v1065 = vunpack.c.l.b16 %v372
      %v1066 = vunpack.c.h.b16 %v372
      %v1067 = vunpack.c.l.b16 %v373
      %v1068 = vunpack.c.h.b16 %v373
      %v1069 = vunpack.c.l.b16 %v374
      %v1070 = vunpack.c.h.b16 %v374
      %v1071 = vunpack.c.l.b16 %v375
      %v1072 = vunpack.c.h.b16 %v375
      %v1073 = vunpack.c.l.b16 %v376
      %v1074 = vunpack.c.h.b16 %v376
      %v1075 = vunpack.c.l.b16 %v377
      %v1076 = vunpack.c.h.b16 %v377
      %v1077 = vunpack.c.l.b16 %v378
      %v1078 = vunpack.c.h.b16 %v378
      %v1079 = vunpack.c.l.b16 %v379
      %v1080 = vunpack.c.h.b16 %v379
      %v1081 = vunpack.c.l.b16 %v380
      %v1082 = vunpack.c.h.b16 %v380
      %v1083 = vunpack.c.l.b16 %v381
      %v1084 = vunpack.c.h.b16 %v381
      %v1085 = vunpack.c.l.b16 %v382
      %v1086 = vunpack.c.h.b16 %v382
      %v1087 = vunpack.c.l.b16 %v383
      %v1088 = vunpack.c.h.b16 %v383
      %v1089 = vunpack.c.l.b16 %v384
      %v1090 = vunpack.c.h.b16 %v384
      %v1091 = vunpack.c.l.b16 %v385
      %v1092 = vunpack.c.h.b16 %v385
      %v1093 = vunpack.c.l.b16 %v386
      %v1094 = vunpack.c.h.b16 %v386
      %v1095 = vunpack.c.l.b16 %v387
      %v1096 = vunpack.c.h.b16 %v387
      %v1097 = vunpack.c.l.b16 %v388
      %v1098 = vunpack.c.h.b16 %v388
      %v1099 = vunpack.c.l.b16 %v389
      %v1100 = vunpack.c.h.b16 %v389
      %v1101 = vunpack.c.l.b16 %v390
      %v1102 = vunpack.c.h.b16 %v390
      %v1103 = vunpack.c.l.b16 %v391
      %v1104 = vunpack.c.h.b16 %v391
      %v1105 = vunpack.c.l.b16 %v392
      %v1106 = vunpack.c.h.b16 %v392
      %v1107 = vunpack.c.l.b16 %v393
      %v1108 = vunpack.c.h.b16 %v393
      %v1109 = vunpack.c.l.b16 %v394
      %v1110 = vunpack.c.h.b16 %v394
      %v1111 = vunpack.c.l.b16 %v395
      %v1112 = vunpack.c.h.b16 %v395
      %v1113 = vunpack.c.l.b16 %v396
      %v1114 = vunpack.c.h.b16 %v396
      %v1115 = vunpack.c.l.b16 %v397
      %v1116 = vunpack.c.h.b16 %v397
      %v1117 = vunpack.c.l.b16 %v398
      %v1118 = vunpack.c.h.b16 %v398
      %v1119 = vunpack.c.l.b16 %v399
      %v1120 = vunpack.c.h.b16 %v399
      %v1121 = vunpack.c.l.b16 %v400
      %v1122 = vunpack.c.h.b16 %v400
      %v1123 = vunpack.c.l.b16 %v401
      %v1124 = vunpack.c.h.b16 %v401
      %v1125 = vunpack.c.l.b16 %v402
      %v1126 = vunpack.c.h.b16 %v402
      %v1127 = vunpack.c.l.b16 %v403
      %v1128 = vunpack.c.h.b16 %v403
      %v1129 = vunpack.c.l.b16 %v404
      %v1130 = vunpack.c.h.b16 %v404
      %v1131 = vunpack.c.l.b16 %v405
      %v1132 = vunpack.c.h.b16 %v405
      %v1133 = vunpack.c.l.b16 %v406
      %v1134 = vunpack.c.h.b16 %v406
      %v1135 = vunpack.c.l.b16 %v407
      %v1136 = vunpack.c.h.b16 %v407
      %v1137 = vunpack.c.l.b16 %v408
      %v1138 = vunpack.c.h.b16 %v408
      %v1139 = vunpack.c.l.b16 %v409
      %v1140 = vunpack.c.h.b16 %v409
      %v1141 = vunpack.c.l.b16 %v410
      %v1142 = vunpack.c.h.b16 %v410
      %v1143 = vunpack.c.l.b16 %v411
      %v1144 = vunpack.c.h.b16 %v411
      %v1145 = vunpack.c.l.b16 %v412
      %v1146 = vunpack.c.h.b16 %v412
      %v1147 = vunpack.c.l.b16 %v413
      %v1148 = vunpack.c.h.b16 %v413
      %v1149 = vunpack.c.l.b16 %v414
      %v1150 = vunpack.c.h.b16 %v414
      %v1151 = vunpack.c.l.b16 %v415
      %v1152 = vunpack.c.h.b16 %v415
      %v1153 = vunpack.c.l.b16 %v416
      %v1154 = vunpack.c.h.b16 %v416
      %v1155 = vunpack.c.l.b16 %v417
      %v1156 = vunpack.c.h.b16 %v417
      %v1157 = vunpack.c.l.b16 %v418
      %v1158 = vunpack.c.h.b16 %v418
      %v1159 = vunpack.c.l.b16 %v419
      %v1160 = vunpack.c.h.b16 %v419
      %v1161 = vunpack.c.l.b16 %v420
      %v1162 = vunpack.c.h.b16 %v420
      %v1163 = vunpack.c.l.b16 %v421
      %v1164 = vunpack.c.h.b16 %v421
      %v1165 = vunpack.c.l.b16 %v422
      %v1166 = vunpack.c.h.b16 %v422
      %v1167 = vunpack.c.l.b16 %v423
      %v1168 = vunpack.c.h.b16 %v423
      %v1169 = vunpack.c.l.b16 %v424
      %v1170 = vunpack.c.h.b16 %v424
      %v1171 = vunpack.c.l.b16 %v425
      %v1172 = vunpack.c.h.b16 %v425
      %v1173 = vunpack.c.l.b16 %v426
      %v1174 = vunpack.c.h.b16 %v426
      %v1175 = vunpack.c.l.b16 %v427
      %v1176 = vunpack.c.h.b16 %v427
      %v1177 = vunpack.c.l.b16 %v428
      %v1178 = vunpack.c.h.b16 %v428
      %v1179 = vunpack.c.l.b16 %v429
      %v1180 = vunpack.c.h.b16 %v429
      %v1181 = vunpack.c.l.b16 %v430
      %v1182 = vunpack.c.h.b16 %v430
      %v1183 = vunpack.c.l.b16 %v431
      %v1184 = vunpack.c.h.b16 %v431
      %v1185 = vunpack.c.l.b16 %v432
      %v1186 = vunpack.c.h.b16 %v432
      %v1187 = vunpack.c.l.b16 %v433
      %v1188 = vunpack.c.h.b16 %v433
      %v1189 = vunpack.c.l.b16 %v434
      %v1190 = vunpack.c.h.b16 %v434
      %v1191 = vunpack.c.l.b16 %v435
      %v1192 = vunpack.c.h.b16 %v435
      %v1193 = vunpack.c.l.b16 %v436
      %v1194 = vunpack.c.h.b16 %v436
      %v1195 = vunpack.c.l.b16 %v437
      %v1196 = vunpack.c.h.b16 %v437
      %v1197 = vunpack.c.l.b16 %v438
      %v1198 = vunpack.c.h.b16 %v438
      %v1199 = vunpack.c.l.b16 %v439
      %v1200 = vunpack.c.h.b16 %v439
      %v1201 = vunpack.c.l.b16 %v440
      %v1202 = vunpack.c.h.b16 %v440
      %v1203 = vunpack.c.l.b16 %v441
      %v1204 = vunpack.c.h.b16 %v441
      %v1205 = vunpack.c.l.b16 %v442
      %v1206 = vunpack.c.h.b16 %v442
      %v1207 = vunpack.c.l.b16 %v443
      %v1208 = vunpack.c.h.b16 %v443
      %v1209 = vunpack.c.l.b16 %v444
      %v1210 = vunpack.c.h.b16 %v444
      %v1211 = vunpack.c.l.b16 %v445
      %v1212 = vunpack.c.h.b16 %v445
      %v1213 = vunpack.c.l.b16 %v446
      %v1214 = vunpack.c.h.b16 %v446
      %v1215 = vpack.c.b16 %v843, %v831
      %v1216 = vpack.c.b16 %v844, %v832
      %v1217 = vpack.c.b16 %v845, %v833
      %v1218 = vpack.c.b16 %v846, %v834
      %v1219 = vpack.c.b16 %v847, %v835
      %v1220 = vpack.c.b16 %v848, %v836
      %v1221 = vpack.c.b16 %v849, %v837
      %v1222 = vpack.c.b16 %v850, %v838
      %v1223 = vpack.c.b16 %v851, %v839
      %v1224 = vpack.c.b16 %v852, %v840
      %v1225 = vpack.c.b16 %v853, %v841
      %v1226 = vpack.c.b16 %v854, %v842
      %v1227 = vpack.c.b16 %v867, %v855
      %v1228 = vpack.c.b16 %v868, %v856
      %v1229 = vpack.c.b16 %v869, %v857
      %v1230 = vpack.c.b16 %v870, %v858
      %v1231 = vpack.c.b16 %v871, %v859
      %v1232 = vpack.c.b16 %v872, %v860
      %v1233 = vpack.c.b16 %v873, %v861
      %v1234 = vpack.c.b16 %v874, %v862
      %v1235 = vpack.c.b16 %v875, %v863
      %v1236 = vpack.c.b16 %v876, %v864
      %v1237 = vpack.c.b16 %v877, %v865
      %v1238 = vpack.c.b16 %v878, %v866
      %v1239 = vpack.c.b16 %v891, %v879
      %v1240 = vpack.c.b16 %v892, %v880
      %v1241 = vpack.c.b16 %v893, %v881
      %v1242 = vpack.c.b16 %v894, %v882
      %v1243 = vpack.c.b16 %v895, %v883
      %v1244 = vpack.c.b16 %v896, %v884
      %v1245 = vpack.c.b16 %v897, %v885
      %v1246 = vpack.c.b16 %v898, %v886
      %v1247 = vpack.c.b16 %v899, %v887
      %v1248 = vpack.c.b16 %v900, %v888
      %v1249 = vpack.c.b16 %v901, %v889
      %v1250 = vpack.c.b16 %v902, %v890
      %v1251 = vpack.c.b16 %v915, %v903
      %v1252 = vpack.c.b16 %v916, %v904
      %v1253 = vpack.c.b16 %v917, %v905
      %v1254 = vpack.c.b16 %v918, %v906
      %v1255 = vpack.c.b16 %v919, %v907
      %v1256 = vpack.c.b16 %v920, %v908
      %v1257 = vpack.c.b16 %v921, %v909
      %v1258 = vpack.c.b16 %v922, %v910
      %v1259 = vpack.c.b16 %v923, %v911
      %v1260 = vpack.c.b16 %v924, %v912
      %v1261 = vpack.c.b16 %v925, %v913
      %v1262 = vpack.c.b16 %v926, %v914
      %v1263 = vpack.c.b16 %v939, %v927
      %v1264 = vpack.c.b16 %v940, %v928
      %v1265 = vpack.c.b16 %v941, %v929
      %v1266 = vpack.c.b16 %v942, %v930
      %v1267 = vpack.c.b16 %v943, %v931
      %v1268 = vpack.c.b16 %v944, %v932
      %v1269 = vpack.c.b16 %v945, %v933
      %v1270 = vpack.c.b16 %v946, %v934
      %v1271 = vpack.c.b16 %v947, %v935
      %v1272 = vpack.c.b16 %v948, %v936
      %v1273 = vpack.c.b16 %v949, %v937
      %v1274 = vpack.c.b16 %v950, %v938
      %v1275 = vpack.c.b16 %v963, %v951
      %v1276 = vpack.c.b16 %v964, %v952
      %v1277 = vpack.c.b16 %v965, %v953
      %v1278 = vpack.c.b16 %v966, %v954
      %v1279 = vpack.c.b16 %v967, %v955
      %v1280 = vpack.c.b16 %v968, %v956
      %v1281 = vpack.c.b16 %v969, %v957
      %v1282 = vpack.c.b16 %v970, %v958
      %v1283 = vpack.c.b16 %v971, %v959
      %v1284 = vpack.c.b16 %v972, %v960
      %v1285 = vpack.c.b16 %v973, %v961
      %v1286 = vpack.c.b16 %v974, %v962
      %v1287 = vpack.c.b16 %v987, %v975
      %v1288 = vpack.c.b16 %v988, %v976
      %v1289 = vpack.c.b16 %v989, %v977
      %v1290 = vpack.c.b16 %v990, %v978
      %v1291 = vpack.c.b16 %v991, %v979
      %v1292 = vpack.c.b16 %v992, %v980
      %v1293 = vpack.c.b16 %v993, %v981
      %v1294 = vpack.c.b16 %v994, %v982
      %v1295 = vpack.c.b16 %v995, %v983
      %v1296 = vpack.c.b16 %v996, %v984
      %v1297 = vpack.c.b16 %v997, %v985
      %v1298 = vpack.c.b16 %v998, %v986
      %v1299 = vpack.c.b16 %v1011, %v999
      %v1300 = vpack.c.b16 %v1012, %v1000
      %v1301 = vpack.c.b16 %v1013, %v1001
      %v1302 = vpack.c.b16 %v1014, %v1002
      %v1303 = vpack.c.b16 %v1015, %v1003
      %v1304 = vpack.c.b16 %v1016, %v1004
      %v1305 = vpack.c.b16 %v1017, %v1005
      %v1306 = vpack.c.b16 %v1018, %v1006
      %v1307 = vpack.c.b16 %v1019, %v1007
      %v1308 = vpack.c.b16 %v1020, %v1008
      %v1309 = vpack.c.b16 %v1021, %v1009
      %v1310 = vpack.c.b16 %v1022, %v1010
      %v1311 = vpack.c.b16 %v1035, %v1023
      %v1312 = vpack.c.b16 %v1036, %v1024
      %v1313 = vpack.c.b16 %v1037, %v1025
      %v1314 = vpack.c.b16 %v1038, %v1026
      %v1315 = vpack.c.b16 %v1039, %v1027
      %v1316 = vpack.c.b16 %v1040, %v1028
      %v1317 = vpack.c.b16 %v1041, %v1029
      %v1318 = vpack.c.b16 %v1042, %v1030
      %v1319 = vpack.c.b16 %v1043, %v1031
      %v1320 = vpack.c.b16 %v1044, %v1032
      %v1321 = vpack.c.b16 %v1045, %v1033
      %v1322 = vpack.c.b16 %v1046, %v1034
      %v1323 = vpack.c.b16 %v1059, %v1047
      %v1324 = vpack.c.b16 %v1060, %v1048
      %v1325 = vpack.c.b16 %v1061, %v1049
      %v1326 = vpack.c.b16 %v1062, %v1050
      %v1327 = vpack.c.b16 %v1063, %v1051
      %v1328 = vpack.c.b16 %v1064, %v1052
      %v1329 = vpack.c.b16 %v1065, %v1053
      %v1330 = vpack.c.b16 %v1066, %v1054
      %v1331 = vpack.c.b16 %v1067, %v1055
      %v1332 = vpack.c.b16 %v1068, %v1056
      %v1333 = vpack.c.b16 %v1069, %v1057
      %v1334 = vpack.c.b16 %v1070, %v1058
      %v1335 = vpack.c.b16 %v1083, %v1071
      %v1336 = vpack.c.b16 %v1084, %v1072
      %v1337 = vpack.c.b16 %v1085, %v1073
      %v1338 = vpack.c.b16 %v1086, %v1074
      %v1339 = vpack.c.b16 %v1087, %v1075
      %v1340 = vpack.c.b16 %v1088, %v1076
      %v1341 = vpack.c.b16 %v1089, %v1077
      %v1342 = vpack.c.b16 %v1090, %v1078
      %v1343 = vpack.c.b16 %v1091, %v1079
      %v1344 = vpack.c.b16 %v1092, %v1080
      %v1345 = vpack.c.b16 %v1093, %v1081
      %v1346 = vpack.c.b16 %v1094, %v1082
      %v1347 = vpack.c.b16 %v1107, %v1095
      %v1348 = vpack.c.b16 %v1108, %v1096
      %v1349 = vpack.c.b16 %v1109, %v1097
      %v1350 = vpack.c.b16 %v1110, %v1098
      %v1351 = vpack.c.b16 %v1111, %v1099
      %v1352 = vpack.c.b16 %v1112, %v1100
      %v1353 = vpack.c.b16 %v1113, %v1101
      %v1354 = vpack.c.b16 %v1114, %v1102
      %v1355 = vpack.c.b16 %v1115, %v1103
      %v1356 = vpack.c.b16 %v1116, %v1104
      %v1357 = vpack.c.b16 %v1117, %v1105
      %v1358 = vpack.c.b16 %v1118, %v1106
      %v1359 = vpack.c.b16 %v1131, %v1119
      %v1360 = vpack.c.b16 %v1132, %v1120
      %v1361 = vpack.c.b16 %v1133, %v1121
      %v1362 = vpack.c.b16 %v1134, %v1122
      %v1363 = vpack.c.b16 %v1135, %v1123
      %v1364 = vpack.c.b16 %v1136, %v1124
      %v1365 = vpack.c.b16 %v1137, %v1125
      %v1366 = vpack.c.b16 %v1138, %v1126
      %v1367 = vpack.c.b16 %v1139, %v1127
      %v1368 = vpack.c.b16 %v1140, %v1128
      %v1369 = vpack.c.b16 %v1141, %v1129
      %v1370 = vpack.c.b16 %v1142, %v1130
      %v1371 = vpack.c.b16 %v1155, %v1143
      %v1372 = vpack.c.b16 %v1156, %v1144
      %v1373 = vpack.c.b16 %v1157, %v1145
      %v1374 = vpack.c.b16 %v1158, %v1146
      %v1375 = vpack.c.b16 %v1159, %v1147
      %v1376 = vpack.c.b16 %v1160, %v1148
      %v1377 = vpack.c.b16 %v1161, %v1149
      %v1378 = vpack.c.b16 %v1162, %v1150
      %v1379 = vpack.c.b16 %v1163, %v1151
      %v1380 = vpack.c.b16 %v1164, %v1152
      %v1381 = vpack.c.b16 %v1165, %v1153
      %v1382 = vpack.c.b16 %v1166, %v1154
      %v1383 = vpack.c.b16 %v1179, %v1167
      %v1384 = vpack.c.b16 %v1180, %v1168
      %v1385 = vpack.c.b16 %v1181, %v1169
      %v1386 = vpack.c.b16 %v1182, %v1170
      %v1387 = vpack.c.b16 %v1183, %v1171
      %v1388 = vpack.c.b16 %v1184, %v1172
      %v1389 = vpack.c.b16 %v1185, %v1173
      %v1390 = vpack.c.b16 %v1186, %v1174
      %v1391 = vpack.c.b16 %v1187, %v1175
      %v1392 = vpack.c.b16 %v1188, %v1176
      %v1393 = vpack.c.b16 %v1189, %v1177
      %v1394 = vpack.c.b16 %v1190, %v1178
      %v1395 = vpack.c.b16 %v1203, %v1191
      %v1396 = vpack.c.b16 %v1204, %v1192
      %v1397 = vpack.c.b16 %v1205, %v1193
      %v1398 = vpack.c.b16 %v1206, %v1194
      %v1399 = vpack.c.b16 %v1207, %v1195
      %v1400 = vpack.c.b16 %v1208, %v1196
      %v1401 = vpack.c.b16 %v1209, %v1197
      %v1402 = vpack.c.b16 %v1210, %v1198
      %v1403 = vpack.c.b16 %v1211, %v1199
      %v1404 = vpack.c.b16 %v1212, %v1200
      %v1405 = vpack.c.b16 %v1213, %v1201
      %v1406 = vpack.c.b16 %v1214, %v1202
      %v1763 = vunpack.c.l.b16 %v447
      %v1764 = vunpack.c.h.b16 %v447
      %v1765 = vunpack.c.l.b16 %v448
      %v1766 = vunpack.c.h.b16 %v448
      %v1767 = vunpack.c.l.b16 %v449
      %v1768 = vunpack.c.h.b16 %v449
      %v1769 = vunpack.c.l.b16 %v450
      %v1770 = vunpack.c.h.b16 %v450
      %v1771 = vunpack.c.l.b16 %v451
      %v1772 = vunpack.c.h.b16 %v451
      %v1773 = vunpack.c.l.b16 %v452
      %v1774 = vunpack.c.h.b16 %v452
      %v1775 = vunpack.c.l.b16 %v453
      %v1776 = vunpack.c.h.b16 %v453
      %v1777 = vunpack.c.l.b16 %v454
      %v1778 = vunpack.c.h.b16 %v454
      %v1779 = vunpack.c.l.b16 %v455
      %v1780 = vunpack.c.h.b16 %v455
      %v1781 = vunpack.c.l.b16 %v456
      %v1782 = vunpack.c.h.b16 %v456
      %v1783 = vunpack.c.l.b16 %v457
      %v1784 = vunpack.c.h.b16 %v457
      %v1785 = vunpack.c.l.b16 %v458
      %v1786 = vunpack.c.h.b16 %v458
      %v1787 = vunpack.c.l.b16 %v459
      %v1788 = vunpack.c.h.b16 %v459
      %v1789 = vunpack.c.l.b16 %v460
      %v1790 = vunpack.c.h.b16 %v460
      %v1791 = vunpack.c.l.b16 %v461
      %v1792 = vunpack.c.h.b16 %v461
      %v1793 = vunpack.c.l.b16 %v462
      %v1794 = vunpack.c.h.b16 %v462
      %v1795 = vunpack.c.l.b16 %v463
      %v1796 = vunpack.c.h.b16 %v463
      %v1797 = vunpack.c.l.b16 %v464
      %v1798 = vunpack.c.h.b16 %v464
      %v1799 = vunpack.c.l.b16 %v465
      %v1800 = vunpack.c.h.b16 %v465
      %v1801 = vunpack.c.l.b16 %v466
      %v1802 = vunpack.c.h.b16 %v466
      %v1803 = vunpack.c.l.b16 %v467
      %v1804 = vunpack.c.h.b16 %v467
      %v1805 = vunpack.c.l.b16 %v468
      %v1806 = vunpack.c.h.b16 %v468
      %v1807 = vunpack.c.l.b16 %v469
      %v1808 = vunpack.c.h.b16 %v469
      %v1809 = vunpack.c.l.b16 %v470
      %v1810 = vunpack.c.h.b16 %v470
      %v1811 = vunpack.c.l.b16 %v471
      %v1812 = vunpack.c.h.b16 %v471
      %v1813 = vunpack.c.l.b16 %v472
      %v1814 = vunpack.c.h.b16 %v472
      %v1815 = vunpack.c.l.b16 %v473
      %v1816 = vunpack.c.h.b16 %v473
      %v1817 = vunpack.c.l.b16 %v474
      %v1818 = vunpack.c.h.b16 %v474
      %v1819 = vunpack.c.l.b16 %v475
      %v1820 = vunpack.c.h.b16 %v475
      %v1821 = vunpack.c.l.b16 %v476
      %v1822 = vunpack.c.h.b16 %v476
      %v1823 = vunpack.c.l.b16 %v477
      %v1824 = vunpack.c.h.b16 %v477
      %v1825 = vunpack.c.l.b16 %v478
      %v1826 = vunpack.c.h.b16 %v478
      %v1827 = vunpack.c.l.b16 %v479
      %v1828 = vunpack.c.h.b16 %v479
      %v1829 = vunpack.c.l.b16 %v480
      %v1830 = vunpack.c.h.b16 %v480
      %v1831 = vunpack.c.l.b16 %v481
      %v1832 = vunpack.c.h.b16 %v481
      %v1833 = vunpack.c.l.b16 %v482
      %v1834 = vunpack.c.h.b16 %v482
      %v1835 = vunpack.c.l.b16 %v483
      %v1836 = vunpack.c.h.b16 %v483
      %v1837 = vunpack.c.l.b16 %v484
      %v1838 = vunpack.c.h.b16 %v484
      %v1839 = vunpack.c.l.b16 %v485
      %v1840 = vunpack.c.h.b16 %v485
      %v1841 = vunpack.c.l.b16 %v486
      %v1842 = vunpack.c.h.b16 %v486
      %v1843 = vunpack.c.l.b16 %v487
      %v1844 = vunpack.c.h.b16 %v487
      %v1845 = vunpack.c.l.b16 %v488
      %v1846 = vunpack.c.h.b16 %v488
      %v1847 = vunpack.c.l.b16 %v489
      %v1848 = vunpack.c.h.b16 %v489
      %v1849 = vunpack.c.l.b16 %v490
      %v1850 = vunpack.c.h.b16 %v490
      %v1851 = vunpack.c.l.b16 %v491
      %v1852 = vunpack.c.h.b16 %v491
      %v1853 = vunpack.c.l.b16 %v492
      %v1854 = vunpack.c.h.b16 %v492
      %v1855 = vunpack.c.l.b16 %v493
      %v1856 = vunpack.c.h.b16 %v493
      %v1857 = vunpack.c.l.b16 %v494
      %v1858 = vunpack.c.h.b16 %v494
      %v1859 = vunpack.c.l.b16 %v495
      %v1860 = vunpack.c.h.b16 %v495
      %v1861 = vunpack.c.l.b16 %v496
      %v1862 = vunpack.c.h.b16 %v496
      %v1863 = vunpack.c.l.b16 %v497
      %v1864 = vunpack.c.h.b16 %v497
      %v1865 = vunpack.c.l.b16 %v498
      %v1866 = vunpack.c.h.b16 %v498
      %v1867 = vunpack.c.l.b16 %v499
      %v1868 = vunpack.c.h.b16 %v499
      %v1869 = vunpack.c.l.b16 %v500
      %v1870 = vunpack.c.h.b16 %v500
      %v1871 = vunpack.c.l.b16 %v501
      %v1872 = vunpack.c.h.b16 %v501
      %v1873 = vunpack.c.l.b16 %v502
      %v1874 = vunpack.c.h.b16 %v502
      %v1875 = vunpack.c.l.b16 %v503
      %v1876 = vunpack.c.h.b16 %v503
      %v1877 = vunpack.c.l.b16 %v504
      %v1878 = vunpack.c.h.b16 %v504
      %v1879 = vunpack.c.l.b16 %v505
      %v1880 = vunpack.c.h.b16 %v505
      %v1881 = vunpack.c.l.b16 %v506
      %v1882 = vunpack.c.h.b16 %v506
      %v1883 = vunpack.c.l.b16 %v507
      %v1884 = vunpack.c.h.b16 %v507
      %v1885 = vunpack.c.l.b16 %v508
      %v1886 = vunpack.c.h.b16 %v508
      %v1887 = vunpack.c.l.b16 %v509
      %v1888 = vunpack.c.h.b16 %v509
      %v1889 = vunpack.c.l.b16 %v510
      %v1890 = vunpack.c.h.b16 %v510
      %v1891 = vunpack.c.l.b16 %v511
      %v1892 = vunpack.c.h.b16 %v511
      %v1893 = vunpack.c.l.b16 %v512
      %v1894 = vunpack.c.h.b16 %v512
      %v1895 = vunpack.c.l.b16 %v513
      %v1896 = vunpack.c.h.b16 %v513
      %v1897 = vunpack.c.l.b16 %v514
      %v1898 = vunpack.c.h.b16 %v514
      %v1899 = vunpack.c.l.b16 %v515
      %v1900 = vunpack.c.h.b16 %v515
      %v1901 = vunpack.c.l.b16 %v516
      %v1902 = vunpack.c.h.b16 %v516
      %v1903 = vunpack.c.l.b16 %v517
      %v1904 = vunpack.c.h.b16 %v517
      %v1905 = vunpack.c.l.b16 %v518
      %v1906 = vunpack.c.h.b16 %v518
      %v1907 = vunpack.c.l.b16 %v519
      %v1908 = vunpack.c.h.b16 %v519
      %v1909 = vunpack.c.l.b16 %v520
      %v1910 = vunpack.c.h.b16 %v520
      %v1911 = vunpack.c.l.b16 %v521
      %v1912 = vunpack.c.h.b16 %v521
      %v1913 = vunpack.c.l.b16 %v522
      %v1914 = vunpack.c.h.b16 %v522
      %v1915 = vunpack.c.l.b16 %v523
      %v1916 = vunpack.c.h.b16 %v523
      %v1917 = vunpack.c.l.b16 %v524
      %v1918 = vunpack.c.h.b16 %v524
      %v1919 = vunpack.c.l.b16 %v525
      %v1920 = vunpack.c.h.b16 %v525
      %v1921 = vunpack.c.l.b16 %v526
      %v1922 = vunpack.c.h.b16 %v526
      %v1923 = vunpack.c.l.b16 %v527
      %v1924 = vunpack.c.h.b16 %v527
      %v1925 = vunpack.c.l.b16 %v528
      %v1926 = vunpack.c.h.b16 %v528
      %v1927 = vunpack.c.l.b16 %v529
      %v1928 = vunpack.c.h.b16 %v529
      %v1929 = vunpack.c.l.b16 %v530
      %v1930 = vunpack.c.h.b16 %v530
      %v1931 = vunpack.c.l.b16 %v531
      %v1932 = vunpack.c.h.b16 %v531
      %v1933 = vunpack.c.l.b16 %v532
      %v1934 = vunpack.c.h.b16 %v532
      %v1935 = vunpack.c.l.b16 %v533
      %v1936 = vunpack.c.h.b16 %v533
      %v1937 = vunpack.c.l.b16 %v534
      %v1938 = vunpack.c.h.b16 %v534
      %v1939 = vunpack.c.l.b16 %v535
      %v1940 = vunpack.c.h.b16 %v535
      %v1941 = vunpack.c.l.b16 %v536
      %v1942 = vunpack.c.h.b16 %v536
      %v1943 = vunpack.c.l.b16 %v537
      %v1944 = vunpack.c.h.b16 %v537
      %v1945 = vunpack.c.l.b16 %v538
      %v1946 = vunpack.c.h.b16 %v538
      %v1947 = vunpack.c.l.b16 %v539
      %v1948 = vunpack.c.h.b16 %v539
      %v1949 = vunpack.c.l.b16 %v540
      %v1950 = vunpack.c.h.b16 %v540
      %v1951 = vunpack.c.l.b16 %v541
      %v1952 = vunpack.c.h.b16 %v541
      %v1953 = vunpack.c.l.b16 %v542
      %v1954 = vunpack.c.h.b16 %v542
      %v1955 = vunpack.c.l.b16 %v543
      %v1956 = vunpack.c.h.b16 %v543
      %v1957 = vunpack.c.l.b16 %v544
      %v1958 = vunpack.c.h.b16 %v544
      %v1959 = vunpack.c.l.b16 %v545
      %v1960 = vunpack.c.h.b16 %v545
      %v1961 = vunpack.c.l.b16 %v546
      %v1962 = vunpack.c.h.b16 %v546
      %v1963 = vunpack.c.l.b16 %v547
      %v1964 = vunpack.c.h.b16 %v547
      %v1965 = vunpack.c.l.b16 %v548
      %v1966 = vunpack.c.h.b16 %v548
      %v1967 = vunpack.c.l.b16 %v549
      %v1968 = vunpack.c.h.b16 %v549
      %v1969 = vunpack.c.l.b16 %v550
      %v1970 = vunpack.c.h.b16 %v550
      %v1971 = vunpack.c.l.b16 %v551
      %v1972 = vunpack.c.h.b16 %v551
      %v1973 = vunpack.c.l.b16 %v552
      %v1974 = vunpack.c.h.b16 %v552
      %v1975 = vunpack.c.l.b16 %v553
      %v1976 = vunpack.c.h.b16 %v553
      %v1977 = vunpack.c.l.b16 %v554
      %v1978 = vunpack.c.h.b16 %v554
      %v1979 = vunpack.c.l.b16 %v555
      %v1980 = vunpack.c.h.b16 %v555
      %v1981 = vunpack.c.l.b16 %v556
      %v1982 = vunpack.c.h.b16 %v556
      %v1983 = vunpack.c.l.b16 %v557
      %v1984 = vunpack.c.h.b16 %v557
      %v1985 = vunpack.c.l.b16 %v558
      %v1986 = vunpack.c.h.b16 %v558
      %v1987 = vunpack.c.l.b16 %v559
      %v1988 = vunpack.c.h.b16 %v559
      %v1989 = vunpack.c.l.b16 %v560
      %v1990 = vunpack.c.h.b16 %v560
      %v1991 = vunpack.c.l.b16 %v561
      %v1992 = vunpack.c.h.b16 %v561
      %v1993 = vunpack.c.l.b16 %v562
      %v1994 = vunpack.c.h.b16 %v562
      %v1995 = vunpack.c.l.b16 %v563
      %v1996 = vunpack.c.h.b16 %v563
      %v1997 = vunpack.c.l.b16 %v564
      %v1998 = vunpack.c.h.b16 %v564
      %v1999 = vunpack.c.l.b16 %v565
      %v2000 = vunpack.c.h.b16 %v565
      %v2001 = vunpack.c.l.b16 %v566
      %v2002 = vunpack.c.h.b16 %v566
      %v2003 = vunpack.c.l.b16 %v567
      %v2004 = vunpack.c.h.b16 %v567
      %v2005 = vunpack.c.l.b16 %v568
      %v2006 = vunpack.c.h.b16 %v568
      %v2007 = vunpack.c.l.b16 %v569
      %v2008 = vunpack.c.h.b16 %v569
      %v2009 = vunpack.c.l.b16 %v570
      %v2010 = vunpack.c.h.b16 %v570
      %v2011 = vunpack.c.l.b16 %v571
      %v2012 = vunpack.c.h.b16 %v571
      %v2013 = vunpack.c.l.b16 %v572
      %v2014 = vunpack.c.h.b16 %v572
      %v2015 = vunpack.c.l.b16 %v573
      %v2016 = vunpack.c.h.b16 %v573
      %v2017 = vunpack.c.l.b16 %v574
      %v2018 = vunpack.c.h.b16 %v574
      %v2019 = vunpack.c.l.b16 %v575
      %v2020 = vunpack.c.h.b16 %v575
      %v2021 = vunpack.c.l.b16 %v576
      %v2022 = vunpack.c.h.b16 %v576
      %v2023 = vunpack.c.l.b16 %v577
      %v2024 = vunpack.c.h.b16 %v577
      %v2025 = vunpack.c.l.b16 %v578
      %v2026 = vunpack.c.h.b16 %v578
      %v2027 = vunpack.c.l.b16 %v579
      %v2028 = vunpack.c.h.b16 %v579
      %v2029 = vunpack.c.l.b16 %v580
      %v2030 = vunpack.c.h.b16 %v580
      %v2031 = vunpack.c.l.b16 %v581
      %v2032 = vunpack.c.h.b16 %v581
      %v2033 = vunpack.c.l.b16 %v582
      %v2034 = vunpack.c.h.b16 %v582
      %v2035 = vunpack.c.l.b16 %v583
      %v2036 = vunpack.c.h.b16 %v583
      %v2037 = vunpack.c.l.b16 %v584
      %v2038 = vunpack.c.h.b16 %v584
      %v2039 = vunpack.c.l.b16 %v585
      %v2040 = vunpack.c.h.b16 %v585
      %v2041 = vunpack.c.l.b16 %v586
      %v2042 = vunpack.c.h.b16 %v586
      %v2043 = vunpack.c.l.b16 %v587
      %v2044 = vunpack.c.h.b16 %v587
      %v2045 = vunpack.c.l.b16 %v588
      %v2046 = vunpack.c.h.b16 %v588
      %v2047 = vunpack.c.l.b16 %v589
      %v2048 = vunpack.c.h.b16 %v589
      %v2049 = vunpack.c.l.b16 %v590
      %v2050 = vunpack.c.h.b16 %v590
      %v2051 = vunpack.c.l.b16 %v591
      %v2052 = vunpack.c.h.b16 %v591
      %v2053 = vunpack.c.l.b16 %v592
      %v2054 = vunpack.c.h.b16 %v592
      %v2055 = vunpack.c.l.b16 %v593
      %v2056 = vunpack.c.h.b16 %v593
      %v2057 = vunpack.c.l.b16 %v594
      %v2058 = vunpack.c.h.b16 %v594
      %v2059 = vunpack.c.l.b16 %v595
      %v2060 = vunpack.c.h.b16 %v595
      %v2061 = vunpack.c.l.b16 %v596
      %v2062 = vunpack.c.h.b16 %v596
      %v2063 = vunpack.c.l.b16 %v597
      %v2064 = vunpack.c.h.b16 %v597
      %v2065 = vunpack.c.l.b16 %v598
      %v2066 = vunpack.c.h.b16 %v598
      %v2067 = vunpack.c.l.b16 %v599
      %v2068 = vunpack.c.h.b16 %v599
      %v2069 = vunpack.c.l.b16 %v600
      %v2070 = vunpack.c.h.b16 %v600
      %v2071 = vunpack.c.l.b16 %v601
      %v2072 = vunpack.c.h.b16 %v601
      %v2073 = vunpack.c.l.b16 %v602
      %v2074 = vunpack.c.h.b16 %v602
      %v2075 = vunpack.c.l.b16 %v603
      %v2076 = vunpack.c.h.b16 %v603
      %v2077 = vunpack.c.l.b16 %v604
      %v2078 = vunpack.c.h.b16 %v604
      %v2079 = vunpack.c.l.b16 %v605
      %v2080 = vunpack.c.h.b16 %v605
      %v2081 = vunpack.c.l.b16 %v606
      %v2082 = vunpack.c.h.b16 %v606
      %v2083 = vunpack.c.l.b16 %v607
      %v2084 = vunpack.c.h.b16 %v607
      %v2085 = vunpack.c.l.b16 %v608
      %v2086 = vunpack.c.h.b16 %v608
      %v2087 = vunpack.c.l.b16 %v609
      %v2088 = vunpack.c.h.b16 %v609
      %v2089 = vunpack.c.l.b16 %v610
      %v2090 = vunpack.c.h.b16 %v610
      %v2091 = vunpack.c.l.b16 %v611
      %v2092 = vunpack.c.h.b16 %v611
      %v2093 = vunpack.c.l.b16 %v612
      %v2094 = vunpack.c.h.b16 %v612
      %v2095 = vunpack.c.l.b16 %v613
      %v2096 = vunpack.c.h.b16 %v613
      %v2097 = vunpack.c.l.b16 %v614
      %v2098 = vunpack.c.h.b16 %v614
      %v2099 = vunpack.c.l.b16 %v615
      %v2100 = vunpack.c.h.b16 %v615
      %v2101 = vunpack.c.l.b16 %v616
      %v2102 = vunpack.c.h.b16 %v616
      %v2103 = vunpack.c.l.b16 %v617
      %v2104 = vunpack.c.h.b16 %v617
      %v2105 = vunpack.c.l.b16 %v618
      %v2106 = vunpack.c.h.b16 %v618
      %v2107 = vunpack.c.l.b16 %v619
      %v2108 = vunpack.c.h.b16 %v619
      %v2109 = vunpack.c.l.b16 %v620
      %v2110 = vunpack.c.h.b16 %v620
      %v2111 = vunpack.c.l.b16 %v621
      %v2112 = vunpack.c.h.b16 %v621
      %v2113 = vunpack.c.l.b16 %v622
      %v2114 = vunpack.c.h.b16 %v622
      %v2115 = vunpack.c.l.b16 %v623
      %v2116 = vunpack.c.h.b16 %v623
      %v2117 = vunpack.c.l.b16 %v624
      %v2118 = vunpack.c.h.b16 %v624
      %v2119 = vunpack.c.l.b16 %v625
      %v2120 = vunpack.c.h.b16 %v625
      %v2121 = vunpack.c.l.b16 %v626
      %v2122 = vunpack.c.h.b16 %v626
      %v2123 = vpack.c.b16 %v1765, %v1763
      %v2124 = vpack.c.b16 %v1766, %v1764
      %v2125 = vpack.c.b16 %v1769, %v1767
      %v2126 = vpack.c.b16 %v1770, %v1768
      %v2127 = vpack.c.b16 %v1773, %v1771
      %v2128 = vpack.c.b16 %v1774, %v1772
      %v2129 = vpack.c.b16 %v1777, %v1775
      %v2130 = vpack.c.b16 %v1778, %v1776
      %v2131 = vpack.c.b16 %v1781, %v1779
      %v2132 = vpack.c.b16 %v1782, %v1780
      %v2133 = vpack.c.b16 %v1785, %v1783
      %v2134 = vpack.c.b16 %v1786, %v1784
      %v2135 = vpack.c.b16 %v1789, %v1787
      %v2136 = vpack.c.b16 %v1790, %v1788
      %v2137 = vpack.c.b16 %v1793, %v1791
      %v2138 = vpack.c.b16 %v1794, %v1792
      %v2139 = vpack.c.b16 %v1797, %v1795
      %v2140 = vpack.c.b16 %v1798, %v1796
      %v2141 = vpack.c.b16 %v1801, %v1799
      %v2142 = vpack.c.b16 %v1802, %v1800
      %v2143 = vpack.c.b16 %v1805, %v1803
      %v2144 = vpack.c.b16 %v1806, %v1804
      %v2145 = vpack.c.b16 %v1809, %v1807
      %v2146 = vpack.c.b16 %v1810, %v1808
      %v2147 = vpack.c.b16 %v1813, %v1811
      %v2148 = vpack.c.b16 %v1814, %v1812
      %v2149 = vpack.c.b16 %v1817, %v1815
      %v2150 = vpack.c.b16 %v1818, %v1816
      %v2151 = vpack.c.b16 %v1821, %v1819
      %v2152 = vpack.c.b16 %v1822, %v1820
      %v2153 = vpack.c.b16 %v1825, %v1823
      %v2154 = vpack.c.b16 %v1826, %v1824
      %v2155 = vpack.c.b16 %v1829, %v1827
      %v2156 = vpack.c.b16 %v1830, %v1828
      %v2157 = vpack.c.b16 %v1833, %v1831
      %v2158 = vpack.c.b16 %v1834, %v1832
      %v2159 = vpack.c.b16 %v1837, %v1835
      %v2160 = vpack.c.b16 %v1838, %v1836
      %v2161 = vpack.c.b16 %v1841, %v1839
      %v2162 = vpack.c.b16 %v1842, %v1840
      %v2163 = vpack.c.b16 %v1845, %v1843
      %v2164 = vpack.c.b16 %v1846, %v1844
      %v2165 = vpack.c.b16 %v1849, %v1847
      %v2166 = vpack.c.b16 %v1850, %v1848
      %v2167 = vpack.c.b16 %v1853, %v1851
      %v2168 = vpack.c.b16 %v1854, %v1852
      %v2169 = vpack.c.b16 %v1857, %v1855
      %v2170 = vpack.c.b16 %v1858, %v1856
      %v2171 = vpack.c.b16 %v1861, %v1859
      %v2172 = vpack.c.b16 %v1862, %v1860
      %v2173 = vpack.c.b16 %v1865, %v1863
      %v2174 = vpack.c.b16 %v1866, %v1864
      %v2175 = vpack.c.b16 %v1869, %v1867
      %v2176 = vpack.c.b16 %v1870, %v1868
      %v2177 = vpack.c.b16 %v1873, %v1871
      %v2178 = vpack.c.b16 %v1874, %v1872
      %v2179 = vpack.c.b16 %v1877, %v1875
      %v2180 = vpack.c.b16 %v1878, %v1876
      %v2181 = vpack.c.b16 %v1881, %v1879
      %v2182 = vpack.c.b16 %v1882, %v1880
      %v2183 = vpack.c.b16 %v1885, %v1883
      %v2184 = vpack.c.b16 %v1886, %v1884
      %v2185 = vpack.c.b16 %v1889, %v1887
      %v2186 = vpack.c.b16 %v1890, %v1888
      %v2187 = vpack.c.b16 %v1893, %v1891
      %v2188 = vpack.c.b16 %v1894, %v1892
      %v2189 = vpack.c.b16 %v1897, %v1895
      %v2190 = vpack.c.b16 %v1898, %v1896
      %v2191 = vpack.c.b16 %v1901, %v1899
      %v2192 = vpack.c.b16 %v1902, %v1900
      %v2193 = vpack.c.b16 %v1905, %v1903
      %v2194 = vpack.c.b16 %v1906, %v1904
      %v2195 = vpack.c.b16 %v1909, %v1907
      %v2196 = vpack.c.b16 %v1910, %v1908
      %v2197 = vpack.c.b16 %v1913, %v1911
      %v2198 = vpack.c.b16 %v1914, %v1912
      %v2199 = vpack.c.b16 %v1917, %v1915
      %v2200 = vpack.c.b16 %v1918, %v1916
      %v2201 = vpack.c.b16 %v1921, %v1919
      %v2202 = vpack.c.b16 %v1922, %v1920
      %v2203 = vpack.c.b16 %v1925, %v1923
      %v2204 = vpack.c.b16 %v1926, %v1924
      %v2205 = vpack.c.b16 %v1929, %v1927
      %v2206 = vpack.c.b16 %v1930, %v1928
      %v2207 = vpack.c.b16 %v1933, %v1931
      %v2208 = vpack.c.b16 %v1934, %v1932
      %v2209 = vpack.c.b16 %v1937, %v1935
      %v2210 = vpack.c.b16 %v1938, %v1936
      %v2211 = vpack.c.b16 %v1941, %v1939
      %v2212 = vpack.c.b16 %v1942, %v1940
      %v2213 = vpack.c.b16 %v1945, %v1943
      %v2214 = vpack.c.b16 %v1946, %v1944
      %v2215 = vpack.c.b16 %v1949, %v1947
      %v2216 = vpack.c.b16 %v1950, %v1948
      %v2217 = vpack.c.b16 %v1953, %v1951
      %v2218 = vpack.c.b16 %v1954, %v1952
      %v2219 = vpack.c.b16 %v1957, %v1955
      %v2220 = vpack.c.b16 %v1958, %v1956
      %v2221 = vpack.c.b16 %v1961, %v1959
      %v2222 = vpack.c.b16 %v1962, %v1960
      %v2223 = vpack.c.b16 %v1965, %v1963
      %v2224 = vpack.c.b16 %v1966, %v1964
      %v2225 = vpack.c.b16 %v1969, %v1967
      %v2226 = vpack.c.b16 %v1970, %v1968
      %v2227 = vpack.c.b16 %v1973, %v1971
      %v2228 = vpack.c.b16 %v1974, %v1972
      %v2229 = vpack.c.b16 %v1977, %v1975
      %v2230 = vpack.c.b16 %v1978, %v1976
      %v2231 = vpack.c.b16 %v1981, %v1979
      %v2232 = vpack.c.b16 %v1982, %v1980
      %v2233 = vpack.c.b16 %v1985, %v1983
      %v2234 = vpack.c.b16 %v1986, %v1984
      %v2235 = vpack.c.b16 %v1989, %v1987
      %v2236 = vpack.c.b16 %v1990, %v1988
      %v2237 = vpack.c.b16 %v1993, %v1991
      %v2238 = vpack.c.b16 %v1994, %v1992
      %v2239 = vpack.c.b16 %v1997, %v1995
      %v2240 = vpack.c.b16 %v1998, %v1996
      %v2241 = vpack.c.b16 %v2001, %v1999
      %v2242 = vpack.c.b16 %v2002, %v2000
      %v2243 = vpack.c.b16 %v2005, %v2003
      %v2244 = vpack.c.b16 %v2006, %v2004
      %v2245 = vpack.c.b16 %v2009, %v2007
      %v2246 = vpack.c.b16 %v2010, %v2008
      %v2247 = vpack.c.b16 %v2013, %v2011
      %v2248 = vpack.c.b16 %v2014, %v2012
      %v2249 = vpack.c.b16 %v2017, %v2015
      %v2250 = vpack.c.b16 %v2018, %v2016
      %v2251 = vpack.c.b16 %v2021, %v2019
      %v2252 = vpack.c.b16 %v2022, %v2020
      %v2253 = vpack.c.b16 %v2025, %v2023
      %v2254 = vpack.c.b16 %v2026, %v2024
      %v2255 = vpack.c.b16 %v2029, %v2027
      %v2256 = vpack.c.b16 %v2030, %v2028
      %v2257 = vpack.c.b16 %v2033, %v2031
      %v2258 = vpack.c.b16 %v2034, %v2032
      %v2259 = vpack.c.b16 %v2037, %v2035
      %v2260 = vpack.c.b16 %v2038, %v2036
      %v2261 = vpack.c.b16 %v2041, %v2039
      %v2262 = vpack.c.b16 %v2042, %v2040
      %v2263 = vpack.c.b16 %v2045, %v2043
      %v2264 = vpack.c.b16 %v2046, %v2044
      %v2265 = vpack.c.b16 %v2049, %v2047
      %v2266 = vpack.c.b16 %v2050, %v2048
      %v2267 = vpack.c.b16 %v2053, %v2051
      %v2268 = vpack.c.b16 %v2054, %v2052
      %v2269 = vpack.c.b16 %v2057, %v2055
      %v2270 = vpack.c.b16 %v2058, %v2056
      %v2271 = vpack.c.b16 %v2061, %v2059
      %v2272 = vpack.c.b16 %v2062, %v2060
      %v2273 = vpack.c.b16 %v2065, %v2063
      %v2274 = vpack.c.b16 %v2066, %v2064
      %v2275 = vpack.c.b16 %v2069, %v2067
      %v2276 = vpack.c.b16 %v2070, %v2068
      %v2277 = vpack.c.b16 %v2073, %v2071
      %v2278 = vpack.c.b16 %v2074, %v2072
      %v2279 = vpack.c.b16 %v2077, %v2075
      %v2280 = vpack.c.b16 %v2078, %v2076
      %v2281 = vpack.c.b16 %v2081, %v2079
      %v2282 = vpack.c.b16 %v2082, %v2080
      %v2283 = vpack.c.b16 %v2085, %v2083
      %v2284 = vpack.c.b16 %v2086, %v2084
      %v2285 = vpack.c.b16 %v2089, %v2087
      %v2286 = vpack.c.b16 %v2090, %v2088
      %v2287 = vpack.c.b16 %v2093, %v2091
      %v2288 = vpack.c.b16 %v2094, %v2092
      %v2289 = vpack.c.b16 %v2097, %v2095
      %v2290 = vpack.c.b16 %v2098, %v2096
      %v2291 = vpack.c.b16 %v2101, %v2099
      %v2292 = vpack.c.b16 %v2102, %v2100
      %v2293 = vpack.c.b16 %v2105, %v2103
      %v2294 = vpack.c.b16 %v2106, %v2104
      %v2295 = vpack.c.b16 %v2109, %v2107
      %v2296 = vpack.c.b16 %v2110, %v2108
      %v2297 = vpack.c.b16 %v2113, %v2111
      %v2298 = vpack.c.b16 %v2114, %v2112
      %v2299 = vpack.c.b16 %v2117, %v2115
      %v2300 = vpack.c.b16 %v2118, %v2116
      %v2301 = vpack.c.b16 %v2121, %v2119
      %v2302 = vpack.c.b16 %v2122, %v2120
      %vm2483 = vcmask 261120
      %v2485 = vsel %vm2483, %v1226, 0
      %v2488 = vsel %vm2483, %v1238, 0
      %v2491 = vsel %vm2483, %v1250, 0
      %v2494 = vsel %vm2483, %v1262, 0
      %v2497 = vsel %vm2483, %v1274, 0
      %v2500 = vsel %vm2483, %v1286, 0
      %v2503 = vsel %vm2483, %v1298, 0
      %v2506 = vsel %vm2483, %v1310, 0
      %v2509 = vsel %vm2483, %v1322, 0
      %v2512 = vsel %vm2483, %v1334, 0
      %v2515 = vsel %vm2483, %v1346, 0
      %v2518 = vsel %vm2483, %v1358, 0
      %v2521 = vsel %vm2483, %v1370, 0
      %v2524 = vsel %vm2483, %v1382, 0
      %v2527 = vsel %vm2483, %v1394, 0
      %v2530 = vsel %vm2483, %v1406, 0
      %2532 = vmatprep.subr.bf16.mxu0 %v2124
      %2533 = vmatpush1.bf16.msra.mxu0 %v2123
      %2534 = vmatprep.subr.bf16.mxu0 %v2126
      %2535 = vmatpush1.bf16.msra.mxu0 %v2125
      %2536 = vmatprep.subr.bf16.mxu0 %v2128
      %2537 = vmatpush1.bf16.msra.mxu0 %v2127
      %2538 = vmatprep.subr.bf16.mxu0 %v2130
      %2539 = vmatpush1.bf16.msra.mxu0 %v2129
      %2540 = vmatprep.subr.bf16.mxu0 %v2132
      %2541 = vmatpush1.bf16.msra.mxu0 %v2131
      %2542 = vmatprep.subr.bf16.mxu0 %v2134
      %2543 = vmatpush1.bf16.msra.mxu0 %v2133
      %2544 = vmatprep.subr.bf16.mxu0 %v2136
      %2545 = vmatpush1.bf16.msra.mxu0 %v2135
      %2546 = vmatprep.subr.bf16.mxu0 %v2138
      %2547 = vmatpush1.bf16.msra.mxu0 %v2137
      %2548 = vmatprep.subr.bf16.mxu0 %v2140
      %2549 = vmatpush1.bf16.msra.mxu0 %v2139
      %2550 = vmatprep.subr.bf16.mxu0 %v2142
      %2551 = vmatpush1.bf16.msra.mxu0 %v2141
      %2552 = vmatprep.subr.bf16.mxu0 %v2144
      %2553 = vmatpush1.bf16.msra.mxu0 %v2143
      %2554 = vmatprep.subr.bf16.mxu0 %v2146
      %2555 = vmatpush1.bf16.msra.mxu0 %v2145
      %2556 = vmatprep.subr.bf16.mxu0 %v2148
      %2557 = vmatpush1.bf16.msra.mxu0 %v2147
      %2558 = vmatprep.subr.bf16.mxu0 %v2150
      %2559 = vmatpush1.bf16.msra.mxu0 %v2149
      %2560 = vmatprep.subr.bf16.mxu0 %v2152
      %2561 = vmatpush1.bf16.msra.mxu0 %v2151
      %2562 = vmatprep.subr.bf16.mxu0 %v2154
      %2563 = vmatpush1.bf16.msra.mxu0 %v2153
      %2564 = vmatprep.mubr.bf16.mxu0 %v1216
      %2565 = vmatmul.mubr.bf16.gmra.mrb[0].mxu0 %v1215
      %v2566 = vpop.f32.mrb[0].mxu0
      %v2567 = vadd.f32 %v632, %v2566
      %v2568 = vpop.f32.mrb[0].mxu0
      %v2569 = vadd.f32 %v636, %v2568
      %v2570 = vpop.f32.mrb[0].mxu0
      %v2571 = vadd.f32 %v632, %v2570
      %v2572 = vpop.f32.mrb[0].mxu0
      %v2573 = vadd.f32 %v636, %v2572
      %2574 = vmatprep.mubr.bf16.mxu0 %v1228
      %2575 = vmatmul.mubr.bf16.gmra.mrb[0].mxu0 %v1227
      %v2576 = vpop.f32.mrb[0].mxu0
      %v2577 = vadd.f32 %v632, %v2576
      %v2578 = vpop.f32.mrb[0].mxu0
      %v2579 = vadd.f32 %v636, %v2578
      %v2580 = vpop.f32.mrb[0].mxu0
      %v2581 = vadd.f32 %v632, %v2580
      %v2582 = vpop.f32.mrb[0].mxu0
      %v2583 = vadd.f32 %v636, %v2582
      %2584 = vmatprep.mubr.bf16.mxu0 %v1240
      %2585 = vmatmul.mubr.bf16.gmra.mrb[0].mxu0 %v1239
      %v2586 = vpop.f32.mrb[0].mxu0
      %v2587 = vadd.f32 %v632, %v2586
      %v2588 = vpop.f32.mrb[0].mxu0
      %v2589 = vadd.f32 %v636, %v2588
      %v2590 = vpop.f32.mrb[0].mxu0
      %v2591 = vadd.f32 %v632, %v2590
      %v2592 = vpop.f32.mrb[0].mxu0
      %v2593 = vadd.f32 %v636, %v2592
      %2594 = vmatprep.mubr.bf16.mxu0 %v1252
      %2595 = vmatmul.mubr.bf16.gmra.mrb[0].mxu0 %v1251
      %v2596 = vpop.f32.mrb[0].mxu0
      %v2597 = vadd.f32 %v632, %v2596
      %v2598 = vpop.f32.mrb[0].mxu0
      %v2599 = vadd.f32 %v636, %v2598
      %v2600 = vpop.f32.mrb[0].mxu0
      %v2601 = vadd.f32 %v632, %v2600
      %v2602 = vpop.f32.mrb[0].mxu0
      %v2603 = vadd.f32 %v636, %v2602
      %2604 = vmatprep.mubr.bf16.mxu0 %v1264
      %2605 = vmatmul.mubr.bf16.gmra.mrb[0].mxu0 %v1263
      %v2606 = vpop.f32.mrb[0].mxu0
      %v2607 = vadd.f32 %v632, %v2606
      %v2608 = vpop.f32.mrb[0].mxu0
      %v2609 = vadd.f32 %v636, %v2608
      %v2610 = vpop.f32.mrb[0].mxu0
      %v2611 = vadd.f32 %v632, %v2610
      %v2612 = vpop.f32.mrb[0].mxu0
      %v2613 = vadd.f32 %v636, %v2612
      %2614 = vmatprep.mubr.bf16.mxu0 %v1276
      %2615 = vmatmul.mubr.bf16.gmra.mrb[0].mxu0 %v1275
      %v2616 = vpop.f32.mrb[0].mxu0
      %v2617 = vadd.f32 %v632, %v2616
      %v2618 = vpop.f32.mrb[0].mxu0
      %v2619 = vadd.f32 %v636, %v2618
      %v2620 = vpop.f32.mrb[0].mxu0
      %v2621 = vadd.f32 %v632, %v2620
      %v2622 = vpop.f32.mrb[0].mxu0
      %v2623 = vadd.f32 %v636, %v2622
      %2624 = vmatprep.mubr.bf16.mxu0 %v1288
      %2625 = vmatmul.mubr.bf16.gmra.mrb[0].mxu0 %v1287
      %v2626 = vpop.f32.mrb[0].mxu0
      %v2627 = vadd.f32 %v632, %v2626
      %v2628 = vpop.f32.mrb[0].mxu0
      %v2629 = vadd.f32 %v636, %v2628
      %v2630 = vpop.f32.mrb[0].mxu0
      %v2631 = vadd.f32 %v632, %v2630
      %v2632 = vpop.f32.mrb[0].mxu0
      %v2633 = vadd.f32 %v636, %v2632
      %2634 = vmatprep.mubr.bf16.mxu0 %v1300
      %2635 = vmatmul.mubr.bf16.gmra.mrb[0].mxu0 %v1299
      %v2636 = vpop.f32.mrb[0].mxu0
      %v2637 = vadd.f32 %v632, %v2636
      %v2638 = vpop.f32.mrb[0].mxu0
      %v2639 = vadd.f32 %v636, %v2638
      %v2640 = vpop.f32.mrb[0].mxu0
      %v2641 = vadd.f32 %v632, %v2640
      %v2642 = vpop.f32.mrb[0].mxu0
      %v2643 = vadd.f32 %v636, %v2642
      %2644 = vmatprep.mubr.bf16.mxu0 %v1312
      %2645 = vmatmul.mubr.bf16.gmra.mrb[0].mxu0 %v1311
      %v2646 = vpop.f32.mrb[0].mxu0
      %v2647 = vadd.f32 %v632, %v2646
      %v2648 = vpop.f32.mrb[0].mxu0
      %v2649 = vadd.f32 %v636, %v2648
      %v2650 = vpop.f32.mrb[0].mxu0
      %v2651 = vadd.f32 %v632, %v2650
      %v2652 = vpop.f32.mrb[0].mxu0
      %v2653 = vadd.f32 %v636, %v2652
      %2654 = vmatprep.mubr.bf16.mxu0 %v1324
      %2655 = vmatmul.mubr.bf16.gmra.mrb[0].mxu0 %v1323
      %v2656 = vpop.f32.mrb[0].mxu0
      %v2657 = vadd.f32 %v632, %v2656
      %v2658 = vpop.f32.mrb[0].mxu0
      %v2659 = vadd.f32 %v636, %v2658
      %v2660 = vpop.f32.mrb[0].mxu0
      %v2661 = vadd.f32 %v632, %v2660
      %v2662 = vpop.f32.mrb[0].mxu0
      %v2663 = vadd.f32 %v636, %v2662
      %2664 = vmatprep.mubr.bf16.mxu0 %v1336
      %2665 = vmatmul.mubr.bf16.gmra.mrb[0].mxu0 %v1335
      %v2666 = vpop.f32.mrb[0].mxu0
      %v2667 = vadd.f32 %v632, %v2666
      %v2668 = vpop.f32.mrb[0].mxu0
      %v2669 = vadd.f32 %v636, %v2668
      %v2670 = vpop.f32.mrb[0].mxu0
      %v2671 = vadd.f32 %v632, %v2670
      %v2672 = vpop.f32.mrb[0].mxu0
      %v2673 = vadd.f32 %v636, %v2672
      %2674 = vmatprep.mubr.bf16.mxu0 %v1348
      %2675 = vmatmul.mubr.bf16.gmra.mrb[0].mxu0 %v1347
      %v2676 = vpop.f32.mrb[0].mxu0
      %v2677 = vadd.f32 %v632, %v2676
      %v2678 = vpop.f32.mrb[0].mxu0
      %v2679 = vadd.f32 %v636, %v2678
      %v2680 = vpop.f32.mrb[0].mxu0
      %v2681 = vadd.f32 %v632, %v2680
      %v2682 = vpop.f32.mrb[0].mxu0
      %v2683 = vadd.f32 %v636, %v2682
      %2684 = vmatprep.mubr.bf16.mxu0 %v1360
      %2685 = vmatmul.mubr.bf16.gmra.mrb[0].mxu0 %v1359
      %v2686 = vpop.f32.mrb[0].mxu0
      %v2687 = vadd.f32 %v632, %v2686
      %v2688 = vpop.f32.mrb[0].mxu0
      %v2689 = vadd.f32 %v636, %v2688
      %v2690 = vpop.f32.mrb[0].mxu0
      %v2691 = vadd.f32 %v632, %v2690
      %v2692 = vpop.f32.mrb[0].mxu0
      %v2693 = vadd.f32 %v636, %v2692
      %2694 = vmatprep.mubr.bf16.mxu0 %v1372
      %2695 = vmatmul.mubr.bf16.gmra.mrb[0].mxu0 %v1371
      %v2696 = vpop.f32.mrb[0].mxu0
      %v2697 = vadd.f32 %v632, %v2696
      %v2698 = vpop.f32.mrb[0].mxu0
      %v2699 = vadd.f32 %v636, %v2698
      %v2700 = vpop.f32.mrb[0].mxu0
      %v2701 = vadd.f32 %v632, %v2700
      %v2702 = vpop.f32.mrb[0].mxu0
      %v2703 = vadd.f32 %v636, %v2702
      %2704 = vmatprep.mubr.bf16.mxu0 %v1384
      %2705 = vmatmul.mubr.bf16.gmra.mrb[0].mxu0 %v1383
      %v2706 = vpop.f32.mrb[0].mxu0
      %v2707 = vadd.f32 %v632, %v2706
      %v2708 = vpop.f32.mrb[0].mxu0
      %v2709 = vadd.f32 %v636, %v2708
      %v2710 = vpop.f32.mrb[0].mxu0
      %v2711 = vadd.f32 %v632, %v2710
      %v2712 = vpop.f32.mrb[0].mxu0
      %v2713 = vadd.f32 %v636, %v2712
      %2714 = vmatprep.mubr.bf16.mxu0 %v1396
      %2715 = vmatmul.mubr.bf16.gmra.mrb[0].mxu0 %v1395
      %v2716 = vpop.f32.mrb[0].mxu0
      %v2717 = vadd.f32 %v632, %v2716
      %v2718 = vpop.f32.mrb[0].mxu0
      %v2719 = vadd.f32 %v636, %v2718
      %v2720 = vpop.f32.mrb[0].mxu0
      %v2721 = vadd.f32 %v632, %v2720
      %v2722 = vpop.f32.mrb[0].mxu0
      %v2723 = vadd.f32 %v636, %v2722
      %2724 = vdwg.mxu0
      %2725 = vmatprep.subr.bf16.mxu0 %v2156
      %2726 = vmatpush1.bf16.msra.mxu0 %v2155
      %2727 = vmatprep.subr.bf16.mxu0 %v2158
      %2728 = vmatpush1.bf16.msra.mxu0 %v2157
      %2729 = vmatprep.subr.bf16.mxu0 %v2160
      %2730 = vmatpush1.bf16.msra.mxu0 %v2159
      %2731 = vmatprep.subr.bf16.mxu0 %v2162
      %2732 = vmatpush1.bf16.msra.mxu0 %v2161
      %2733 = vmatprep.subr.bf16.mxu0 %v2164
      %2734 = vmatpush1.bf16.msra.mxu0 %v2163
      %2735 = vmatprep.subr.bf16.mxu0 %v2166
      %2736 = vmatpush1.bf16.msra.mxu0 %v2165
      %2737 = vmatprep.subr.bf16.mxu0 %v2168
      %2738 = vmatpush1.bf16.msra.mxu0 %v2167
      %2739 = vmatprep.subr.bf16.mxu0 %v2170
      %2740 = vmatpush1.bf16.msra.mxu0 %v2169
      %2741 = vmatprep.subr.bf16.mxu0 %v2172
      %2742 = vmatpush1.bf16.msra.mxu0 %v2171
      %2743 = vmatprep.subr.bf16.mxu0 %v2174
      %2744 = vmatpush1.bf16.msra.mxu0 %v2173
      %2745 = vmatprep.subr.bf16.mxu0 %v2176
      %2746 = vmatpush1.bf16.msra.mxu0 %v2175
      %2747 = vmatprep.subr.bf16.mxu0 %v2178
      %2748 = vmatpush1.bf16.msra.mxu0 %v2177
      %2749 = vmatprep.subr.bf16.mxu0 %v2180
      %2750 = vmatpush1.bf16.msra.mxu0 %v2179
      %2751 = vmatprep.subr.bf16.mxu0 %v2182
      %2752 = vmatpush1.bf16.msra.mxu0 %v2181
      %2753 = vmatprep.subr.bf16.mxu0 %v2184
      %2754 = vmatpush1.bf16.msra.mxu0 %v2183
      %2755 = vmatprep.subr.bf16.mxu0 %v2186
      %2756 = vmatpush1.bf16.msra.mxu0 %v2185
      %2757 = vmatprep.mubr.bf16.mxu0 %v1218
      %2758 = vmatmul.mubr.bf16.gmra.mrb[0].mxu0 %v1217
      %v2759 = vpop.f32.mrb[0].mxu0
      %v2760 = vadd.f32 %v2567, %v2759
      %v2761 = vpop.f32.mrb[0].mxu0
      %v2762 = vadd.f32 %v2569, %v2761
      %v2763 = vpop.f32.mrb[0].mxu0
      %v2764 = vadd.f32 %v2571, %v2763
      %v2765 = vpop.f32.mrb[0].mxu0
      %v2766 = vadd.f32 %v2573, %v2765
      %2767 = vmatprep.mubr.bf16.mxu0 %v1230
      %2768 = vmatmul.mubr.bf16.gmra.mrb[0].mxu0 %v1229
      %v2769 = vpop.f32.mrb[0].mxu0
      %v2770 = vadd.f32 %v2577, %v2769
      %v2771 = vpop.f32.mrb[0].mxu0
      %v2772 = vadd.f32 %v2579, %v2771
      %v2773 = vpop.f32.mrb[0].mxu0
      %v2774 = vadd.f32 %v2581, %v2773
      %v2775 = vpop.f32.mrb[0].mxu0
      %v2776 = vadd.f32 %v2583, %v2775
      %2777 = vmatprep.mubr.bf16.mxu0 %v1242
      %2778 = vmatmul.mubr.bf16.gmra.mrb[0].mxu0 %v1241
      %v2779 = vpop.f32.mrb[0].mxu0
      %v2780 = vadd.f32 %v2587, %v2779
      %v2781 = vpop.f32.mrb[0].mxu0
      %v2782 = vadd.f32 %v2589, %v2781
      %v2783 = vpop.f32.mrb[0].mxu0
      %v2784 = vadd.f32 %v2591, %v2783
      %v2785 = vpop.f32.mrb[0].mxu0
      %v2786 = vadd.f32 %v2593, %v2785
      %2787 = vmatprep.mubr.bf16.mxu0 %v1254
      %2788 = vmatmul.mubr.bf16.gmra.mrb[0].mxu0 %v1253
      %v2789 = vpop.f32.mrb[0].mxu0
      %v2790 = vadd.f32 %v2597, %v2789
      %v2791 = vpop.f32.mrb[0].mxu0
      %v2792 = vadd.f32 %v2599, %v2791
      %v2793 = vpop.f32.mrb[0].mxu0
      %v2794 = vadd.f32 %v2601, %v2793
      %v2795 = vpop.f32.mrb[0].mxu0
      %v2796 = vadd.f32 %v2603, %v2795
      %2797 = vmatprep.mubr.bf16.mxu0 %v1266
      %2798 = vmatmul.mubr.bf16.gmra.mrb[0].mxu0 %v1265
      %v2799 = vpop.f32.mrb[0].mxu0
      %v2800 = vadd.f32 %v2607, %v2799
      %v2801 = vpop.f32.mrb[0].mxu0
      %v2802 = vadd.f32 %v2609, %v2801
      %v2803 = vpop.f32.mrb[0].mxu0
      %v2804 = vadd.f32 %v2611, %v2803
      %v2805 = vpop.f32.mrb[0].mxu0
      %v2806 = vadd.f32 %v2613, %v2805
      %2807 = vmatprep.mubr.bf16.mxu0 %v1278
      %2808 = vmatmul.mubr.bf16.gmra.mrb[0].mxu0 %v1277
      %v2809 = vpop.f32.mrb[0].mxu0
      %v2810 = vadd.f32 %v2617, %v2809
      %v2811 = vpop.f32.mrb[0].mxu0
      %v2812 = vadd.f32 %v2619, %v2811
      %v2813 = vpop.f32.mrb[0].mxu0
      %v2814 = vadd.f32 %v2621, %v2813
      %v2815 = vpop.f32.mrb[0].mxu0
      %v2816 = vadd.f32 %v2623, %v2815
      %2817 = vmatprep.mubr.bf16.mxu0 %v1290
      %2818 = vmatmul.mubr.bf16.gmra.mrb[0].mxu0 %v1289
      %v2819 = vpop.f32.mrb[0].mxu0
      %v2820 = vadd.f32 %v2627, %v2819
      %v2821 = vpop.f32.mrb[0].mxu0
      %v2822 = vadd.f32 %v2629, %v2821
      %v2823 = vpop.f32.mrb[0].mxu0
      %v2824 = vadd.f32 %v2631, %v2823
      %v2825 = vpop.f32.mrb[0].mxu0
      %v2826 = vadd.f32 %v2633, %v2825
      %2827 = vmatprep.mubr.bf16.mxu0 %v1302
      %2828 = vmatmul.mubr.bf16.gmra.mrb[0].mxu0 %v1301
      %v2829 = vpop.f32.mrb[0].mxu0
      %v2830 = vadd.f32 %v2637, %v2829
      %v2831 = vpop.f32.mrb[0].mxu0
      %v2832 = vadd.f32 %v2639, %v2831
      %v2833 = vpop.f32.mrb[0].mxu0
      %v2834 = vadd.f32 %v2641, %v2833
      %v2835 = vpop.f32.mrb[0].mxu0
      %v2836 = vadd.f32 %v2643, %v2835
      %2837 = vmatprep.mubr.bf16.mxu0 %v1314
      %2838 = vmatmul.mubr.bf16.gmra.mrb[0].mxu0 %v1313
      %v2839 = vpop.f32.mrb[0].mxu0
      %v2840 = vadd.f32 %v2647, %v2839
      %v2841 = vpop.f32.mrb[0].mxu0
      %v2842 = vadd.f32 %v2649, %v2841
      %v2843 = vpop.f32.mrb[0].mxu0
      %v2844 = vadd.f32 %v2651, %v2843
      %v2845 = vpop.f32.mrb[0].mxu0
      %v2846 = vadd.f32 %v2653, %v2845
      %2847 = vmatprep.mubr.bf16.mxu0 %v1326
      %2848 = vmatmul.mubr.bf16.gmra.mrb[0].mxu0 %v1325
      %v2849 = vpop.f32.mrb[0].mxu0
      %v2850 = vadd.f32 %v2657, %v2849
      %v2851 = vpop.f32.mrb[0].mxu0
      %v2852 = vadd.f32 %v2659, %v2851
      %v2853 = vpop.f32.mrb[0].mxu0
      %v2854 = vadd.f32 %v2661, %v2853
      %v2855 = vpop.f32.mrb[0].mxu0
      %v2856 = vadd.f32 %v2663, %v2855
      %2857 = vmatprep.mubr.bf16.mxu0 %v1338
      %2858 = vmatmul.mubr.bf16.gmra.mrb[0].mxu0 %v1337
      %v2859 = vpop.f32.mrb[0].mxu0
      %v2860 = vadd.f32 %v2667, %v2859
      %v2861 = vpop.f32.mrb[0].mxu0
      %v2862 = vadd.f32 %v2669, %v2861
      %v2863 = vpop.f32.mrb[0].mxu0
      %v2864 = vadd.f32 %v2671, %v2863
      %v2865 = vpop.f32.mrb[0].mxu0
      %v2866 = vadd.f32 %v2673, %v2865
      %2867 = vmatprep.mubr.bf16.mxu0 %v1350
      %2868 = vmatmul.mubr.bf16.gmra.mrb[0].mxu0 %v1349
      %v2869 = vpop.f32.mrb[0].mxu0
      %v2870 = vadd.f32 %v2677, %v2869
      %v2871 = vpop.f32.mrb[0].mxu0
      %v2872 = vadd.f32 %v2679, %v2871
      %v2873 = vpop.f32.mrb[0].mxu0
      %v2874 = vadd.f32 %v2681, %v2873
      %v2875 = vpop.f32.mrb[0].mxu0
      %v2876 = vadd.f32 %v2683, %v2875
      %2877 = vmatprep.mubr.bf16.mxu0 %v1362
      %2878 = vmatmul.mubr.bf16.gmra.mrb[0].mxu0 %v1361
      %v2879 = vpop.f32.mrb[0].mxu0
      %v2880 = vadd.f32 %v2687, %v2879
      %v2881 = vpop.f32.mrb[0].mxu0
      %v2882 = vadd.f32 %v2689, %v2881
      %v2883 = vpop.f32.mrb[0].mxu0
      %v2884 = vadd.f32 %v2691, %v2883
      %v2885 = vpop.f32.mrb[0].mxu0
      %v2886 = vadd.f32 %v2693, %v2885
      %2887 = vmatprep.mubr.bf16.mxu0 %v1374
      %2888 = vmatmul.mubr.bf16.gmra.mrb[0].mxu0 %v1373
      %v2889 = vpop.f32.mrb[0].mxu0
      %v2890 = vadd.f32 %v2697, %v2889
      %v2891 = vpop.f32.mrb[0].mxu0
      %v2892 = vadd.f32 %v2699, %v2891
      %v2893 = vpop.f32.mrb[0].mxu0
      %v2894 = vadd.f32 %v2701, %v2893
      %v2895 = vpop.f32.mrb[0].mxu0
      %v2896 = vadd.f32 %v2703, %v2895
      %2897 = vmatprep.mubr.bf16.mxu0 %v1386
      %2898 = vmatmul.mubr.bf16.gmra.mrb[0].mxu0 %v1385
      %v2899 = vpop.f32.mrb[0].mxu0
      %v2900 = vadd.f32 %v2707, %v2899
      %v2901 = vpop.f32.mrb[0].mxu0
      %v2902 = vadd.f32 %v2709, %v2901
      %v2903 = vpop.f32.mrb[0].mxu0
      %v2904 = vadd.f32 %v2711, %v2903
      %v2905 = vpop.f32.mrb[0].mxu0
      %v2906 = vadd.f32 %v2713, %v2905
      %2907 = vmatprep.mubr.bf16.mxu0 %v1398
      %2908 = vmatmul.mubr.bf16.gmra.mrb[0].mxu0 %v1397
      %v2909 = vpop.f32.mrb[0].mxu0
      %v2910 = vadd.f32 %v2717, %v2909
      %v2911 = vpop.f32.mrb[0].mxu0
      %v2912 = vadd.f32 %v2719, %v2911
      %v2913 = vpop.f32.mrb[0].mxu0
      %v2914 = vadd.f32 %v2721, %v2913
      %v2915 = vpop.f32.mrb[0].mxu0
      %v2916 = vadd.f32 %v2723, %v2915
      %2917 = vdwg.mxu0
      %2918 = vmatprep.subr.bf16.mxu0 %v2188
      %2919 = vmatpush1.bf16.msra.mxu0 %v2187
      %2920 = vmatprep.subr.bf16.mxu0 %v2190
      %2921 = vmatpush1.bf16.msra.mxu0 %v2189
      %2922 = vmatprep.subr.bf16.mxu0 %v2192
      %2923 = vmatpush1.bf16.msra.mxu0 %v2191
      %2924 = vmatprep.subr.bf16.mxu0 %v2194
      %2925 = vmatpush1.bf16.msra.mxu0 %v2193
      %2926 = vmatprep.subr.bf16.mxu0 %v2196
      %2927 = vmatpush1.bf16.msra.mxu0 %v2195
      %2928 = vmatprep.subr.bf16.mxu0 %v2198
      %2929 = vmatpush1.bf16.msra.mxu0 %v2197
      %2930 = vmatprep.subr.bf16.mxu0 %v2200
      %2931 = vmatpush1.bf16.msra.mxu0 %v2199
      %2932 = vmatprep.subr.bf16.mxu0 %v2202
      %2933 = vmatpush1.bf16.msra.mxu0 %v2201
      %2934 = vmatprep.subr.bf16.mxu0 %v2204
      %2935 = vmatpush1.bf16.msra.mxu0 %v2203
      %2936 = vmatprep.subr.bf16.mxu0 %v2206
      %2937 = vmatpush1.bf16.msra.mxu0 %v2205
      %2938 = vmatprep.subr.bf16.mxu0 %v2208
      %2939 = vmatpush1.bf16.msra.mxu0 %v2207
      %2940 = vmatprep.subr.bf16.mxu0 %v2210
      %2941 = vmatpush1.bf16.msra.mxu0 %v2209
      %2942 = vmatprep.subr.bf16.mxu0 %v2212
      %2943 = vmatpush1.bf16.msra.mxu0 %v2211
      %2944 = vmatprep.subr.bf16.mxu0 %v2214
      %2945 = vmatpush1.bf16.msra.mxu0 %v2213
      %2946 = vmatprep.subr.bf16.mxu0 %v2216
      %2947 = vmatpush1.bf16.msra.mxu0 %v2215
      %2948 = vmatprep.subr.bf16.mxu0 %v2218
      %2949 = vmatpush1.bf16.msra.mxu0 %v2217
      %2950 = vmatprep.mubr.bf16.mxu0 %v1220
      %2951 = vmatmul.mubr.bf16.gmra.mrb[0].mxu0 %v1219
      %v2952 = vpop.f32.mrb[0].mxu0
      %v2953 = vadd.f32 %v2760, %v2952
      %v2954 = vpop.f32.mrb[0].mxu0
      %v2955 = vadd.f32 %v2762, %v2954
      %v2956 = vpop.f32.mrb[0].mxu0
      %v2957 = vadd.f32 %v2764, %v2956
      %v2958 = vpop.f32.mrb[0].mxu0
      %v2959 = vadd.f32 %v2766, %v2958
      %2960 = vmatprep.mubr.bf16.mxu0 %v1232
      %2961 = vmatmul.mubr.bf16.gmra.mrb[0].mxu0 %v1231
      %v2962 = vpop.f32.mrb[0].mxu0
      %v2963 = vadd.f32 %v2770, %v2962
      %v2964 = vpop.f32.mrb[0].mxu0
      %v2965 = vadd.f32 %v2772, %v2964
      %v2966 = vpop.f32.mrb[0].mxu0
      %v2967 = vadd.f32 %v2774, %v2966
      %v2968 = vpop.f32.mrb[0].mxu0
      %v2969 = vadd.f32 %v2776, %v2968
      %2970 = vmatprep.mubr.bf16.mxu0 %v1244
      %2971 = vmatmul.mubr.bf16.gmra.mrb[0].mxu0 %v1243
      %v2972 = vpop.f32.mrb[0].mxu0
      %v2973 = vadd.f32 %v2780, %v2972
      %v2974 = vpop.f32.mrb[0].mxu0
      %v2975 = vadd.f32 %v2782, %v2974
      %v2976 = vpop.f32.mrb[0].mxu0
      %v2977 = vadd.f32 %v2784, %v2976
      %v2978 = vpop.f32.mrb[0].mxu0
      %v2979 = vadd.f32 %v2786, %v2978
      %2980 = vmatprep.mubr.bf16.mxu0 %v1256
      %2981 = vmatmul.mubr.bf16.gmra.mrb[0].mxu0 %v1255
      %v2982 = vpop.f32.mrb[0].mxu0
      %v2983 = vadd.f32 %v2790, %v2982
      %v2984 = vpop.f32.mrb[0].mxu0
      %v2985 = vadd.f32 %v2792, %v2984
      %v2986 = vpop.f32.mrb[0].mxu0
      %v2987 = vadd.f32 %v2794, %v2986
      %v2988 = vpop.f32.mrb[0].mxu0
      %v2989 = vadd.f32 %v2796, %v2988
      %2990 = vmatprep.mubr.bf16.mxu0 %v1268
      %2991 = vmatmul.mubr.bf16.gmra.mrb[0].mxu0 %v1267
      %v2992 = vpop.f32.mrb[0].mxu0
      %v2993 = vadd.f32 %v2800, %v2992
      %v2994 = vpop.f32.mrb[0].mxu0
      %v2995 = vadd.f32 %v2802, %v2994
      %v2996 = vpop.f32.mrb[0].mxu0
      %v2997 = vadd.f32 %v2804, %v2996
      %v2998 = vpop.f32.mrb[0].mxu0
      %v2999 = vadd.f32 %v2806, %v2998
      %3000 = vmatprep.mubr.bf16.mxu0 %v1280
      %3001 = vmatmul.mubr.bf16.gmra.mrb[0].mxu0 %v1279
      %v3002 = vpop.f32.mrb[0].mxu0
      %v3003 = vadd.f32 %v2810, %v3002
      %v3004 = vpop.f32.mrb[0].mxu0
      %v3005 = vadd.f32 %v2812, %v3004
      %v3006 = vpop.f32.mrb[0].mxu0
      %v3007 = vadd.f32 %v2814, %v3006
      %v3008 = vpop.f32.mrb[0].mxu0
      %v3009 = vadd.f32 %v2816, %v3008
      %3010 = vmatprep.mubr.bf16.mxu0 %v1292
      %3011 = vmatmul.mubr.bf16.gmra.mrb[0].mxu0 %v1291
      %v3012 = vpop.f32.mrb[0].mxu0
      %v3013 = vadd.f32 %v2820, %v3012
      %v3014 = vpop.f32.mrb[0].mxu0
      %v3015 = vadd.f32 %v2822, %v3014
      %v3016 = vpop.f32.mrb[0].mxu0
      %v3017 = vadd.f32 %v2824, %v3016
      %v3018 = vpop.f32.mrb[0].mxu0
      %v3019 = vadd.f32 %v2826, %v3018
      %3020 = vmatprep.mubr.bf16.mxu0 %v1304
      %3021 = vmatmul.mubr.bf16.gmra.mrb[0].mxu0 %v1303
      %v3022 = vpop.f32.mrb[0].mxu0
      %v3023 = vadd.f32 %v2830, %v3022
      %v3024 = vpop.f32.mrb[0].mxu0
      %v3025 = vadd.f32 %v2832, %v3024
      %v3026 = vpop.f32.mrb[0].mxu0
      %v3027 = vadd.f32 %v2834, %v3026
      %v3028 = vpop.f32.mrb[0].mxu0
      %v3029 = vadd.f32 %v2836, %v3028
      %3030 = vmatprep.mubr.bf16.mxu0 %v1316
      %3031 = vmatmul.mubr.bf16.gmra.mrb[0].mxu0 %v1315
      %v3032 = vpop.f32.mrb[0].mxu0
      %v3033 = vadd.f32 %v2840, %v3032
      %v3034 = vpop.f32.mrb[0].mxu0
      %v3035 = vadd.f32 %v2842, %v3034
      %v3036 = vpop.f32.mrb[0].mxu0
      %v3037 = vadd.f32 %v2844, %v3036
      %v3038 = vpop.f32.mrb[0].mxu0
      %v3039 = vadd.f32 %v2846, %v3038
      %3040 = vmatprep.mubr.bf16.mxu0 %v1328
      %3041 = vmatmul.mubr.bf16.gmra.mrb[0].mxu0 %v1327
      %v3042 = vpop.f32.mrb[0].mxu0
      %v3043 = vadd.f32 %v2850, %v3042
      %v3044 = vpop.f32.mrb[0].mxu0
      %v3045 = vadd.f32 %v2852, %v3044
      %v3046 = vpop.f32.mrb[0].mxu0
      %v3047 = vadd.f32 %v2854, %v3046
      %v3048 = vpop.f32.mrb[0].mxu0
      %v3049 = vadd.f32 %v2856, %v3048
      %3050 = vmatprep.mubr.bf16.mxu0 %v1340
      %3051 = vmatmul.mubr.bf16.gmra.mrb[0].mxu0 %v1339
      %v3052 = vpop.f32.mrb[0].mxu0
      %v3053 = vadd.f32 %v2860, %v3052
      %v3054 = vpop.f32.mrb[0].mxu0
      %v3055 = vadd.f32 %v2862, %v3054
      %v3056 = vpop.f32.mrb[0].mxu0
      %v3057 = vadd.f32 %v2864, %v3056
      %v3058 = vpop.f32.mrb[0].mxu0
      %v3059 = vadd.f32 %v2866, %v3058
      %3060 = vmatprep.mubr.bf16.mxu0 %v1352
      %3061 = vmatmul.mubr.bf16.gmra.mrb[0].mxu0 %v1351
      %v3062 = vpop.f32.mrb[0].mxu0
      %v3063 = vadd.f32 %v2870, %v3062
      %v3064 = vpop.f32.mrb[0].mxu0
      %v3065 = vadd.f32 %v2872, %v3064
      %v3066 = vpop.f32.mrb[0].mxu0
      %v3067 = vadd.f32 %v2874, %v3066
      %v3068 = vpop.f32.mrb[0].mxu0
      %v3069 = vadd.f32 %v2876, %v3068
      %3070 = vmatprep.mubr.bf16.mxu0 %v1364
      %3071 = vmatmul.mubr.bf16.gmra.mrb[0].mxu0 %v1363
      %v3072 = vpop.f32.mrb[0].mxu0
      %v3073 = vadd.f32 %v2880, %v3072
      %v3074 = vpop.f32.mrb[0].mxu0
      %v3075 = vadd.f32 %v2882, %v3074
      %v3076 = vpop.f32.mrb[0].mxu0
      %v3077 = vadd.f32 %v2884, %v3076
      %v3078 = vpop.f32.mrb[0].mxu0
      %v3079 = vadd.f32 %v2886, %v3078
      %3080 = vmatprep.mubr.bf16.mxu0 %v1376
      %3081 = vmatmul.mubr.bf16.gmra.mrb[0].mxu0 %v1375
      %v3082 = vpop.f32.mrb[0].mxu0
      %v3083 = vadd.f32 %v2890, %v3082
      %v3084 = vpop.f32.mrb[0].mxu0
      %v3085 = vadd.f32 %v2892, %v3084
      %v3086 = vpop.f32.mrb[0].mxu0
      %v3087 = vadd.f32 %v2894, %v3086
      %v3088 = vpop.f32.mrb[0].mxu0
      %v3089 = vadd.f32 %v2896, %v3088
      %3090 = vmatprep.mubr.bf16.mxu0 %v1388
      %3091 = vmatmul.mubr.bf16.gmra.mrb[0].mxu0 %v1387
      %v3092 = vpop.f32.mrb[0].mxu0
      %v3093 = vadd.f32 %v2900, %v3092
      %v3094 = vpop.f32.mrb[0].mxu0
      %v3095 = vadd.f32 %v2902, %v3094
      %v3096 = vpop.f32.mrb[0].mxu0
      %v3097 = vadd.f32 %v2904, %v3096
      %v3098 = vpop.f32.mrb[0].mxu0
      %v3099 = vadd.f32 %v2906, %v3098
      %3100 = vmatprep.mubr.bf16.mxu0 %v1400
      %3101 = vmatmul.mubr.bf16.gmra.mrb[0].mxu0 %v1399
      %v3102 = vpop.f32.mrb[0].mxu0
      %v3103 = vadd.f32 %v2910, %v3102
      %v3104 = vpop.f32.mrb[0].mxu0
      %v3105 = vadd.f32 %v2912, %v3104
      %v3106 = vpop.f32.mrb[0].mxu0
      %v3107 = vadd.f32 %v2914, %v3106
      %v3108 = vpop.f32.mrb[0].mxu0
      %v3109 = vadd.f32 %v2916, %v3108
      %3110 = vdwg.mxu0
      %3111 = vmatprep.subr.bf16.mxu0 %v2220
      %3112 = vmatpush1.bf16.msra.mxu0 %v2219
      %3113 = vmatprep.subr.bf16.mxu0 %v2222
      %3114 = vmatpush1.bf16.msra.mxu0 %v2221
      %3115 = vmatprep.subr.bf16.mxu0 %v2224
      %3116 = vmatpush1.bf16.msra.mxu0 %v2223
      %3117 = vmatprep.subr.bf16.mxu0 %v2226
      %3118 = vmatpush1.bf16.msra.mxu0 %v2225
      %3119 = vmatprep.subr.bf16.mxu0 %v2228
      %3120 = vmatpush1.bf16.msra.mxu0 %v2227
      %3121 = vmatprep.subr.bf16.mxu0 %v2230
      %3122 = vmatpush1.bf16.msra.mxu0 %v2229
      %3123 = vmatprep.subr.bf16.mxu0 %v2232
      %3124 = vmatpush1.bf16.msra.mxu0 %v2231
      %3125 = vmatprep.subr.bf16.mxu0 %v2234
      %3126 = vmatpush1.bf16.msra.mxu0 %v2233
      %3127 = vmatprep.subr.bf16.mxu0 %v2236
      %3128 = vmatpush1.bf16.msra.mxu0 %v2235
      %3129 = vmatprep.subr.bf16.mxu0 %v2238
      %3130 = vmatpush1.bf16.msra.mxu0 %v2237
      %3131 = vmatprep.subr.bf16.mxu0 %v2240
      %3132 = vmatpush1.bf16.msra.mxu0 %v2239
      %3133 = vmatprep.subr.bf16.mxu0 %v2242
      %3134 = vmatpush1.bf16.msra.mxu0 %v2241
      %3135 = vmatprep.subr.bf16.mxu0 %v2244
      %3136 = vmatpush1.bf16.msra.mxu0 %v2243
      %3137 = vmatprep.subr.bf16.mxu0 %v2246
      %3138 = vmatpush1.bf16.msra.mxu0 %v2245
      %3139 = vmatprep.subr.bf16.mxu0 %v2248
      %3140 = vmatpush1.bf16.msra.mxu0 %v2247
      %3141 = vmatprep.subr.bf16.mxu0 %v2250
      %3142 = vmatpush1.bf16.msra.mxu0 %v2249
      %3143 = vmatprep.mubr.bf16.mxu0 %v1222
      %3144 = vmatmul.mubr.bf16.gmra.mrb[0].mxu0 %v1221
      %v3145 = vpop.f32.mrb[0].mxu0
      %v3146 = vadd.f32 %v2953, %v3145
      %v3147 = vpop.f32.mrb[0].mxu0
      %v3148 = vadd.f32 %v2955, %v3147
      %v3149 = vpop.f32.mrb[0].mxu0
      %v3150 = vadd.f32 %v2957, %v3149
      %v3151 = vpop.f32.mrb[0].mxu0
      %v3152 = vadd.f32 %v2959, %v3151
      %3153 = vmatprep.mubr.bf16.mxu0 %v1234
      %3154 = vmatmul.mubr.bf16.gmra.mrb[0].mxu0 %v1233
      %v3155 = vpop.f32.mrb[0].mxu0
      %v3156 = vadd.f32 %v2963, %v3155
      %v3157 = vpop.f32.mrb[0].mxu0
      %v3158 = vadd.f32 %v2965, %v3157
      %v3159 = vpop.f32.mrb[0].mxu0
      %v3160 = vadd.f32 %v2967, %v3159
      %v3161 = vpop.f32.mrb[0].mxu0
      %v3162 = vadd.f32 %v2969, %v3161
      %3163 = vmatprep.mubr.bf16.mxu0 %v1246
      %3164 = vmatmul.mubr.bf16.gmra.mrb[0].mxu0 %v1245
      %v3165 = vpop.f32.mrb[0].mxu0
      %v3166 = vadd.f32 %v2973, %v3165
      %v3167 = vpop.f32.mrb[0].mxu0
      %v3168 = vadd.f32 %v2975, %v3167
      %v3169 = vpop.f32.mrb[0].mxu0
      %v3170 = vadd.f32 %v2977, %v3169
      %v3171 = vpop.f32.mrb[0].mxu0
      %v3172 = vadd.f32 %v2979, %v3171
      %3173 = vmatprep.mubr.bf16.mxu0 %v1258
      %3174 = vmatmul.mubr.bf16.gmra.mrb[0].mxu0 %v1257
      %v3175 = vpop.f32.mrb[0].mxu0
      %v3176 = vadd.f32 %v2983, %v3175
      %v3177 = vpop.f32.mrb[0].mxu0
      %v3178 = vadd.f32 %v2985, %v3177
      %v3179 = vpop.f32.mrb[0].mxu0
      %v3180 = vadd.f32 %v2987, %v3179
      %v3181 = vpop.f32.mrb[0].mxu0
      %v3182 = vadd.f32 %v2989, %v3181
      %3183 = vmatprep.mubr.bf16.mxu0 %v1270
      %3184 = vmatmul.mubr.bf16.gmra.mrb[0].mxu0 %v1269
      %v3185 = vpop.f32.mrb[0].mxu0
      %v3186 = vadd.f32 %v2993, %v3185
      %v3187 = vpop.f32.mrb[0].mxu0
      %v3188 = vadd.f32 %v2995, %v3187
      %v3189 = vpop.f32.mrb[0].mxu0
      %v3190 = vadd.f32 %v2997, %v3189
      %v3191 = vpop.f32.mrb[0].mxu0
      %v3192 = vadd.f32 %v2999, %v3191
      %3193 = vmatprep.mubr.bf16.mxu0 %v1282
      %3194 = vmatmul.mubr.bf16.gmra.mrb[0].mxu0 %v1281
      %v3195 = vpop.f32.mrb[0].mxu0
      %v3196 = vadd.f32 %v3003, %v3195
      %v3197 = vpop.f32.mrb[0].mxu0
      %v3198 = vadd.f32 %v3005, %v3197
      %v3199 = vpop.f32.mrb[0].mxu0
      %v3200 = vadd.f32 %v3007, %v3199
      %v3201 = vpop.f32.mrb[0].mxu0
      %v3202 = vadd.f32 %v3009, %v3201
      %3203 = vmatprep.mubr.bf16.mxu0 %v1294
      %3204 = vmatmul.mubr.bf16.gmra.mrb[0].mxu0 %v1293
      %v3205 = vpop.f32.mrb[0].mxu0
      %v3206 = vadd.f32 %v3013, %v3205
      %v3207 = vpop.f32.mrb[0].mxu0
      %v3208 = vadd.f32 %v3015, %v3207
      %v3209 = vpop.f32.mrb[0].mxu0
      %v3210 = vadd.f32 %v3017, %v3209
      %v3211 = vpop.f32.mrb[0].mxu0
      %v3212 = vadd.f32 %v3019, %v3211
      %3213 = vmatprep.mubr.bf16.mxu0 %v1306
      %3214 = vmatmul.mubr.bf16.gmra.mrb[0].mxu0 %v1305
      %v3215 = vpop.f32.mrb[0].mxu0
      %v3216 = vadd.f32 %v3023, %v3215
      %v3217 = vpop.f32.mrb[0].mxu0
      %v3218 = vadd.f32 %v3025, %v3217
      %v3219 = vpop.f32.mrb[0].mxu0
      %v3220 = vadd.f32 %v3027, %v3219
      %v3221 = vpop.f32.mrb[0].mxu0
      %v3222 = vadd.f32 %v3029, %v3221
      %3223 = vmatprep.mubr.bf16.mxu0 %v1318
      %3224 = vmatmul.mubr.bf16.gmra.mrb[0].mxu0 %v1317
      %v3225 = vpop.f32.mrb[0].mxu0
      %v3226 = vadd.f32 %v3033, %v3225
      %v3227 = vpop.f32.mrb[0].mxu0
      %v3228 = vadd.f32 %v3035, %v3227
      %v3229 = vpop.f32.mrb[0].mxu0
      %v3230 = vadd.f32 %v3037, %v3229
      %v3231 = vpop.f32.mrb[0].mxu0
      %v3232 = vadd.f32 %v3039, %v3231
      %3233 = vmatprep.mubr.bf16.mxu0 %v1330
      %3234 = vmatmul.mubr.bf16.gmra.mrb[0].mxu0 %v1329
      %v3235 = vpop.f32.mrb[0].mxu0
      %v3236 = vadd.f32 %v3043, %v3235
      %v3237 = vpop.f32.mrb[0].mxu0
      %v3238 = vadd.f32 %v3045, %v3237
      %v3239 = vpop.f32.mrb[0].mxu0
      %v3240 = vadd.f32 %v3047, %v3239
      %v3241 = vpop.f32.mrb[0].mxu0
      %v3242 = vadd.f32 %v3049, %v3241
      %3243 = vmatprep.mubr.bf16.mxu0 %v1342
      %3244 = vmatmul.mubr.bf16.gmra.mrb[0].mxu0 %v1341
      %v3245 = vpop.f32.mrb[0].mxu0
      %v3246 = vadd.f32 %v3053, %v3245
      %v3247 = vpop.f32.mrb[0].mxu0
      %v3248 = vadd.f32 %v3055, %v3247
      %v3249 = vpop.f32.mrb[0].mxu0
      %v3250 = vadd.f32 %v3057, %v3249
      %v3251 = vpop.f32.mrb[0].mxu0
      %v3252 = vadd.f32 %v3059, %v3251
      %3253 = vmatprep.mubr.bf16.mxu0 %v1354
      %3254 = vmatmul.mubr.bf16.gmra.mrb[0].mxu0 %v1353
      %v3255 = vpop.f32.mrb[0].mxu0
      %v3256 = vadd.f32 %v3063, %v3255
      %v3257 = vpop.f32.mrb[0].mxu0
      %v3258 = vadd.f32 %v3065, %v3257
      %v3259 = vpop.f32.mrb[0].mxu0
      %v3260 = vadd.f32 %v3067, %v3259
      %v3261 = vpop.f32.mrb[0].mxu0
      %v3262 = vadd.f32 %v3069, %v3261
      %3263 = vmatprep.mubr.bf16.mxu0 %v1366
      %3264 = vmatmul.mubr.bf16.gmra.mrb[0].mxu0 %v1365
      %v3265 = vpop.f32.mrb[0].mxu0
      %v3266 = vadd.f32 %v3073, %v3265
      %v3267 = vpop.f32.mrb[0].mxu0
      %v3268 = vadd.f32 %v3075, %v3267
      %v3269 = vpop.f32.mrb[0].mxu0
      %v3270 = vadd.f32 %v3077, %v3269
      %v3271 = vpop.f32.mrb[0].mxu0
      %v3272 = vadd.f32 %v3079, %v3271
      %3273 = vmatprep.mubr.bf16.mxu0 %v1378
      %3274 = vmatmul.mubr.bf16.gmra.mrb[0].mxu0 %v1377
      %v3275 = vpop.f32.mrb[0].mxu0
      %v3276 = vadd.f32 %v3083, %v3275
      %v3277 = vpop.f32.mrb[0].mxu0
      %v3278 = vadd.f32 %v3085, %v3277
      %v3279 = vpop.f32.mrb[0].mxu0
      %v3280 = vadd.f32 %v3087, %v3279
      %v3281 = vpop.f32.mrb[0].mxu0
      %v3282 = vadd.f32 %v3089, %v3281
      %3283 = vmatprep.mubr.bf16.mxu0 %v1390
      %3284 = vmatmul.mubr.bf16.gmra.mrb[0].mxu0 %v1389
      %v3285 = vpop.f32.mrb[0].mxu0
      %v3286 = vadd.f32 %v3093, %v3285
      %v3287 = vpop.f32.mrb[0].mxu0
      %v3288 = vadd.f32 %v3095, %v3287
      %v3289 = vpop.f32.mrb[0].mxu0
      %v3290 = vadd.f32 %v3097, %v3289
      %v3291 = vpop.f32.mrb[0].mxu0
      %v3292 = vadd.f32 %v3099, %v3291
      %3293 = vmatprep.mubr.bf16.mxu0 %v1402
      %3294 = vmatmul.mubr.bf16.gmra.mrb[0].mxu0 %v1401
      %v3295 = vpop.f32.mrb[0].mxu0
      %v3296 = vadd.f32 %v3103, %v3295
      %v3297 = vpop.f32.mrb[0].mxu0
      %v3298 = vadd.f32 %v3105, %v3297
      %v3299 = vpop.f32.mrb[0].mxu0
      %v3300 = vadd.f32 %v3107, %v3299
      %v3301 = vpop.f32.mrb[0].mxu0
      %v3302 = vadd.f32 %v3109, %v3301
      %3303 = vdwg.mxu0
      %3304 = vmatprep.subr.bf16.mxu0 %v2252
      %3305 = vmatpush1.bf16.msra.mxu0 %v2251
      %3306 = vmatprep.subr.bf16.mxu0 %v2254
      %3307 = vmatpush1.bf16.msra.mxu0 %v2253
      %3308 = vmatprep.subr.bf16.mxu0 %v2256
      %3309 = vmatpush1.bf16.msra.mxu0 %v2255
      %3310 = vmatprep.subr.bf16.mxu0 %v2258
      %3311 = vmatpush1.bf16.msra.mxu0 %v2257
      %3312 = vmatprep.subr.bf16.mxu0 %v2260
      %3313 = vmatpush1.bf16.msra.mxu0 %v2259
      %3314 = vmatprep.subr.bf16.mxu0 %v2262
      %3315 = vmatpush1.bf16.msra.mxu0 %v2261
      %3316 = vmatprep.subr.bf16.mxu0 %v2264
      %3317 = vmatpush1.bf16.msra.mxu0 %v2263
      %3318 = vmatprep.subr.bf16.mxu0 %v2266
      %3319 = vmatpush1.bf16.msra.mxu0 %v2265
      %3320 = vmatprep.subr.bf16.mxu0 %v2268
      %3321 = vmatpush1.bf16.msra.mxu0 %v2267
      %3322 = vmatprep.subr.bf16.mxu0 %v2270
      %3323 = vmatpush1.bf16.msra.mxu0 %v2269
      %3324 = vmatprep.subr.bf16.mxu0 %v2272
      %3325 = vmatpush1.bf16.msra.mxu0 %v2271
      %3326 = vmatprep.subr.bf16.mxu0 %v2274
      %3327 = vmatpush1.bf16.msra.mxu0 %v2273
      %3328 = vmatprep.subr.bf16.mxu0 %v2276
      %3329 = vmatpush1.bf16.msra.mxu0 %v2275
      %3330 = vmatprep.subr.bf16.mxu0 %v2278
      %3331 = vmatpush1.bf16.msra.mxu0 %v2277
      %3332 = vmatprep.subr.bf16.mxu0 %v2280
      %3333 = vmatpush1.bf16.msra.mxu0 %v2279
      %3334 = vmatprep.subr.bf16.mxu0 %v2282
      %3335 = vmatpush1.bf16.msra.mxu0 %v2281
      %3336 = vmatprep.mubr.bf16.mxu0 %v1224
      %3337 = vmatmul.mubr.bf16.gmra.mrb[0].mxu0 %v1223
      %v3338 = vpop.f32.mrb[0].mxu0
      %v3339 = vadd.f32 %v3146, %v3338
      %v3340 = vpop.f32.mrb[0].mxu0
      %v3341 = vadd.f32 %v3148, %v3340
      %v3342 = vpop.f32.mrb[0].mxu0
      %v3343 = vadd.f32 %v3150, %v3342
      %v3344 = vpop.f32.mrb[0].mxu0
      %v3345 = vadd.f32 %v3152, %v3344
      %3346 = vmatprep.mubr.bf16.mxu0 %v1236
      %3347 = vmatmul.mubr.bf16.gmra.mrb[0].mxu0 %v1235
      %v3348 = vpop.f32.mrb[0].mxu0
      %v3349 = vadd.f32 %v3156, %v3348
      %v3350 = vpop.f32.mrb[0].mxu0
      %v3351 = vadd.f32 %v3158, %v3350
      %v3352 = vpop.f32.mrb[0].mxu0
      %v3353 = vadd.f32 %v3160, %v3352
      %v3354 = vpop.f32.mrb[0].mxu0
      %v3355 = vadd.f32 %v3162, %v3354
      %3356 = vmatprep.mubr.bf16.mxu0 %v1248
      %3357 = vmatmul.mubr.bf16.gmra.mrb[0].mxu0 %v1247
      %v3358 = vpop.f32.mrb[0].mxu0
      %v3359 = vadd.f32 %v3166, %v3358
      %v3360 = vpop.f32.mrb[0].mxu0
      %v3361 = vadd.f32 %v3168, %v3360
      %v3362 = vpop.f32.mrb[0].mxu0
      %v3363 = vadd.f32 %v3170, %v3362
      %v3364 = vpop.f32.mrb[0].mxu0
      %v3365 = vadd.f32 %v3172, %v3364
      %3366 = vmatprep.mubr.bf16.mxu0 %v1260
      %3367 = vmatmul.mubr.bf16.gmra.mrb[0].mxu0 %v1259
      %v3368 = vpop.f32.mrb[0].mxu0
      %v3369 = vadd.f32 %v3176, %v3368
      %v3370 = vpop.f32.mrb[0].mxu0
      %v3371 = vadd.f32 %v3178, %v3370
      %v3372 = vpop.f32.mrb[0].mxu0
      %v3373 = vadd.f32 %v3180, %v3372
      %v3374 = vpop.f32.mrb[0].mxu0
      %v3375 = vadd.f32 %v3182, %v3374
      %3376 = vmatprep.mubr.bf16.mxu0 %v1272
      %3377 = vmatmul.mubr.bf16.gmra.mrb[0].mxu0 %v1271
      %v3378 = vpop.f32.mrb[0].mxu0
      %v3379 = vadd.f32 %v3186, %v3378
      %v3380 = vpop.f32.mrb[0].mxu0
      %v3381 = vadd.f32 %v3188, %v3380
      %v3382 = vpop.f32.mrb[0].mxu0
      %v3383 = vadd.f32 %v3190, %v3382
      %v3384 = vpop.f32.mrb[0].mxu0
      %v3385 = vadd.f32 %v3192, %v3384
      %3386 = vmatprep.mubr.bf16.mxu0 %v1284
      %3387 = vmatmul.mubr.bf16.gmra.mrb[0].mxu0 %v1283
      %v3388 = vpop.f32.mrb[0].mxu0
      %v3389 = vadd.f32 %v3196, %v3388
      %v3390 = vpop.f32.mrb[0].mxu0
      %v3391 = vadd.f32 %v3198, %v3390
      %v3392 = vpop.f32.mrb[0].mxu0
      %v3393 = vadd.f32 %v3200, %v3392
      %v3394 = vpop.f32.mrb[0].mxu0
      %v3395 = vadd.f32 %v3202, %v3394
      %3396 = vmatprep.mubr.bf16.mxu0 %v1296
      %3397 = vmatmul.mubr.bf16.gmra.mrb[0].mxu0 %v1295
      %v3398 = vpop.f32.mrb[0].mxu0
      %v3399 = vadd.f32 %v3206, %v3398
      %v3400 = vpop.f32.mrb[0].mxu0
      %v3401 = vadd.f32 %v3208, %v3400
      %v3402 = vpop.f32.mrb[0].mxu0
      %v3403 = vadd.f32 %v3210, %v3402
      %v3404 = vpop.f32.mrb[0].mxu0
      %v3405 = vadd.f32 %v3212, %v3404
      %3406 = vmatprep.mubr.bf16.mxu0 %v1308
      %3407 = vmatmul.mubr.bf16.gmra.mrb[0].mxu0 %v1307
      %v3408 = vpop.f32.mrb[0].mxu0
      %v3409 = vadd.f32 %v3216, %v3408
      %v3410 = vpop.f32.mrb[0].mxu0
      %v3411 = vadd.f32 %v3218, %v3410
      %v3412 = vpop.f32.mrb[0].mxu0
      %v3413 = vadd.f32 %v3220, %v3412
      %v3414 = vpop.f32.mrb[0].mxu0
      %v3415 = vadd.f32 %v3222, %v3414
      %3416 = vmatprep.mubr.bf16.mxu0 %v1320
      %3417 = vmatmul.mubr.bf16.gmra.mrb[0].mxu0 %v1319
      %v3418 = vpop.f32.mrb[0].mxu0
      %v3419 = vadd.f32 %v3226, %v3418
      %v3420 = vpop.f32.mrb[0].mxu0
      %v3421 = vadd.f32 %v3228, %v3420
      %v3422 = vpop.f32.mrb[0].mxu0
      %v3423 = vadd.f32 %v3230, %v3422
      %v3424 = vpop.f32.mrb[0].mxu0
      %v3425 = vadd.f32 %v3232, %v3424
      %3426 = vmatprep.mubr.bf16.mxu0 %v1332
      %3427 = vmatmul.mubr.bf16.gmra.mrb[0].mxu0 %v1331
      %v3428 = vpop.f32.mrb[0].mxu0
      %v3429 = vadd.f32 %v3236, %v3428
      %v3430 = vpop.f32.mrb[0].mxu0
      %v3431 = vadd.f32 %v3238, %v3430
      %v3432 = vpop.f32.mrb[0].mxu0
      %v3433 = vadd.f32 %v3240, %v3432
      %v3434 = vpop.f32.mrb[0].mxu0
      %v3435 = vadd.f32 %v3242, %v3434
      %3436 = vmatprep.mubr.bf16.mxu0 %v1344
      %3437 = vmatmul.mubr.bf16.gmra.mrb[0].mxu0 %v1343
      %v3438 = vpop.f32.mrb[0].mxu0
      %v3439 = vadd.f32 %v3246, %v3438
      %v3440 = vpop.f32.mrb[0].mxu0
      %v3441 = vadd.f32 %v3248, %v3440
      %v3442 = vpop.f32.mrb[0].mxu0
      %v3443 = vadd.f32 %v3250, %v3442
      %v3444 = vpop.f32.mrb[0].mxu0
      %v3445 = vadd.f32 %v3252, %v3444
      %3446 = vmatprep.mubr.bf16.mxu0 %v1356
      %3447 = vmatmul.mubr.bf16.gmra.mrb[0].mxu0 %v1355
      %v3448 = vpop.f32.mrb[0].mxu0
      %v3449 = vadd.f32 %v3256, %v3448
      %v3450 = vpop.f32.mrb[0].mxu0
      %v3451 = vadd.f32 %v3258, %v3450
      %v3452 = vpop.f32.mrb[0].mxu0
      %v3453 = vadd.f32 %v3260, %v3452
      %v3454 = vpop.f32.mrb[0].mxu0
      %v3455 = vadd.f32 %v3262, %v3454
      %3456 = vmatprep.mubr.bf16.mxu0 %v1368
      %3457 = vmatmul.mubr.bf16.gmra.mrb[0].mxu0 %v1367
      %v3458 = vpop.f32.mrb[0].mxu0
      %v3459 = vadd.f32 %v3266, %v3458
      %v3460 = vpop.f32.mrb[0].mxu0
      %v3461 = vadd.f32 %v3268, %v3460
      %v3462 = vpop.f32.mrb[0].mxu0
      %v3463 = vadd.f32 %v3270, %v3462
      %v3464 = vpop.f32.mrb[0].mxu0
      %v3465 = vadd.f32 %v3272, %v3464
      %3466 = vmatprep.mubr.bf16.mxu0 %v1380
      %3467 = vmatmul.mubr.bf16.gmra.mrb[0].mxu0 %v1379
      %v3468 = vpop.f32.mrb[0].mxu0
      %v3469 = vadd.f32 %v3276, %v3468
      %v3470 = vpop.f32.mrb[0].mxu0
      %v3471 = vadd.f32 %v3278, %v3470
      %v3472 = vpop.f32.mrb[0].mxu0
      %v3473 = vadd.f32 %v3280, %v3472
      %v3474 = vpop.f32.mrb[0].mxu0
      %v3475 = vadd.f32 %v3282, %v3474
      %3476 = vmatprep.mubr.bf16.mxu0 %v1392
      %3477 = vmatmul.mubr.bf16.gmra.mrb[0].mxu0 %v1391
      %v3478 = vpop.f32.mrb[0].mxu0
      %v3479 = vadd.f32 %v3286, %v3478
      %v3480 = vpop.f32.mrb[0].mxu0
      %v3481 = vadd.f32 %v3288, %v3480
      %v3482 = vpop.f32.mrb[0].mxu0
      %v3483 = vadd.f32 %v3290, %v3482
      %v3484 = vpop.f32.mrb[0].mxu0
      %v3485 = vadd.f32 %v3292, %v3484
      %3486 = vmatprep.mubr.bf16.mxu0 %v1404
      %3487 = vmatmul.mubr.bf16.gmra.mrb[0].mxu0 %v1403
      %v3488 = vpop.f32.mrb[0].mxu0
      %v3489 = vadd.f32 %v3296, %v3488
      %v3490 = vpop.f32.mrb[0].mxu0
      %v3491 = vadd.f32 %v3298, %v3490
      %v3492 = vpop.f32.mrb[0].mxu0
      %v3493 = vadd.f32 %v3300, %v3492
      %v3494 = vpop.f32.mrb[0].mxu0
      %v3495 = vadd.f32 %v3302, %v3494
      %3496 = vdwg.mxu0
      %3497 = vmatprep.subr.bf16.mxu0 %v2284
      %3498 = vmatpush1.bf16.msra.mxu0 %v2283
      %3499 = vmatprep.subr.bf16.mxu0 %v2286
      %3500 = vmatpush1.bf16.msra.mxu0 %v2285
      %3501 = vmatprep.subr.bf16.mxu0 %v2288
      %3502 = vmatpush1.bf16.msra.mxu0 %v2287
      %3503 = vmatprep.subr.bf16.mxu0 %v2290
      %3504 = vmatpush1.bf16.msra.mxu0 %v2289
      %3505 = vmatprep.subr.bf16.mxu0 %v2292
      %3506 = vmatpush1.bf16.msra.mxu0 %v2291
      %3507 = vmatprep.subr.bf16.mxu0 %v2294
      %3508 = vmatpush1.bf16.msra.mxu0 %v2293
      %3509 = vmatprep.subr.bf16.mxu0 %v2296
      %3510 = vmatpush1.bf16.msra.mxu0 %v2295
      %3511 = vmatprep.subr.bf16.mxu0 %v2298
      %3512 = vmatpush1.bf16.msra.mxu0 %v2297
      %3513 = vmatprep.subr.bf16.mxu0 %v2300
      %3514 = vmatpush1.bf16.msra.mxu0 %v2299
      %3515 = vmatprep.subr.bf16.mxu0 %v2302
      %3516 = vmatpush1.bf16.msra.mxu0 %v2301
      %3517 = vmatprep.subr.bf16.mxu0 0
      %3518 = vmatpush1.bf16.msra.mxu0 0
      %3519 = vmatprep.subr.bf16.mxu0 0
      %3520 = vmatpush1.bf16.msra.mxu0 0
      %3521 = vmatprep.subr.bf16.mxu0 0
      %3522 = vmatpush1.bf16.msra.mxu0 0
      %3523 = vmatprep.subr.bf16.mxu0 0
      %3524 = vmatpush1.bf16.msra.mxu0 0
      %3525 = vmatprep.subr.bf16.mxu0 0
      %3526 = vmatpush1.bf16.msra.mxu0 0
      %3527 = vmatprep.subr.bf16.mxu0 0
      %3528 = vmatpush1.bf16.msra.mxu0 0
      %3529 = vmatprep.mubr.bf16.mxu0 %v2485
      %3530 = vmatmul.mubr.bf16.gmra.mrb[0].mxu0 %v1225
      %v3531 = vpop.f32.mrb[0].mxu0
      %v3532 = vadd.f32 %v3339, %v3531
      %v3533 = vpop.f32.mrb[0].mxu0
      %v3534 = vadd.f32 %v3341, %v3533
      %v3535 = vpop.f32.mrb[0].mxu0
      %v3536 = vadd.f32 %v3343, %v3535
      %v3537 = vpop.f32.mrb[0].mxu0
      %v3538 = vadd.f32 %v3345, %v3537
      %3539 = vmatprep.mubr.bf16.mxu0 %v2488
      %3540 = vmatmul.mubr.bf16.gmra.mrb[0].mxu0 %v1237
      %v3541 = vpop.f32.mrb[0].mxu0
      %v3542 = vadd.f32 %v3349, %v3541
      %v3543 = vpop.f32.mrb[0].mxu0
      %v3544 = vadd.f32 %v3351, %v3543
      %v3545 = vpop.f32.mrb[0].mxu0
      %v3546 = vadd.f32 %v3353, %v3545
      %v3547 = vpop.f32.mrb[0].mxu0
      %v3548 = vadd.f32 %v3355, %v3547
      %3549 = vmatprep.mubr.bf16.mxu0 %v2491
      %3550 = vmatmul.mubr.bf16.gmra.mrb[0].mxu0 %v1249
      %v3551 = vpop.f32.mrb[0].mxu0
      %v3552 = vadd.f32 %v3359, %v3551
      %v3553 = vpop.f32.mrb[0].mxu0
      %v3554 = vadd.f32 %v3361, %v3553
      %v3555 = vpop.f32.mrb[0].mxu0
      %v3556 = vadd.f32 %v3363, %v3555
      %v3557 = vpop.f32.mrb[0].mxu0
      %v3558 = vadd.f32 %v3365, %v3557
      %3559 = vmatprep.mubr.bf16.mxu0 %v2494
      %3560 = vmatmul.mubr.bf16.gmra.mrb[0].mxu0 %v1261
      %v3561 = vpop.f32.mrb[0].mxu0
      %v3562 = vadd.f32 %v3369, %v3561
      %v3563 = vpop.f32.mrb[0].mxu0
      %v3564 = vadd.f32 %v3371, %v3563
      %v3565 = vpop.f32.mrb[0].mxu0
      %v3566 = vadd.f32 %v3373, %v3565
      %v3567 = vpop.f32.mrb[0].mxu0
      %v3568 = vadd.f32 %v3375, %v3567
      %3569 = vmatprep.mubr.bf16.mxu0 %v2497
      %3570 = vmatmul.mubr.bf16.gmra.mrb[0].mxu0 %v1273
      %v3571 = vpop.f32.mrb[0].mxu0
      %v3572 = vadd.f32 %v3379, %v3571
      %v3573 = vpop.f32.mrb[0].mxu0
      %v3574 = vadd.f32 %v3381, %v3573
      %v3575 = vpop.f32.mrb[0].mxu0
      %v3576 = vadd.f32 %v3383, %v3575
      %v3577 = vpop.f32.mrb[0].mxu0
      %v3578 = vadd.f32 %v3385, %v3577
      %3579 = vmatprep.mubr.bf16.mxu0 %v2500
      %3580 = vmatmul.mubr.bf16.gmra.mrb[0].mxu0 %v1285
      %v3581 = vpop.f32.mrb[0].mxu0
      %v3582 = vadd.f32 %v3389, %v3581
      %v3583 = vpop.f32.mrb[0].mxu0
      %v3584 = vadd.f32 %v3391, %v3583
      %v3585 = vpop.f32.mrb[0].mxu0
      %v3586 = vadd.f32 %v3393, %v3585
      %v3587 = vpop.f32.mrb[0].mxu0
      %v3588 = vadd.f32 %v3395, %v3587
      %3589 = vmatprep.mubr.bf16.mxu0 %v2503
      %3590 = vmatmul.mubr.bf16.gmra.mrb[0].mxu0 %v1297
      %v3591 = vpop.f32.mrb[0].mxu0
      %v3592 = vadd.f32 %v3399, %v3591
      %v3593 = vpop.f32.mrb[0].mxu0
      %v3594 = vadd.f32 %v3401, %v3593
      %v3595 = vpop.f32.mrb[0].mxu0
      %v3596 = vadd.f32 %v3403, %v3595
      %v3597 = vpop.f32.mrb[0].mxu0
      %v3598 = vadd.f32 %v3405, %v3597
      %3599 = vmatprep.mubr.bf16.mxu0 %v2506
      %3600 = vmatmul.mubr.bf16.gmra.mrb[0].mxu0 %v1309
      %v3601 = vpop.f32.mrb[0].mxu0
      %v3602 = vadd.f32 %v3409, %v3601
      %v3603 = vpop.f32.mrb[0].mxu0
      %v3604 = vadd.f32 %v3411, %v3603
      %v3605 = vpop.f32.mrb[0].mxu0
      %v3606 = vadd.f32 %v3413, %v3605
      %v3607 = vpop.f32.mrb[0].mxu0
      %v3608 = vadd.f32 %v3415, %v3607
      %3609 = vmatprep.mubr.bf16.mxu0 %v2509
      %3610 = vmatmul.mubr.bf16.gmra.mrb[0].mxu0 %v1321
      %v3611 = vpop.f32.mrb[0].mxu0
      %v3612 = vadd.f32 %v3419, %v3611
      %v3613 = vpop.f32.mrb[0].mxu0
      %v3614 = vadd.f32 %v3421, %v3613
      %v3615 = vpop.f32.mrb[0].mxu0
      %v3616 = vadd.f32 %v3423, %v3615
      %v3617 = vpop.f32.mrb[0].mxu0
      %v3618 = vadd.f32 %v3425, %v3617
      %3619 = vmatprep.mubr.bf16.mxu0 %v2512
      %3620 = vmatmul.mubr.bf16.gmra.mrb[0].mxu0 %v1333
      %v3621 = vpop.f32.mrb[0].mxu0
      %v3622 = vadd.f32 %v3429, %v3621
      %v3623 = vpop.f32.mrb[0].mxu0
      %v3624 = vadd.f32 %v3431, %v3623
      %v3625 = vpop.f32.mrb[0].mxu0
      %v3626 = vadd.f32 %v3433, %v3625
      %v3627 = vpop.f32.mrb[0].mxu0
      %v3628 = vadd.f32 %v3435, %v3627
      %3629 = vmatprep.mubr.bf16.mxu0 %v2515
      %3630 = vmatmul.mubr.bf16.gmra.mrb[0].mxu0 %v1345
      %v3631 = vpop.f32.mrb[0].mxu0
      %v3632 = vadd.f32 %v3439, %v3631
      %v3633 = vpop.f32.mrb[0].mxu0
      %v3634 = vadd.f32 %v3441, %v3633
      %v3635 = vpop.f32.mrb[0].mxu0
      %v3636 = vadd.f32 %v3443, %v3635
      %v3637 = vpop.f32.mrb[0].mxu0
      %v3638 = vadd.f32 %v3445, %v3637
      %3639 = vmatprep.mubr.bf16.mxu0 %v2518
      %3640 = vmatmul.mubr.bf16.gmra.mrb[0].mxu0 %v1357
      %v3641 = vpop.f32.mrb[0].mxu0
      %v3642 = vadd.f32 %v3449, %v3641
      %v3643 = vpop.f32.mrb[0].mxu0
      %v3644 = vadd.f32 %v3451, %v3643
      %v3645 = vpop.f32.mrb[0].mxu0
      %v3646 = vadd.f32 %v3453, %v3645
      %v3647 = vpop.f32.mrb[0].mxu0
      %v3648 = vadd.f32 %v3455, %v3647
      %3649 = vmatprep.mubr.bf16.mxu0 %v2521
      %3650 = vmatmul.mubr.bf16.gmra.mrb[0].mxu0 %v1369
      %v3651 = vpop.f32.mrb[0].mxu0
      %v3652 = vadd.f32 %v3459, %v3651
      %v3653 = vpop.f32.mrb[0].mxu0
      %v3654 = vadd.f32 %v3461, %v3653
      %v3655 = vpop.f32.mrb[0].mxu0
      %v3656 = vadd.f32 %v3463, %v3655
      %v3657 = vpop.f32.mrb[0].mxu0
      %v3658 = vadd.f32 %v3465, %v3657
      %3659 = vmatprep.mubr.bf16.mxu0 %v2524
      %3660 = vmatmul.mubr.bf16.gmra.mrb[0].mxu0 %v1381
      %v3661 = vpop.f32.mrb[0].mxu0
      %v3662 = vadd.f32 %v3469, %v3661
      %v3663 = vpop.f32.mrb[0].mxu0
      %v3664 = vadd.f32 %v3471, %v3663
      %v3665 = vpop.f32.mrb[0].mxu0
      %v3666 = vadd.f32 %v3473, %v3665
      %v3667 = vpop.f32.mrb[0].mxu0
      %v3668 = vadd.f32 %v3475, %v3667
      %3669 = vmatprep.mubr.bf16.mxu0 %v2527
      %3670 = vmatmul.mubr.bf16.gmra.mrb[0].mxu0 %v1393
      %v3671 = vpop.f32.mrb[0].mxu0
      %v3672 = vadd.f32 %v3479, %v3671
      %v3673 = vpop.f32.mrb[0].mxu0
      %v3674 = vadd.f32 %v3481, %v3673
      %v3675 = vpop.f32.mrb[0].mxu0
      %v3676 = vadd.f32 %v3483, %v3675
      %v3677 = vpop.f32.mrb[0].mxu0
      %v3678 = vadd.f32 %v3485, %v3677
      %3679 = vmatprep.mubr.bf16.mxu0 %v2530
      %3680 = vmatmul.mubr.bf16.gmra.mrb[0].mxu0 %v1405
      %v3681 = vpop.f32.mrb[0].mxu0
      %v3682 = vadd.f32 %v3489, %v3681
      %v3683 = vpop.f32.mrb[0].mxu0
      %v3684 = vadd.f32 %v3491, %v3683
      %v3685 = vpop.f32.mrb[0].mxu0
      %v3686 = vadd.f32 %v3493, %v3685
      %v3687 = vpop.f32.mrb[0].mxu0
      %v3688 = vadd.f32 %v3495, %v3687
      %3689 = vdwg.mxu0
      %vm3690 = vcmp.ge.f32.partialorder %v3532, 0.0
      %vm3691 = vcmp.ge.f32.partialorder %v3534, 0.0
      %vm3692 = vcmp.ge.f32.partialorder %v3536, 0.0
      %vm3693 = vcmp.ge.f32.partialorder %v3538, 0.0
      %vm3694 = vcmp.ge.f32.partialorder %v3542, 0.0
      %vm3695 = vcmp.ge.f32.partialorder %v3544, 0.0
      %vm3696 = vcmp.ge.f32.partialorder %v3546, 0.0
      %vm3697 = vcmp.ge.f32.partialorder %v3548, 0.0
      %vm3698 = vcmp.ge.f32.partialorder %v3552, 0.0
      %vm3699 = vcmp.ge.f32.partialorder %v3554, 0.0
      %vm3700 = vcmp.ge.f32.partialorder %v3556, 0.0
      %vm3701 = vcmp.ge.f32.partialorder %v3558, 0.0
      %vm3702 = vcmp.ge.f32.partialorder %v3562, 0.0
      %vm3703 = vcmp.ge.f32.partialorder %v3564, 0.0
      %vm3704 = vcmp.ge.f32.partialorder %v3566, 0.0
      %vm3705 = vcmp.ge.f32.partialorder %v3568, 0.0
      %vm3706 = vcmp.ge.f32.partialorder %v3572, 0.0
      %vm3707 = vcmp.ge.f32.partialorder %v3574, 0.0
      %vm3708 = vcmp.ge.f32.partialorder %v3576, 0.0
      %vm3709 = vcmp.ge.f32.partialorder %v3578, 0.0
      %vm3710 = vcmp.ge.f32.partialorder %v3582, 0.0
      %vm3711 = vcmp.ge.f32.partialorder %v3584, 0.0
      %vm3712 = vcmp.ge.f32.partialorder %v3586, 0.0
      %vm3713 = vcmp.ge.f32.partialorder %v3588, 0.0
      %vm3714 = vcmp.ge.f32.partialorder %v3592, 0.0
      %vm3715 = vcmp.ge.f32.partialorder %v3594, 0.0
      %vm3716 = vcmp.ge.f32.partialorder %v3596, 0.0
      %vm3717 = vcmp.ge.f32.partialorder %v3598, 0.0
      %vm3718 = vcmp.ge.f32.partialorder %v3602, 0.0
      %vm3719 = vcmp.ge.f32.partialorder %v3604, 0.0
      %vm3720 = vcmp.ge.f32.partialorder %v3606, 0.0
      %vm3721 = vcmp.ge.f32.partialorder %v3608, 0.0
      %vm3722 = vcmp.ge.f32.partialorder %v3612, 0.0
      %vm3723 = vcmp.ge.f32.partialorder %v3614, 0.0
      %vm3724 = vcmp.ge.f32.partialorder %v3616, 0.0
      %vm3725 = vcmp.ge.f32.partialorder %v3618, 0.0
      %vm3726 = vcmp.ge.f32.partialorder %v3622, 0.0
      %vm3727 = vcmp.ge.f32.partialorder %v3624, 0.0
      %vm3728 = vcmp.ge.f32.partialorder %v3626, 0.0
      %vm3729 = vcmp.ge.f32.partialorder %v3628, 0.0
      %vm3730 = vcmp.ge.f32.partialorder %v3632, 0.0
      %vm3731 = vcmp.ge.f32.partialorder %v3634, 0.0
      %vm3732 = vcmp.ge.f32.partialorder %v3636, 0.0
      %vm3733 = vcmp.ge.f32.partialorder %v3638, 0.0
      %vm3734 = vcmp.ge.f32.partialorder %v3642, 0.0
      %vm3735 = vcmp.ge.f32.partialorder %v3644, 0.0
      %vm3736 = vcmp.ge.f32.partialorder %v3646, 0.0
      %vm3737 = vcmp.ge.f32.partialorder %v3648, 0.0
      %vm3738 = vcmp.ge.f32.partialorder %v3652, 0.0
      %vm3739 = vcmp.ge.f32.partialorder %v3654, 0.0
      %vm3740 = vcmp.ge.f32.partialorder %v3656, 0.0
      %vm3741 = vcmp.ge.f32.partialorder %v3658, 0.0
      %vm3742 = vcmp.ge.f32.partialorder %v3662, 0.0
      %vm3743 = vcmp.ge.f32.partialorder %v3664, 0.0
      %vm3744 = vcmp.ge.f32.partialorder %v3666, 0.0
      %vm3745 = vcmp.ge.f32.partialorder %v3668, 0.0
      %vm3746 = vcmp.ge.f32.partialorder %v3672, 0.0
      %vm3747 = vcmp.ge.f32.partialorder %v3674, 0.0
      %vm3748 = vcmp.ge.f32.partialorder %v3676, 0.0
      %vm3749 = vcmp.ge.f32.partialorder %v3678, 0.0
      %vm3750 = vcmp.ge.f32.partialorder %v3682, 0.0
      %vm3751 = vcmp.ge.f32.partialorder %v3684, 0.0
      %vm3752 = vcmp.ge.f32.partialorder %v3686, 0.0
      %vm3753 = vcmp.ge.f32.partialorder %v3688, 0.0
      %v3754 = vmul.f32 %v3532, 0.005
      %v3755 = vmul.f32 %v3534, 0.005
      %v3756 = vmul.f32 %v3536, 0.005
      %v3757 = vmul.f32 %v3538, 0.005
      %v3758 = vmul.f32 %v3542, 0.005
      %v3759 = vmul.f32 %v3544, 0.005
      %v3760 = vmul.f32 %v3546, 0.005
      %v3761 = vmul.f32 %v3548, 0.005
      %v3762 = vmul.f32 %v3552, 0.005
      %v3763 = vmul.f32 %v3554, 0.005
      %v3764 = vmul.f32 %v3556, 0.005
      %v3765 = vmul.f32 %v3558, 0.005
      %v3766 = vmul.f32 %v3562, 0.005
      %v3767 = vmul.f32 %v3564, 0.005
      %v3768 = vmul.f32 %v3566, 0.005
      %v3769 = vmul.f32 %v3568, 0.005
      %v3770 = vmul.f32 %v3572, 0.005
      %v3771 = vmul.f32 %v3574, 0.005
      %v3772 = vmul.f32 %v3576, 0.005
      %v3773 = vmul.f32 %v3578, 0.005
      %v3774 = vmul.f32 %v3582, 0.005
      %v3775 = vmul.f32 %v3584, 0.005
      %v3776 = vmul.f32 %v3586, 0.005
      %v3777 = vmul.f32 %v3588, 0.005
      %v3778 = vmul.f32 %v3592, 0.005
      %v3779 = vmul.f32 %v3594, 0.005
      %v3780 = vmul.f32 %v3596, 0.005
      %v3781 = vmul.f32 %v3598, 0.005
      %v3782 = vmul.f32 %v3602, 0.005
      %v3783 = vmul.f32 %v3604, 0.005
      %v3784 = vmul.f32 %v3606, 0.005
      %v3785 = vmul.f32 %v3608, 0.005
      %v3786 = vmul.f32 %v3612, 0.005
      %v3787 = vmul.f32 %v3614, 0.005
      %v3788 = vmul.f32 %v3616, 0.005
      %v3789 = vmul.f32 %v3618, 0.005
      %v3790 = vmul.f32 %v3622, 0.005
      %v3791 = vmul.f32 %v3624, 0.005
      %v3792 = vmul.f32 %v3626, 0.005
      %v3793 = vmul.f32 %v3628, 0.005
      %v3794 = vmul.f32 %v3632, 0.005
      %v3795 = vmul.f32 %v3634, 0.005
      %v3796 = vmul.f32 %v3636, 0.005
      %v3797 = vmul.f32 %v3638, 0.005
      %v3798 = vmul.f32 %v3642, 0.005
      %v3799 = vmul.f32 %v3644, 0.005
      %v3800 = vmul.f32 %v3646, 0.005
      %v3801 = vmul.f32 %v3648, 0.005
      %v3802 = vmul.f32 %v3652, 0.005
      %v3803 = vmul.f32 %v3654, 0.005
      %v3804 = vmul.f32 %v3656, 0.005
      %v3805 = vmul.f32 %v3658, 0.005
      %v3806 = vmul.f32 %v3662, 0.005
      %v3807 = vmul.f32 %v3664, 0.005
      %v3808 = vmul.f32 %v3666, 0.005
      %v3809 = vmul.f32 %v3668, 0.005
      %v3810 = vmul.f32 %v3672, 0.005
      %v3811 = vmul.f32 %v3674, 0.005
      %v3812 = vmul.f32 %v3676, 0.005
      %v3813 = vmul.f32 %v3678, 0.005
      %v3814 = vmul.f32 %v3682, 0.005
      %v3815 = vmul.f32 %v3684, 0.005
      %v3816 = vmul.f32 %v3686, 0.005
      %v3817 = vmul.f32 %v3688, 0.005
      %v3818 = vsel %vm3690, %v3532, %v3754
      %v3819 = vsel %vm3691, %v3534, %v3755
      %v3820 = vsel %vm3692, %v3536, %v3756
      %v3821 = vsel %vm3693, %v3538, %v3757
      %v3822 = vsel %vm3694, %v3542, %v3758
      %v3823 = vsel %vm3695, %v3544, %v3759
      %v3824 = vsel %vm3696, %v3546, %v3760
      %v3825 = vsel %vm3697, %v3548, %v3761
      %v3826 = vsel %vm3698, %v3552, %v3762
      %v3827 = vsel %vm3699, %v3554, %v3763
      %v3828 = vsel %vm3700, %v3556, %v3764
      %v3829 = vsel %vm3701, %v3558, %v3765
      %v3830 = vsel %vm3702, %v3562, %v3766
      %v3831 = vsel %vm3703, %v3564, %v3767
      %v3832 = vsel %vm3704, %v3566, %v3768
      %v3833 = vsel %vm3705, %v3568, %v3769
      %v3834 = vsel %vm3706, %v3572, %v3770
      %v3835 = vsel %vm3707, %v3574, %v3771
      %v3836 = vsel %vm3708, %v3576, %v3772
      %v3837 = vsel %vm3709, %v3578, %v3773
      %v3838 = vsel %vm3710, %v3582, %v3774
      %v3839 = vsel %vm3711, %v3584, %v3775
      %v3840 = vsel %vm3712, %v3586, %v3776
      %v3841 = vsel %vm3713, %v3588, %v3777
      %v3842 = vsel %vm3714, %v3592, %v3778
      %v3843 = vsel %vm3715, %v3594, %v3779
      %v3844 = vsel %vm3716, %v3596, %v3780
      %v3845 = vsel %vm3717, %v3598, %v3781
      %v3846 = vsel %vm3718, %v3602, %v3782
      %v3847 = vsel %vm3719, %v3604, %v3783
      %v3848 = vsel %vm3720, %v3606, %v3784
      %v3849 = vsel %vm3721, %v3608, %v3785
      %v3850 = vsel %vm3722, %v3612, %v3786
      %v3851 = vsel %vm3723, %v3614, %v3787
      %v3852 = vsel %vm3724, %v3616, %v3788
      %v3853 = vsel %vm3725, %v3618, %v3789
      %v3854 = vsel %vm3726, %v3622, %v3790
      %v3855 = vsel %vm3727, %v3624, %v3791
      %v3856 = vsel %vm3728, %v3626, %v3792
      %v3857 = vsel %vm3729, %v3628, %v3793
      %v3858 = vsel %vm3730, %v3632, %v3794
      %v3859 = vsel %vm3731, %v3634, %v3795
      %v3860 = vsel %vm3732, %v3636, %v3796
      %v3861 = vsel %vm3733, %v3638, %v3797
      %v3862 = vsel %vm3734, %v3642, %v3798
      %v3863 = vsel %vm3735, %v3644, %v3799
      %v3864 = vsel %vm3736, %v3646, %v3800
      %v3865 = vsel %vm3737, %v3648, %v3801
      %v3866 = vsel %vm3738, %v3652, %v3802
      %v3867 = vsel %vm3739, %v3654, %v3803
      %v3868 = vsel %vm3740, %v3656, %v3804
      %v3869 = vsel %vm3741, %v3658, %v3805
      %v3870 = vsel %vm3742, %v3662, %v3806
      %v3871 = vsel %vm3743, %v3664, %v3807
      %v3872 = vsel %vm3744, %v3666, %v3808
      %v3873 = vsel %vm3745, %v3668, %v3809
      %v3874 = vsel %vm3746, %v3672, %v3810
      %v3875 = vsel %vm3747, %v3674, %v3811
      %v3876 = vsel %vm3748, %v3676, %v3812
      %v3877 = vsel %vm3749, %v3678, %v3813
      %v3878 = vsel %vm3750, %v3682, %v3814
      %v3879 = vsel %vm3751, %v3684, %v3815
      %v3880 = vsel %vm3752, %v3686, %v3816
      %v3881 = vsel %vm3753, %v3688, %v3817
      %3882 = vst [vmem:[%s244] sm:$0xff] %v3818
      %3883 = vst.msk [vmem:[%s244 + $0x8] sm:$0xff] %vm2483, %v3819
      %3884 = vst [vmem:[%s244 + $0x10] sm:$0xff] %v3820
      %3885 = vst.msk [vmem:[%s244 + $0x18] sm:$0xff] %vm2483, %v3821
      %3886 = vst [vmem:[%s244 + $0x20] sm:$0xff] %v3822
      %3887 = vst.msk [vmem:[%s244 + $0x28] sm:$0xff] %vm2483, %v3823
      %3888 = vst [vmem:[%s244 + $0x30] sm:$0xff] %v3824
      %3889 = vst.msk [vmem:[%s244 + $0x38] sm:$0xff] %vm2483, %v3825
      %3890 = vst [vmem:[%s244 + $0x40] sm:$0xff] %v3826
      %3891 = vst.msk [vmem:[%s244 + $0x48] sm:$0xff] %vm2483, %v3827
      %3892 = vst [vmem:[%s244 + $0x50] sm:$0xff] %v3828
      %3893 = vst.msk [vmem:[%s244 + $0x58] sm:$0xff] %vm2483, %v3829
      %3894 = vst [vmem:[%s244 + $0x60] sm:$0xff] %v3830
      %3895 = vst.msk [vmem:[%s244 + $0x68] sm:$0xff] %vm2483, %v3831
      %3896 = vst [vmem:[%s244 + $0x70] sm:$0xff] %v3832
      %3897 = vst.msk [vmem:[%s244 + $0x78] sm:$0xff] %vm2483, %v3833
      %3898 = vst [vmem:[%s244 + $0x80] sm:$0xff] %v3834
      %3899 = vst.msk [vmem:[%s244 + $0x88] sm:$0xff] %vm2483, %v3835
      %3900 = vst [vmem:[%s244 + $0x90] sm:$0xff] %v3836
      %3901 = vst.msk [vmem:[%s244 + $0x98] sm:$0xff] %vm2483, %v3837
      %3902 = vst [vmem:[%s244 + $0xa0] sm:$0xff] %v3838
      %3903 = vst.msk [vmem:[%s244 + $0xa8] sm:$0xff] %vm2483, %v3839
      %3904 = vst [vmem:[%s244 + $0xb0] sm:$0xff] %v3840
      %3905 = vst.msk [vmem:[%s244 + $0xb8] sm:$0xff] %vm2483, %v3841
      %3906 = vst [vmem:[%s244 + $0xc0] sm:$0xff] %v3842
      %3907 = vst.msk [vmem:[%s244 + $0xc8] sm:$0xff] %vm2483, %v3843
      %3908 = vst [vmem:[%s244 + $0xd0] sm:$0xff] %v3844
      %3909 = vst.msk [vmem:[%s244 + $0xd8] sm:$0xff] %vm2483, %v3845
      %3910 = vst [vmem:[%s244 + $0xe0] sm:$0xff] %v3846
      %3911 = vst.msk [vmem:[%s244 + $0xe8] sm:$0xff] %vm2483, %v3847
      %3912 = vst [vmem:[%s244 + $0xf0] sm:$0xff] %v3848
      %3913 = vst.msk [vmem:[%s244 + $0xf8] sm:$0xff] %vm2483, %v3849
      %3914 = vst [vmem:[%s244 + $0x100] sm:$0xff] %v3850
      %3915 = vst.msk [vmem:[%s244 + $0x108] sm:$0xff] %vm2483, %v3851
      %3916 = vst [vmem:[%s244 + $0x110] sm:$0xff] %v3852
      %3917 = vst.msk [vmem:[%s244 + $0x118] sm:$0xff] %vm2483, %v3853
      %3918 = vst [vmem:[%s244 + $0x120] sm:$0xff] %v3854
      %3919 = vst.msk [vmem:[%s244 + $0x128] sm:$0xff] %vm2483, %v3855
      %3920 = vst [vmem:[%s244 + $0x130] sm:$0xff] %v3856
      %3921 = vst.msk [vmem:[%s244 + $0x138] sm:$0xff] %vm2483, %v3857
      %3922 = vst [vmem:[%s244 + $0x140] sm:$0xff] %v3858
      %3923 = vst.msk [vmem:[%s244 + $0x148] sm:$0xff] %vm2483, %v3859
      %3924 = vst [vmem:[%s244 + $0x150] sm:$0xff] %v3860
      %3925 = vst.msk [vmem:[%s244 + $0x158] sm:$0xff] %vm2483, %v3861
      %3926 = vst [vmem:[%s244 + $0x160] sm:$0xff] %v3862
      %3927 = vst.msk [vmem:[%s244 + $0x168] sm:$0xff] %vm2483, %v3863
      %3928 = vst [vmem:[%s244 + $0x170] sm:$0xff] %v3864
      %3929 = vst.msk [vmem:[%s244 + $0x178] sm:$0xff] %vm2483, %v3865
      %3930 = vst [vmem:[%s244 + $0x180] sm:$0xff] %v3866
      %3931 = vst.msk [vmem:[%s244 + $0x188] sm:$0xff] %vm2483, %v3867
      %3932 = vst [vmem:[%s244 + $0x190] sm:$0xff] %v3868
      %3933 = vst.msk [vmem:[%s244 + $0x198] sm:$0xff] %vm2483, %v3869
      %3934 = vst [vmem:[%s244 + $0x1a0] sm:$0xff] %v3870
      %3935 = vst.msk [vmem:[%s244 + $0x1a8] sm:$0xff] %vm2483, %v3871
      %3936 = vst [vmem:[%s244 + $0x1b0] sm:$0xff] %v3872
      %3937 = vst.msk [vmem:[%s244 + $0x1b8] sm:$0xff] %vm2483, %v3873
      %3938 = vst [vmem:[%s244 + $0x1c0] sm:$0xff] %v3874
      %3939 = vst.msk [vmem:[%s244 + $0x1c8] sm:$0xff] %vm2483, %v3875
      %3940 = vst [vmem:[%s244 + $0x1d0] sm:$0xff] %v3876
      %3941 = vst.msk [vmem:[%s244 + $0x1d8] sm:$0xff] %vm2483, %v3877
      %3942 = vst [vmem:[%s244 + $0x1e0] sm:$0xff] %v3878
      %3943 = vst.msk [vmem:[%s244 + $0x1e8] sm:$0xff] %vm2483, %v3879
      %3944 = vst [vmem:[%s244 + $0x1f0] sm:$0xff] %v3880
      %3945 = vst.msk [vmem:[%s244 + $0x1f8] sm:$0xff] %vm2483, %v3881
      %v3946 = vadd.f32 %v3818, %v3820
      %v3947 = vadd.f32 %v3946, %v3822
      %v3948 = vadd.f32 %v3947, %v3824
      %v3949 = vadd.f32 %v3948, %v3826
      %v3950 = vadd.f32 %v3949, %v3828
      %v3951 = vadd.f32 %v3950, %v3830
      %v3952 = vadd.f32 %v3951, %v3832
      %v3953 = vadd.f32 %v3952, %v3834
      %v3954 = vadd.f32 %v3953, %v3836
      %v3955 = vadd.f32 %v3954, %v3838
      %v3956 = vadd.f32 %v3955, %v3840
      %v3957 = vadd.f32 %v3956, %v3842
      %v3958 = vadd.f32 %v3957, %v3844
      %v3959 = vadd.f32 %v3958, %v3846
      %v3960 = vadd.f32 %v3959, %v3848
      %v3961 = vadd.f32 %v3960, %v3850
      %v3962 = vadd.f32 %v3961, %v3852
      %v3963 = vadd.f32 %v3962, %v3854
      %v3964 = vadd.f32 %v3963, %v3856
      %v3965 = vadd.f32 %v3964, %v3858
      %v3966 = vadd.f32 %v3965, %v3860
      %v3967 = vadd.f32 %v3966, %v3862
      %v3968 = vadd.f32 %v3967, %v3864
      %v3969 = vadd.f32 %v3968, %v3866
      %v3970 = vadd.f32 %v3969, %v3868
      %v3971 = vadd.f32 %v3970, %v3870
      %v3972 = vadd.f32 %v3971, %v3872
      %v3973 = vadd.f32 %v3972, %v3874
      %v3974 = vadd.f32 %v3973, %v3876
      %v3975 = vadd.f32 %v3974, %v3878
      %v3976 = vadd.f32 %v3975, %v3880
      %v3977 = vrot.slane %v3976, 4
      %v3978 = vadd.f32 %v3976, %v3977
      %v3979 = vrot.slane %v3978, 2
      %v3980 = vadd.f32 %v3978, %v3979
      %v3981 = vrot.slane %v3980, 1
      %v3982 = vadd.f32 %v3980, %v3981
      %v3983 = vsel %vm2483, %v3819, 0.0
      %v3984 = vsel %vm2483, %v3821, 0.0
      %v3985 = vadd.f32 %v3983, %v3984
      %v3986 = vsel %vm2483, %v3823, 0.0
      %v3987 = vadd.f32 %v3985, %v3986
      %v3988 = vsel %vm2483, %v3825, 0.0
      %v3989 = vadd.f32 %v3987, %v3988
      %v3990 = vsel %vm2483, %v3827, 0.0
      %v3991 = vadd.f32 %v3989, %v3990
      %v3992 = vsel %vm2483, %v3829, 0.0
      %v3993 = vadd.f32 %v3991, %v3992
      %v3994 = vsel %vm2483, %v3831, 0.0
      %v3995 = vadd.f32 %v3993, %v3994
      %v3996 = vsel %vm2483, %v3833, 0.0
      %v3997 = vadd.f32 %v3995, %v3996
      %v3998 = vsel %vm2483, %v3835, 0.0
      %v3999 = vadd.f32 %v3997, %v3998
      %v4000 = vsel %vm2483, %v3837, 0.0
      %v4001 = vadd.f32 %v3999, %v4000
      %v4002 = vsel %vm2483, %v3839, 0.0
      %v4003 = vadd.f32 %v4001, %v4002
      %v4004 = vsel %vm2483, %v3841, 0.0
      %v4005 = vadd.f32 %v4003, %v4004
      %v4006 = vsel %vm2483, %v3843, 0.0
      %v4007 = vadd.f32 %v4005, %v4006
      %v4008 = vsel %vm2483, %v3845, 0.0
      %v4009 = vadd.f32 %v4007, %v4008
      %v4010 = vsel %vm2483, %v3847, 0.0
      %v4011 = vadd.f32 %v4009, %v4010
      %v4012 = vsel %vm2483, %v3849, 0.0
      %v4013 = vadd.f32 %v4011, %v4012
      %v4014 = vsel %vm2483, %v3851, 0.0
      %v4015 = vadd.f32 %v4013, %v4014
      %v4016 = vsel %vm2483, %v3853, 0.0
      %v4017 = vadd.f32 %v4015, %v4016
      %v4018 = vsel %vm2483, %v3855, 0.0
      %v4019 = vadd.f32 %v4017, %v4018
      %v4020 = vsel %vm2483, %v3857, 0.0
      %v4021 = vadd.f32 %v4019, %v4020
      %v4022 = vsel %vm2483, %v3859, 0.0
      %v4023 = vadd.f32 %v4021, %v4022
      %v4024 = vsel %vm2483, %v3861, 0.0
      %v4025 = vadd.f32 %v4023, %v4024
      %v4026 = vsel %vm2483, %v3863, 0.0
      %v4027 = vadd.f32 %v4025, %v4026
      %v4028 = vsel %vm2483, %v3865, 0.0
      %v4029 = vadd.f32 %v4027, %v4028
      %v4030 = vsel %vm2483, %v3867, 0.0
      %v4031 = vadd.f32 %v4029, %v4030
      %v4032 = vsel %vm2483, %v3869, 0.0
      %v4033 = vadd.f32 %v4031, %v4032
      %v4034 = vsel %vm2483, %v3871, 0.0
      %v4035 = vadd.f32 %v4033, %v4034
      %v4036 = vsel %vm2483, %v3873, 0.0
      %v4037 = vadd.f32 %v4035, %v4036
      %v4038 = vsel %vm2483, %v3875, 0.0
      %v4039 = vadd.f32 %v4037, %v4038
      %v4040 = vsel %vm2483, %v3877, 0.0
      %v4041 = vadd.f32 %v4039, %v4040
      %v4042 = vsel %vm2483, %v3879, 0.0
      %v4043 = vadd.f32 %v4041, %v4042
      %v4044 = vsel %vm2483, %v3881, 0.0
      %v4045 = vadd.f32 %v4043, %v4044
      %v4046 = vrot.slane %v4045, 4
      %v4047 = vadd.f32 %v4045, %v4046
      %v4048 = vrot.slane %v4047, 2
      %v4049 = vadd.f32 %v4047, %v4048
      %v4050 = vrot.slane %v4049, 1
      %v4051 = vadd.f32 %v4049, %v4050
      %v4054 = vcombine.low %v3982, %v4051
      %v4056 = vunpack.c.l.s4 1966171168
      %v4057 = vunpack.c.0.s8 %v4056
      %v4058 = vlaneseq
      %v4059 = vshrl.u32 %v4058, 7
      %v4060 = vsub.s32 %v4057, %v4059
      %v4061 = vrot.slane %v4054, %v4060
      %v4063 = vunpack.c.l.s4 1966171168
      %v4064 = vunpack.c.0.s8 %v4063
      %v4065 = vlaneseq
      %v4066 = vshrl.u32 %v4065, 7
      %v4067 = vsub.s32 %v4064, %v4066
      %v4068 = vrot.slane %v4061, %v4067
      %v4070 = vlaneseq
      %vm4071 = vcmp.ge.s32.totalorder %v4070, 0
      %vm4072 = vcmp.lt.s32.totalorder %v4070, 160
      %vm4073 = vmand %vm4071, %vm4072
      %4074 = vst.msk [vmem:[%s249] sm:$0x3] %vm4073, %v4068
      %v4075 = vmul.f32 %v3818, %v3818
      %v4076 = vmul.f32 %v3819, %v3819
      %v4077 = vmul.f32 %v3820, %v3820
      %v4078 = vmul.f32 %v3821, %v3821
      %v4079 = vmul.f32 %v3822, %v3822
      %v4080 = vmul.f32 %v3823, %v3823
      %v4081 = vmul.f32 %v3824, %v3824
      %v4082 = vmul.f32 %v3825, %v3825
      %v4083 = vmul.f32 %v3826, %v3826
      %v4084 = vmul.f32 %v3827, %v3827
      %v4085 = vmul.f32 %v3828, %v3828
      %v4086 = vmul.f32 %v3829, %v3829
      %v4087 = vmul.f32 %v3830, %v3830
      %v4088 = vmul.f32 %v3831, %v3831
      %v4089 = vmul.f32 %v3832, %v3832
      %v4090 = vmul.f32 %v3833, %v3833
      %v4091 = vmul.f32 %v3834, %v3834
      %v4092 = vmul.f32 %v3835, %v3835
      %v4093 = vmul.f32 %v3836, %v3836
      %v4094 = vmul.f32 %v3837, %v3837
      %v4095 = vmul.f32 %v3838, %v3838
      %v4096 = vmul.f32 %v3839, %v3839
      %v4097 = vmul.f32 %v3840, %v3840
      %v4098 = vmul.f32 %v3841, %v3841
      %v4099 = vmul.f32 %v3842, %v3842
      %v4100 = vmul.f32 %v3843, %v3843
      %v4101 = vmul.f32 %v3844, %v3844
      %v4102 = vmul.f32 %v3845, %v3845
      %v4103 = vmul.f32 %v3846, %v3846
      %v4104 = vmul.f32 %v3847, %v3847
      %v4105 = vmul.f32 %v3848, %v3848
      %v4106 = vmul.f32 %v3849, %v3849
      %v4107 = vmul.f32 %v3850, %v3850
      %v4108 = vmul.f32 %v3851, %v3851
      %v4109 = vmul.f32 %v3852, %v3852
      %v4110 = vmul.f32 %v3853, %v3853
      %v4111 = vmul.f32 %v3854, %v3854
      %v4112 = vmul.f32 %v3855, %v3855
      %v4113 = vmul.f32 %v3856, %v3856
      %v4114 = vmul.f32 %v3857, %v3857
      %v4115 = vmul.f32 %v3858, %v3858
      %v4116 = vmul.f32 %v3859, %v3859
      %v4117 = vmul.f32 %v3860, %v3860
      %v4118 = vmul.f32 %v3861, %v3861
      %v4119 = vmul.f32 %v3862, %v3862
      %v4120 = vmul.f32 %v3863, %v3863
      %v4121 = vmul.f32 %v3864, %v3864
      %v4122 = vmul.f32 %v3865, %v3865
      %v4123 = vmul.f32 %v3866, %v3866
      %v4124 = vmul.f32 %v3867, %v3867
      %v4125 = vmul.f32 %v3868, %v3868
      %v4126 = vmul.f32 %v3869, %v3869
      %v4127 = vmul.f32 %v3870, %v3870
      %v4128 = vmul.f32 %v3871, %v3871
      %v4129 = vmul.f32 %v3872, %v3872
      %v4130 = vmul.f32 %v3873, %v3873
      %v4131 = vmul.f32 %v3874, %v3874
      %v4132 = vmul.f32 %v3875, %v3875
      %v4133 = vmul.f32 %v3876, %v3876
      %v4134 = vmul.f32 %v3877, %v3877
      %v4135 = vmul.f32 %v3878, %v3878
      %v4136 = vmul.f32 %v3879, %v3879
      %v4137 = vmul.f32 %v3880, %v3880
      %v4138 = vmul.f32 %v3881, %v3881
      %v4139 = vadd.f32 %v4075, %v4077
      %v4140 = vadd.f32 %v4139, %v4079
      %v4141 = vadd.f32 %v4140, %v4081
      %v4142 = vadd.f32 %v4141, %v4083
      %v4143 = vadd.f32 %v4142, %v4085
      %v4144 = vadd.f32 %v4143, %v4087
      %v4145 = vadd.f32 %v4144, %v4089
      %v4146 = vadd.f32 %v4145, %v4091
      %v4147 = vadd.f32 %v4146, %v4093
      %v4148 = vadd.f32 %v4147, %v4095
      %v4149 = vadd.f32 %v4148, %v4097
      %v4150 = vadd.f32 %v4149, %v4099
      %v4151 = vadd.f32 %v4150, %v4101
      %v4152 = vadd.f32 %v4151, %v4103
      %v4153 = vadd.f32 %v4152, %v4105
      %v4154 = vadd.f32 %v4153, %v4107
      %v4155 = vadd.f32 %v4154, %v4109
      %v4156 = vadd.f32 %v4155, %v4111
      %v4157 = vadd.f32 %v4156, %v4113
      %v4158 = vadd.f32 %v4157, %v4115
      %v4159 = vadd.f32 %v4158, %v4117
      %v4160 = vadd.f32 %v4159, %v4119
      %v4161 = vadd.f32 %v4160, %v4121
      %v4162 = vadd.f32 %v4161, %v4123
      %v4163 = vadd.f32 %v4162, %v4125
      %v4164 = vadd.f32 %v4163, %v4127
      %v4165 = vadd.f32 %v4164, %v4129
      %v4166 = vadd.f32 %v4165, %v4131
      %v4167 = vadd.f32 %v4166, %v4133
      %v4168 = vadd.f32 %v4167, %v4135
      %v4169 = vadd.f32 %v4168, %v4137
      %v4170 = vrot.slane %v4169, 4
      %v4171 = vadd.f32 %v4169, %v4170
      %v4172 = vrot.slane %v4171, 2
      %v4173 = vadd.f32 %v4171, %v4172
      %v4174 = vrot.slane %v4173, 1
      %v4175 = vadd.f32 %v4173, %v4174
      %v4176 = vsel %vm2483, %v4076, 0.0
      %v4177 = vsel %vm2483, %v4078, 0.0
      %v4178 = vadd.f32 %v4176, %v4177
      %v4179 = vsel %vm2483, %v4080, 0.0
      %v4180 = vadd.f32 %v4178, %v4179
      %v4181 = vsel %vm2483, %v4082, 0.0
      %v4182 = vadd.f32 %v4180, %v4181
      %v4183 = vsel %vm2483, %v4084, 0.0
      %v4184 = vadd.f32 %v4182, %v4183
      %v4185 = vsel %vm2483, %v4086, 0.0
      %v4186 = vadd.f32 %v4184, %v4185
      %v4187 = vsel %vm2483, %v4088, 0.0
      %v4188 = vadd.f32 %v4186, %v4187
      %v4189 = vsel %vm2483, %v4090, 0.0
      %v4190 = vadd.f32 %v4188, %v4189
      %v4191 = vsel %vm2483, %v4092, 0.0
      %v4192 = vadd.f32 %v4190, %v4191
      %v4193 = vsel %vm2483, %v4094, 0.0
      %v4194 = vadd.f32 %v4192, %v4193
      %v4195 = vsel %vm2483, %v4096, 0.0
      %v4196 = vadd.f32 %v4194, %v4195
      %v4197 = vsel %vm2483, %v4098, 0.0
      %v4198 = vadd.f32 %v4196, %v4197
      %v4199 = vsel %vm2483, %v4100, 0.0
      %v4200 = vadd.f32 %v4198, %v4199
      %v4201 = vsel %vm2483, %v4102, 0.0
      %v4202 = vadd.f32 %v4200, %v4201
      %v4203 = vsel %vm2483, %v4104, 0.0
      %v4204 = vadd.f32 %v4202, %v4203
      %v4205 = vsel %vm2483, %v4106, 0.0
      %v4206 = vadd.f32 %v4204, %v4205
      %v4207 = vsel %vm2483, %v4108, 0.0
      %v4208 = vadd.f32 %v4206, %v4207
      %v4209 = vsel %vm2483, %v4110, 0.0
      %v4210 = vadd.f32 %v4208, %v4209
      %v4211 = vsel %vm2483, %v4112, 0.0
      %v4212 = vadd.f32 %v4210, %v4211
      %v4213 = vsel %vm2483, %v4114, 0.0
      %v4214 = vadd.f32 %v4212, %v4213
      %v4215 = vsel %vm2483, %v4116, 0.0
      %v4216 = vadd.f32 %v4214, %v4215
      %v4217 = vsel %vm2483, %v4118, 0.0
      %v4218 = vadd.f32 %v4216, %v4217
      %v4219 = vsel %vm2483, %v4120, 0.0
      %v4220 = vadd.f32 %v4218, %v4219
      %v4221 = vsel %vm2483, %v4122, 0.0
      %v4222 = vadd.f32 %v4220, %v4221
      %v4223 = vsel %vm2483, %v4124, 0.0
      %v4224 = vadd.f32 %v4222, %v4223
      %v4225 = vsel %vm2483, %v4126, 0.0
      %v4226 = vadd.f32 %v4224, %v4225
      %v4227 = vsel %vm2483, %v4128, 0.0
      %v4228 = vadd.f32 %v4226, %v4227
      %v4229 = vsel %vm2483, %v4130, 0.0
      %v4230 = vadd.f32 %v4228, %v4229
      %v4231 = vsel %vm2483, %v4132, 0.0
      %v4232 = vadd.f32 %v4230, %v4231
      %v4233 = vsel %vm2483, %v4134, 0.0
      %v4234 = vadd.f32 %v4232, %v4233
      %v4235 = vsel %vm2483, %v4136, 0.0
      %v4236 = vadd.f32 %v4234, %v4235
      %v4237 = vsel %vm2483, %v4138, 0.0
      %v4238 = vadd.f32 %v4236, %v4237
      %v4239 = vrot.slane %v4238, 4
      %v4240 = vadd.f32 %v4238, %v4239
      %v4241 = vrot.slane %v4240, 2
      %v4242 = vadd.f32 %v4240, %v4241
      %v4243 = vrot.slane %v4242, 1
      %v4244 = vadd.f32 %v4242, %v4243
      %v4247 = vcombine.low %v4175, %v4244
      %v4249 = vunpack.c.l.s4 1966171168
      %v4250 = vunpack.c.0.s8 %v4249
      %v4251 = vlaneseq
      %v4252 = vshrl.u32 %v4251, 7
      %v4253 = vsub.s32 %v4250, %v4252
      %v4254 = vrot.slane %v4247, %v4253
      %v4256 = vunpack.c.l.s4 1966171168
      %v4257 = vunpack.c.0.s8 %v4256
      %v4258 = vlaneseq
      %v4259 = vshrl.u32 %v4258, 7
      %v4260 = vsub.s32 %v4257, %v4259
      %v4261 = vrot.slane %v4254, %v4260
      %4263 = vst.msk [vmem:[%s253] sm:$0x3] %vm4073, %v4261
      %s4264 = smul.u32 32, %s17
      %p4265 = scmp.lt.s32.totalorder %s4264, 63
      %s4266 = scalar_select %p4265, %s4264, 63
      %s4267 = smul.addr %s4266, 2
      %s4268 = smul.addr %s4267, 8
      %s4269 = scalar_lea.vmem %s3, %s4268
      %p4270 = scmp.lt.s32.totalorder %s17, 1
      %s4271 = scalar_select %p4270, %s17, 1
      %s4272 = smul.addr %s4271, 2
      %s4273 = scalar_lea.vmem %s4, %s4272
      %p4274 = scmp.lt.s32.totalorder %s17, 1
      %s4275 = scalar_select %p4274, %s17, 1
      %s4276 = smul.addr %s4275, 2
      %s4277 = scalar_lea.vmem %s5, %s4276
      // Predicated region
      $region33: #{bifusion_forward.16} parent=31 // pred_check
        %p4278 = pneg %p103
      $region34: #{bifusion_forward.16} parent=31 // pred_check_branch
        %4280 = sbr.rel (%p4278) target = $region36
      $region35: #{bifusion_forward.16} parent=31 // pred_region
        %s4281 = smul.u32 32, %s17
      $region36: #{bifusion_forward.16} parent=31 // pred_fallthru
        _
      // Predicated region
      $region37: #{bifusion_forward.16} parent=31 // pred_check
        %p4282 = pneg %p129
      $region38: #{bifusion_forward.16} parent=31 // pred_check_branch
        %4284 = sbr.rel (%p4282) target = $region40
      $region39: #{bifusion_forward.16} parent=31 // pred_region
        _
      $region40: #{bifusion_forward.16} parent=31 // pred_fallthru
        _
      // Predicated region
      $region41: #{bifusion_forward.16} parent=31 // pred_check
        %p4285 = pneg %p155
      $region42: #{bifusion_forward.16} parent=31 // pred_check_branch
        %4287 = sbr.rel (%p4285) target = $region44
      $region43: #{bifusion_forward.16} parent=31 // pred_region
        _
      $region44: #{bifusion_forward.16} parent=31 // pred_fallthru
        _
    $region32: #{bifusion_forward.16} parent=5 // pred_fallthru
      _
    %p4288 = scmp.le.s32.totalorder 2, %s12
    // Predicated region
    $region45: #{bifusion_forward.16} parent=5 // pred_check
      %p4289 = pneg %p4288
    $region46: #{bifusion_forward.16} parent=5 // pred_check_branch
      %4291 = sbr.rel (%p4289) target = $region48
    $region47: #{bifusion_forward.16} parent=5 // pred_region
      %s4292 = ssub.s32 %s12, 2
      // Predicated region
      $region49: #{bifusion_forward.16} parent=47 // pred_check
        %p4293 = pneg %p109
      $region50: #{bifusion_forward.16} parent=47 // pred_check_branch
        %4295 = sbr.rel (%p4293) target = $region52
      $region51: #{bifusion_forward.16} parent=47 // pred_region
        %s4296 = smul.u32 32, %s18
        %p4297 = scmp.lt.s32.totalorder %s4296, 63
        %s4298 = scalar_select %p4297, %s4296, 63
        %s4299 = smul.addr %s4298, 2
        %s4300 = smul.addr %s4299, 8
        %s4301 = scalar_lea.vmem %s3, %s4300
      $region52: #{bifusion_forward.16} parent=47 // pred_fallthru
        _
      // Predicated region
      $region53: #{bifusion_forward.16} parent=47 // pred_check
        %p4302 = pneg %p135
      $region54: #{bifusion_forward.16} parent=47 // pred_check_branch
        %4304 = sbr.rel (%p4302) target = $region56
      $region55: #{bifusion_forward.16} parent=47 // pred_region
        %p4305 = scmp.lt.s32.totalorder %s18, 1
        %s4306 = scalar_select %p4305, %s18, 1
        %s4307 = smul.addr %s4306, 2
        %s4308 = scalar_lea.vmem %s4, %s4307
      $region56: #{bifusion_forward.16} parent=47 // pred_fallthru
        _
      // Predicated region
      $region57: #{bifusion_forward.16} parent=47 // pred_check
        %p4309 = pneg %p161
      $region58: #{bifusion_forward.16} parent=47 // pred_check_branch
        %4311 = sbr.rel (%p4309) target = $region60
      $region59: #{bifusion_forward.16} parent=47 // pred_region
        %p4312 = scmp.lt.s32.totalorder %s18, 1
        %s4313 = scalar_select %p4312, %s18, 1
        %s4314 = smul.addr %s4313, 2
        %s4315 = scalar_lea.vmem %s5, %s4314
      $region60: #{bifusion_forward.16} parent=47 // pred_fallthru
        _
    $region48: #{bifusion_forward.16} parent=5 // pred_fallthru
      _
  $region6: #{bifusion_forward.16} parent=0 // loop_footer
    %s16 = sadd.s32 1, %s12
  $region7: #{bifusion_forward.16} parent=0 // loop_footer_branch
    %11 = sbr.rel target = $region3
  $region8: #{bifusion_forward.16} parent=0 // loop_exit
    _

// kernel: bifusion_forward.19
$region0: #{bifusion_forward.19}
  #allocation0 [shape = 'u32[]', space=smem, size = 0x4, offset = 0x4, fixed_abs, tag = 'smem constant byte address 0x4 - core index']
  #allocation1 [shape = 'u32[144,128]{1,0:T(1,128)}', space=vmem, size = 0x12000, scoped, tag = 'internal scratch']
  %s0 = inlined_call_operand.vmem [shape: f32[512,160], index: 0, kind: input, shape index: {}]
  %s1 = inlined_call_operand.vmem [shape: f32[2,160], index: 1, kind: input, shape index: {}]
  %s2 = inlined_call_operand.vmem [shape: f32[512,160], index: 2, kind: input, shape index: {}]
  %s3 = inlined_call_operand.hbm [shape: f32[512,160], index: 3, kind: output, shape index: {}]
  %s4 = sld [smem:[#allocation0]]
  $region45: #{bifusion_forward.19} parent=0
    _
  %s6 = ssub.s32 1, %s4
  %s7 = scalar_select 0, %s6, %s4
  $region1: #{bifusion_forward.19} parent=0
    #allocation2 [shape = 'u8[524288]{0}', space=vmem, size = 0x80000, scoped, tag = 'output window, operand 0']
    #allocation3 [shape = 's32[2]{0}', space=sflag, size = 0x8, scoped, tag = 'scoped memory for bifusion_forward.19']
    %8 = vsyncpa [#allocation3], 0
    %s9 = scalar_lea.sflag [#allocation3], 1
    %10 = vsyncpa %s9, 0
    loop: start=0, step=1, limit=4
    $region2: #{bifusion_forward.19} parent=1 // loop_pre_header
      _
    $region3: #{bifusion_forward.19} parent=1 // loop_header
      %s12 = sphi 0, %s16
      %p13 = scmp.ge.s32.totalorder %s12, 4
      %s22 = sphi 0, %s24
      %s25 = sphi 0, %s22
      %s26 = sphi 0, %s25
      %s42 = sphi 0, %s26
      %s46 = sphi 0, %s46
      %s48 = sphi 0, %s46
      %s49 = sphi 0, %s48
      %s63 = sphi 0, %s49
      %s69 = sphi 0, %s71
      %s72 = sphi 0, %s69
      %s73 = sphi 0, %s72
      %s89 = sphi 0, %s73
      %s95 = sphi 0, %s97
      %s98 = sphi 0, %s95
      %s99 = sphi 0, %s98
      %s115 = sphi 0, %s99
    $region4: #{bifusion_forward.19} parent=1 // loop_header_branch
      %15 = sbr.rel (%p13) target = $region8
    $region5: #{bifusion_forward.19} parent=1 // loop_body
      %s17 = ssub.s32 %s12, 1
      %s18 = ssub.s32 %s12, 2
      %s19 = sadd.s32 %s12, 1
      %s20 = ssub.s32 %s12, %s19
      %p21 = scmp.eq.s32.totalorder %s20, 0
      %s23 = sadd.s32 %s22, 1
      %s24 = scalar_select %p21, %s22, %s23
      %p27 = pneg %p21
      %p28 = scmp.eq.s32.totalorder %s12, 1
      %p29 = por %p27, %p28
      %p30 = scmp.ne.s32.totalorder %s22, %s25
      %p31 = scmp.eq.s32.totalorder %s12, 0
      %p32 = por %p30, %p31
      %p33 = scmp.ne.s32.totalorder %s22, %s25
      %p34 = scmp.eq.s32.totalorder %s17, 1
      %p35 = por %p33, %p34
      %p36 = scmp.ne.s32.totalorder %s25, %s26
      %p37 = scmp.eq.s32.totalorder %s17, 0
      %p38 = por %p36, %p37
      %p39 = scmp.ne.s32.totalorder %s25, %s26
      %p40 = scmp.eq.s32.totalorder %s18, 1
      %p41 = por %p39, %p40
      %p43 = scmp.ne.s32.totalorder %s26, %s42
      %p44 = scmp.eq.s32.totalorder %s18, 0
      %p45 = por %p43, %p44
      %s47 = sadd.s32 %s46, 1
      %p50 = scmp.eq.s32.totalorder %s12, 1
      %p51 = scmp.ne.s32.totalorder %s46, %s48
      %p52 = scmp.eq.s32.totalorder %s12, 0
      %p53 = por %p51, %p52
      %p54 = scmp.ne.s32.totalorder %s46, %s48
      %p55 = scmp.eq.s32.totalorder %s17, 1
      %p56 = por %p54, %p55
      %p57 = scmp.ne.s32.totalorder %s48, %s49
      %p58 = scmp.eq.s32.totalorder %s17, 0
      %p59 = por %p57, %p58
      %p60 = scmp.ne.s32.totalorder %s48, %s49
      %p61 = scmp.eq.s32.totalorder %s18, 1
      %p62 = por %p60, %p61
      %p64 = scmp.ne.s32.totalorder %s49, %s63
      %p65 = scmp.eq.s32.totalorder %s18, 0
      %p66 = por %p64, %p65
      %s67 = ssub.s32 %s12, %s19
      %p68 = scmp.eq.s32.totalorder %s67, 0
      %s70 = sadd.s32 %s69, 1
      %s71 = scalar_select %p68, %s69, %s70
      %p74 = pneg %p68
      %p75 = scmp.eq.s32.totalorder %s12, 1
      %p76 = por %p74, %p75
      %p77 = scmp.ne.s32.totalorder %s69, %s72
      %p78 = scmp.eq.s32.totalorder %s12, 0
      %p79 = por %p77, %p78
      %p80 = scmp.ne.s32.totalorder %s69, %s72
      %p81 = scmp.eq.s32.totalorder %s17, 1
      %p82 = por %p80, %p81
      %p83 = scmp.ne.s32.totalorder %s72, %s73
      %p84 = scmp.eq.s32.totalorder %s17, 0
      %p85 = por %p83, %p84
      %p86 = scmp.ne.s32.totalorder %s72, %s73
      %p87 = scmp.eq.s32.totalorder %s18, 1
      %p88 = por %p86, %p87
      %p90 = scmp.ne.s32.totalorder %s73, %s89
      %p91 = scmp.eq.s32.totalorder %s18, 0
      %p92 = por %p90, %p91
      %s93 = ssub.s32 %s12, %s19
      %p94 = scmp.eq.s32.totalorder %s93, 0
      %s96 = sadd.s32 %s95, 1
      %s97 = scalar_select %p94, %s95, %s96
      %p100 = pneg %p94
      %p101 = scmp.eq.s32.totalorder %s12, 1
      %p102 = por %p100, %p101
      %p103 = scmp.ne.s32.totalorder %s95, %s98
      %p104 = scmp.eq.s32.totalorder %s12, 0
      %p105 = por %p103, %p104
      %p106 = scmp.ne.s32.totalorder %s95, %s98
      %p107 = scmp.eq.s32.totalorder %s17, 1
      %p108 = por %p106, %p107
      %p109 = scmp.ne.s32.totalorder %s98, %s99
      %p110 = scmp.eq.s32.totalorder %s17, 0
      %p111 = por %p109, %p110
      %p112 = scmp.ne.s32.totalorder %s98, %s99
      %p113 = scmp.eq.s32.totalorder %s18, 1
      %p114 = por %p112, %p113
      %p116 = scmp.ne.s32.totalorder %s99, %s115
      %p117 = scmp.eq.s32.totalorder %s18, 0
      %p118 = por %p116, %p117
      %p119 = scmp.le.s32.totalorder 1, %s12
      %p120 = scmp.lt.s32.totalorder %s12, 3
      %p121 = pnand %p119, %p120
      %p122 = pneg %p121
      // Predicated region
      $region9: #{bifusion_forward.19} parent=5 // pred_check
        _
      $region10: #{bifusion_forward.19} parent=5 // pred_check_branch
        %124 = sbr.rel (%p121) target = $region12
      $region11: #{bifusion_forward.19} parent=5 // pred_region
        %s125 = ssub.s32 %s12, 1
        // Predicated region
        $region13: #{bifusion_forward.19} parent=11 // pred_check
          %p126 = pneg %p59
        $region14: #{bifusion_forward.19} parent=11 // pred_check_branch
          %128 = sbr.rel (%p126) target = $region16
        $region15: #{bifusion_forward.19} parent=11 // pred_region
          _
        $region16: #{bifusion_forward.19} parent=11 // pred_fallthru
          _
      $region12: #{bifusion_forward.19} parent=5 // pred_fallthru
        _
      %p129 = scmp.lt.s32.totalorder %s12, 2
      // Predicated region
      $region17: #{bifusion_forward.19} parent=5 // pred_check
        %p130 = pneg %p129
      $region18: #{bifusion_forward.19} parent=5 // pred_check_branch
        %132 = sbr.rel (%p130) target = $region20
      $region19: #{bifusion_forward.19} parent=5 // pred_region
        // Predicated region
        $region21: #{bifusion_forward.19} parent=19 // pred_check
          %p133 = pneg %p32
        $region22: #{bifusion_forward.19} parent=19 // pred_check_branch
          %135 = sbr.rel (%p133) target = $region24
        $region23: #{bifusion_forward.19} parent=19 // pred_region
          %s136 = smul.u32 32, %s12
          %p137 = scmp.lt.s32.totalorder %s136, 63
          %s138 = scalar_select %p137, %s136, 63
          %s139 = smul.addr %s138, 2
          %s140 = smul.addr %s139, 8
          %s141 = scalar_lea.vmem %s0, %s140
          %s142 = smul.u32 32, %s12
        $region24: #{bifusion_forward.19} parent=19 // pred_fallthru
          _
        // Predicated region
        $region25: #{bifusion_forward.19} parent=19 // pred_check
          %p143 = pneg %p79
        $region26: #{bifusion_forward.19} parent=19 // pred_check_branch
          %145 = sbr.rel (%p143) target = $region28
        $region27: #{bifusion_forward.19} parent=19 // pred_region
          %s146 = smul.u32 32, %s12
          %p147 = scmp.lt.s32.totalorder %s146, 63
          %s148 = scalar_select %p147, %s146, 63
          %s149 = smul.addr %s148, 2
          %s150 = smul.addr %s149, 8
          %s151 = scalar_lea.vmem %s2, %s150
          %s152 = smul.u32 32, %s12
        $region28: #{bifusion_forward.19} parent=19 // pred_fallthru
          _
      $region20: #{bifusion_forward.19} parent=5 // pred_fallthru
        _
      %p153 = scmp.le.s32.totalorder 1, %s12
      %p154 = scmp.lt.s32.totalorder %s12, 3
      %p155 = pnand %p153, %p154
      %p156 = pneg %p155
      // Predicated region
      $region29: #{bifusion_forward.19} parent=5 // pred_check
        _
      $region30: #{bifusion_forward.19} parent=5 // pred_check_branch
        %158 = sbr.rel (%p155) target = $region32
      $region31: #{bifusion_forward.19} parent=5 // pred_region
        %s159 = ssub.s32 %s12, 1
        %s160 = smul.u32 32, %s17
        %p161 = scmp.lt.s32.totalorder %s160, 63
        %s162 = scalar_select %p161, %s160, 63
        %s163 = smul.addr %s162, 2
        %s164 = smul.addr %s163, 8
        %s165 = scalar_lea.vmem %s0, %s164
        %p166 = pneg %p38
        %p167 = pneg %p35
        %p168 = pneg %p59
        %p169 = pneg %p56
        %s170 = smul.u32 32, %s17
        %p171 = scmp.lt.s32.totalorder %s170, 63
        %s172 = scalar_select %p171, %s170, 63
        %s173 = smul.addr %s172, 2
        %s174 = smul.addr %s173, 8
        %s175 = scalar_lea.vmem %s2, %s174
        %p176 = pneg %p85
        %p177 = pneg %p82
        %p178 = pneg %p111
        %p179 = pneg %p108
        %s180 = sand.u32 %s98, 1
        %s181 = scalar_lea.sflag [#allocation3], %s180
        %s182 = sand.u32 %s98, 1
        %s183 = smul.addr %s182, 512
        %s184 = scalar_lea.vmem [#allocation2], %s183
        %s185 = smul.u32 32, %s17
        %p186 = scmp.lt.s32.totalorder %s185, 63
        %s187 = scalar_select %p186, %s185, 63
        %s188 = smul.addr %s187, 2
        %s189 = smul.addr %s188, 8
        %s190 = scalar_lea.vmem %s0, %s189
        %s191 = smul.u32 32, %s17
        %s192 = smul.u32 32, %s17
        %p193 = scmp.lt.s32.totalorder %s192, 63
        %s194 = scalar_select %p193, %s192, 63
        %s195 = smul.addr %s194, 2
        %s196 = smul.addr %s195, 8
        %s197 = scalar_lea.vmem %s2, %s196
        %s198 = smul.u32 32, %s17
        %s199 = smul.u32 32, %s17
        %v200 = vld [vmem:[%s190] sm:$0xff]
        %v201 = vld [vmem:[%s190 + $0x8] sm:$0xff]
        %v202 = vld [vmem:[%s190 + $0x10] sm:$0xff]
        %v203 = vld [vmem:[%s190 + $0x18] sm:$0xff]
        %v204 = vld [vmem:[%s190 + $0x20] sm:$0xff]
        %v205 = vld [vmem:[%s190 + $0x28] sm:$0xff]
        %v206 = vld [vmem:[%s190 + $0x30] sm:$0xff]
        %v207 = vld [vmem:[%s190 + $0x38] sm:$0xff]
        %v208 = vld [vmem:[%s190 + $0x40] sm:$0xff]
        %v209 = vld [vmem:[%s190 + $0x48] sm:$0xff]
        %v210 = vld [vmem:[%s190 + $0x50] sm:$0xff]
        %v211 = vld [vmem:[%s190 + $0x58] sm:$0xff]
        %v212 = vld [vmem:[%s190 + $0x60] sm:$0xff]
        %v213 = vld [vmem:[%s190 + $0x68] sm:$0xff]
        %v214 = vld [vmem:[%s190 + $0x70] sm:$0xff]
        %v215 = vld [vmem:[%s190 + $0x78] sm:$0xff]
        %v216 = vld [vmem:[%s190 + $0x80] sm:$0xff]
        %v217 = vld [vmem:[%s190 + $0x88] sm:$0xff]
        %v218 = vld [vmem:[%s190 + $0x90] sm:$0xff]
        %v219 = vld [vmem:[%s190 + $0x98] sm:$0xff]
        %v220 = vld [vmem:[%s190 + $0xa0] sm:$0xff]
        %v221 = vld [vmem:[%s190 + $0xa8] sm:$0xff]
        %v222 = vld [vmem:[%s190 + $0xb0] sm:$0xff]
        %v223 = vld [vmem:[%s190 + $0xb8] sm:$0xff]
        %v224 = vld [vmem:[%s190 + $0xc0] sm:$0xff]
        %v225 = vld [vmem:[%s190 + $0xc8] sm:$0xff]
        %v226 = vld [vmem:[%s190 + $0xd0] sm:$0xff]
        %v227 = vld [vmem:[%s190 + $0xd8] sm:$0xff]
        %v228 = vld [vmem:[%s190 + $0xe0] sm:$0xff]
        %v229 = vld [vmem:[%s190 + $0xe8] sm:$0xff]
        %v230 = vld [vmem:[%s190 + $0xf0] sm:$0xff]
        %v231 = vld [vmem:[%s190 + $0xf8] sm:$0xff]
        %v232 = vld [vmem:[%s190 + $0x100] sm:$0xff]
        %v233 = vld [vmem:[%s190 + $0x108] sm:$0xff]
        %v234 = vld [vmem:[%s190 + $0x110] sm:$0xff]
        %v235 = vld [vmem:[%s190 + $0x118] sm:$0xff]
        %v236 = vld [vmem:[%s190 + $0x120] sm:$0xff]
        %v237 = vld [vmem:[%s190 + $0x128] sm:$0xff]
        %v238 = vld [vmem:[%s190 + $0x130] sm:$0xff]
        %v239 = vld [vmem:[%s190 + $0x138] sm:$0xff]
        %v240 = vld [vmem:[%s190 + $0x140] sm:$0xff]
        %v241 = vld [vmem:[%s190 + $0x148] sm:$0xff]
        %v242 = vld [vmem:[%s190 + $0x150] sm:$0xff]
        %v243 = vld [vmem:[%s190 + $0x158] sm:$0xff]
        %v244 = vld [vmem:[%s190 + $0x160] sm:$0xff]
        %v245 = vld [vmem:[%s190 + $0x168] sm:$0xff]
        %v246 = vld [vmem:[%s190 + $0x170] sm:$0xff]
        %v247 = vld [vmem:[%s190 + $0x178] sm:$0xff]
        %v248 = vld [vmem:[%s190 + $0x180] sm:$0xff]
        %v249 = vld [vmem:[%s190 + $0x188] sm:$0xff]
        %v250 = vld [vmem:[%s190 + $0x190] sm:$0xff]
        %v251 = vld [vmem:[%s190 + $0x198] sm:$0xff]
        %v252 = vld [vmem:[%s190 + $0x1a0] sm:$0xff]
        %v253 = vld [vmem:[%s190 + $0x1a8] sm:$0xff]
        %v254 = vld [vmem:[%s190 + $0x1b0] sm:$0xff]
        %v255 = vld [vmem:[%s190 + $0x1b8] sm:$0xff]
        %v256 = vld [vmem:[%s190 + $0x1c0] sm:$0xff]
        %v257 = vld [vmem:[%s190 + $0x1c8] sm:$0xff]
        %v258 = vld [vmem:[%s190 + $0x1d0] sm:$0xff]
        %v259 = vld [vmem:[%s190 + $0x1d8] sm:$0xff]
        %v260 = vld [vmem:[%s190 + $0x1e0] sm:$0xff]
        %v261 = vld [vmem:[%s190 + $0x1e8] sm:$0xff]
        %v262 = vld [vmem:[%s190 + $0x1f0] sm:$0xff]
        %v263 = vld [vmem:[%s190 + $0x1f8] sm:$0xff]
        %v264 = vld [vmem:[%s1] ss:$2 sm:$0x3]
        %v266 = vlaneseq
        %v267 = vshrl.u32 %v266, 7
        %v268 = vsub.s32 0, %v267
        %v269 = vrot.slane %v264, %v268
        %v270 = vlaneseq
        %v271 = vshrl.u32 %v270, 7
        %v272 = vsub.s32 1, %v271
        %v273 = vrot.slane %v264, %v272
        %v276 = vmul.f32 %v200, %v269
        %v277 = vmul.f32 %v201, %v273
        %v278 = vmul.f32 %v202, %v269
        %v279 = vmul.f32 %v203, %v273
        %v280 = vmul.f32 %v204, %v269
        %v281 = vmul.f32 %v205, %v273
        %v282 = vmul.f32 %v206, %v269
        %v283 = vmul.f32 %v207, %v273
        %v284 = vmul.f32 %v208, %v269
        %v285 = vmul.f32 %v209, %v273
        %v286 = vmul.f32 %v210, %v269
        %v287 = vmul.f32 %v211, %v273
        %v288 = vmul.f32 %v212, %v269
        %v289 = vmul.f32 %v213, %v273
        %v290 = vmul.f32 %v214, %v269
        %v291 = vmul.f32 %v215, %v273
        %v292 = vmul.f32 %v216, %v269
        %v293 = vmul.f32 %v217, %v273
        %v294 = vmul.f32 %v218, %v269
        %v295 = vmul.f32 %v219, %v273
        %v296 = vmul.f32 %v220, %v269
        %v297 = vmul.f32 %v221, %v273
        %v298 = vmul.f32 %v222, %v269
        %v299 = vmul.f32 %v223, %v273
        %v300 = vmul.f32 %v224, %v269
        %v301 = vmul.f32 %v225, %v273
        %v302 = vmul.f32 %v226, %v269
        %v303 = vmul.f32 %v227, %v273
        %v304 = vmul.f32 %v228, %v269
        %v305 = vmul.f32 %v229, %v273
        %v306 = vmul.f32 %v230, %v269
        %v307 = vmul.f32 %v231, %v273
        %v308 = vmul.f32 %v232, %v269
        %v309 = vmul.f32 %v233, %v273
        %v310 = vmul.f32 %v234, %v269
        %v311 = vmul.f32 %v235, %v273
        %v312 = vmul.f32 %v236, %v269
        %v313 = vmul.f32 %v237, %v273
        %v314 = vmul.f32 %v238, %v269
        %v315 = vmul.f32 %v239, %v273
        %v316 = vmul.f32 %v240, %v269
        %v317 = vmul.f32 %v241, %v273
        %v318 = vmul.f32 %v242, %v269
        %v319 = vmul.f32 %v243, %v273
        %v320 = vmul.f32 %v244, %v269
        %v321 = vmul.f32 %v245, %v273
        %v322 = vmul.f32 %v246, %v269
        %v323 = vmul.f32 %v247, %v273
        %v324 = vmul.f32 %v248, %v269
        %v325 = vmul.f32 %v249, %v273
        %v326 = vmul.f32 %v250, %v269
        %v327 = vmul.f32 %v251, %v273
        %v328 = vmul.f32 %v252, %v269
        %v329 = vmul.f32 %v253, %v273
        %v330 = vmul.f32 %v254, %v269
        %v331 = vmul.f32 %v255, %v273
        %v332 = vmul.f32 %v256, %v269
        %v333 = vmul.f32 %v257, %v273
        %v334 = vmul.f32 %v258, %v269
        %v335 = vmul.f32 %v259, %v273
        %v336 = vmul.f32 %v260, %v269
        %v337 = vmul.f32 %v261, %v273
        %v338 = vmul.f32 %v262, %v269
        %v339 = vmul.f32 %v263, %v273
        %s340 = scalar_lea.vmem %s1, 1
        %v341 = vld [vmem:[%s340] ss:$2 sm:$0x3]
        %v343 = vlaneseq
        %v344 = vshrl.u32 %v343, 7
        %v345 = vsub.s32 0, %v344
        %v346 = vrot.slane %v341, %v345
        %v347 = vlaneseq
        %v348 = vshrl.u32 %v347, 7
        %v349 = vsub.s32 1, %v348
        %v350 = vrot.slane %v341, %v349
        %v353 = vadd.f32 %v276, %v346
        %v354 = vadd.f32 %v277, %v350
        %v355 = vadd.f32 %v278, %v346
        %v356 = vadd.f32 %v279, %v350
        %v357 = vadd.f32 %v280, %v346
        %v358 = vadd.f32 %v281, %v350
        %v359 = vadd.f32 %v282, %v346
        %v360 = vadd.f32 %v283, %v350
        %v361 = vadd.f32 %v284, %v346
        %v362 = vadd.f32 %v285, %v350
        %v363 = vadd.f32 %v286, %v346
        %v364 = vadd.f32 %v287, %v350
        %v365 = vadd.f32 %v288, %v346
        %v366 = vadd.f32 %v289, %v350
        %v367 = vadd.f32 %v290, %v346
        %v368 = vadd.f32 %v291, %v350
        %v369 = vadd.f32 %v292, %v346
        %v370 = vadd.f32 %v293, %v350
        %v371 = vadd.f32 %v294, %v346
        %v372 = vadd.f32 %v295, %v350
        %v373 = vadd.f32 %v296, %v346
        %v374 = vadd.f32 %v297, %v350
        %v375 = vadd.f32 %v298, %v346
        %v376 = vadd.f32 %v299, %v350
        %v377 = vadd.f32 %v300, %v346
        %v378 = vadd.f32 %v301, %v350
        %v379 = vadd.f32 %v302, %v346
        %v380 = vadd.f32 %v303, %v350
        %v381 = vadd.f32 %v304, %v346
        %v382 = vadd.f32 %v305, %v350
        %v383 = vadd.f32 %v306, %v346
        %v384 = vadd.f32 %v307, %v350
        %v385 = vadd.f32 %v308, %v346
        %v386 = vadd.f32 %v309, %v350
        %v387 = vadd.f32 %v310, %v346
        %v388 = vadd.f32 %v311, %v350
        %v389 = vadd.f32 %v312, %v346
        %v390 = vadd.f32 %v313, %v350
        %v391 = vadd.f32 %v314, %v346
        %v392 = vadd.f32 %v315, %v350
        %v393 = vadd.f32 %v316, %v346
        %v394 = vadd.f32 %v317, %v350
        %v395 = vadd.f32 %v318, %v346
        %v396 = vadd.f32 %v319, %v350
        %v397 = vadd.f32 %v320, %v346
        %v398 = vadd.f32 %v321, %v350
        %v399 = vadd.f32 %v322, %v346
        %v400 = vadd.f32 %v323, %v350
        %v401 = vadd.f32 %v324, %v346
        %v402 = vadd.f32 %v325, %v350
        %v403 = vadd.f32 %v326, %v346
        %v404 = vadd.f32 %v327, %v350
        %v405 = vadd.f32 %v328, %v346
        %v406 = vadd.f32 %v329, %v350
        %v407 = vadd.f32 %v330, %v346
        %v408 = vadd.f32 %v331, %v350
        %v409 = vadd.f32 %v332, %v346
        %v410 = vadd.f32 %v333, %v350
        %v411 = vadd.f32 %v334, %v346
        %v412 = vadd.f32 %v335, %v350
        %v413 = vadd.f32 %v336, %v346
        %v414 = vadd.f32 %v337, %v350
        %v415 = vadd.f32 %v338, %v346
        %v416 = vadd.f32 %v339, %v350
        %v417 = vld [vmem:[%s197] sm:$0xff]
        %v418 = vld [vmem:[%s197 + $0x8] sm:$0xff]
        %v419 = vld [vmem:[%s197 + $0x10] sm:$0xff]
        %v420 = vld [vmem:[%s197 + $0x18] sm:$0xff]
        %v421 = vld [vmem:[%s197 + $0x20] sm:$0xff]
        %v422 = vld [vmem:[%s197 + $0x28] sm:$0xff]
        %v423 = vld [vmem:[%s197 + $0x30] sm:$0xff]
        %v424 = vld [vmem:[%s197 + $0x38] sm:$0xff]
        %v425 = vld [vmem:[%s197 + $0x40] sm:$0xff]
        %v426 = vld [vmem:[%s197 + $0x48] sm:$0xff]
        %v427 = vld [vmem:[%s197 + $0x50] sm:$0xff]
        %v428 = vld [vmem:[%s197 + $0x58] sm:$0xff]
        %v429 = vld [vmem:[%s197 + $0x60] sm:$0xff]
        %v430 = vld [vmem:[%s197 + $0x68] sm:$0xff]
        %v431 = vld [vmem:[%s197 + $0x70] sm:$0xff]
        %v432 = vld [vmem:[%s197 + $0x78] sm:$0xff]
        %v433 = vld [vmem:[%s197 + $0x80] sm:$0xff]
        %v434 = vld [vmem:[%s197 + $0x88] sm:$0xff]
        %v435 = vld [vmem:[%s197 + $0x90] sm:$0xff]
        %v436 = vld [vmem:[%s197 + $0x98] sm:$0xff]
        %v437 = vld [vmem:[%s197 + $0xa0] sm:$0xff]
        %v438 = vld [vmem:[%s197 + $0xa8] sm:$0xff]
        %v439 = vld [vmem:[%s197 + $0xb0] sm:$0xff]
        %v440 = vld [vmem:[%s197 + $0xb8] sm:$0xff]
        %v441 = vld [vmem:[%s197 + $0xc0] sm:$0xff]
        %v442 = vld [vmem:[%s197 + $0xc8] sm:$0xff]
        %v443 = vld [vmem:[%s197 + $0xd0] sm:$0xff]
        %v444 = vld [vmem:[%s197 + $0xd8] sm:$0xff]
        %v445 = vld [vmem:[%s197 + $0xe0] sm:$0xff]
        %v446 = vld [vmem:[%s197 + $0xe8] sm:$0xff]
        %v447 = vld [vmem:[%s197 + $0xf0] sm:$0xff]
        %v448 = vld [vmem:[%s197 + $0xf8] sm:$0xff]
        %v449 = vld [vmem:[%s197 + $0x100] sm:$0xff]
        %v450 = vld [vmem:[%s197 + $0x108] sm:$0xff]
        %v451 = vld [vmem:[%s197 + $0x110] sm:$0xff]
        %v452 = vld [vmem:[%s197 + $0x118] sm:$0xff]
        %v453 = vld [vmem:[%s197 + $0x120] sm:$0xff]
        %v454 = vld [vmem:[%s197 + $0x128] sm:$0xff]
        %v455 = vld [vmem:[%s197 + $0x130] sm:$0xff]
        %v456 = vld [vmem:[%s197 + $0x138] sm:$0xff]
        %v457 = vld [vmem:[%s197 + $0x140] sm:$0xff]
        %v458 = vld [vmem:[%s197 + $0x148] sm:$0xff]
        %v459 = vld [vmem:[%s197 + $0x150] sm:$0xff]
        %v460 = vld [vmem:[%s197 + $0x158] sm:$0xff]
        %v461 = vld [vmem:[%s197 + $0x160] sm:$0xff]
        %v462 = vld [vmem:[%s197 + $0x168] sm:$0xff]
        %v463 = vld [vmem:[%s197 + $0x170] sm:$0xff]
        %v464 = vld [vmem:[%s197 + $0x178] sm:$0xff]
        %v465 = vld [vmem:[%s197 + $0x180] sm:$0xff]
        %v466 = vld [vmem:[%s197 + $0x188] sm:$0xff]
        %v467 = vld [vmem:[%s197 + $0x190] sm:$0xff]
        %v468 = vld [vmem:[%s197 + $0x198] sm:$0xff]
        %v469 = vld [vmem:[%s197 + $0x1a0] sm:$0xff]
        %v470 = vld [vmem:[%s197 + $0x1a8] sm:$0xff]
        %v471 = vld [vmem:[%s197 + $0x1b0] sm:$0xff]
        %v472 = vld [vmem:[%s197 + $0x1b8] sm:$0xff]
        %v473 = vld [vmem:[%s197 + $0x1c0] sm:$0xff]
        %v474 = vld [vmem:[%s197 + $0x1c8] sm:$0xff]
        %v475 = vld [vmem:[%s197 + $0x1d0] sm:$0xff]
        %v476 = vld [vmem:[%s197 + $0x1d8] sm:$0xff]
        %v477 = vld [vmem:[%s197 + $0x1e0] sm:$0xff]
        %v478 = vld [vmem:[%s197 + $0x1e8] sm:$0xff]
        %v479 = vld [vmem:[%s197 + $0x1f0] sm:$0xff]
        %v480 = vld [vmem:[%s197 + $0x1f8] sm:$0xff]
        %v481 = vadd.f32 %v353, %v417
        %v482 = vadd.f32 %v354, %v418
        %v483 = vadd.f32 %v355, %v419
        %v484 = vadd.f32 %v356, %v420
        %v485 = vadd.f32 %v357, %v421
        %v486 = vadd.f32 %v358, %v422
        %v487 = vadd.f32 %v359, %v423
        %v488 = vadd.f32 %v360, %v424
        %v489 = vadd.f32 %v361, %v425
        %v490 = vadd.f32 %v362, %v426
        %v491 = vadd.f32 %v363, %v427
        %v492 = vadd.f32 %v364, %v428
        %v493 = vadd.f32 %v365, %v429
        %v494 = vadd.f32 %v366, %v430
        %v495 = vadd.f32 %v367, %v431
        %v496 = vadd.f32 %v368, %v432
        %v497 = vadd.f32 %v369, %v433
        %v498 = vadd.f32 %v370, %v434
        %v499 = vadd.f32 %v371, %v435
        %v500 = vadd.f32 %v372, %v436
        %v501 = vadd.f32 %v373, %v437
        %v502 = vadd.f32 %v374, %v438
        %v503 = vadd.f32 %v375, %v439
        %v504 = vadd.f32 %v376, %v440
        %v505 = vadd.f32 %v377, %v441
        %v506 = vadd.f32 %v378, %v442
        %v507 = vadd.f32 %v379, %v443
        %v508 = vadd.f32 %v380, %v444
        %v509 = vadd.f32 %v381, %v445
        %v510 = vadd.f32 %v382, %v446
        %v511 = vadd.f32 %v383, %v447
        %v512 = vadd.f32 %v384, %v448
        %v513 = vadd.f32 %v385, %v449
        %v514 = vadd.f32 %v386, %v450
        %v515 = vadd.f32 %v387, %v451
        %v516 = vadd.f32 %v388, %v452
        %v517 = vadd.f32 %v389, %v453
        %v518 = vadd.f32 %v390, %v454
        %v519 = vadd.f32 %v391, %v455
        %v520 = vadd.f32 %v392, %v456
        %v521 = vadd.f32 %v393, %v457
        %v522 = vadd.f32 %v394, %v458
        %v523 = vadd.f32 %v395, %v459
        %v524 = vadd.f32 %v396, %v460
        %v525 = vadd.f32 %v397, %v461
        %v526 = vadd.f32 %v398, %v462
        %v527 = vadd.f32 %v399, %v463
        %v528 = vadd.f32 %v400, %v464
        %v529 = vadd.f32 %v401, %v465
        %v530 = vadd.f32 %v402, %v466
        %v531 = vadd.f32 %v403, %v467
        %v532 = vadd.f32 %v404, %v468
        %v533 = vadd.f32 %v405, %v469
        %v534 = vadd.f32 %v406, %v470
        %v535 = vadd.f32 %v407, %v471
        %v536 = vadd.f32 %v408, %v472
        %v537 = vadd.f32 %v409, %v473
        %v538 = vadd.f32 %v410, %v474
        %v539 = vadd.f32 %v411, %v475
        %v540 = vadd.f32 %v412, %v476
        %v541 = vadd.f32 %v413, %v477
        %v542 = vadd.f32 %v414, %v478
        %v543 = vadd.f32 %v415, %v479
        %v544 = vadd.f32 %v416, %v480
        %545 = vst [vmem:[%s184] sm:$0xff] %v481
        %vm546 = vcmask 261120
        %547 = vst.msk [vmem:[%s184 + $0x8] sm:$0xff] %vm546, %v482
        %548 = vst [vmem:[%s184 + $0x10] sm:$0xff] %v483
        %549 = vst.msk [vmem:[%s184 + $0x18] sm:$0xff] %vm546, %v484
        %550 = vst [vmem:[%s184 + $0x20] sm:$0xff] %v485
        %551 = vst.msk [vmem:[%s184 + $0x28] sm:$0xff] %vm546, %v486
        %552 = vst [vmem:[%s184 + $0x30] sm:$0xff] %v487
        %553 = vst.msk [vmem:[%s184 + $0x38] sm:$0xff] %vm546, %v488
        %554 = vst [vmem:[%s184 + $0x40] sm:$0xff] %v489
        %555 = vst.msk [vmem:[%s184 + $0x48] sm:$0xff] %vm546, %v490
        %556 = vst [vmem:[%s184 + $0x50] sm:$0xff] %v491
        %557 = vst.msk [vmem:[%s184 + $0x58] sm:$0xff] %vm546, %v492
        %558 = vst [vmem:[%s184 + $0x60] sm:$0xff] %v493
        %559 = vst.msk [vmem:[%s184 + $0x68] sm:$0xff] %vm546, %v494
        %560 = vst [vmem:[%s184 + $0x70] sm:$0xff] %v495
        %561 = vst.msk [vmem:[%s184 + $0x78] sm:$0xff] %vm546, %v496
        %562 = vst [vmem:[%s184 + $0x80] sm:$0xff] %v497
        %563 = vst.msk [vmem:[%s184 + $0x88] sm:$0xff] %vm546, %v498
        %564 = vst [vmem:[%s184 + $0x90] sm:$0xff] %v499
        %565 = vst.msk [vmem:[%s184 + $0x98] sm:$0xff] %vm546, %v500
        %566 = vst [vmem:[%s184 + $0xa0] sm:$0xff] %v501
        %567 = vst.msk [vmem:[%s184 + $0xa8] sm:$0xff] %vm546, %v502
        %568 = vst [vmem:[%s184 + $0xb0] sm:$0xff] %v503
        %569 = vst.msk [vmem:[%s184 + $0xb8] sm:$0xff] %vm546, %v504
        %570 = vst [vmem:[%s184 + $0xc0] sm:$0xff] %v505
        %571 = vst.msk [vmem:[%s184 + $0xc8] sm:$0xff] %vm546, %v506
        %572 = vst [vmem:[%s184 + $0xd0] sm:$0xff] %v507
        %573 = vst.msk [vmem:[%s184 + $0xd8] sm:$0xff] %vm546, %v508
        %574 = vst [vmem:[%s184 + $0xe0] sm:$0xff] %v509
        %575 = vst.msk [vmem:[%s184 + $0xe8] sm:$0xff] %vm546, %v510
        %576 = vst [vmem:[%s184 + $0xf0] sm:$0xff] %v511
        %577 = vst.msk [vmem:[%s184 + $0xf8] sm:$0xff] %vm546, %v512
        %578 = vst [vmem:[%s184 + $0x100] sm:$0xff] %v513
        %579 = vst.msk [vmem:[%s184 + $0x108] sm:$0xff] %vm546, %v514
        %580 = vst [vmem:[%s184 + $0x110] sm:$0xff] %v515
        %581 = vst.msk [vmem:[%s184 + $0x118] sm:$0xff] %vm546, %v516
        %582 = vst [vmem:[%s184 + $0x120] sm:$0xff] %v517
        %583 = vst.msk [vmem:[%s184 + $0x128] sm:$0xff] %vm546, %v518
        %584 = vst [vmem:[%s184 + $0x130] sm:$0xff] %v519
        %585 = vst.msk [vmem:[%s184 + $0x138] sm:$0xff] %vm546, %v520
        %586 = vst [vmem:[%s184 + $0x140] sm:$0xff] %v521
        %587 = vst.msk [vmem:[%s184 + $0x148] sm:$0xff] %vm546, %v522
        %588 = vst [vmem:[%s184 + $0x150] sm:$0xff] %v523
        %589 = vst.msk [vmem:[%s184 + $0x158] sm:$0xff] %vm546, %v524
        %590 = vst [vmem:[%s184 + $0x160] sm:$0xff] %v525
        %591 = vst.msk [vmem:[%s184 + $0x168] sm:$0xff] %vm546, %v526
        %592 = vst [vmem:[%s184 + $0x170] sm:$0xff] %v527
        %593 = vst.msk [vmem:[%s184 + $0x178] sm:$0xff] %vm546, %v528
        %594 = vst [vmem:[%s184 + $0x180] sm:$0xff] %v529
        %595 = vst.msk [vmem:[%s184 + $0x188] sm:$0xff] %vm546, %v530
        %596 = vst [vmem:[%s184 + $0x190] sm:$0xff] %v531
        %597 = vst.msk [vmem:[%s184 + $0x198] sm:$0xff] %vm546, %v532
        %598 = vst [vmem:[%s184 + $0x1a0] sm:$0xff] %v533
        %599 = vst.msk [vmem:[%s184 + $0x1a8] sm:$0xff] %vm546, %v534
        %600 = vst [vmem:[%s184 + $0x1b0] sm:$0xff] %v535
        %601 = vst.msk [vmem:[%s184 + $0x1b8] sm:$0xff] %vm546, %v536
        %602 = vst [vmem:[%s184 + $0x1c0] sm:$0xff] %v537
        %603 = vst.msk [vmem:[%s184 + $0x1c8] sm:$0xff] %vm546, %v538
        %604 = vst [vmem:[%s184 + $0x1d0] sm:$0xff] %v539
        %605 = vst.msk [vmem:[%s184 + $0x1d8] sm:$0xff] %vm546, %v540
        %606 = vst [vmem:[%s184 + $0x1e0] sm:$0xff] %v541
        %607 = vst.msk [vmem:[%s184 + $0x1e8] sm:$0xff] %vm546, %v542
        %608 = vst [vmem:[%s184 + $0x1f0] sm:$0xff] %v543
        %609 = vst.msk [vmem:[%s184 + $0x1f8] sm:$0xff] %vm546, %v544
        %s610 = sand.u32 %s98, 1
        %s611 = scalar_lea.sflag [#allocation3], %s610
        %s612 = sand.u32 %s98, 1
        %s613 = smul.addr %s612, 512
        %s614 = scalar_lea.vmem [#allocation2], %s613
        // Predicated region
        $region33: #{bifusion_forward.19} parent=31 // pred_check
          %p615 = pneg %p108
        $region34: #{bifusion_forward.19} parent=31 // pred_check_branch
          %617 = sbr.rel (%p615) target = $region36
        $region35: #{bifusion_forward.19} parent=31 // pred_region
          %s618 = smul.u32 32, %s17
          %s620 = ssub.s32 8192, 8192
          %621 = vsyncadd %s611, %s620
          %s622 = smul.addr %s618, 2
          %s623 = smul.addr %s622, 128
          %s624 = scalar_lea.hbm %s3, %s623
          %s625 = sshll.u32 %s614, 4
          %s626 = int_to_ptr.vmem [resolvable:$true] %s625
          %631 = dma.vmem_to_hbm [thread:$0]  %s626, 8192, %s624, %s611, 256, 256, 16
        $region36: #{bifusion_forward.19} parent=31 // pred_fallthru
          _
      $region32: #{bifusion_forward.19} parent=5 // pred_fallthru
        _
      %p632 = scmp.le.s32.totalorder 2, %s12
      // Predicated region
      $region37: #{bifusion_forward.19} parent=5 // pred_check
        %p633 = pneg %p632
      $region38: #{bifusion_forward.19} parent=5 // pred_check_branch
        %635 = sbr.rel (%p633) target = $region40
      $region39: #{bifusion_forward.19} parent=5 // pred_region
        %s636 = ssub.s32 %s12, 2
        // Predicated region
        $region41: #{bifusion_forward.19} parent=39 // pred_check
          %p637 = pneg %p114
        $region42: #{bifusion_forward.19} parent=39 // pred_check_branch
          %639 = sbr.rel (%p637) target = $region44
        $region43: #{bifusion_forward.19} parent=39 // pred_region
          %s640 = sand.u32 %s99, 1
          %s641 = scalar_lea.sflag [#allocation3], %s640
          %s642 = sand.u32 %s99, 1
          %s643 = smul.addr %s642, 512
          %s644 = scalar_lea.vmem [#allocation2], %s643
          %645 = dma.done %s641, 8192
        $region44: #{bifusion_forward.19} parent=39 // pred_fallthru
          _
      $region40: #{bifusion_forward.19} parent=5 // pred_fallthru
        _
    $region6: #{bifusion_forward.19} parent=1 // loop_footer
      %s16 = sadd.s32 1, %s12
    $region7: #{bifusion_forward.19} parent=1 // loop_footer_branch
      %11 = sbr.rel target = $region3
    $region8: #{bifusion_forward.19} parent=1 // loop_exit
      _
    %646 = vsyncpa [#allocation3], 1
    %s647 = scalar_lea.sflag [#allocation3], 1
    %648 = vsyncpa %s647, 1

</llo_original>
